<compile_context>
chip_gen: v5e
topology: v5e:2x2
jax: 0.10.0
libtpu: 0.0.40
codegen_flags: <defaults>
</compile_context>

<pallas_src>
import jax
import jax.numpy as jnp
from jax import lax
from jax.experimental import pallas as pl
from jax.experimental.pallas import tpu as pltpu

LANE = 128  # TPU lane width; in-VMEM channel dim is padded to this.


# ----------------------------------------------------------------------------
# Fused kernel: deconv -> concat -> (conv3x3 + BN + ReLU) x 2
# ----------------------------------------------------------------------------
def upsample_double_conv_kernel(x1_ref, x2_ref, wt_ref, w1_ref, w2_ref,
                                prm_ref, out_ref, x1p_ref, pad_ref):
    # x1_ref : (N, H1, W1, Cin)   bf16, real channel dim
    # x2_ref : (N, H,  W,  Cout)  bf16, real channel dim
    # wt_ref : (C, 4*C)           bf16 deconv taps, column block t = dy*2 + dx
    # w1_ref : (9*C, C)           bf16 conv1 weights, row = k*C + cin, k = kh*3+kw
    # w2_ref : (9*C, C)           bf16 conv2 weights
    # prm_ref: (8, C)             f32 rows: [deconv bias, g1, be1, g2, be2, 0, 0, 0]
    # out_ref: (N, H, W, Cout)    f32, real channel dim
    # x1p_ref: (M0, C)            bf16 scratch (lane-padded x1)
    # pad_ref: (N, H+2, W+2, C)   f32 scratch (zero border for padding=1)
    N, H1, W1, Cin = x1_ref.shape
    _, H, W, Cout = x2_ref.shape
    C = pad_ref.shape[-1]
    M0 = N * H1 * W1
    M = N * H * W
    eps = 1e-5

    bt = prm_ref[0:1, :]
    g1, be1 = prm_ref[1:2, :], prm_ref[2:3, :]
    g2, be2 = prm_ref[3:4, :], prm_ref[4:5, :]

    # ---- ConvTranspose2d(kernel=2, stride=2): one bf16 MXU matmul ----------
    # Lane-pad x1 inside VMEM (HBM copy stays at the real channel width).
    x1p_ref[...] = jnp.zeros((M0, C), jnp.bfloat16)
    x1p_ref[:, :Cin] = x1_ref[...].reshape(M0, Cin)
    u_all = jnp.dot(x1p_ref[...], wt_ref[...],
                    preferred_element_type=jnp.float32)          # (M0, 4*C) f32

    # Interleave the 4 (dy, dx) taps: out[n, 2i+dy, 2j+dx, :] = tap[n, i, j, :].
    rows = []
    for dy in range(2):
        cols = []
        for dx in range(2):
            t = 2 * dy + dx
            u = u_all[:, t * C:(t + 1) * C] + bt
            cols.append(u.reshape(N, H1, W1, C))
        rows.append(jnp.stack(cols, axis=3).reshape(N, H1, W, C))
    up = jnp.stack(rows, axis=2).reshape(N, H, W, C)             # f32, 0 beyond Cout

    # ---- zero only the 1-pixel border of the padded-plane scratch ----------
    pad_ref[:, 0:1, :, :] = jnp.zeros((N, 1, W + 2, C), jnp.float32)
    pad_ref[:, H + 1:H + 2, :, :] = jnp.zeros((N, 1, W + 2, C), jnp.float32)
    pad_ref[:, :, 0:1, :] = jnp.zeros((N, H + 2, 1, C), jnp.float32)
    pad_ref[:, :, W + 1:W + 2, :] = jnp.zeros((N, H + 2, 1, C), jnp.float32)

    # ---- channel concat: up(x1) at lanes [0,Cout), x2 at [Cout,2*Cout) -----
    pad_ref[:, 1:H + 1, 1:W + 1, :] = up
    pad_ref[:, 1:H + 1, 1:W + 1, Cout:2 * Cout] = x2_ref[...].astype(jnp.float32)

    def conv_bn_relu(w_ref, g, b):
        # Conv3x3 (padding=1): 9 accumulated bf16 MXU matmuls, no im2col buffer.
        y = None
        for k in range(9):
            kh, kw = k // 3, k % 3
            tap = pad_ref[:, kh:kh + H, kw:kw + W, :].reshape(M, C)
            d = jnp.dot(tap.astype(jnp.bfloat16), w_ref[k * C:(k + 1) * C, :],
                        preferred_element_type=jnp.float32)
            y = d if y is None else y + d
        # BatchNorm (training-mode batch stats), two-pass variance, fused with
        # scale + shift + ReLU.  Conv bias omitted (cancelled by mean subtraction).
        mean = jnp.mean(y, axis=0, keepdims=True)
        yc = y - mean
        var = jnp.mean(yc * yc, axis=0, keepdims=True)
        s = g * lax.rsqrt(var + eps)
        return jnp.maximum(yc * s + b, 0.0)                      # (M, C) f32

    h1 = conv_bn_relu(w1_ref, g1, be1)
    pad_ref[:, 1:H + 1, 1:W + 1, :] = h1.reshape(N, H, W, C)
    h2 = conv_bn_relu(w2_ref, g2, be2)

    out_ref[...] = h2[:, :Cout].reshape(N, H, W, Cout)


# ----------------------------------------------------------------------------
# Parameter packing helpers (plain JAX, tiny, run once under jit)
# ----------------------------------------------------------------------------
def _conv_w_to_mat(w_ochw, cin_p, cout_p):
    """torch Conv2d weight (Cout, Cin, 3, 3) -> bf16 im2col matrix (9*cin_p, cout_p)."""
    cout, cin = w_ochw.shape[0], w_ochw.shape[1]
    w = jnp.transpose(w_ochw, (2, 3, 1, 0))                        # (3, 3, Cin, Cout)
    w = jnp.pad(w, ((0, 0), (0, 0), (0, cin_p - cin), (0, cout_p - cout)))
    return w.reshape(9 * cin_p, cout_p).astype(jnp.bfloat16)


def _deconv_w_to_mat(w_iohw, cin_p, cout_p):
    """torch ConvTranspose2d weight (Cin, Cout, 2, 2) -> bf16 (cin_p, 4*cout_p),
    column block t = dy*2 + dx."""
    cin, cout = w_iohw.shape[0], w_iohw.shape[1]
    w = jnp.transpose(w_iohw, (0, 2, 3, 1))                        # (Cin, dy, dx, Cout)
    w = jnp.pad(w, ((0, cin_p - cin), (0, 0), (0, 0), (0, cout_p - cout)))
    return w.reshape(cin_p, 4 * cout_p).astype(jnp.bfloat16)


# ----------------------------------------------------------------------------
# upSample forward
# ----------------------------------------------------------------------------
@jax.jit
def upsample_forward(x1_nchw, x2_nchw, params):
    (wt, bt, w1, b1, g1, be1, w2, b2, g2, be2) = params
    del b1, b2  # conv biases are exactly cancelled by training-mode BatchNorm
    N, Cin, H1, W1 = x1_nchw.shape
    Cout = wt.shape[1]
    H, W = 2 * H1, 2 * W1
    C = LANE
    assert Cin <= C and 2 * Cout <= C, "channel dims must fit one 128-lane tile"
    assert x2_nchw.shape == (N, Cout, H, W)

    # NHWC bf16 activations with their REAL channel dims (no HBM lane padding).
    x1b = jnp.transpose(x1_nchw, (0, 2, 3, 1)).astype(jnp.bfloat16)  # (N, H1, W1, Cin)
    x2b = jnp.transpose(x2_nchw, (0, 2, 3, 1)).astype(jnp.bfloat16)  # (N, H,  W,  Cout)

    wt_all = _deconv_w_to_mat(wt, C, C)                              # (C, 4*C) bf16
    w1m = _conv_w_to_mat(w1, C, C)                                   # (9*C, C) bf16
    w2m = _conv_w_to_mat(w2, C, C)                                   # (9*C, C) bf16

    prm = jnp.zeros((8, C), jnp.float32)
    for r, v in enumerate((bt, g1, be1, g2, be2)):
        prm = prm.at[r, :v.shape[0]].set(v.astype(jnp.float32))

    # VMEM budget derived from the actual tile sizes (double-buffered I/O,
    # scratch, plus headroom for the f32 intermediates), capped for v7x.
    io_bytes = (2 * (x1b.size + x2b.size) * 2
                + (wt_all.size + w1m.size + w2m.size) * 2
                + prm.size * 4 + 2 * N * H * W * Cout * 4)
    scratch_bytes = N * H1 * W1 * C * 2 + N * (H + 2) * (W + 2) * C * 4
    live_bytes = 16 * N * H * W * C * 4
    vmem_limit = int(min(64 * 2 ** 20,
                         max(32 * 2 ** 20,
                             2 * (io_bytes + scratch_bytes + live_bytes))))

    out = pl.pallas_call(
        upsample_double_conv_kernel,
        out_shape=jax.ShapeDtypeStruct((N, H, W, Cout), jnp.float32),
        grid=(1,),
        in_specs=[
            pl.BlockSpec((N, H1, W1, Cin), lambda i: (0, 0, 0, 0)),
            pl.BlockSpec((N, H, W, Cout), lambda i: (0, 0, 0, 0)),
            pl.BlockSpec((C, 4 * C), lambda i: (0, 0)),
            pl.BlockSpec((9 * C, C), lambda i: (0, 0)),
            pl.BlockSpec((9 * C, C), lambda i: (0, 0)),
            pl.BlockSpec((8, C), lambda i: (0, 0)),
        ],
        out_specs=pl.BlockSpec((N, H, W, Cout), lambda i: (0, 0, 0, 0)),
        scratch_shapes=[
            pltpu.VMEM((N * H1 * W1, C), jnp.bfloat16),      # lane-padded x1
            pltpu.VMEM((N, H + 2, W + 2, C), jnp.float32),   # zero-border plane
        ],
        compiler_params=pltpu.CompilerParams(
            dimension_semantics=("arbitrary",),
            vmem_limit_bytes=vmem_limit),
    )(x1b, x2b, wt_all, w1m, w2m, prm)

    return jnp.transpose(out, (0, 3, 1, 2))                 # NHWC -> NCHW


# ----------------------------------------------------------------------------
# Pure-JAX f32 reference (conv biases included, to verify BN cancellation)
# ----------------------------------------------------------------------------
def _ref_block(x_nhwc, w_ochw, b, gamma, beta):
    w_hwio = jnp.transpose(w_ochw, (2, 3, 1, 0))
    y = lax.conv_general_dilated(
        x_nhwc, w_hwio, window_strides=(1, 1), padding="SAME",
        dimension_numbers=("NHWC", "HWIO", "NHWC"))
    y = y + b.reshape(1, 1, 1, -1)
    mean = jnp.mean(y, axis=(0, 1, 2), keepdims=True)
    var = jnp.mean((y - mean) ** 2, axis=(0, 1, 2), keepdims=True)
    yn = (y - mean) * lax.rsqrt(var + 1e-5)
    yn = yn * gamma.reshape(1, 1, 1, -1) + beta.reshape(1, 1, 1, -1)
    return jnp.maximum(yn, 0.0)


def ref_upsample(x1_nchw, x2_nchw, params):
    (wt, bt, w1, b1, g1, be1, w2, b2, g2, be2) = params
    N, _, H1, W1 = x1_nchw.shape
    Cout = wt.shape[1]
    x1n = jnp.transpose(x1_nchw, (0, 2, 3, 1))
    # ConvTranspose2d(k=2, s=2): u[n,i,dy,j,dx,o] = sum_c x1[n,i,j,c]*wt[c,o,dy,dx]
    u = jnp.einsum("nijc,coyx->niyjxo", x1n, wt)
    up = u.reshape(N, 2 * H1, 2 * W1, Cout) + bt.reshape(1, 1, 1, -1)
    x2n = jnp.transpose(x2_nchw, (0, 2, 3, 1))
    cat = jnp.concatenate([up, x2n], axis=-1)
    y = _ref_block(cat, w1, b1, g1, be1)
    y = _ref_block(y, w2, b2, g2, be2)
    return jnp.transpose(y, (0, 3, 1, 2))


if __name__ == "__main__":
    N, Cin, Cout, H1, W1 = 2, 8, 4, 8, 8          # upSample(in_channels=8, out_channels=4)
    H, W = 2 * H1, 2 * W1

    key = jax.random.PRNGKey(0)
    ks = jax.random.split(key, 12)
    x1 = jax.random.normal(ks[0], (N, Cin, H1, W1), jnp.float32)
    x2 = jax.random.normal(ks[1], (N, Cout, H, W), jnp.float32)

    # Synthetic parameters with PyTorch layouts.
    wt = jax.random.normal(ks[2], (Cin, Cout, 2, 2), jnp.float32) * 0.2
    bt = jax.random.normal(ks[3], (Cout,), jnp.float32) * 0.1
    w1 = jax.random.normal(ks[4], (Cout, 2 * Cout, 3, 3), jnp.float32) * 0.2
    b1 = jax.random.normal(ks[5], (Cout,), jnp.float32) * 0.1
    g1 = 1.0 + 0.1 * jax.random.normal(ks[6], (Cout,), jnp.float32)
    be1 = 0.1 * jax.random.normal(ks[7], (Cout,), jnp.float32)
    w2 = jax.random.normal(ks[8], (Cout, Cout, 3, 3), jnp.float32) * 0.2
    b2 = jax.random.normal(ks[9], (Cout,), jnp.float32) * 0.1
    g2 = 1.0 + 0.1 * jax.random.normal(ks[10], (Cout,), jnp.float32)
    be2 = 0.1 * jax.random.normal(ks[11], (Cout,), jnp.float32)

    params = (wt, bt, w1, b1, g1, be1, w2, b2, g2, be2)

    out = jax.block_until_ready(upsample_forward(x1, x2, params))
    assert out.shape == (N, Cout, H, W)

    ref = jax.block_until_ready(ref_upsample(x1, x2, params))
    err = float(jnp.max(jnp.abs(out - ref)))
    # bf16 MXU operands vs f32 reference -> loosened tolerance.
    assert jnp.allclose(out, ref, atol=1e-1, rtol=1e-1), \
        f"mismatch vs f32 reference: max abs err {err}"

    print("KERNEL_OK")
</pallas_src>

<mosaic_0001>
module attributes {stable_mosaic.version = 11 : i64} {
  func.func @upsample_double_conv_kernel(%arg0: i32, %arg1: memref<2x8x8x8xbf16, #tpu.memory_space<vmem>>, %arg2: memref<2x16x16x4xbf16, #tpu.memory_space<vmem>>, %arg3: memref<128x512xbf16, #tpu.memory_space<vmem>>, %arg4: memref<1152x128xbf16, #tpu.memory_space<vmem>>, %arg5: memref<1152x128xbf16, #tpu.memory_space<vmem>>, %arg6: memref<8x128xf32, #tpu.memory_space<vmem>>, %arg7: memref<2x16x16x4xf32, #tpu.memory_space<vmem>>, %arg8: memref<128x128xbf16, #tpu.memory_space<vmem>>, %arg9: memref<2x18x18x128xf32, #tpu.memory_space<vmem>>) attributes {dimension_semantics = [#tpu.dimension_semantics<arbitrary>], iteration_bounds = array<i64: 1>, scalar_prefetch = 0 : i64, scratch_operands = 2 : i64, tpu.core_type = #tpu.core_type<tc>, window_params = [{pipeline_mode = #tpu.pipeline_mode<synchronous>, transform_indices = @transform_0, window_bounds = array<i64: 2, 8, 8, 8>}, {pipeline_mode = #tpu.pipeline_mode<synchronous>, transform_indices = @transform_1, window_bounds = array<i64: 2, 16, 16, 4>}, {pipeline_mode = #tpu.pipeline_mode<synchronous>, transform_indices = @transform_2, window_bounds = array<i64: 128, 512>}, {pipeline_mode = #tpu.pipeline_mode<synchronous>, transform_indices = @transform_3, window_bounds = array<i64: 1152, 128>}, {pipeline_mode = #tpu.pipeline_mode<synchronous>, transform_indices = @transform_4, window_bounds = array<i64: 1152, 128>}, {pipeline_mode = #tpu.pipeline_mode<synchronous>, transform_indices = @transform_5, window_bounds = array<i64: 8, 128>}, {pipeline_mode = #tpu.pipeline_mode<synchronous>, transform_indices = @transform_6, window_bounds = array<i64: 2, 16, 16, 4>}]} {
    %c0 = arith.constant 0 : index
    %c0_0 = arith.constant 0 : index
    %0 = vector.load %arg6[%c0, %c0_0] : memref<8x128xf32, #tpu.memory_space<vmem>>, vector<1x128xf32>
    %c1 = arith.constant 1 : index
    %c0_1 = arith.constant 0 : index
    %1 = vector.load %arg6[%c1, %c0_1] : memref<8x128xf32, #tpu.memory_space<vmem>>, vector<1x128xf32>
    %c2 = arith.constant 2 : index
    %c0_2 = arith.constant 0 : index
    %2 = vector.load %arg6[%c2, %c0_2] : memref<8x128xf32, #tpu.memory_space<vmem>>, vector<1x128xf32>
    %c3 = arith.constant 3 : index
    %c0_3 = arith.constant 0 : index
    %3 = vector.load %arg6[%c3, %c0_3] : memref<8x128xf32, #tpu.memory_space<vmem>>, vector<1x128xf32>
    %c4 = arith.constant 4 : index
    %c0_4 = arith.constant 0 : index
    %4 = vector.load %arg6[%c4, %c0_4] : memref<8x128xf32, #tpu.memory_space<vmem>>, vector<1x128xf32>
    %cst = arith.constant 0.000000e+00 : bf16
    %5 = vector.broadcast %cst : bf16 to vector<128x128xbf16>
    %c0_5 = arith.constant 0 : index
    %c0_6 = arith.constant 0 : index
    %6 = vector.load %arg8[%c0_5, %c0_6] : memref<128x128xbf16, #tpu.memory_space<vmem>>, vector<128x128xbf16>
    tpu.vector_store %arg8[%c0_5, %c0_6], %5 {strides = array<i32>} : memref<128x128xbf16, #tpu.memory_space<vmem>>, vector<128x128xbf16>,
    %c0_7 = arith.constant 0 : index
    %c0_8 = arith.constant 0 : index
    %c0_9 = arith.constant 0 : index
    %c0_10 = arith.constant 0 : index
    %7 = vector.load %arg1[%c0_7, %c0_8, %c0_9, %c0_10] : memref<2x8x8x8xbf16, #tpu.memory_space<vmem>>, vector<2x8x8x8xbf16>
    %8 = vector.shape_cast %7 : vector<2x8x8x8xbf16> to vector<128x8xbf16>
    %c0_11 = arith.constant 0 : index
    %c0_12 = arith.constant 0 : index
    %9 = vector.load %arg8[%c0_11, %c0_12] : memref<128x128xbf16, #tpu.memory_space<vmem>>, vector<128x8xbf16>
    tpu.vector_store %arg8[%c0_11, %c0_12], %8 {strides = array<i32>} : memref<128x128xbf16, #tpu.memory_space<vmem>>, vector<128x8xbf16>,
    %c0_13 = arith.constant 0 : index
    %c0_14 = arith.constant 0 : index
    %10 = vector.load %arg8[%c0_13, %c0_14] : memref<128x128xbf16, #tpu.memory_space<vmem>>, vector<128x128xbf16>
    %c0_15 = arith.constant 0 : index
    %c0_16 = arith.constant 0 : index
    %11 = vector.load %arg3[%c0_15, %c0_16] : memref<128x512xbf16, #tpu.memory_space<vmem>>, vector<128x512xbf16>
    %cst_17 = arith.constant dense<0.000000e+00> : vector<128x512xf32>
    %12 = tpu.matmul %10, %11, %cst_17 {dimension_numbers = #tpu.dot_dimension_numbers<[1], [0], [0], [1], [0, 0, 1, 1], [], []>} : vector<128x128xbf16>, vector<128x512xbf16>, vector<128x512xf32> -> vector<128x512xf32>
    %13 = vector.extract_strided_slice %12 {offsets = [0, 0], sizes = [128, 128], strides = [1, 1]} : vector<128x512xf32> to vector<128x128xf32>
    %14 = vector.broadcast %0 : vector<1x128xf32> to vector<128x128xf32>
    %15 = arith.addf %13, %14 : vector<128x128xf32>
    %16 = vector.shape_cast %15 : vector<128x128xf32> to vector<2x8x8x128xf32>
    %17 = vector.extract_strided_slice %12 {offsets = [0, 128], sizes = [128, 128], strides = [1, 1]} : vector<128x512xf32> to vector<128x128xf32>
    %18 = vector.broadcast %0 : vector<1x128xf32> to vector<128x128xf32>
    %19 = arith.addf %17, %18 : vector<128x128xf32>
    %20 = vector.shape_cast %19 : vector<128x128xf32> to vector<2x8x8x128xf32>
    %21 = vector.shape_cast %16 : vector<2x8x8x128xf32> to vector<2x8x8x1x128xf32>
    %22 = vector.shape_cast %20 : vector<2x8x8x128xf32> to vector<2x8x8x1x128xf32>
    %23 = tpu.concatenate %21, %22 in 3 : vector<2x8x8x1x128xf32>, vector<2x8x8x1x128xf32> -> vector<2x8x8x2x128xf32>
    %24 = vector.shape_cast %23 : vector<2x8x8x2x128xf32> to vector<2x8x16x128xf32>
    %25 = vector.extract_strided_slice %12 {offsets = [0, 256], sizes = [128, 128], strides = [1, 1]} : vector<128x512xf32> to vector<128x128xf32>
    %26 = vector.broadcast %0 : vector<1x128xf32> to vector<128x128xf32>
    %27 = arith.addf %25, %26 : vector<128x128xf32>
    %28 = vector.shape_cast %27 : vector<128x128xf32> to vector<2x8x8x128xf32>
    %29 = vector.extract_strided_slice %12 {offsets = [0, 384], sizes = [128, 128], strides = [1, 1]} : vector<128x512xf32> to vector<128x128xf32>
    %30 = vector.broadcast %0 : vector<1x128xf32> to vector<128x128xf32>
    %31 = arith.addf %29, %30 : vector<128x128xf32>
    %32 = vector.shape_cast %31 : vector<128x128xf32> to vector<2x8x8x128xf32>
    %33 = vector.shape_cast %28 : vector<2x8x8x128xf32> to vector<2x8x8x1x128xf32>
    %34 = vector.shape_cast %32 : vector<2x8x8x128xf32> to vector<2x8x8x1x128xf32>
    %35 = tpu.concatenate %33, %34 in 3 : vector<2x8x8x1x128xf32>, vector<2x8x8x1x128xf32> -> vector<2x8x8x2x128xf32>
    %36 = vector.shape_cast %35 : vector<2x8x8x2x128xf32> to vector<2x8x16x128xf32>
    %37 = vector.shape_cast %24 : vector<2x8x16x128xf32> to vector<2x8x1x16x128xf32>
    %38 = vector.shape_cast %36 : vector<2x8x16x128xf32> to vector<2x8x1x16x128xf32>
    %39 = tpu.concatenate %37, %38 in 2 : vector<2x8x1x16x128xf32>, vector<2x8x1x16x128xf32> -> vector<2x8x2x16x128xf32>
    %40 = vector.shape_cast %39 : vector<2x8x2x16x128xf32> to vector<2x16x16x128xf32>
    %cst_18 = arith.constant 0.000000e+00 : f32
    %41 = vector.broadcast %cst_18 : f32 to vector<2x1x18x128xf32>
    %c0_19 = arith.constant 0 : index
    %c0_20 = arith.constant 0 : index
    %c0_21 = arith.constant 0 : index
    %c0_22 = arith.constant 0 : index
    %42 = vector.load %arg9[%c0_19, %c0_20, %c0_21, %c0_22] : memref<2x18x18x128xf32, #tpu.memory_space<vmem>>, vector<2x1x18x128xf32>
    tpu.vector_store %arg9[%c0_19, %c0_20, %c0_21, %c0_22], %41 {strides = array<i32>} : memref<2x18x18x128xf32, #tpu.memory_space<vmem>>, vector<2x1x18x128xf32>,
    %cst_23 = arith.constant 0.000000e+00 : f32
    %43 = vector.broadcast %cst_23 : f32 to vector<2x1x18x128xf32>
    %c0_24 = arith.constant 0 : index
    %c17 = arith.constant 17 : index
    %c0_25 = arith.constant 0 : index
    %c0_26 = arith.constant 0 : index
    %44 = vector.load %arg9[%c0_24, %c17, %c0_25, %c0_26] : memref<2x18x18x128xf32, #tpu.memory_space<vmem>>, vector<2x1x18x128xf32>
    tpu.vector_store %arg9[%c0_24, %c17, %c0_25, %c0_26], %43 {strides = array<i32>} : memref<2x18x18x128xf32, #tpu.memory_space<vmem>>, vector<2x1x18x128xf32>,
    %cst_27 = arith.constant 0.000000e+00 : f32
    %45 = vector.broadcast %cst_27 : f32 to vector<2x18x1x128xf32>
    %c0_28 = arith.constant 0 : index
    %c0_29 = arith.constant 0 : index
    %c0_30 = arith.constant 0 : index
    %c0_31 = arith.constant 0 : index
    %46 = vector.load %arg9[%c0_28, %c0_29, %c0_30, %c0_31] : memref<2x18x18x128xf32, #tpu.memory_space<vmem>>, vector<2x18x1x128xf32>
    tpu.vector_store %arg9[%c0_28, %c0_29, %c0_30, %c0_31], %45 {strides = array<i32>} : memref<2x18x18x128xf32, #tpu.memory_space<vmem>>, vector<2x18x1x128xf32>,
    %cst_32 = arith.constant 0.000000e+00 : f32
    %47 = vector.broadcast %cst_32 : f32 to vector<2x18x1x128xf32>
    %c0_33 = arith.constant 0 : index
    %c0_34 = arith.constant 0 : index
    %c17_35 = arith.constant 17 : index
    %c0_36 = arith.constant 0 : index
    %48 = vector.load %arg9[%c0_33, %c0_34, %c17_35, %c0_36] : memref<2x18x18x128xf32, #tpu.memory_space<vmem>>, vector<2x18x1x128xf32>
    tpu.vector_store %arg9[%c0_33, %c0_34, %c17_35, %c0_36], %47 {strides = array<i32>} : memref<2x18x18x128xf32, #tpu.memory_space<vmem>>, vector<2x18x1x128xf32>,
    %c0_37 = arith.constant 0 : index
    %c1_38 = arith.constant 1 : index
    %c1_39 = arith.constant 1 : index
    %c0_40 = arith.constant 0 : index
    %49 = vector.load %arg9[%c0_37, %c1_38, %c1_39, %c0_40] : memref<2x18x18x128xf32, #tpu.memory_space<vmem>>, vector<2x16x16x128xf32>
    tpu.vector_store %arg9[%c0_37, %c1_38, %c1_39, %c0_40], %40 {strides = array<i32>} : memref<2x18x18x128xf32, #tpu.memory_space<vmem>>, vector<2x16x16x128xf32>,
    %c0_41 = arith.constant 0 : index
    %c0_42 = arith.constant 0 : index
    %c0_43 = arith.constant 0 : index
    %c0_44 = arith.constant 0 : index
    %50 = vector.load %arg2[%c0_41, %c0_42, %c0_43, %c0_44] : memref<2x16x16x4xbf16, #tpu.memory_space<vmem>>, vector<2x16x16x4xbf16>
    %51 = arith.extf %50 : vector<2x16x16x4xbf16> to vector<2x16x16x4xf32>
    %c0_45 = arith.constant 0 : index
    %c1_46 = arith.constant 1 : index
    %c1_47 = arith.constant 1 : index
    %c4_48 = arith.constant 4 : index
    %52 = vector.load %arg9[%c0_45, %c1_46, %c1_47, %c4_48] : memref<2x18x18x128xf32, #tpu.memory_space<vmem>>, vector<2x16x16x4xf32>
    tpu.vector_store %arg9[%c0_45, %c1_46, %c1_47, %c4_48], %51 {strides = array<i32>} : memref<2x18x18x128xf32, #tpu.memory_space<vmem>>, vector<2x16x16x4xf32>,
    %c0_49 = arith.constant 0 : index
    %c0_50 = arith.constant 0 : index
    %c0_51 = arith.constant 0 : index
    %c0_52 = arith.constant 0 : index
    %53 = vector.load %arg9[%c0_49, %c0_50, %c0_51, %c0_52] : memref<2x18x18x128xf32, #tpu.memory_space<vmem>>, vector<2x16x16x128xf32>
    %54 = vector.shape_cast %53 : vector<2x16x16x128xf32> to vector<512x128xf32>
    %55 = arith.truncf %54 : vector<512x128xf32> to vector<512x128xbf16>
    %c0_53 = arith.constant 0 : index
    %c0_54 = arith.constant 0 : index
    %56 = vector.load %arg4[%c0_53, %c0_54] : memref<1152x128xbf16, #tpu.memory_space<vmem>>, vector<128x128xbf16>
    %cst_55 = arith.constant dense<0.000000e+00> : vector<512x128xf32>
    %57 = tpu.matmul %55, %56, %cst_55 {dimension_numbers = #tpu.dot_dimension_numbers<[1], [0], [0], [1], [0, 0, 1, 1], [], []>} : vector<512x128xbf16>, vector<128x128xbf16>, vector<512x128xf32> -> vector<512x128xf32>
    %c0_56 = arith.constant 0 : index
    %c0_57 = arith.constant 0 : index
    %c1_58 = arith.constant 1 : index
    %c0_59 = arith.constant 0 : index
    %58 = vector.load %arg9[%c0_56, %c0_57, %c1_58, %c0_59] : memref<2x18x18x128xf32, #tpu.memory_space<vmem>>, vector<2x16x16x128xf32>
    %59 = vector.shape_cast %58 : vector<2x16x16x128xf32> to vector<512x128xf32>
    %60 = arith.truncf %59 : vector<512x128xf32> to vector<512x128xbf16>
    %c128 = arith.constant 128 : index
    %c0_60 = arith.constant 0 : index
    %61 = vector.load %arg4[%c128, %c0_60] : memref<1152x128xbf16, #tpu.memory_space<vmem>>, vector<128x128xbf16>
    %cst_61 = arith.constant dense<0.000000e+00> : vector<512x128xf32>
    %62 = tpu.matmul %60, %61, %cst_61 {dimension_numbers = #tpu.dot_dimension_numbers<[1], [0], [0], [1], [0, 0, 1, 1], [], []>} : vector<512x128xbf16>, vector<128x128xbf16>, vector<512x128xf32> -> vector<512x128xf32>
    %63 = arith.addf %57, %62 : vector<512x128xf32>
    %c0_62 = arith.constant 0 : index
    %c0_63 = arith.constant 0 : index
    %c2_64 = arith.constant 2 : index
    %c0_65 = arith.constant 0 : index
    %64 = vector.load %arg9[%c0_62, %c0_63, %c2_64, %c0_65] : memref<2x18x18x128xf32, #tpu.memory_space<vmem>>, vector<2x16x16x128xf32>
    %65 = vector.shape_cast %64 : vector<2x16x16x128xf32> to vector<512x128xf32>
    %66 = arith.truncf %65 : vector<512x128xf32> to vector<512x128xbf16>
    %c256 = arith.constant 256 : index
    %c0_66 = arith.constant 0 : index
    %67 = vector.load %arg4[%c256, %c0_66] : memref<1152x128xbf16, #tpu.memory_space<vmem>>, vector<128x128xbf16>
    %cst_67 = arith.constant dense<0.000000e+00> : vector<512x128xf32>
    %68 = tpu.matmul %66, %67, %cst_67 {dimension_numbers = #tpu.dot_dimension_numbers<[1], [0], [0], [1], [0, 0, 1, 1], [], []>} : vector<512x128xbf16>, vector<128x128xbf16>, vector<512x128xf32> -> vector<512x128xf32>
    %69 = arith.addf %63, %68 : vector<512x128xf32>
    %c0_68 = arith.constant 0 : index
    %c1_69 = arith.constant 1 : index
    %c0_70 = arith.constant 0 : index
    %c0_71 = arith.constant 0 : index
    %70 = vector.load %arg9[%c0_68, %c1_69, %c0_70, %c0_71] : memref<2x18x18x128xf32, #tpu.memory_space<vmem>>, vector<2x16x16x128xf32>
    %71 = vector.shape_cast %70 : vector<2x16x16x128xf32> to vector<512x128xf32>
    %72 = arith.truncf %71 : vector<512x128xf32> to vector<512x128xbf16>
    %c384 = arith.constant 384 : index
    %c0_72 = arith.constant 0 : index
    %73 = vector.load %arg4[%c384, %c0_72] : memref<1152x128xbf16, #tpu.memory_space<vmem>>, vector<128x128xbf16>
    %cst_73 = arith.constant dense<0.000000e+00> : vector<512x128xf32>
    %74 = tpu.matmul %72, %73, %cst_73 {dimension_numbers = #tpu.dot_dimension_numbers<[1], [0], [0], [1], [0, 0, 1, 1], [], []>} : vector<512x128xbf16>, vector<128x128xbf16>, vector<512x128xf32> -> vector<512x128xf32>
    %75 = arith.addf %69, %74 : vector<512x128xf32>
    %c0_74 = arith.constant 0 : index
    %c1_75 = arith.constant 1 : index
    %c1_76 = arith.constant 1 : index
    %c0_77 = arith.constant 0 : index
    %76 = vector.load %arg9[%c0_74, %c1_75, %c1_76, %c0_77] : memref<2x18x18x128xf32, #tpu.memory_space<vmem>>, vector<2x16x16x128xf32>
    %77 = vector.shape_cast %76 : vector<2x16x16x128xf32> to vector<512x128xf32>
    %78 = arith.truncf %77 : vector<512x128xf32> to vector<512x128xbf16>
    %c512 = arith.constant 512 : index
    %c0_78 = arith.constant 0 : index
    %79 = vector.load %arg4[%c512, %c0_78] : memref<1152x128xbf16, #tpu.memory_space<vmem>>, vector<128x128xbf16>
    %cst_79 = arith.constant dense<0.000000e+00> : vector<512x128xf32>
    %80 = tpu.matmul %78, %79, %cst_79 {dimension_numbers = #tpu.dot_dimension_numbers<[1], [0], [0], [1], [0, 0, 1, 1], [], []>} : vector<512x128xbf16>, vector<128x128xbf16>, vector<512x128xf32> -> vector<512x128xf32>
    %81 = arith.addf %75, %80 : vector<512x128xf32>
    %c0_80 = arith.constant 0 : index
    %c1_81 = arith.constant 1 : index
    %c2_82 = arith.constant 2 : index
    %c0_83 = arith.constant 0 : index
    %82 = vector.load %arg9[%c0_80, %c1_81, %c2_82, %c0_83] : memref<2x18x18x128xf32, #tpu.memory_space<vmem>>, vector<2x16x16x128xf32>
    %83 = vector.shape_cast %82 : vector<2x16x16x128xf32> to vector<512x128xf32>
    %84 = arith.truncf %83 : vector<512x128xf32> to vector<512x128xbf16>
    %c640 = arith.constant 640 : index
    %c0_84 = arith.constant 0 : index
    %85 = vector.load %arg4[%c640, %c0_84] : memref<1152x128xbf16, #tpu.memory_space<vmem>>, vector<128x128xbf16>
    %cst_85 = arith.constant dense<0.000000e+00> : vector<512x128xf32>
    %86 = tpu.matmul %84, %85, %cst_85 {dimension_numbers = #tpu.dot_dimension_numbers<[1], [0], [0], [1], [0, 0, 1, 1], [], []>} : vector<512x128xbf16>, vector<128x128xbf16>, vector<512x128xf32> -> vector<512x128xf32>
    %87 = arith.addf %81, %86 : vector<512x128xf32>
    %c0_86 = arith.constant 0 : index
    %c2_87 = arith.constant 2 : index
    %c0_88 = arith.constant 0 : index
    %c0_89 = arith.constant 0 : index
    %88 = vector.load %arg9[%c0_86, %c2_87, %c0_88, %c0_89] : memref<2x18x18x128xf32, #tpu.memory_space<vmem>>, vector<2x16x16x128xf32>
    %89 = vector.shape_cast %88 : vector<2x16x16x128xf32> to vector<512x128xf32>
    %90 = arith.truncf %89 : vector<512x128xf32> to vector<512x128xbf16>
    %c768 = arith.constant 768 : index
    %c0_90 = arith.constant 0 : index
    %91 = vector.load %arg4[%c768, %c0_90] : memref<1152x128xbf16, #tpu.memory_space<vmem>>, vector<128x128xbf16>
    %cst_91 = arith.constant dense<0.000000e+00> : vector<512x128xf32>
    %92 = tpu.matmul %90, %91, %cst_91 {dimension_numbers = #tpu.dot_dimension_numbers<[1], [0], [0], [1], [0, 0, 1, 1], [], []>} : vector<512x128xbf16>, vector<128x128xbf16>, vector<512x128xf32> -> vector<512x128xf32>
    %93 = arith.addf %87, %92 : vector<512x128xf32>
    %c0_92 = arith.constant 0 : index
    %c2_93 = arith.constant 2 : index
    %c1_94 = arith.constant 1 : index
    %c0_95 = arith.constant 0 : index
    %94 = vector.load %arg9[%c0_92, %c2_93, %c1_94, %c0_95] : memref<2x18x18x128xf32, #tpu.memory_space<vmem>>, vector<2x16x16x128xf32>
    %95 = vector.shape_cast %94 : vector<2x16x16x128xf32> to vector<512x128xf32>
    %96 = arith.truncf %95 : vector<512x128xf32> to vector<512x128xbf16>
    %c896 = arith.constant 896 : index
    %c0_96 = arith.constant 0 : index
    %97 = vector.load %arg4[%c896, %c0_96] : memref<1152x128xbf16, #tpu.memory_space<vmem>>, vector<128x128xbf16>
    %cst_97 = arith.constant dense<0.000000e+00> : vector<512x128xf32>
    %98 = tpu.matmul %96, %97, %cst_97 {dimension_numbers = #tpu.dot_dimension_numbers<[1], [0], [0], [1], [0, 0, 1, 1], [], []>} : vector<512x128xbf16>, vector<128x128xbf16>, vector<512x128xf32> -> vector<512x128xf32>
    %99 = arith.addf %93, %98 : vector<512x128xf32>
    %c0_98 = arith.constant 0 : index
    %c2_99 = arith.constant 2 : index
    %c2_100 = arith.constant 2 : index
    %c0_101 = arith.constant 0 : index
    %100 = vector.load %arg9[%c0_98, %c2_99, %c2_100, %c0_101] : memref<2x18x18x128xf32, #tpu.memory_space<vmem>>, vector<2x16x16x128xf32>
    %101 = vector.shape_cast %100 : vector<2x16x16x128xf32> to vector<512x128xf32>
    %102 = arith.truncf %101 : vector<512x128xf32> to vector<512x128xbf16>
    %c1024 = arith.constant 1024 : index
    %c0_102 = arith.constant 0 : index
    %103 = vector.load %arg4[%c1024, %c0_102] : memref<1152x128xbf16, #tpu.memory_space<vmem>>, vector<128x128xbf16>
    %cst_103 = arith.constant dense<0.000000e+00> : vector<512x128xf32>
    %104 = tpu.matmul %102, %103, %cst_103 {dimension_numbers = #tpu.dot_dimension_numbers<[1], [0], [0], [1], [0, 0, 1, 1], [], []>} : vector<512x128xbf16>, vector<128x128xbf16>, vector<512x128xf32> -> vector<512x128xf32>
    %105 = arith.addf %99, %104 : vector<512x128xf32>
    %cst_104 = arith.constant dense<0.000000e+00> : vector<128xf32>
    %106 = vector.multi_reduction <add>, %105, %cst_104 [0] : vector<512x128xf32> to vector<128xf32>
    %107 = vector.shape_cast %106 : vector<128xf32> to vector<1x128xf32>
    %cst_105 = arith.constant 5.120000e+02 : f32
    %108 = vector.broadcast %cst_105 : f32 to vector<1x128xf32>
    %109 = arith.divf %107, %108 : vector<1x128xf32>
    %110 = vector.broadcast %109 : vector<1x128xf32> to vector<512x128xf32>
    %111 = arith.subf %105, %110 : vector<512x128xf32>
    %112 = arith.mulf %111, %111 : vector<512x128xf32>
    %cst_106 = arith.constant dense<0.000000e+00> : vector<128xf32>
    %113 = vector.multi_reduction <add>, %112, %cst_106 [0] : vector<512x128xf32> to vector<128xf32>
    %114 = vector.shape_cast %113 : vector<128xf32> to vector<1x128xf32>
    %cst_107 = arith.constant 5.120000e+02 : f32
    %115 = vector.broadcast %cst_107 : f32 to vector<1x128xf32>
    %116 = arith.divf %114, %115 : vector<1x128xf32>
    %cst_108 = arith.constant 9.99999974E-6 : f32
    %117 = vector.broadcast %cst_108 : f32 to vector<1x128xf32>
    %118 = arith.addf %116, %117 : vector<1x128xf32>
    %119 = math.rsqrt %118 : vector<1x128xf32>
    %120 = arith.mulf %1, %119 : vector<1x128xf32>
    %121 = vector.broadcast %120 : vector<1x128xf32> to vector<512x128xf32>
    %122 = arith.mulf %111, %121 : vector<512x128xf32>
    %123 = vector.broadcast %2 : vector<1x128xf32> to vector<512x128xf32>
    %124 = arith.addf %122, %123 : vector<512x128xf32>
    %cst_109 = arith.constant 0.000000e+00 : f32
    %125 = vector.broadcast %cst_109 : f32 to vector<512x128xf32>
    %126 = arith.maximumf %124, %125 : vector<512x128xf32>
    %127 = vector.shape_cast %126 : vector<512x128xf32> to vector<2x16x16x128xf32>
    %c0_110 = arith.constant 0 : index
    %c1_111 = arith.constant 1 : index
    %c1_112 = arith.constant 1 : index
    %c0_113 = arith.constant 0 : index
    %128 = vector.load %arg9[%c0_110, %c1_111, %c1_112, %c0_113] : memref<2x18x18x128xf32, #tpu.memory_space<vmem>>, vector<2x16x16x128xf32>
    tpu.vector_store %arg9[%c0_110, %c1_111, %c1_112, %c0_113], %127 {strides = array<i32>} : memref<2x18x18x128xf32, #tpu.memory_space<vmem>>, vector<2x16x16x128xf32>,
    %c0_114 = arith.constant 0 : index
    %c0_115 = arith.constant 0 : index
    %c0_116 = arith.constant 0 : index
    %c0_117 = arith.constant 0 : index
    %129 = vector.load %arg9[%c0_114, %c0_115, %c0_116, %c0_117] : memref<2x18x18x128xf32, #tpu.memory_space<vmem>>, vector<2x16x16x128xf32>
    %130 = vector.shape_cast %129 : vector<2x16x16x128xf32> to vector<512x128xf32>
    %131 = arith.truncf %130 : vector<512x128xf32> to vector<512x128xbf16>
    %c0_118 = arith.constant 0 : index
    %c0_119 = arith.constant 0 : index
    %132 = vector.load %arg5[%c0_118, %c0_119] : memref<1152x128xbf16, #tpu.memory_space<vmem>>, vector<128x128xbf16>
    %cst_120 = arith.constant dense<0.000000e+00> : vector<512x128xf32>
    %133 = tpu.matmul %131, %132, %cst_120 {dimension_numbers = #tpu.dot_dimension_numbers<[1], [0], [0], [1], [0, 0, 1, 1], [], []>} : vector<512x128xbf16>, vector<128x128xbf16>, vector<512x128xf32> -> vector<512x128xf32>
    %c0_121 = arith.constant 0 : index
    %c0_122 = arith.constant 0 : index
    %c1_123 = arith.constant 1 : index
    %c0_124 = arith.constant 0 : index
    %134 = vector.load %arg9[%c0_121, %c0_122, %c1_123, %c0_124] : memref<2x18x18x128xf32, #tpu.memory_space<vmem>>, vector<2x16x16x128xf32>
    %135 = vector.shape_cast %134 : vector<2x16x16x128xf32> to vector<512x128xf32>
    %136 = arith.truncf %135 : vector<512x128xf32> to vector<512x128xbf16>
    %c128_125 = arith.constant 128 : index
    %c0_126 = arith.constant 0 : index
    %137 = vector.load %arg5[%c128_125, %c0_126] : memref<1152x128xbf16, #tpu.memory_space<vmem>>, vector<128x128xbf16>
    %cst_127 = arith.constant dense<0.000000e+00> : vector<512x128xf32>
    %138 = tpu.matmul %136, %137, %cst_127 {dimension_numbers = #tpu.dot_dimension_numbers<[1], [0], [0], [1], [0, 0, 1, 1], [], []>} : vector<512x128xbf16>, vector<128x128xbf16>, vector<512x128xf32> -> vector<512x128xf32>
    %139 = arith.addf %133, %138 : vector<512x128xf32>
    %c0_128 = arith.constant 0 : index
    %c0_129 = arith.constant 0 : index
    %c2_130 = arith.constant 2 : index
    %c0_131 = arith.constant 0 : index
    %140 = vector.load %arg9[%c0_128, %c0_129, %c2_130, %c0_131] : memref<2x18x18x128xf32, #tpu.memory_space<vmem>>, vector<2x16x16x128xf32>
    %141 = vector.shape_cast %140 : vector<2x16x16x128xf32> to vector<512x128xf32>
    %142 = arith.truncf %141 : vector<512x128xf32> to vector<512x128xbf16>
    %c256_132 = arith.constant 256 : index
    %c0_133 = arith.constant 0 : index
    %143 = vector.load %arg5[%c256_132, %c0_133] : memref<1152x128xbf16, #tpu.memory_space<vmem>>, vector<128x128xbf16>
    %cst_134 = arith.constant dense<0.000000e+00> : vector<512x128xf32>
    %144 = tpu.matmul %142, %143, %cst_134 {dimension_numbers = #tpu.dot_dimension_numbers<[1], [0], [0], [1], [0, 0, 1, 1], [], []>} : vector<512x128xbf16>, vector<128x128xbf16>, vector<512x128xf32> -> vector<512x128xf32>
    %145 = arith.addf %139, %144 : vector<512x128xf32>
    %c0_135 = arith.constant 0 : index
    %c1_136 = arith.constant 1 : index
    %c0_137 = arith.constant 0 : index
    %c0_138 = arith.constant 0 : index
    %146 = vector.load %arg9[%c0_135, %c1_136, %c0_137, %c0_138] : memref<2x18x18x128xf32, #tpu.memory_space<vmem>>, vector<2x16x16x128xf32>
    %147 = vector.shape_cast %146 : vector<2x16x16x128xf32> to vector<512x128xf32>
    %148 = arith.truncf %147 : vector<512x128xf32> to vector<512x128xbf16>
    %c384_139 = arith.constant 384 : index
    %c0_140 = arith.constant 0 : index
    %149 = vector.load %arg5[%c384_139, %c0_140] : memref<1152x128xbf16, #tpu.memory_space<vmem>>, vector<128x128xbf16>
    %cst_141 = arith.constant dense<0.000000e+00> : vector<512x128xf32>
    %150 = tpu.matmul %148, %149, %cst_141 {dimension_numbers = #tpu.dot_dimension_numbers<[1], [0], [0], [1], [0, 0, 1, 1], [], []>} : vector<512x128xbf16>, vector<128x128xbf16>, vector<512x128xf32> -> vector<512x128xf32>
    %151 = arith.addf %145, %150 : vector<512x128xf32>
    %c0_142 = arith.constant 0 : index
    %c1_143 = arith.constant 1 : index
    %c1_144 = arith.constant 1 : index
    %c0_145 = arith.constant 0 : index
    %152 = vector.load %arg9[%c0_142, %c1_143, %c1_144, %c0_145] : memref<2x18x18x128xf32, #tpu.memory_space<vmem>>, vector<2x16x16x128xf32>
    %153 = vector.shape_cast %152 : vector<2x16x16x128xf32> to vector<512x128xf32>
    %154 = arith.truncf %153 : vector<512x128xf32> to vector<512x128xbf16>
    %c512_146 = arith.constant 512 : index
    %c0_147 = arith.constant 0 : index
    %155 = vector.load %arg5[%c512_146, %c0_147] : memref<1152x128xbf16, #tpu.memory_space<vmem>>, vector<128x128xbf16>
    %cst_148 = arith.constant dense<0.000000e+00> : vector<512x128xf32>
    %156 = tpu.matmul %154, %155, %cst_148 {dimension_numbers = #tpu.dot_dimension_numbers<[1], [0], [0], [1], [0, 0, 1, 1], [], []>} : vector<512x128xbf16>, vector<128x128xbf16>, vector<512x128xf32> -> vector<512x128xf32>
    %157 = arith.addf %151, %156 : vector<512x128xf32>
    %c0_149 = arith.constant 0 : index
    %c1_150 = arith.constant 1 : index
    %c2_151 = arith.constant 2 : index
    %c0_152 = arith.constant 0 : index
    %158 = vector.load %arg9[%c0_149, %c1_150, %c2_151, %c0_152] : memref<2x18x18x128xf32, #tpu.memory_space<vmem>>, vector<2x16x16x128xf32>
    %159 = vector.shape_cast %158 : vector<2x16x16x128xf32> to vector<512x128xf32>
    %160 = arith.truncf %159 : vector<512x128xf32> to vector<512x128xbf16>
    %c640_153 = arith.constant 640 : index
    %c0_154 = arith.constant 0 : index
    %161 = vector.load %arg5[%c640_153, %c0_154] : memref<1152x128xbf16, #tpu.memory_space<vmem>>, vector<128x128xbf16>
    %cst_155 = arith.constant dense<0.000000e+00> : vector<512x128xf32>
    %162 = tpu.matmul %160, %161, %cst_155 {dimension_numbers = #tpu.dot_dimension_numbers<[1], [0], [0], [1], [0, 0, 1, 1], [], []>} : vector<512x128xbf16>, vector<128x128xbf16>, vector<512x128xf32> -> vector<512x128xf32>
    %163 = arith.addf %157, %162 : vector<512x128xf32>
    %c0_156 = arith.constant 0 : index
    %c2_157 = arith.constant 2 : index
    %c0_158 = arith.constant 0 : index
    %c0_159 = arith.constant 0 : index
    %164 = vector.load %arg9[%c0_156, %c2_157, %c0_158, %c0_159] : memref<2x18x18x128xf32, #tpu.memory_space<vmem>>, vector<2x16x16x128xf32>
    %165 = vector.shape_cast %164 : vector<2x16x16x128xf32> to vector<512x128xf32>
    %166 = arith.truncf %165 : vector<512x128xf32> to vector<512x128xbf16>
    %c768_160 = arith.constant 768 : index
    %c0_161 = arith.constant 0 : index
    %167 = vector.load %arg5[%c768_160, %c0_161] : memref<1152x128xbf16, #tpu.memory_space<vmem>>, vector<128x128xbf16>
    %cst_162 = arith.constant dense<0.000000e+00> : vector<512x128xf32>
    %168 = tpu.matmul %166, %167, %cst_162 {dimension_numbers = #tpu.dot_dimension_numbers<[1], [0], [0], [1], [0, 0, 1, 1], [], []>} : vector<512x128xbf16>, vector<128x128xbf16>, vector<512x128xf32> -> vector<512x128xf32>
    %169 = arith.addf %163, %168 : vector<512x128xf32>
    %c0_163 = arith.constant 0 : index
    %c2_164 = arith.constant 2 : index
    %c1_165 = arith.constant 1 : index
    %c0_166 = arith.constant 0 : index
    %170 = vector.load %arg9[%c0_163, %c2_164, %c1_165, %c0_166] : memref<2x18x18x128xf32, #tpu.memory_space<vmem>>, vector<2x16x16x128xf32>
    %171 = vector.shape_cast %170 : vector<2x16x16x128xf32> to vector<512x128xf32>
    %172 = arith.truncf %171 : vector<512x128xf32> to vector<512x128xbf16>
    %c896_167 = arith.constant 896 : index
    %c0_168 = arith.constant 0 : index
    %173 = vector.load %arg5[%c896_167, %c0_168] : memref<1152x128xbf16, #tpu.memory_space<vmem>>, vector<128x128xbf16>
    %cst_169 = arith.constant dense<0.000000e+00> : vector<512x128xf32>
    %174 = tpu.matmul %172, %173, %cst_169 {dimension_numbers = #tpu.dot_dimension_numbers<[1], [0], [0], [1], [0, 0, 1, 1], [], []>} : vector<512x128xbf16>, vector<128x128xbf16>, vector<512x128xf32> -> vector<512x128xf32>
    %175 = arith.addf %169, %174 : vector<512x128xf32>
    %c0_170 = arith.constant 0 : index
    %c2_171 = arith.constant 2 : index
    %c2_172 = arith.constant 2 : index
    %c0_173 = arith.constant 0 : index
    %176 = vector.load %arg9[%c0_170, %c2_171, %c2_172, %c0_173] : memref<2x18x18x128xf32, #tpu.memory_space<vmem>>, vector<2x16x16x128xf32>
    %177 = vector.shape_cast %176 : vector<2x16x16x128xf32> to vector<512x128xf32>
    %178 = arith.truncf %177 : vector<512x128xf32> to vector<512x128xbf16>
    %c1024_174 = arith.constant 1024 : index
    %c0_175 = arith.constant 0 : index
    %179 = vector.load %arg5[%c1024_174, %c0_175] : memref<1152x128xbf16, #tpu.memory_space<vmem>>, vector<128x128xbf16>
    %cst_176 = arith.constant dense<0.000000e+00> : vector<512x128xf32>
    %180 = tpu.matmul %178, %179, %cst_176 {dimension_numbers = #tpu.dot_dimension_numbers<[1], [0], [0], [1], [0, 0, 1, 1], [], []>} : vector<512x128xbf16>, vector<128x128xbf16>, vector<512x128xf32> -> vector<512x128xf32>
    %181 = arith.addf %175, %180 : vector<512x128xf32>
    %cst_177 = arith.constant dense<0.000000e+00> : vector<128xf32>
    %182 = vector.multi_reduction <add>, %181, %cst_177 [0] : vector<512x128xf32> to vector<128xf32>
    %183 = vector.shape_cast %182 : vector<128xf32> to vector<1x128xf32>
    %cst_178 = arith.constant 5.120000e+02 : f32
    %184 = vector.broadcast %cst_178 : f32 to vector<1x128xf32>
    %185 = arith.divf %183, %184 : vector<1x128xf32>
    %186 = vector.broadcast %185 : vector<1x128xf32> to vector<512x128xf32>
    %187 = arith.subf %181, %186 : vector<512x128xf32>
    %188 = arith.mulf %187, %187 : vector<512x128xf32>
    %cst_179 = arith.constant dense<0.000000e+00> : vector<128xf32>
    %189 = vector.multi_reduction <add>, %188, %cst_179 [0] : vector<512x128xf32> to vector<128xf32>
    %190 = vector.shape_cast %189 : vector<128xf32> to vector<1x128xf32>
    %cst_180 = arith.constant 5.120000e+02 : f32
    %191 = vector.broadcast %cst_180 : f32 to vector<1x128xf32>
    %192 = arith.divf %190, %191 : vector<1x128xf32>
    %cst_181 = arith.constant 9.99999974E-6 : f32
    %193 = vector.broadcast %cst_181 : f32 to vector<1x128xf32>
    %194 = arith.addf %192, %193 : vector<1x128xf32>
    %195 = math.rsqrt %194 : vector<1x128xf32>
    %196 = arith.mulf %3, %195 : vector<1x128xf32>
    %197 = vector.broadcast %196 : vector<1x128xf32> to vector<512x128xf32>
    %198 = arith.mulf %187, %197 : vector<512x128xf32>
    %199 = vector.broadcast %4 : vector<1x128xf32> to vector<512x128xf32>
    %200 = arith.addf %198, %199 : vector<512x128xf32>
    %cst_182 = arith.constant 0.000000e+00 : f32
    %201 = vector.broadcast %cst_182 : f32 to vector<512x128xf32>
    %202 = arith.maximumf %200, %201 : vector<512x128xf32>
    %203 = vector.extract_strided_slice %202 {offsets = [0, 0], sizes = [512, 4], strides = [1, 1]} : vector<512x128xf32> to vector<512x4xf32>
    %204 = vector.shape_cast %203 : vector<512x4xf32> to vector<2x16x16x4xf32>
    %c0_183 = arith.constant 0 : index
    %c0_184 = arith.constant 0 : index
    %c0_185 = arith.constant 0 : index
    %c0_186 = arith.constant 0 : index
    %205 = vector.load %arg7[%c0_183, %c0_184, %c0_185, %c0_186] : memref<2x16x16x4xf32, #tpu.memory_space<vmem>>, vector<2x16x16x4xf32>
    tpu.vector_store %arg7[%c0_183, %c0_184, %c0_185, %c0_186], %204 {strides = array<i32>} : memref<2x16x16x4xf32, #tpu.memory_space<vmem>>, vector<2x16x16x4xf32>,
    return
  }
  func.func @transform_0(%arg0: i32) -> (i32, i32, i32, i32) {
    %c0_i32 = arith.constant 0 : i32
    %c0_i32_0 = arith.constant 0 : i32
    %c0_i32_1 = arith.constant 0 : i32
    %c0_i32_2 = arith.constant 0 : i32
    %c0_i32_3 = arith.constant 0 : i32
    return %c0_i32, %c0_i32_0, %c0_i32_1, %c0_i32_2 : i32, i32, i32, i32
  }
  func.func @transform_1(%arg0: i32) -> (i32, i32, i32, i32) {
    %c0_i32 = arith.constant 0 : i32
    %c0_i32_0 = arith.constant 0 : i32
    %c0_i32_1 = arith.constant 0 : i32
    %c0_i32_2 = arith.constant 0 : i32
    %c0_i32_3 = arith.constant 0 : i32
    return %c0_i32, %c0_i32_0, %c0_i32_1, %c0_i32_2 : i32, i32, i32, i32
  }
  func.func @transform_2(%arg0: i32) -> (i32, i32) {
    %c0_i32 = arith.constant 0 : i32
    %c0_i32_0 = arith.constant 0 : i32
    %c0_i32_1 = arith.constant 0 : i32
    return %c0_i32, %c0_i32_0 : i32, i32
  }
  func.func @transform_3(%arg0: i32) -> (i32, i32) {
    %c0_i32 = arith.constant 0 : i32
    %c0_i32_0 = arith.constant 0 : i32
    %c0_i32_1 = arith.constant 0 : i32
    return %c0_i32, %c0_i32_0 : i32, i32
  }
  func.func @transform_4(%arg0: i32) -> (i32, i32) {
    %c0_i32 = arith.constant 0 : i32
    %c0_i32_0 = arith.constant 0 : i32
    %c0_i32_1 = arith.constant 0 : i32
    return %c0_i32, %c0_i32_0 : i32, i32
  }
  func.func @transform_5(%arg0: i32) -> (i32, i32) {
    %c0_i32 = arith.constant 0 : i32
    %c0_i32_0 = arith.constant 0 : i32
    %c0_i32_1 = arith.constant 0 : i32
    return %c0_i32, %c0_i32_0 : i32, i32
  }
  func.func @transform_6(%arg0: i32) -> (i32, i32, i32, i32) {
    %c0_i32 = arith.constant 0 : i32
    %c0_i32_0 = arith.constant 0 : i32
    %c0_i32_1 = arith.constant 0 : i32
    %c0_i32_2 = arith.constant 0 : i32
    %c0_i32_3 = arith.constant 0 : i32
    return %c0_i32, %c0_i32_0, %c0_i32_1, %c0_i32_2 : i32, i32, i32, i32
  }
}

</mosaic_0001>

<llo_original>
// kernel: upsample_forward.1
$region0: #{upsample_forward.1}
  #allocation0 [shape = 'u32[]', space=smem, size = 0x4, offset = 0x4, fixed_abs, tag = 'smem constant byte address 0x4 - core index']
  #allocation1 [shape = 'u32[72,128]{1,0:T(1,128)}', space=vmem, size = 0x9000, scoped, tag = 'internal scratch']
  #allocation2 [shape = 'bf16[128,128]{1,0:T(8,128)(2,1)}', space=vmem, size = 0x8000, scoped, tag = 'scratch operand']
  #allocation3 [shape = 'f32[2,18,18,128]{3,2,1,0:T(8,128)}', space=vmem, size = 0x6c000, scoped, tag = 'scratch operand']
  %s0 = inlined_call_operand.vmem [shape: bf16[2,8,8,8], index: 0, kind: input, shape index: {}]
  %s1 = inlined_call_operand.vmem [shape: bf16[2,16,16,4], index: 1, kind: input, shape index: {}]
  %s2 = inlined_call_operand.vmem [shape: bf16[128,512], index: 2, kind: input, shape index: {}]
  %s3 = inlined_call_operand.vmem [shape: bf16[1152,128], index: 3, kind: input, shape index: {}]
  %s4 = inlined_call_operand.vmem [shape: bf16[1152,128], index: 4, kind: input, shape index: {}]
  %s5 = inlined_call_operand.vmem [shape: f32[8,128], index: 5, kind: input, shape index: {}]
  %s6 = inlined_call_operand.vmem [shape: f32[2,16,16,4], index: 6, kind: output, shape index: {}]
  %s7 = sld [smem:[#allocation0]]
  $region34: #{upsample_forward.1} parent=0
    _
  %s9 = ssub.s32 1, %s7
  %s10 = scalar_select 0, %s9, %s7
  // Predicated region
  $region2: #{upsample_forward.1} parent=0 // pred_check
    _
  $region3: #{upsample_forward.1} parent=0 // pred_check_branch
    %12 = sbr.rel (0) target = $region5
  $region4: #{upsample_forward.1} parent=0 // pred_region
    _
  $region5: #{upsample_forward.1} parent=0 // pred_fallthru
    _
  // Predicated region
  $region6: #{upsample_forward.1} parent=0 // pred_check
    _
  $region7: #{upsample_forward.1} parent=0 // pred_check_branch
    %14 = sbr.rel (0) target = $region9
  $region8: #{upsample_forward.1} parent=0 // pred_region
    _
  $region9: #{upsample_forward.1} parent=0 // pred_fallthru
    _
  // Predicated region
  $region10: #{upsample_forward.1} parent=0 // pred_check
    _
  $region11: #{upsample_forward.1} parent=0 // pred_check_branch
    %16 = sbr.rel (0) target = $region13
  $region12: #{upsample_forward.1} parent=0 // pred_region
    _
  $region13: #{upsample_forward.1} parent=0 // pred_fallthru
    _
  // Predicated region
  $region14: #{upsample_forward.1} parent=0 // pred_check
    _
  $region15: #{upsample_forward.1} parent=0 // pred_check_branch
    %18 = sbr.rel (0) target = $region17
  $region16: #{upsample_forward.1} parent=0 // pred_region
    _
  $region17: #{upsample_forward.1} parent=0 // pred_fallthru
    _
  // Predicated region
  $region18: #{upsample_forward.1} parent=0 // pred_check
    _
  $region19: #{upsample_forward.1} parent=0 // pred_check_branch
    %20 = sbr.rel (0) target = $region21
  $region20: #{upsample_forward.1} parent=0 // pred_region
    _
  $region21: #{upsample_forward.1} parent=0 // pred_fallthru
    _
  // Predicated region
  $region22: #{upsample_forward.1} parent=0 // pred_check
    _
  $region23: #{upsample_forward.1} parent=0 // pred_check_branch
    %22 = sbr.rel (0) target = $region25
  $region24: #{upsample_forward.1} parent=0 // pred_region
    _
  $region25: #{upsample_forward.1} parent=0 // pred_fallthru
    _
  %v24 = vld [vmem:[%s5] sm:$0x1]
  %v25 = vld [vmem:[%s5 + $0x1] sm:$0x1]
  %v26 = vld [vmem:[%s5 + $0x2] sm:$0x1]
  %v27 = vld [vmem:[%s5 + $0x3] sm:$0x1]
  %v28 = vld [vmem:[%s5 + $0x4] sm:$0x1]
  %29 = vst [vmem:[#allocation2] sm:$0xf] 0
  %30 = vst [vmem:[#allocation2 + $0x4] sm:$0xf] 0
  %31 = vst [vmem:[#allocation2 + $0x8] sm:$0xf] 0
  %32 = vst [vmem:[#allocation2 + $0xc] sm:$0xf] 0
  %33 = vst [vmem:[#allocation2 + $0x10] sm:$0xf] 0
  %34 = vst [vmem:[#allocation2 + $0x14] sm:$0xf] 0
  %35 = vst [vmem:[#allocation2 + $0x18] sm:$0xf] 0
  %36 = vst [vmem:[#allocation2 + $0x1c] sm:$0xf] 0
  %37 = vst [vmem:[#allocation2 + $0x20] sm:$0xf] 0
  %38 = vst [vmem:[#allocation2 + $0x24] sm:$0xf] 0
  %39 = vst [vmem:[#allocation2 + $0x28] sm:$0xf] 0
  %40 = vst [vmem:[#allocation2 + $0x2c] sm:$0xf] 0
  %41 = vst [vmem:[#allocation2 + $0x30] sm:$0xf] 0
  %42 = vst [vmem:[#allocation2 + $0x34] sm:$0xf] 0
  %43 = vst [vmem:[#allocation2 + $0x38] sm:$0xf] 0
  %44 = vst [vmem:[#allocation2 + $0x3c] sm:$0xf] 0
  %v45 = vld [vmem:[%s0] sm:$0xf]
  %v46 = vld [vmem:[%s0 + $0x4] sm:$0xf]
  %v47 = vld [vmem:[%s0 + $0x8] sm:$0xf]
  %v48 = vld [vmem:[%s0 + $0xc] sm:$0xf]
  %v49 = vld [vmem:[%s0 + $0x10] sm:$0xf]
  %v50 = vld [vmem:[%s0 + $0x14] sm:$0xf]
  %v51 = vld [vmem:[%s0 + $0x18] sm:$0xf]
  %v52 = vld [vmem:[%s0 + $0x1c] sm:$0xf]
  %v53 = vld [vmem:[%s0 + $0x20] sm:$0xf]
  %v54 = vld [vmem:[%s0 + $0x24] sm:$0xf]
  %v55 = vld [vmem:[%s0 + $0x28] sm:$0xf]
  %v56 = vld [vmem:[%s0 + $0x2c] sm:$0xf]
  %v57 = vld [vmem:[%s0 + $0x30] sm:$0xf]
  %v58 = vld [vmem:[%s0 + $0x34] sm:$0xf]
  %v59 = vld [vmem:[%s0 + $0x38] sm:$0xf]
  %v60 = vld [vmem:[%s0 + $0x3c] sm:$0xf]
  %vm61 = vcmask 60416
  %62 = vst.msk [vmem:[#allocation2] sm:$0xf] %vm61, %v45
  %63 = vst.msk [vmem:[#allocation2 + $0x4] sm:$0xf] %vm61, %v46
  %64 = vst.msk [vmem:[#allocation2 + $0x8] sm:$0xf] %vm61, %v47
  %65 = vst.msk [vmem:[#allocation2 + $0xc] sm:$0xf] %vm61, %v48
  %66 = vst.msk [vmem:[#allocation2 + $0x10] sm:$0xf] %vm61, %v49
  %67 = vst.msk [vmem:[#allocation2 + $0x14] sm:$0xf] %vm61, %v50
  %68 = vst.msk [vmem:[#allocation2 + $0x18] sm:$0xf] %vm61, %v51
  %69 = vst.msk [vmem:[#allocation2 + $0x1c] sm:$0xf] %vm61, %v52
  %70 = vst.msk [vmem:[#allocation2 + $0x20] sm:$0xf] %vm61, %v53
  %71 = vst.msk [vmem:[#allocation2 + $0x24] sm:$0xf] %vm61, %v54
  %72 = vst.msk [vmem:[#allocation2 + $0x28] sm:$0xf] %vm61, %v55
  %73 = vst.msk [vmem:[#allocation2 + $0x2c] sm:$0xf] %vm61, %v56
  %74 = vst.msk [vmem:[#allocation2 + $0x30] sm:$0xf] %vm61, %v57
  %75 = vst.msk [vmem:[#allocation2 + $0x34] sm:$0xf] %vm61, %v58
  %76 = vst.msk [vmem:[#allocation2 + $0x38] sm:$0xf] %vm61, %v59
  %77 = vst.msk [vmem:[#allocation2 + $0x3c] sm:$0xf] %vm61, %v60
  %v78 = vld [vmem:[#allocation2] sm:$0xf]
  %v79 = vld [vmem:[#allocation2 + $0x4] sm:$0xf]
  %v80 = vld [vmem:[#allocation2 + $0x8] sm:$0xf]
  %v81 = vld [vmem:[#allocation2 + $0xc] sm:$0xf]
  %v82 = vld [vmem:[#allocation2 + $0x10] sm:$0xf]
  %v83 = vld [vmem:[#allocation2 + $0x14] sm:$0xf]
  %v84 = vld [vmem:[#allocation2 + $0x18] sm:$0xf]
  %v85 = vld [vmem:[#allocation2 + $0x1c] sm:$0xf]
  %v86 = vld [vmem:[#allocation2 + $0x20] sm:$0xf]
  %v87 = vld [vmem:[#allocation2 + $0x24] sm:$0xf]
  %v88 = vld [vmem:[#allocation2 + $0x28] sm:$0xf]
  %v89 = vld [vmem:[#allocation2 + $0x2c] sm:$0xf]
  %v90 = vld [vmem:[#allocation2 + $0x30] sm:$0xf]
  %v91 = vld [vmem:[#allocation2 + $0x34] sm:$0xf]
  %v92 = vld [vmem:[#allocation2 + $0x38] sm:$0xf]
  %v93 = vld [vmem:[#allocation2 + $0x3c] sm:$0xf]
  %v94 = vld [vmem:[%s2] sm:$0xff]
  %v95 = vld [vmem:[%s2 + $0x8] sm:$0xff]
  %v96 = vld [vmem:[%s2 + $0x10] sm:$0xff]
  %v97 = vld [vmem:[%s2 + $0x18] sm:$0xff]
  %v98 = vld [vmem:[%s2 + $0x20] sm:$0xff]
  %v99 = vld [vmem:[%s2 + $0x28] sm:$0xff]
  %v100 = vld [vmem:[%s2 + $0x30] sm:$0xff]
  %v101 = vld [vmem:[%s2 + $0x38] sm:$0xff]
  %v102 = vld [vmem:[%s2 + $0x40] sm:$0xff]
  %v103 = vld [vmem:[%s2 + $0x48] sm:$0xff]
  %v104 = vld [vmem:[%s2 + $0x50] sm:$0xff]
  %v105 = vld [vmem:[%s2 + $0x58] sm:$0xff]
  %v106 = vld [vmem:[%s2 + $0x60] sm:$0xff]
  %v107 = vld [vmem:[%s2 + $0x68] sm:$0xff]
  %v108 = vld [vmem:[%s2 + $0x70] sm:$0xff]
  %v109 = vld [vmem:[%s2 + $0x78] sm:$0xff]
  %v110 = vld [vmem:[%s2 + $0x80] sm:$0xff]
  %v111 = vld [vmem:[%s2 + $0x88] sm:$0xff]
  %v112 = vld [vmem:[%s2 + $0x90] sm:$0xff]
  %v113 = vld [vmem:[%s2 + $0x98] sm:$0xff]
  %v114 = vld [vmem:[%s2 + $0xa0] sm:$0xff]
  %v115 = vld [vmem:[%s2 + $0xa8] sm:$0xff]
  %v116 = vld [vmem:[%s2 + $0xb0] sm:$0xff]
  %v117 = vld [vmem:[%s2 + $0xb8] sm:$0xff]
  %v118 = vld [vmem:[%s2 + $0xc0] sm:$0xff]
  %v119 = vld [vmem:[%s2 + $0xc8] sm:$0xff]
  %v120 = vld [vmem:[%s2 + $0xd0] sm:$0xff]
  %v121 = vld [vmem:[%s2 + $0xd8] sm:$0xff]
  %v122 = vld [vmem:[%s2 + $0xe0] sm:$0xff]
  %v123 = vld [vmem:[%s2 + $0xe8] sm:$0xff]
  %v124 = vld [vmem:[%s2 + $0xf0] sm:$0xff]
  %v125 = vld [vmem:[%s2 + $0xf8] sm:$0xff]
  %v142 = vunpack.c.l.b16 %v78
  %v143 = vunpack.c.l.b16 %v79
  %v144 = vunpack.c.l.b16 %v80
  %v145 = vunpack.c.l.b16 %v81
  %v146 = vunpack.c.l.b16 %v82
  %v147 = vunpack.c.l.b16 %v83
  %v148 = vunpack.c.l.b16 %v84
  %v149 = vunpack.c.l.b16 %v85
  %v150 = vunpack.c.l.b16 %v86
  %v151 = vunpack.c.l.b16 %v87
  %v152 = vunpack.c.l.b16 %v88
  %v153 = vunpack.c.l.b16 %v89
  %v154 = vunpack.c.l.b16 %v90
  %v155 = vunpack.c.l.b16 %v91
  %v156 = vunpack.c.l.b16 %v92
  %v157 = vunpack.c.l.b16 %v93
  %v158 = vpack.c.b16 %v143, %v142
  %v159 = vpack.c.b16 %v145, %v144
  %v160 = vpack.c.b16 %v147, %v146
  %v161 = vpack.c.b16 %v149, %v148
  %v162 = vpack.c.b16 %v151, %v150
  %v163 = vpack.c.b16 %v153, %v152
  %v164 = vpack.c.b16 %v155, %v154
  %v165 = vpack.c.b16 %v157, %v156
  %v206 = vunpack.c.l.b16 %v94
  %v207 = vunpack.c.h.b16 %v94
  %v208 = vunpack.c.l.b16 %v95
  %v209 = vunpack.c.h.b16 %v95
  %v210 = vunpack.c.l.b16 %v96
  %v211 = vunpack.c.h.b16 %v96
  %v212 = vunpack.c.l.b16 %v97
  %v213 = vunpack.c.h.b16 %v97
  %v214 = vunpack.c.l.b16 %v98
  %v215 = vunpack.c.h.b16 %v98
  %v216 = vunpack.c.l.b16 %v99
  %v217 = vunpack.c.h.b16 %v99
  %v218 = vunpack.c.l.b16 %v100
  %v219 = vunpack.c.h.b16 %v100
  %v220 = vunpack.c.l.b16 %v101
  %v221 = vunpack.c.h.b16 %v101
  %v222 = vunpack.c.l.b16 %v102
  %v223 = vunpack.c.h.b16 %v102
  %v224 = vunpack.c.l.b16 %v103
  %v225 = vunpack.c.h.b16 %v103
  %v226 = vunpack.c.l.b16 %v104
  %v227 = vunpack.c.h.b16 %v104
  %v228 = vunpack.c.l.b16 %v105
  %v229 = vunpack.c.h.b16 %v105
  %v230 = vunpack.c.l.b16 %v106
  %v231 = vunpack.c.h.b16 %v106
  %v232 = vunpack.c.l.b16 %v107
  %v233 = vunpack.c.h.b16 %v107
  %v234 = vunpack.c.l.b16 %v108
  %v235 = vunpack.c.h.b16 %v108
  %v236 = vunpack.c.l.b16 %v109
  %v237 = vunpack.c.h.b16 %v109
  %v238 = vunpack.c.l.b16 %v110
  %v239 = vunpack.c.h.b16 %v110
  %v240 = vunpack.c.l.b16 %v111
  %v241 = vunpack.c.h.b16 %v111
  %v242 = vunpack.c.l.b16 %v112
  %v243 = vunpack.c.h.b16 %v112
  %v244 = vunpack.c.l.b16 %v113
  %v245 = vunpack.c.h.b16 %v113
  %v246 = vunpack.c.l.b16 %v114
  %v247 = vunpack.c.h.b16 %v114
  %v248 = vunpack.c.l.b16 %v115
  %v249 = vunpack.c.h.b16 %v115
  %v250 = vunpack.c.l.b16 %v116
  %v251 = vunpack.c.h.b16 %v116
  %v252 = vunpack.c.l.b16 %v117
  %v253 = vunpack.c.h.b16 %v117
  %v254 = vunpack.c.l.b16 %v118
  %v255 = vunpack.c.h.b16 %v118
  %v256 = vunpack.c.l.b16 %v119
  %v257 = vunpack.c.h.b16 %v119
  %v258 = vunpack.c.l.b16 %v120
  %v259 = vunpack.c.h.b16 %v120
  %v260 = vunpack.c.l.b16 %v121
  %v261 = vunpack.c.h.b16 %v121
  %v262 = vunpack.c.l.b16 %v122
  %v263 = vunpack.c.h.b16 %v122
  %v264 = vunpack.c.l.b16 %v123
  %v265 = vunpack.c.h.b16 %v123
  %v266 = vunpack.c.l.b16 %v124
  %v267 = vunpack.c.h.b16 %v124
  %v268 = vunpack.c.l.b16 %v125
  %v269 = vunpack.c.h.b16 %v125
  %v270 = vpack.c.b16 %v210, %v206
  %v271 = vpack.c.b16 %v211, %v207
  %v272 = vpack.c.b16 %v212, %v208
  %v273 = vpack.c.b16 %v213, %v209
  %v274 = vpack.c.b16 %v218, %v214
  %v275 = vpack.c.b16 %v219, %v215
  %v276 = vpack.c.b16 %v220, %v216
  %v277 = vpack.c.b16 %v221, %v217
  %v278 = vpack.c.b16 %v226, %v222
  %v279 = vpack.c.b16 %v227, %v223
  %v280 = vpack.c.b16 %v228, %v224
  %v281 = vpack.c.b16 %v229, %v225
  %v282 = vpack.c.b16 %v234, %v230
  %v283 = vpack.c.b16 %v235, %v231
  %v284 = vpack.c.b16 %v236, %v232
  %v285 = vpack.c.b16 %v237, %v233
  %v286 = vpack.c.b16 %v242, %v238
  %v287 = vpack.c.b16 %v243, %v239
  %v288 = vpack.c.b16 %v244, %v240
  %v289 = vpack.c.b16 %v245, %v241
  %v290 = vpack.c.b16 %v250, %v246
  %v291 = vpack.c.b16 %v251, %v247
  %v292 = vpack.c.b16 %v252, %v248
  %v293 = vpack.c.b16 %v253, %v249
  %v294 = vpack.c.b16 %v258, %v254
  %v295 = vpack.c.b16 %v259, %v255
  %v296 = vpack.c.b16 %v260, %v256
  %v297 = vpack.c.b16 %v261, %v257
  %v298 = vpack.c.b16 %v266, %v262
  %v299 = vpack.c.b16 %v267, %v263
  %v300 = vpack.c.b16 %v268, %v264
  %v301 = vpack.c.b16 %v269, %v265
  %334 = vmatpush.bf16.msra.mxu0 %v298
  %335 = vmatpush.bf16.msra.mxu0 %v294
  %336 = vmatpush.bf16.msra.mxu0 %v290
  %337 = vmatpush.bf16.msra.mxu0 %v286
  %338 = vmatpush.bf16.msra.mxu0 %v282
  %339 = vmatpush.bf16.msra.mxu0 %v278
  %340 = vmatpush.bf16.msra.mxu0 %v274
  %341 = vmatpush.bf16.msra.mxu0 %v270
  %342 = vmatmul.bf16.gmra.mxu0 %v158
  %v343 = vpop.f32.mrf.mxu0
  %v344 = vadd.f32 0.0, %v343
  %v345 = vpop.f32.mrf.mxu0
  %v346 = vadd.f32 0.0, %v345
  %347 = vmatmul.bf16.gmra.mxu0 %v159
  %v348 = vpop.f32.mrf.mxu0
  %v349 = vadd.f32 0.0, %v348
  %v350 = vpop.f32.mrf.mxu0
  %v351 = vadd.f32 0.0, %v350
  %352 = vmatmul.bf16.gmra.mxu0 %v160
  %v353 = vpop.f32.mrf.mxu0
  %v354 = vadd.f32 0.0, %v353
  %v355 = vpop.f32.mrf.mxu0
  %v356 = vadd.f32 0.0, %v355
  %357 = vmatmul.bf16.gmra.mxu0 %v161
  %v358 = vpop.f32.mrf.mxu0
  %v359 = vadd.f32 0.0, %v358
  %v360 = vpop.f32.mrf.mxu0
  %v361 = vadd.f32 0.0, %v360
  %362 = vmatmul.bf16.gmra.mxu0 %v162
  %v363 = vpop.f32.mrf.mxu0
  %v364 = vadd.f32 0.0, %v363
  %v365 = vpop.f32.mrf.mxu0
  %v366 = vadd.f32 0.0, %v365
  %367 = vmatmul.bf16.gmra.mxu0 %v163
  %v368 = vpop.f32.mrf.mxu0
  %v369 = vadd.f32 0.0, %v368
  %v370 = vpop.f32.mrf.mxu0
  %v371 = vadd.f32 0.0, %v370
  %372 = vmatmul.bf16.gmra.mxu0 %v164
  %v373 = vpop.f32.mrf.mxu0
  %v374 = vadd.f32 0.0, %v373
  %v375 = vpop.f32.mrf.mxu0
  %v376 = vadd.f32 0.0, %v375
  %377 = vmatmul.bf16.gmra.mxu0 %v165
  %v378 = vpop.f32.mrf.mxu0
  %v379 = vadd.f32 0.0, %v378
  %v380 = vpop.f32.mrf.mxu0
  %v381 = vadd.f32 0.0, %v380
  %382 = vdwg.mxu0
  %383 = vmatpush.bf16.msra.mxu0 %v299
  %384 = vmatpush.bf16.msra.mxu0 %v295
  %385 = vmatpush.bf16.msra.mxu0 %v291
  %386 = vmatpush.bf16.msra.mxu0 %v287
  %387 = vmatpush.bf16.msra.mxu0 %v283
  %388 = vmatpush.bf16.msra.mxu0 %v279
  %389 = vmatpush.bf16.msra.mxu0 %v275
  %390 = vmatpush.bf16.msra.mxu0 %v271
  %391 = vmatmul.bf16.gmra.mxu0 %v158
  %v392 = vpop.f32.mrf.mxu0
  %v393 = vadd.f32 0.0, %v392
  %v394 = vpop.f32.mrf.mxu0
  %v395 = vadd.f32 0.0, %v394
  %396 = vmatmul.bf16.gmra.mxu0 %v159
  %v397 = vpop.f32.mrf.mxu0
  %v398 = vadd.f32 0.0, %v397
  %v399 = vpop.f32.mrf.mxu0
  %v400 = vadd.f32 0.0, %v399
  %401 = vmatmul.bf16.gmra.mxu0 %v160
  %v402 = vpop.f32.mrf.mxu0
  %v403 = vadd.f32 0.0, %v402
  %v404 = vpop.f32.mrf.mxu0
  %v405 = vadd.f32 0.0, %v404
  %406 = vmatmul.bf16.gmra.mxu0 %v161
  %v407 = vpop.f32.mrf.mxu0
  %v408 = vadd.f32 0.0, %v407
  %v409 = vpop.f32.mrf.mxu0
  %v410 = vadd.f32 0.0, %v409
  %411 = vmatmul.bf16.gmra.mxu0 %v162
  %v412 = vpop.f32.mrf.mxu0
  %v413 = vadd.f32 0.0, %v412
  %v414 = vpop.f32.mrf.mxu0
  %v415 = vadd.f32 0.0, %v414
  %416 = vmatmul.bf16.gmra.mxu0 %v163
  %v417 = vpop.f32.mrf.mxu0
  %v418 = vadd.f32 0.0, %v417
  %v419 = vpop.f32.mrf.mxu0
  %v420 = vadd.f32 0.0, %v419
  %421 = vmatmul.bf16.gmra.mxu0 %v164
  %v422 = vpop.f32.mrf.mxu0
  %v423 = vadd.f32 0.0, %v422
  %v424 = vpop.f32.mrf.mxu0
  %v425 = vadd.f32 0.0, %v424
  %426 = vmatmul.bf16.gmra.mxu0 %v165
  %v427 = vpop.f32.mrf.mxu0
  %v428 = vadd.f32 0.0, %v427
  %v429 = vpop.f32.mrf.mxu0
  %v430 = vadd.f32 0.0, %v429
  %431 = vdwg.mxu0
  %432 = vmatpush.bf16.msra.mxu0 %v300
  %433 = vmatpush.bf16.msra.mxu0 %v296
  %434 = vmatpush.bf16.msra.mxu0 %v292
  %435 = vmatpush.bf16.msra.mxu0 %v288
  %436 = vmatpush.bf16.msra.mxu0 %v284
  %437 = vmatpush.bf16.msra.mxu0 %v280
  %438 = vmatpush.bf16.msra.mxu0 %v276
  %439 = vmatpush.bf16.msra.mxu0 %v272
  %440 = vmatmul.bf16.gmra.mxu0 %v158
  %v441 = vpop.f32.mrf.mxu0
  %v442 = vadd.f32 0.0, %v441
  %v443 = vpop.f32.mrf.mxu0
  %v444 = vadd.f32 0.0, %v443
  %445 = vmatmul.bf16.gmra.mxu0 %v159
  %v446 = vpop.f32.mrf.mxu0
  %v447 = vadd.f32 0.0, %v446
  %v448 = vpop.f32.mrf.mxu0
  %v449 = vadd.f32 0.0, %v448
  %450 = vmatmul.bf16.gmra.mxu0 %v160
  %v451 = vpop.f32.mrf.mxu0
  %v452 = vadd.f32 0.0, %v451
  %v453 = vpop.f32.mrf.mxu0
  %v454 = vadd.f32 0.0, %v453
  %455 = vmatmul.bf16.gmra.mxu0 %v161
  %v456 = vpop.f32.mrf.mxu0
  %v457 = vadd.f32 0.0, %v456
  %v458 = vpop.f32.mrf.mxu0
  %v459 = vadd.f32 0.0, %v458
  %460 = vmatmul.bf16.gmra.mxu0 %v162
  %v461 = vpop.f32.mrf.mxu0
  %v462 = vadd.f32 0.0, %v461
  %v463 = vpop.f32.mrf.mxu0
  %v464 = vadd.f32 0.0, %v463
  %465 = vmatmul.bf16.gmra.mxu0 %v163
  %v466 = vpop.f32.mrf.mxu0
  %v467 = vadd.f32 0.0, %v466
  %v468 = vpop.f32.mrf.mxu0
  %v469 = vadd.f32 0.0, %v468
  %470 = vmatmul.bf16.gmra.mxu0 %v164
  %v471 = vpop.f32.mrf.mxu0
  %v472 = vadd.f32 0.0, %v471
  %v473 = vpop.f32.mrf.mxu0
  %v474 = vadd.f32 0.0, %v473
  %475 = vmatmul.bf16.gmra.mxu0 %v165
  %v476 = vpop.f32.mrf.mxu0
  %v477 = vadd.f32 0.0, %v476
  %v478 = vpop.f32.mrf.mxu0
  %v479 = vadd.f32 0.0, %v478
  %480 = vdwg.mxu0
  %481 = vmatpush.bf16.msra.mxu0 %v301
  %482 = vmatpush.bf16.msra.mxu0 %v297
  %483 = vmatpush.bf16.msra.mxu0 %v293
  %484 = vmatpush.bf16.msra.mxu0 %v289
  %485 = vmatpush.bf16.msra.mxu0 %v285
  %486 = vmatpush.bf16.msra.mxu0 %v281
  %487 = vmatpush.bf16.msra.mxu0 %v277
  %488 = vmatpush.bf16.msra.mxu0 %v273
  %489 = vmatmul.bf16.gmra.mxu0 %v158
  %v490 = vpop.f32.mrf.mxu0
  %v491 = vadd.f32 0.0, %v490
  %v492 = vpop.f32.mrf.mxu0
  %v493 = vadd.f32 0.0, %v492
  %494 = vmatmul.bf16.gmra.mxu0 %v159
  %v495 = vpop.f32.mrf.mxu0
  %v496 = vadd.f32 0.0, %v495
  %v497 = vpop.f32.mrf.mxu0
  %v498 = vadd.f32 0.0, %v497
  %499 = vmatmul.bf16.gmra.mxu0 %v160
  %v500 = vpop.f32.mrf.mxu0
  %v501 = vadd.f32 0.0, %v500
  %v502 = vpop.f32.mrf.mxu0
  %v503 = vadd.f32 0.0, %v502
  %504 = vmatmul.bf16.gmra.mxu0 %v161
  %v505 = vpop.f32.mrf.mxu0
  %v506 = vadd.f32 0.0, %v505
  %v507 = vpop.f32.mrf.mxu0
  %v508 = vadd.f32 0.0, %v507
  %509 = vmatmul.bf16.gmra.mxu0 %v162
  %v510 = vpop.f32.mrf.mxu0
  %v511 = vadd.f32 0.0, %v510
  %v512 = vpop.f32.mrf.mxu0
  %v513 = vadd.f32 0.0, %v512
  %514 = vmatmul.bf16.gmra.mxu0 %v163
  %v515 = vpop.f32.mrf.mxu0
  %v516 = vadd.f32 0.0, %v515
  %v517 = vpop.f32.mrf.mxu0
  %v518 = vadd.f32 0.0, %v517
  %519 = vmatmul.bf16.gmra.mxu0 %v164
  %v520 = vpop.f32.mrf.mxu0
  %v521 = vadd.f32 0.0, %v520
  %v522 = vpop.f32.mrf.mxu0
  %v523 = vadd.f32 0.0, %v522
  %524 = vmatmul.bf16.gmra.mxu0 %v165
  %v525 = vpop.f32.mrf.mxu0
  %v526 = vadd.f32 0.0, %v525
  %v527 = vpop.f32.mrf.mxu0
  %v528 = vadd.f32 0.0, %v527
  %529 = vdwg.mxu0
  %v530 = vperm.slane %v24, 0
  %v531 = vadd.f32 %v344, %v530
  %v532 = vadd.f32 %v346, %v530
  %v533 = vadd.f32 %v349, %v530
  %v534 = vadd.f32 %v351, %v530
  %v535 = vadd.f32 %v354, %v530
  %v536 = vadd.f32 %v356, %v530
  %v537 = vadd.f32 %v359, %v530
  %v538 = vadd.f32 %v361, %v530
  %v539 = vadd.f32 %v364, %v530
  %v540 = vadd.f32 %v366, %v530
  %v541 = vadd.f32 %v369, %v530
  %v542 = vadd.f32 %v371, %v530
  %v543 = vadd.f32 %v374, %v530
  %v544 = vadd.f32 %v376, %v530
  %v545 = vadd.f32 %v379, %v530
  %v546 = vadd.f32 %v381, %v530
  %v547 = vadd.f32 %v393, %v530
  %v548 = vadd.f32 %v395, %v530
  %v549 = vadd.f32 %v398, %v530
  %v550 = vadd.f32 %v400, %v530
  %v551 = vadd.f32 %v403, %v530
  %v552 = vadd.f32 %v405, %v530
  %v553 = vadd.f32 %v408, %v530
  %v554 = vadd.f32 %v410, %v530
  %v555 = vadd.f32 %v413, %v530
  %v556 = vadd.f32 %v415, %v530
  %v557 = vadd.f32 %v418, %v530
  %v558 = vadd.f32 %v420, %v530
  %v559 = vadd.f32 %v423, %v530
  %v560 = vadd.f32 %v425, %v530
  %v561 = vadd.f32 %v428, %v530
  %v562 = vadd.f32 %v430, %v530
  %v579 = vrot.slane %v531, 1
  %v580 = vrot.slane %v531, 2
  %v581 = vrot.slane %v531, 3
  %v582 = vrot.slane %v531, 4
  %v583 = vrot.slane %v531, 5
  %v584 = vrot.slane %v531, 6
  %v585 = vrot.slane %v531, 7
  %v586 = vrot.slane %v532, 1
  %v587 = vrot.slane %v532, 2
  %v588 = vrot.slane %v532, 3
  %v589 = vrot.slane %v532, 4
  %v590 = vrot.slane %v532, 5
  %v591 = vrot.slane %v532, 6
  %v592 = vrot.slane %v532, 7
  %v593 = vrot.slane %v533, 1
  %v594 = vrot.slane %v533, 2
  %v595 = vrot.slane %v533, 3
  %v596 = vrot.slane %v533, 4
  %v597 = vrot.slane %v533, 5
  %v598 = vrot.slane %v533, 6
  %v599 = vrot.slane %v533, 7
  %v600 = vrot.slane %v534, 1
  %v601 = vrot.slane %v534, 2
  %v602 = vrot.slane %v534, 3
  %v603 = vrot.slane %v534, 4
  %v604 = vrot.slane %v534, 5
  %v605 = vrot.slane %v534, 6
  %v606 = vrot.slane %v534, 7
  %v607 = vrot.slane %v535, 1
  %v608 = vrot.slane %v535, 2
  %v609 = vrot.slane %v535, 3
  %v610 = vrot.slane %v535, 4
  %v611 = vrot.slane %v535, 5
  %v612 = vrot.slane %v535, 6
  %v613 = vrot.slane %v535, 7
  %v614 = vrot.slane %v536, 1
  %v615 = vrot.slane %v536, 2
  %v616 = vrot.slane %v536, 3
  %v617 = vrot.slane %v536, 4
  %v618 = vrot.slane %v536, 5
  %v619 = vrot.slane %v536, 6
  %v620 = vrot.slane %v536, 7
  %v621 = vrot.slane %v537, 1
  %v622 = vrot.slane %v537, 2
  %v623 = vrot.slane %v537, 3
  %v624 = vrot.slane %v537, 4
  %v625 = vrot.slane %v537, 5
  %v626 = vrot.slane %v537, 6
  %v627 = vrot.slane %v537, 7
  %v628 = vrot.slane %v538, 1
  %v629 = vrot.slane %v538, 2
  %v630 = vrot.slane %v538, 3
  %v631 = vrot.slane %v538, 4
  %v632 = vrot.slane %v538, 5
  %v633 = vrot.slane %v538, 6
  %v634 = vrot.slane %v538, 7
  %v635 = vrot.slane %v539, 1
  %v636 = vrot.slane %v539, 2
  %v637 = vrot.slane %v539, 3
  %v638 = vrot.slane %v539, 4
  %v639 = vrot.slane %v539, 5
  %v640 = vrot.slane %v539, 6
  %v641 = vrot.slane %v539, 7
  %v642 = vrot.slane %v540, 1
  %v643 = vrot.slane %v540, 2
  %v644 = vrot.slane %v540, 3
  %v645 = vrot.slane %v540, 4
  %v646 = vrot.slane %v540, 5
  %v647 = vrot.slane %v540, 6
  %v648 = vrot.slane %v540, 7
  %v649 = vrot.slane %v541, 1
  %v650 = vrot.slane %v541, 2
  %v651 = vrot.slane %v541, 3
  %v652 = vrot.slane %v541, 4
  %v653 = vrot.slane %v541, 5
  %v654 = vrot.slane %v541, 6
  %v655 = vrot.slane %v541, 7
  %v656 = vrot.slane %v542, 1
  %v657 = vrot.slane %v542, 2
  %v658 = vrot.slane %v542, 3
  %v659 = vrot.slane %v542, 4
  %v660 = vrot.slane %v542, 5
  %v661 = vrot.slane %v542, 6
  %v662 = vrot.slane %v542, 7
  %v663 = vrot.slane %v543, 1
  %v664 = vrot.slane %v543, 2
  %v665 = vrot.slane %v543, 3
  %v666 = vrot.slane %v543, 4
  %v667 = vrot.slane %v543, 5
  %v668 = vrot.slane %v543, 6
  %v669 = vrot.slane %v543, 7
  %v670 = vrot.slane %v544, 1
  %v671 = vrot.slane %v544, 2
  %v672 = vrot.slane %v544, 3
  %v673 = vrot.slane %v544, 4
  %v674 = vrot.slane %v544, 5
  %v675 = vrot.slane %v544, 6
  %v676 = vrot.slane %v544, 7
  %v677 = vrot.slane %v545, 1
  %v678 = vrot.slane %v545, 2
  %v679 = vrot.slane %v545, 3
  %v680 = vrot.slane %v545, 4
  %v681 = vrot.slane %v545, 5
  %v682 = vrot.slane %v545, 6
  %v683 = vrot.slane %v545, 7
  %v684 = vrot.slane %v546, 1
  %v685 = vrot.slane %v546, 2
  %v686 = vrot.slane %v546, 3
  %v687 = vrot.slane %v546, 4
  %v688 = vrot.slane %v546, 5
  %v689 = vrot.slane %v546, 6
  %v690 = vrot.slane %v546, 7
  %v819 = vrot.slane %v547, 1
  %v820 = vrot.slane %v547, 2
  %v821 = vrot.slane %v547, 3
  %v822 = vrot.slane %v547, 4
  %v823 = vrot.slane %v547, 5
  %v824 = vrot.slane %v547, 6
  %v825 = vrot.slane %v547, 7
  %v826 = vrot.slane %v548, 1
  %v827 = vrot.slane %v548, 2
  %v828 = vrot.slane %v548, 3
  %v829 = vrot.slane %v548, 4
  %v830 = vrot.slane %v548, 5
  %v831 = vrot.slane %v548, 6
  %v832 = vrot.slane %v548, 7
  %v833 = vrot.slane %v549, 1
  %v834 = vrot.slane %v549, 2
  %v835 = vrot.slane %v549, 3
  %v836 = vrot.slane %v549, 4
  %v837 = vrot.slane %v549, 5
  %v838 = vrot.slane %v549, 6
  %v839 = vrot.slane %v549, 7
  %v840 = vrot.slane %v550, 1
  %v841 = vrot.slane %v550, 2
  %v842 = vrot.slane %v550, 3
  %v843 = vrot.slane %v550, 4
  %v844 = vrot.slane %v550, 5
  %v845 = vrot.slane %v550, 6
  %v846 = vrot.slane %v550, 7
  %v847 = vrot.slane %v551, 1
  %v848 = vrot.slane %v551, 2
  %v849 = vrot.slane %v551, 3
  %v850 = vrot.slane %v551, 4
  %v851 = vrot.slane %v551, 5
  %v852 = vrot.slane %v551, 6
  %v853 = vrot.slane %v551, 7
  %v854 = vrot.slane %v552, 1
  %v855 = vrot.slane %v552, 2
  %v856 = vrot.slane %v552, 3
  %v857 = vrot.slane %v552, 4
  %v858 = vrot.slane %v552, 5
  %v859 = vrot.slane %v552, 6
  %v860 = vrot.slane %v552, 7
  %v861 = vrot.slane %v553, 1
  %v862 = vrot.slane %v553, 2
  %v863 = vrot.slane %v553, 3
  %v864 = vrot.slane %v553, 4
  %v865 = vrot.slane %v553, 5
  %v866 = vrot.slane %v553, 6
  %v867 = vrot.slane %v553, 7
  %v868 = vrot.slane %v554, 1
  %v869 = vrot.slane %v554, 2
  %v870 = vrot.slane %v554, 3
  %v871 = vrot.slane %v554, 4
  %v872 = vrot.slane %v554, 5
  %v873 = vrot.slane %v554, 6
  %v874 = vrot.slane %v554, 7
  %v875 = vrot.slane %v555, 1
  %v876 = vrot.slane %v555, 2
  %v877 = vrot.slane %v555, 3
  %v878 = vrot.slane %v555, 4
  %v879 = vrot.slane %v555, 5
  %v880 = vrot.slane %v555, 6
  %v881 = vrot.slane %v555, 7
  %v882 = vrot.slane %v556, 1
  %v883 = vrot.slane %v556, 2
  %v884 = vrot.slane %v556, 3
  %v885 = vrot.slane %v556, 4
  %v886 = vrot.slane %v556, 5
  %v887 = vrot.slane %v556, 6
  %v888 = vrot.slane %v556, 7
  %v889 = vrot.slane %v557, 1
  %v890 = vrot.slane %v557, 2
  %v891 = vrot.slane %v557, 3
  %v892 = vrot.slane %v557, 4
  %v893 = vrot.slane %v557, 5
  %v894 = vrot.slane %v557, 6
  %v895 = vrot.slane %v557, 7
  %v896 = vrot.slane %v558, 1
  %v897 = vrot.slane %v558, 2
  %v898 = vrot.slane %v558, 3
  %v899 = vrot.slane %v558, 4
  %v900 = vrot.slane %v558, 5
  %v901 = vrot.slane %v558, 6
  %v902 = vrot.slane %v558, 7
  %v903 = vrot.slane %v559, 1
  %v904 = vrot.slane %v559, 2
  %v905 = vrot.slane %v559, 3
  %v906 = vrot.slane %v559, 4
  %v907 = vrot.slane %v559, 5
  %v908 = vrot.slane %v559, 6
  %v909 = vrot.slane %v559, 7
  %v910 = vrot.slane %v560, 1
  %v911 = vrot.slane %v560, 2
  %v912 = vrot.slane %v560, 3
  %v913 = vrot.slane %v560, 4
  %v914 = vrot.slane %v560, 5
  %v915 = vrot.slane %v560, 6
  %v916 = vrot.slane %v560, 7
  %v917 = vrot.slane %v561, 1
  %v918 = vrot.slane %v561, 2
  %v919 = vrot.slane %v561, 3
  %v920 = vrot.slane %v561, 4
  %v921 = vrot.slane %v561, 5
  %v922 = vrot.slane %v561, 6
  %v923 = vrot.slane %v561, 7
  %v924 = vrot.slane %v562, 1
  %v925 = vrot.slane %v562, 2
  %v926 = vrot.slane %v562, 3
  %v927 = vrot.slane %v562, 4
  %v928 = vrot.slane %v562, 5
  %v929 = vrot.slane %v562, 6
  %v930 = vrot.slane %v562, 7
  %v931 = vperm.slane %v547, 0
  %v932 = vperm.slane %v819, 0
  %v933 = vperm.slane %v820, 0
  %v934 = vperm.slane %v821, 0
  %v935 = vperm.slane %v822, 0
  %v936 = vperm.slane %v823, 0
  %v937 = vperm.slane %v824, 0
  %v938 = vperm.slane %v825, 0
  %v939 = vperm.slane %v548, 0
  %v940 = vperm.slane %v826, 0
  %v941 = vperm.slane %v827, 0
  %v942 = vperm.slane %v828, 0
  %v943 = vperm.slane %v829, 0
  %v944 = vperm.slane %v830, 0
  %v945 = vperm.slane %v831, 0
  %v946 = vperm.slane %v832, 0
  %v947 = vperm.slane %v549, 0
  %v948 = vperm.slane %v833, 0
  %v949 = vperm.slane %v834, 0
  %v950 = vperm.slane %v835, 0
  %v951 = vperm.slane %v836, 0
  %v952 = vperm.slane %v837, 0
  %v953 = vperm.slane %v838, 0
  %v954 = vperm.slane %v839, 0
  %v955 = vperm.slane %v550, 0
  %v956 = vperm.slane %v840, 0
  %v957 = vperm.slane %v841, 0
  %v958 = vperm.slane %v842, 0
  %v959 = vperm.slane %v843, 0
  %v960 = vperm.slane %v844, 0
  %v961 = vperm.slane %v845, 0
  %v962 = vperm.slane %v846, 0
  %v963 = vperm.slane %v551, 0
  %v964 = vperm.slane %v847, 0
  %v965 = vperm.slane %v848, 0
  %v966 = vperm.slane %v849, 0
  %v967 = vperm.slane %v850, 0
  %v968 = vperm.slane %v851, 0
  %v969 = vperm.slane %v852, 0
  %v970 = vperm.slane %v853, 0
  %v971 = vperm.slane %v552, 0
  %v972 = vperm.slane %v854, 0
  %v973 = vperm.slane %v855, 0
  %v974 = vperm.slane %v856, 0
  %v975 = vperm.slane %v857, 0
  %v976 = vperm.slane %v858, 0
  %v977 = vperm.slane %v859, 0
  %v978 = vperm.slane %v860, 0
  %v979 = vperm.slane %v553, 0
  %v980 = vperm.slane %v861, 0
  %v981 = vperm.slane %v862, 0
  %v982 = vperm.slane %v863, 0
  %v983 = vperm.slane %v864, 0
  %v984 = vperm.slane %v865, 0
  %v985 = vperm.slane %v866, 0
  %v986 = vperm.slane %v867, 0
  %v987 = vperm.slane %v554, 0
  %v988 = vperm.slane %v868, 0
  %v989 = vperm.slane %v869, 0
  %v990 = vperm.slane %v870, 0
  %v991 = vperm.slane %v871, 0
  %v992 = vperm.slane %v872, 0
  %v993 = vperm.slane %v873, 0
  %v994 = vperm.slane %v874, 0
  %v995 = vperm.slane %v555, 0
  %v996 = vperm.slane %v875, 0
  %v997 = vperm.slane %v876, 0
  %v998 = vperm.slane %v877, 0
  %v999 = vperm.slane %v878, 0
  %v1000 = vperm.slane %v879, 0
  %v1001 = vperm.slane %v880, 0
  %v1002 = vperm.slane %v881, 0
  %v1003 = vperm.slane %v556, 0
  %v1004 = vperm.slane %v882, 0
  %v1005 = vperm.slane %v883, 0
  %v1006 = vperm.slane %v884, 0
  %v1007 = vperm.slane %v885, 0
  %v1008 = vperm.slane %v886, 0
  %v1009 = vperm.slane %v887, 0
  %v1010 = vperm.slane %v888, 0
  %v1011 = vperm.slane %v557, 0
  %v1012 = vperm.slane %v889, 0
  %v1013 = vperm.slane %v890, 0
  %v1014 = vperm.slane %v891, 0
  %v1015 = vperm.slane %v892, 0
  %v1016 = vperm.slane %v893, 0
  %v1017 = vperm.slane %v894, 0
  %v1018 = vperm.slane %v895, 0
  %v1019 = vperm.slane %v558, 0
  %v1020 = vperm.slane %v896, 0
  %v1021 = vperm.slane %v897, 0
  %v1022 = vperm.slane %v898, 0
  %v1023 = vperm.slane %v899, 0
  %v1024 = vperm.slane %v900, 0
  %v1025 = vperm.slane %v901, 0
  %v1026 = vperm.slane %v902, 0
  %v1027 = vperm.slane %v559, 0
  %v1028 = vperm.slane %v903, 0
  %v1029 = vperm.slane %v904, 0
  %v1030 = vperm.slane %v905, 0
  %v1031 = vperm.slane %v906, 0
  %v1032 = vperm.slane %v907, 0
  %v1033 = vperm.slane %v908, 0
  %v1034 = vperm.slane %v909, 0
  %v1035 = vperm.slane %v560, 0
  %v1036 = vperm.slane %v910, 0
  %v1037 = vperm.slane %v911, 0
  %v1038 = vperm.slane %v912, 0
  %v1039 = vperm.slane %v913, 0
  %v1040 = vperm.slane %v914, 0
  %v1041 = vperm.slane %v915, 0
  %v1042 = vperm.slane %v916, 0
  %v1043 = vperm.slane %v561, 0
  %v1044 = vperm.slane %v917, 0
  %v1045 = vperm.slane %v918, 0
  %v1046 = vperm.slane %v919, 0
  %v1047 = vperm.slane %v920, 0
  %v1048 = vperm.slane %v921, 0
  %v1049 = vperm.slane %v922, 0
  %v1050 = vperm.slane %v923, 0
  %v1051 = vperm.slane %v562, 0
  %v1052 = vperm.slane %v924, 0
  %v1053 = vperm.slane %v925, 0
  %v1054 = vperm.slane %v926, 0
  %v1055 = vperm.slane %v927, 0
  %v1056 = vperm.slane %v928, 0
  %v1057 = vperm.slane %v929, 0
  %v1058 = vperm.slane %v930, 0
  %vm1187 = vcmask 1040384
  %v1188 = vsel %vm1187, %v531, %v931
  %v1189 = vsel %vm1187, %v579, %v932
  %v1190 = vsel %vm1187, %v580, %v933
  %v1191 = vsel %vm1187, %v581, %v934
  %v1192 = vsel %vm1187, %v582, %v935
  %v1193 = vsel %vm1187, %v583, %v936
  %v1194 = vsel %vm1187, %v584, %v937
  %v1195 = vsel %vm1187, %v585, %v938
  %v1196 = vsel %vm1187, %v532, %v939
  %v1197 = vsel %vm1187, %v586, %v940
  %v1198 = vsel %vm1187, %v587, %v941
  %v1199 = vsel %vm1187, %v588, %v942
  %v1200 = vsel %vm1187, %v589, %v943
  %v1201 = vsel %vm1187, %v590, %v944
  %v1202 = vsel %vm1187, %v591, %v945
  %v1203 = vsel %vm1187, %v592, %v946
  %v1204 = vsel %vm1187, %v533, %v947
  %v1205 = vsel %vm1187, %v593, %v948
  %v1206 = vsel %vm1187, %v594, %v949
  %v1207 = vsel %vm1187, %v595, %v950
  %v1208 = vsel %vm1187, %v596, %v951
  %v1209 = vsel %vm1187, %v597, %v952
  %v1210 = vsel %vm1187, %v598, %v953
  %v1211 = vsel %vm1187, %v599, %v954
  %v1212 = vsel %vm1187, %v534, %v955
  %v1213 = vsel %vm1187, %v600, %v956
  %v1214 = vsel %vm1187, %v601, %v957
  %v1215 = vsel %vm1187, %v602, %v958
  %v1216 = vsel %vm1187, %v603, %v959
  %v1217 = vsel %vm1187, %v604, %v960
  %v1218 = vsel %vm1187, %v605, %v961
  %v1219 = vsel %vm1187, %v606, %v962
  %v1220 = vsel %vm1187, %v535, %v963
  %v1221 = vsel %vm1187, %v607, %v964
  %v1222 = vsel %vm1187, %v608, %v965
  %v1223 = vsel %vm1187, %v609, %v966
  %v1224 = vsel %vm1187, %v610, %v967
  %v1225 = vsel %vm1187, %v611, %v968
  %v1226 = vsel %vm1187, %v612, %v969
  %v1227 = vsel %vm1187, %v613, %v970
  %v1228 = vsel %vm1187, %v536, %v971
  %v1229 = vsel %vm1187, %v614, %v972
  %v1230 = vsel %vm1187, %v615, %v973
  %v1231 = vsel %vm1187, %v616, %v974
  %v1232 = vsel %vm1187, %v617, %v975
  %v1233 = vsel %vm1187, %v618, %v976
  %v1234 = vsel %vm1187, %v619, %v977
  %v1235 = vsel %vm1187, %v620, %v978
  %v1236 = vsel %vm1187, %v537, %v979
  %v1237 = vsel %vm1187, %v621, %v980
  %v1238 = vsel %vm1187, %v622, %v981
  %v1239 = vsel %vm1187, %v623, %v982
  %v1240 = vsel %vm1187, %v624, %v983
  %v1241 = vsel %vm1187, %v625, %v984
  %v1242 = vsel %vm1187, %v626, %v985
  %v1243 = vsel %vm1187, %v627, %v986
  %v1244 = vsel %vm1187, %v538, %v987
  %v1245 = vsel %vm1187, %v628, %v988
  %v1246 = vsel %vm1187, %v629, %v989
  %v1247 = vsel %vm1187, %v630, %v990
  %v1248 = vsel %vm1187, %v631, %v991
  %v1249 = vsel %vm1187, %v632, %v992
  %v1250 = vsel %vm1187, %v633, %v993
  %v1251 = vsel %vm1187, %v634, %v994
  %v1252 = vsel %vm1187, %v539, %v995
  %v1253 = vsel %vm1187, %v635, %v996
  %v1254 = vsel %vm1187, %v636, %v997
  %v1255 = vsel %vm1187, %v637, %v998
  %v1256 = vsel %vm1187, %v638, %v999
  %v1257 = vsel %vm1187, %v639, %v1000
  %v1258 = vsel %vm1187, %v640, %v1001
  %v1259 = vsel %vm1187, %v641, %v1002
  %v1260 = vsel %vm1187, %v540, %v1003
  %v1261 = vsel %vm1187, %v642, %v1004
  %v1262 = vsel %vm1187, %v643, %v1005
  %v1263 = vsel %vm1187, %v644, %v1006
  %v1264 = vsel %vm1187, %v645, %v1007
  %v1265 = vsel %vm1187, %v646, %v1008
  %v1266 = vsel %vm1187, %v647, %v1009
  %v1267 = vsel %vm1187, %v648, %v1010
  %v1268 = vsel %vm1187, %v541, %v1011
  %v1269 = vsel %vm1187, %v649, %v1012
  %v1270 = vsel %vm1187, %v650, %v1013
  %v1271 = vsel %vm1187, %v651, %v1014
  %v1272 = vsel %vm1187, %v652, %v1015
  %v1273 = vsel %vm1187, %v653, %v1016
  %v1274 = vsel %vm1187, %v654, %v1017
  %v1275 = vsel %vm1187, %v655, %v1018
  %v1276 = vsel %vm1187, %v542, %v1019
  %v1277 = vsel %vm1187, %v656, %v1020
  %v1278 = vsel %vm1187, %v657, %v1021
  %v1279 = vsel %vm1187, %v658, %v1022
  %v1280 = vsel %vm1187, %v659, %v1023
  %v1281 = vsel %vm1187, %v660, %v1024
  %v1282 = vsel %vm1187, %v661, %v1025
  %v1283 = vsel %vm1187, %v662, %v1026
  %v1284 = vsel %vm1187, %v543, %v1027
  %v1285 = vsel %vm1187, %v663, %v1028
  %v1286 = vsel %vm1187, %v664, %v1029
  %v1287 = vsel %vm1187, %v665, %v1030
  %v1288 = vsel %vm1187, %v666, %v1031
  %v1289 = vsel %vm1187, %v667, %v1032
  %v1290 = vsel %vm1187, %v668, %v1033
  %v1291 = vsel %vm1187, %v669, %v1034
  %v1292 = vsel %vm1187, %v544, %v1035
  %v1293 = vsel %vm1187, %v670, %v1036
  %v1294 = vsel %vm1187, %v671, %v1037
  %v1295 = vsel %vm1187, %v672, %v1038
  %v1296 = vsel %vm1187, %v673, %v1039
  %v1297 = vsel %vm1187, %v674, %v1040
  %v1298 = vsel %vm1187, %v675, %v1041
  %v1299 = vsel %vm1187, %v676, %v1042
  %v1300 = vsel %vm1187, %v545, %v1043
  %v1301 = vsel %vm1187, %v677, %v1044
  %v1302 = vsel %vm1187, %v678, %v1045
  %v1303 = vsel %vm1187, %v679, %v1046
  %v1304 = vsel %vm1187, %v680, %v1047
  %v1305 = vsel %vm1187, %v681, %v1048
  %v1306 = vsel %vm1187, %v682, %v1049
  %v1307 = vsel %vm1187, %v683, %v1050
  %v1308 = vsel %vm1187, %v546, %v1051
  %v1309 = vsel %vm1187, %v684, %v1052
  %v1310 = vsel %vm1187, %v685, %v1053
  %v1311 = vsel %vm1187, %v686, %v1054
  %v1312 = vsel %vm1187, %v687, %v1055
  %v1313 = vsel %vm1187, %v688, %v1056
  %v1314 = vsel %vm1187, %v689, %v1057
  %v1315 = vsel %vm1187, %v690, %v1058
  %v1316 = vadd.f32 %v442, %v530
  %v1317 = vadd.f32 %v444, %v530
  %v1318 = vadd.f32 %v447, %v530
  %v1319 = vadd.f32 %v449, %v530
  %v1320 = vadd.f32 %v452, %v530
  %v1321 = vadd.f32 %v454, %v530
  %v1322 = vadd.f32 %v457, %v530
  %v1323 = vadd.f32 %v459, %v530
  %v1324 = vadd.f32 %v462, %v530
  %v1325 = vadd.f32 %v464, %v530
  %v1326 = vadd.f32 %v467, %v530
  %v1327 = vadd.f32 %v469, %v530
  %v1328 = vadd.f32 %v472, %v530
  %v1329 = vadd.f32 %v474, %v530
  %v1330 = vadd.f32 %v477, %v530
  %v1331 = vadd.f32 %v479, %v530
  %v1332 = vadd.f32 %v491, %v530
  %v1333 = vadd.f32 %v493, %v530
  %v1334 = vadd.f32 %v496, %v530
  %v1335 = vadd.f32 %v498, %v530
  %v1336 = vadd.f32 %v501, %v530
  %v1337 = vadd.f32 %v503, %v530
  %v1338 = vadd.f32 %v506, %v530
  %v1339 = vadd.f32 %v508, %v530
  %v1340 = vadd.f32 %v511, %v530
  %v1341 = vadd.f32 %v513, %v530
  %v1342 = vadd.f32 %v516, %v530
  %v1343 = vadd.f32 %v518, %v530
  %v1344 = vadd.f32 %v521, %v530
  %v1345 = vadd.f32 %v523, %v530
  %v1346 = vadd.f32 %v526, %v530
  %v1347 = vadd.f32 %v528, %v530
  %v1364 = vrot.slane %v1316, 1
  %v1365 = vrot.slane %v1316, 2
  %v1366 = vrot.slane %v1316, 3
  %v1367 = vrot.slane %v1316, 4
  %v1368 = vrot.slane %v1316, 5
  %v1369 = vrot.slane %v1316, 6
  %v1370 = vrot.slane %v1316, 7
  %v1371 = vrot.slane %v1317, 1
  %v1372 = vrot.slane %v1317, 2
  %v1373 = vrot.slane %v1317, 3
  %v1374 = vrot.slane %v1317, 4
  %v1375 = vrot.slane %v1317, 5
  %v1376 = vrot.slane %v1317, 6
  %v1377 = vrot.slane %v1317, 7
  %v1378 = vrot.slane %v1318, 1
  %v1379 = vrot.slane %v1318, 2
  %v1380 = vrot.slane %v1318, 3
  %v1381 = vrot.slane %v1318, 4
  %v1382 = vrot.slane %v1318, 5
  %v1383 = vrot.slane %v1318, 6
  %v1384 = vrot.slane %v1318, 7
  %v1385 = vrot.slane %v1319, 1
  %v1386 = vrot.slane %v1319, 2
  %v1387 = vrot.slane %v1319, 3
  %v1388 = vrot.slane %v1319, 4
  %v1389 = vrot.slane %v1319, 5
  %v1390 = vrot.slane %v1319, 6
  %v1391 = vrot.slane %v1319, 7
  %v1392 = vrot.slane %v1320, 1
  %v1393 = vrot.slane %v1320, 2
  %v1394 = vrot.slane %v1320, 3
  %v1395 = vrot.slane %v1320, 4
  %v1396 = vrot.slane %v1320, 5
  %v1397 = vrot.slane %v1320, 6
  %v1398 = vrot.slane %v1320, 7
  %v1399 = vrot.slane %v1321, 1
  %v1400 = vrot.slane %v1321, 2
  %v1401 = vrot.slane %v1321, 3
  %v1402 = vrot.slane %v1321, 4
  %v1403 = vrot.slane %v1321, 5
  %v1404 = vrot.slane %v1321, 6
  %v1405 = vrot.slane %v1321, 7
  %v1406 = vrot.slane %v1322, 1
  %v1407 = vrot.slane %v1322, 2
  %v1408 = vrot.slane %v1322, 3
  %v1409 = vrot.slane %v1322, 4
  %v1410 = vrot.slane %v1322, 5
  %v1411 = vrot.slane %v1322, 6
  %v1412 = vrot.slane %v1322, 7
  %v1413 = vrot.slane %v1323, 1
  %v1414 = vrot.slane %v1323, 2
  %v1415 = vrot.slane %v1323, 3
  %v1416 = vrot.slane %v1323, 4
  %v1417 = vrot.slane %v1323, 5
  %v1418 = vrot.slane %v1323, 6
  %v1419 = vrot.slane %v1323, 7
  %v1420 = vrot.slane %v1324, 1
  %v1421 = vrot.slane %v1324, 2
  %v1422 = vrot.slane %v1324, 3
  %v1423 = vrot.slane %v1324, 4
  %v1424 = vrot.slane %v1324, 5
  %v1425 = vrot.slane %v1324, 6
  %v1426 = vrot.slane %v1324, 7
  %v1427 = vrot.slane %v1325, 1
  %v1428 = vrot.slane %v1325, 2
  %v1429 = vrot.slane %v1325, 3
  %v1430 = vrot.slane %v1325, 4
  %v1431 = vrot.slane %v1325, 5
  %v1432 = vrot.slane %v1325, 6
  %v1433 = vrot.slane %v1325, 7
  %v1434 = vrot.slane %v1326, 1
  %v1435 = vrot.slane %v1326, 2
  %v1436 = vrot.slane %v1326, 3
  %v1437 = vrot.slane %v1326, 4
  %v1438 = vrot.slane %v1326, 5
  %v1439 = vrot.slane %v1326, 6
  %v1440 = vrot.slane %v1326, 7
  %v1441 = vrot.slane %v1327, 1
  %v1442 = vrot.slane %v1327, 2
  %v1443 = vrot.slane %v1327, 3
  %v1444 = vrot.slane %v1327, 4
  %v1445 = vrot.slane %v1327, 5
  %v1446 = vrot.slane %v1327, 6
  %v1447 = vrot.slane %v1327, 7
  %v1448 = vrot.slane %v1328, 1
  %v1449 = vrot.slane %v1328, 2
  %v1450 = vrot.slane %v1328, 3
  %v1451 = vrot.slane %v1328, 4
  %v1452 = vrot.slane %v1328, 5
  %v1453 = vrot.slane %v1328, 6
  %v1454 = vrot.slane %v1328, 7
  %v1455 = vrot.slane %v1329, 1
  %v1456 = vrot.slane %v1329, 2
  %v1457 = vrot.slane %v1329, 3
  %v1458 = vrot.slane %v1329, 4
  %v1459 = vrot.slane %v1329, 5
  %v1460 = vrot.slane %v1329, 6
  %v1461 = vrot.slane %v1329, 7
  %v1462 = vrot.slane %v1330, 1
  %v1463 = vrot.slane %v1330, 2
  %v1464 = vrot.slane %v1330, 3
  %v1465 = vrot.slane %v1330, 4
  %v1466 = vrot.slane %v1330, 5
  %v1467 = vrot.slane %v1330, 6
  %v1468 = vrot.slane %v1330, 7
  %v1469 = vrot.slane %v1331, 1
  %v1470 = vrot.slane %v1331, 2
  %v1471 = vrot.slane %v1331, 3
  %v1472 = vrot.slane %v1331, 4
  %v1473 = vrot.slane %v1331, 5
  %v1474 = vrot.slane %v1331, 6
  %v1475 = vrot.slane %v1331, 7
  %v1604 = vrot.slane %v1332, 1
  %v1605 = vrot.slane %v1332, 2
  %v1606 = vrot.slane %v1332, 3
  %v1607 = vrot.slane %v1332, 4
  %v1608 = vrot.slane %v1332, 5
  %v1609 = vrot.slane %v1332, 6
  %v1610 = vrot.slane %v1332, 7
  %v1611 = vrot.slane %v1333, 1
  %v1612 = vrot.slane %v1333, 2
  %v1613 = vrot.slane %v1333, 3
  %v1614 = vrot.slane %v1333, 4
  %v1615 = vrot.slane %v1333, 5
  %v1616 = vrot.slane %v1333, 6
  %v1617 = vrot.slane %v1333, 7
  %v1618 = vrot.slane %v1334, 1
  %v1619 = vrot.slane %v1334, 2
  %v1620 = vrot.slane %v1334, 3
  %v1621 = vrot.slane %v1334, 4
  %v1622 = vrot.slane %v1334, 5
  %v1623 = vrot.slane %v1334, 6
  %v1624 = vrot.slane %v1334, 7
  %v1625 = vrot.slane %v1335, 1
  %v1626 = vrot.slane %v1335, 2
  %v1627 = vrot.slane %v1335, 3
  %v1628 = vrot.slane %v1335, 4
  %v1629 = vrot.slane %v1335, 5
  %v1630 = vrot.slane %v1335, 6
  %v1631 = vrot.slane %v1335, 7
  %v1632 = vrot.slane %v1336, 1
  %v1633 = vrot.slane %v1336, 2
  %v1634 = vrot.slane %v1336, 3
  %v1635 = vrot.slane %v1336, 4
  %v1636 = vrot.slane %v1336, 5
  %v1637 = vrot.slane %v1336, 6
  %v1638 = vrot.slane %v1336, 7
  %v1639 = vrot.slane %v1337, 1
  %v1640 = vrot.slane %v1337, 2
  %v1641 = vrot.slane %v1337, 3
  %v1642 = vrot.slane %v1337, 4
  %v1643 = vrot.slane %v1337, 5
  %v1644 = vrot.slane %v1337, 6
  %v1645 = vrot.slane %v1337, 7
  %v1646 = vrot.slane %v1338, 1
  %v1647 = vrot.slane %v1338, 2
  %v1648 = vrot.slane %v1338, 3
  %v1649 = vrot.slane %v1338, 4
  %v1650 = vrot.slane %v1338, 5
  %v1651 = vrot.slane %v1338, 6
  %v1652 = vrot.slane %v1338, 7
  %v1653 = vrot.slane %v1339, 1
  %v1654 = vrot.slane %v1339, 2
  %v1655 = vrot.slane %v1339, 3
  %v1656 = vrot.slane %v1339, 4
  %v1657 = vrot.slane %v1339, 5
  %v1658 = vrot.slane %v1339, 6
  %v1659 = vrot.slane %v1339, 7
  %v1660 = vrot.slane %v1340, 1
  %v1661 = vrot.slane %v1340, 2
  %v1662 = vrot.slane %v1340, 3
  %v1663 = vrot.slane %v1340, 4
  %v1664 = vrot.slane %v1340, 5
  %v1665 = vrot.slane %v1340, 6
  %v1666 = vrot.slane %v1340, 7
  %v1667 = vrot.slane %v1341, 1
  %v1668 = vrot.slane %v1341, 2
  %v1669 = vrot.slane %v1341, 3
  %v1670 = vrot.slane %v1341, 4
  %v1671 = vrot.slane %v1341, 5
  %v1672 = vrot.slane %v1341, 6
  %v1673 = vrot.slane %v1341, 7
  %v1674 = vrot.slane %v1342, 1
  %v1675 = vrot.slane %v1342, 2
  %v1676 = vrot.slane %v1342, 3
  %v1677 = vrot.slane %v1342, 4
  %v1678 = vrot.slane %v1342, 5
  %v1679 = vrot.slane %v1342, 6
  %v1680 = vrot.slane %v1342, 7
  %v1681 = vrot.slane %v1343, 1
  %v1682 = vrot.slane %v1343, 2
  %v1683 = vrot.slane %v1343, 3
  %v1684 = vrot.slane %v1343, 4
  %v1685 = vrot.slane %v1343, 5
  %v1686 = vrot.slane %v1343, 6
  %v1687 = vrot.slane %v1343, 7
  %v1688 = vrot.slane %v1344, 1
  %v1689 = vrot.slane %v1344, 2
  %v1690 = vrot.slane %v1344, 3
  %v1691 = vrot.slane %v1344, 4
  %v1692 = vrot.slane %v1344, 5
  %v1693 = vrot.slane %v1344, 6
  %v1694 = vrot.slane %v1344, 7
  %v1695 = vrot.slane %v1345, 1
  %v1696 = vrot.slane %v1345, 2
  %v1697 = vrot.slane %v1345, 3
  %v1698 = vrot.slane %v1345, 4
  %v1699 = vrot.slane %v1345, 5
  %v1700 = vrot.slane %v1345, 6
  %v1701 = vrot.slane %v1345, 7
  %v1702 = vrot.slane %v1346, 1
  %v1703 = vrot.slane %v1346, 2
  %v1704 = vrot.slane %v1346, 3
  %v1705 = vrot.slane %v1346, 4
  %v1706 = vrot.slane %v1346, 5
  %v1707 = vrot.slane %v1346, 6
  %v1708 = vrot.slane %v1346, 7
  %v1709 = vrot.slane %v1347, 1
  %v1710 = vrot.slane %v1347, 2
  %v1711 = vrot.slane %v1347, 3
  %v1712 = vrot.slane %v1347, 4
  %v1713 = vrot.slane %v1347, 5
  %v1714 = vrot.slane %v1347, 6
  %v1715 = vrot.slane %v1347, 7
  %v1716 = vperm.slane %v1332, 0
  %v1717 = vperm.slane %v1604, 0
  %v1718 = vperm.slane %v1605, 0
  %v1719 = vperm.slane %v1606, 0
  %v1720 = vperm.slane %v1607, 0
  %v1721 = vperm.slane %v1608, 0
  %v1722 = vperm.slane %v1609, 0
  %v1723 = vperm.slane %v1610, 0
  %v1724 = vperm.slane %v1333, 0
  %v1725 = vperm.slane %v1611, 0
  %v1726 = vperm.slane %v1612, 0
  %v1727 = vperm.slane %v1613, 0
  %v1728 = vperm.slane %v1614, 0
  %v1729 = vperm.slane %v1615, 0
  %v1730 = vperm.slane %v1616, 0
  %v1731 = vperm.slane %v1617, 0
  %v1732 = vperm.slane %v1334, 0
  %v1733 = vperm.slane %v1618, 0
  %v1734 = vperm.slane %v1619, 0
  %v1735 = vperm.slane %v1620, 0
  %v1736 = vperm.slane %v1621, 0
  %v1737 = vperm.slane %v1622, 0
  %v1738 = vperm.slane %v1623, 0
  %v1739 = vperm.slane %v1624, 0
  %v1740 = vperm.slane %v1335, 0
  %v1741 = vperm.slane %v1625, 0
  %v1742 = vperm.slane %v1626, 0
  %v1743 = vperm.slane %v1627, 0
  %v1744 = vperm.slane %v1628, 0
  %v1745 = vperm.slane %v1629, 0
  %v1746 = vperm.slane %v1630, 0
  %v1747 = vperm.slane %v1631, 0
  %v1748 = vperm.slane %v1336, 0
  %v1749 = vperm.slane %v1632, 0
  %v1750 = vperm.slane %v1633, 0
  %v1751 = vperm.slane %v1634, 0
  %v1752 = vperm.slane %v1635, 0
  %v1753 = vperm.slane %v1636, 0
  %v1754 = vperm.slane %v1637, 0
  %v1755 = vperm.slane %v1638, 0
  %v1756 = vperm.slane %v1337, 0
  %v1757 = vperm.slane %v1639, 0
  %v1758 = vperm.slane %v1640, 0
  %v1759 = vperm.slane %v1641, 0
  %v1760 = vperm.slane %v1642, 0
  %v1761 = vperm.slane %v1643, 0
  %v1762 = vperm.slane %v1644, 0
  %v1763 = vperm.slane %v1645, 0
  %v1764 = vperm.slane %v1338, 0
  %v1765 = vperm.slane %v1646, 0
  %v1766 = vperm.slane %v1647, 0
  %v1767 = vperm.slane %v1648, 0
  %v1768 = vperm.slane %v1649, 0
  %v1769 = vperm.slane %v1650, 0
  %v1770 = vperm.slane %v1651, 0
  %v1771 = vperm.slane %v1652, 0
  %v1772 = vperm.slane %v1339, 0
  %v1773 = vperm.slane %v1653, 0
  %v1774 = vperm.slane %v1654, 0
  %v1775 = vperm.slane %v1655, 0
  %v1776 = vperm.slane %v1656, 0
  %v1777 = vperm.slane %v1657, 0
  %v1778 = vperm.slane %v1658, 0
  %v1779 = vperm.slane %v1659, 0
  %v1780 = vperm.slane %v1340, 0
  %v1781 = vperm.slane %v1660, 0
  %v1782 = vperm.slane %v1661, 0
  %v1783 = vperm.slane %v1662, 0
  %v1784 = vperm.slane %v1663, 0
  %v1785 = vperm.slane %v1664, 0
  %v1786 = vperm.slane %v1665, 0
  %v1787 = vperm.slane %v1666, 0
  %v1788 = vperm.slane %v1341, 0
  %v1789 = vperm.slane %v1667, 0
  %v1790 = vperm.slane %v1668, 0
  %v1791 = vperm.slane %v1669, 0
  %v1792 = vperm.slane %v1670, 0
  %v1793 = vperm.slane %v1671, 0
  %v1794 = vperm.slane %v1672, 0
  %v1795 = vperm.slane %v1673, 0
  %v1796 = vperm.slane %v1342, 0
  %v1797 = vperm.slane %v1674, 0
  %v1798 = vperm.slane %v1675, 0
  %v1799 = vperm.slane %v1676, 0
  %v1800 = vperm.slane %v1677, 0
  %v1801 = vperm.slane %v1678, 0
  %v1802 = vperm.slane %v1679, 0
  %v1803 = vperm.slane %v1680, 0
  %v1804 = vperm.slane %v1343, 0
  %v1805 = vperm.slane %v1681, 0
  %v1806 = vperm.slane %v1682, 0
  %v1807 = vperm.slane %v1683, 0
  %v1808 = vperm.slane %v1684, 0
  %v1809 = vperm.slane %v1685, 0
  %v1810 = vperm.slane %v1686, 0
  %v1811 = vperm.slane %v1687, 0
  %v1812 = vperm.slane %v1344, 0
  %v1813 = vperm.slane %v1688, 0
  %v1814 = vperm.slane %v1689, 0
  %v1815 = vperm.slane %v1690, 0
  %v1816 = vperm.slane %v1691, 0
  %v1817 = vperm.slane %v1692, 0
  %v1818 = vperm.slane %v1693, 0
  %v1819 = vperm.slane %v1694, 0
  %v1820 = vperm.slane %v1345, 0
  %v1821 = vperm.slane %v1695, 0
  %v1822 = vperm.slane %v1696, 0
  %v1823 = vperm.slane %v1697, 0
  %v1824 = vperm.slane %v1698, 0
  %v1825 = vperm.slane %v1699, 0
  %v1826 = vperm.slane %v1700, 0
  %v1827 = vperm.slane %v1701, 0
  %v1828 = vperm.slane %v1346, 0
  %v1829 = vperm.slane %v1702, 0
  %v1830 = vperm.slane %v1703, 0
  %v1831 = vperm.slane %v1704, 0
  %v1832 = vperm.slane %v1705, 0
  %v1833 = vperm.slane %v1706, 0
  %v1834 = vperm.slane %v1707, 0
  %v1835 = vperm.slane %v1708, 0
  %v1836 = vperm.slane %v1347, 0
  %v1837 = vperm.slane %v1709, 0
  %v1838 = vperm.slane %v1710, 0
  %v1839 = vperm.slane %v1711, 0
  %v1840 = vperm.slane %v1712, 0
  %v1841 = vperm.slane %v1713, 0
  %v1842 = vperm.slane %v1714, 0
  %v1843 = vperm.slane %v1715, 0
  %v1972 = vsel %vm1187, %v1316, %v1716
  %v1973 = vsel %vm1187, %v1364, %v1717
  %v1974 = vsel %vm1187, %v1365, %v1718
  %v1975 = vsel %vm1187, %v1366, %v1719
  %v1976 = vsel %vm1187, %v1367, %v1720
  %v1977 = vsel %vm1187, %v1368, %v1721
  %v1978 = vsel %vm1187, %v1369, %v1722
  %v1979 = vsel %vm1187, %v1370, %v1723
  %v1980 = vsel %vm1187, %v1317, %v1724
  %v1981 = vsel %vm1187, %v1371, %v1725
  %v1982 = vsel %vm1187, %v1372, %v1726
  %v1983 = vsel %vm1187, %v1373, %v1727
  %v1984 = vsel %vm1187, %v1374, %v1728
  %v1985 = vsel %vm1187, %v1375, %v1729
  %v1986 = vsel %vm1187, %v1376, %v1730
  %v1987 = vsel %vm1187, %v1377, %v1731
  %v1988 = vsel %vm1187, %v1318, %v1732
  %v1989 = vsel %vm1187, %v1378, %v1733
  %v1990 = vsel %vm1187, %v1379, %v1734
  %v1991 = vsel %vm1187, %v1380, %v1735
  %v1992 = vsel %vm1187, %v1381, %v1736
  %v1993 = vsel %vm1187, %v1382, %v1737
  %v1994 = vsel %vm1187, %v1383, %v1738
  %v1995 = vsel %vm1187, %v1384, %v1739
  %v1996 = vsel %vm1187, %v1319, %v1740
  %v1997 = vsel %vm1187, %v1385, %v1741
  %v1998 = vsel %vm1187, %v1386, %v1742
  %v1999 = vsel %vm1187, %v1387, %v1743
  %v2000 = vsel %vm1187, %v1388, %v1744
  %v2001 = vsel %vm1187, %v1389, %v1745
  %v2002 = vsel %vm1187, %v1390, %v1746
  %v2003 = vsel %vm1187, %v1391, %v1747
  %v2004 = vsel %vm1187, %v1320, %v1748
  %v2005 = vsel %vm1187, %v1392, %v1749
  %v2006 = vsel %vm1187, %v1393, %v1750
  %v2007 = vsel %vm1187, %v1394, %v1751
  %v2008 = vsel %vm1187, %v1395, %v1752
  %v2009 = vsel %vm1187, %v1396, %v1753
  %v2010 = vsel %vm1187, %v1397, %v1754
  %v2011 = vsel %vm1187, %v1398, %v1755
  %v2012 = vsel %vm1187, %v1321, %v1756
  %v2013 = vsel %vm1187, %v1399, %v1757
  %v2014 = vsel %vm1187, %v1400, %v1758
  %v2015 = vsel %vm1187, %v1401, %v1759
  %v2016 = vsel %vm1187, %v1402, %v1760
  %v2017 = vsel %vm1187, %v1403, %v1761
  %v2018 = vsel %vm1187, %v1404, %v1762
  %v2019 = vsel %vm1187, %v1405, %v1763
  %v2020 = vsel %vm1187, %v1322, %v1764
  %v2021 = vsel %vm1187, %v1406, %v1765
  %v2022 = vsel %vm1187, %v1407, %v1766
  %v2023 = vsel %vm1187, %v1408, %v1767
  %v2024 = vsel %vm1187, %v1409, %v1768
  %v2025 = vsel %vm1187, %v1410, %v1769
  %v2026 = vsel %vm1187, %v1411, %v1770
  %v2027 = vsel %vm1187, %v1412, %v1771
  %v2028 = vsel %vm1187, %v1323, %v1772
  %v2029 = vsel %vm1187, %v1413, %v1773
  %v2030 = vsel %vm1187, %v1414, %v1774
  %v2031 = vsel %vm1187, %v1415, %v1775
  %v2032 = vsel %vm1187, %v1416, %v1776
  %v2033 = vsel %vm1187, %v1417, %v1777
  %v2034 = vsel %vm1187, %v1418, %v1778
  %v2035 = vsel %vm1187, %v1419, %v1779
  %v2036 = vsel %vm1187, %v1324, %v1780
  %v2037 = vsel %vm1187, %v1420, %v1781
  %v2038 = vsel %vm1187, %v1421, %v1782
  %v2039 = vsel %vm1187, %v1422, %v1783
  %v2040 = vsel %vm1187, %v1423, %v1784
  %v2041 = vsel %vm1187, %v1424, %v1785
  %v2042 = vsel %vm1187, %v1425, %v1786
  %v2043 = vsel %vm1187, %v1426, %v1787
  %v2044 = vsel %vm1187, %v1325, %v1788
  %v2045 = vsel %vm1187, %v1427, %v1789
  %v2046 = vsel %vm1187, %v1428, %v1790
  %v2047 = vsel %vm1187, %v1429, %v1791
  %v2048 = vsel %vm1187, %v1430, %v1792
  %v2049 = vsel %vm1187, %v1431, %v1793
  %v2050 = vsel %vm1187, %v1432, %v1794
  %v2051 = vsel %vm1187, %v1433, %v1795
  %v2052 = vsel %vm1187, %v1326, %v1796
  %v2053 = vsel %vm1187, %v1434, %v1797
  %v2054 = vsel %vm1187, %v1435, %v1798
  %v2055 = vsel %vm1187, %v1436, %v1799
  %v2056 = vsel %vm1187, %v1437, %v1800
  %v2057 = vsel %vm1187, %v1438, %v1801
  %v2058 = vsel %vm1187, %v1439, %v1802
  %v2059 = vsel %vm1187, %v1440, %v1803
  %v2060 = vsel %vm1187, %v1327, %v1804
  %v2061 = vsel %vm1187, %v1441, %v1805
  %v2062 = vsel %vm1187, %v1442, %v1806
  %v2063 = vsel %vm1187, %v1443, %v1807
  %v2064 = vsel %vm1187, %v1444, %v1808
  %v2065 = vsel %vm1187, %v1445, %v1809
  %v2066 = vsel %vm1187, %v1446, %v1810
  %v2067 = vsel %vm1187, %v1447, %v1811
  %v2068 = vsel %vm1187, %v1328, %v1812
  %v2069 = vsel %vm1187, %v1448, %v1813
  %v2070 = vsel %vm1187, %v1449, %v1814
  %v2071 = vsel %vm1187, %v1450, %v1815
  %v2072 = vsel %vm1187, %v1451, %v1816
  %v2073 = vsel %vm1187, %v1452, %v1817
  %v2074 = vsel %vm1187, %v1453, %v1818
  %v2075 = vsel %vm1187, %v1454, %v1819
  %v2076 = vsel %vm1187, %v1329, %v1820
  %v2077 = vsel %vm1187, %v1455, %v1821
  %v2078 = vsel %vm1187, %v1456, %v1822
  %v2079 = vsel %vm1187, %v1457, %v1823
  %v2080 = vsel %vm1187, %v1458, %v1824
  %v2081 = vsel %vm1187, %v1459, %v1825
  %v2082 = vsel %vm1187, %v1460, %v1826
  %v2083 = vsel %vm1187, %v1461, %v1827
  %v2084 = vsel %vm1187, %v1330, %v1828
  %v2085 = vsel %vm1187, %v1462, %v1829
  %v2086 = vsel %vm1187, %v1463, %v1830
  %v2087 = vsel %vm1187, %v1464, %v1831
  %v2088 = vsel %vm1187, %v1465, %v1832
  %v2089 = vsel %vm1187, %v1466, %v1833
  %v2090 = vsel %vm1187, %v1467, %v1834
  %v2091 = vsel %vm1187, %v1468, %v1835
  %v2092 = vsel %vm1187, %v1331, %v1836
  %v2093 = vsel %vm1187, %v1469, %v1837
  %v2094 = vsel %vm1187, %v1470, %v1838
  %v2095 = vsel %vm1187, %v1471, %v1839
  %v2096 = vsel %vm1187, %v1472, %v1840
  %v2097 = vsel %vm1187, %v1473, %v1841
  %v2098 = vsel %vm1187, %v1474, %v1842
  %v2099 = vsel %vm1187, %v1475, %v1843
  %2100 = vst [vmem:[#allocation3] sm:$0xff] 0.0
  %2101 = vst [vmem:[#allocation3 + $0x8] sm:$0xff] 0.0
  %2102 = vst [vmem:[#allocation3 + $0x10] sm:$0x3] 0.0
  %2103 = vst [vmem:[#allocation3 + $0x1b0] sm:$0xff] 0.0
  %2104 = vst [vmem:[#allocation3 + $0x1b8] sm:$0xff] 0.0
  %2105 = vst [vmem:[#allocation3 + $0x1c0] sm:$0x3] 0.0
  %s2106 = scalar_lea.vmem [#allocation3], 408
  %2107 = vst [vmem:[%s2106] sm:$0xff] 0.0
  %2108 = vst [vmem:[%s2106 + $0x8] sm:$0xff] 0.0
  %2109 = vst [vmem:[%s2106 + $0x10] sm:$0x3] 0.0
  %2110 = vst [vmem:[%s2106 + $0x1b0] sm:$0xff] 0.0
  %2111 = vst [vmem:[%s2106 + $0x1b8] sm:$0xff] 0.0
  %2112 = vst [vmem:[%s2106 + $0x1c0] sm:$0x3] 0.0
  %2113 = vst [vmem:[#allocation3] sm:$0x1] 0.0
  %2114 = vst [vmem:[#allocation3 + $0x18] sm:$0x1] 0.0
  %2115 = vst [vmem:[#allocation3 + $0x30] sm:$0x1] 0.0
  %2116 = vst [vmem:[#allocation3 + $0x48] sm:$0x1] 0.0
  %2117 = vst [vmem:[#allocation3 + $0x60] sm:$0x1] 0.0
  %2118 = vst [vmem:[#allocation3 + $0x78] sm:$0x1] 0.0
  %2119 = vst [vmem:[#allocation3 + $0x90] sm:$0x1] 0.0
  %2120 = vst [vmem:[#allocation3 + $0xa8] sm:$0x1] 0.0
  %2121 = vst [vmem:[#allocation3 + $0xc0] sm:$0x1] 0.0
  %2122 = vst [vmem:[#allocation3 + $0xd8] sm:$0x1] 0.0
  %2123 = vst [vmem:[#allocation3 + $0xf0] sm:$0x1] 0.0
  %2124 = vst [vmem:[#allocation3 + $0x108] sm:$0x1] 0.0
  %2125 = vst [vmem:[#allocation3 + $0x120] sm:$0x1] 0.0
  %2126 = vst [vmem:[#allocation3 + $0x138] sm:$0x1] 0.0
  %2127 = vst [vmem:[#allocation3 + $0x150] sm:$0x1] 0.0
  %2128 = vst [vmem:[#allocation3 + $0x168] sm:$0x1] 0.0
  %2129 = vst [vmem:[#allocation3 + $0x180] sm:$0x1] 0.0
  %2130 = vst [vmem:[#allocation3 + $0x198] sm:$0x1] 0.0
  %2131 = vst [vmem:[#allocation3 + $0x1b0] sm:$0x1] 0.0
  %2132 = vst [vmem:[#allocation3 + $0x1c8] sm:$0x1] 0.0
  %2133 = vst [vmem:[#allocation3 + $0x1e0] sm:$0x1] 0.0
  %2134 = vst [vmem:[#allocation3 + $0x1f8] sm:$0x1] 0.0
  %2135 = vst [vmem:[#allocation3 + $0x210] sm:$0x1] 0.0
  %2136 = vst [vmem:[#allocation3 + $0x228] sm:$0x1] 0.0
  %2137 = vst [vmem:[#allocation3 + $0x240] sm:$0x1] 0.0
  %2138 = vst [vmem:[#allocation3 + $0x258] sm:$0x1] 0.0
  %2139 = vst [vmem:[#allocation3 + $0x270] sm:$0x1] 0.0
  %2140 = vst [vmem:[#allocation3 + $0x288] sm:$0x1] 0.0
  %2141 = vst [vmem:[#allocation3 + $0x2a0] sm:$0x1] 0.0
  %2142 = vst [vmem:[#allocation3 + $0x2b8] sm:$0x1] 0.0
  %2143 = vst [vmem:[#allocation3 + $0x2d0] sm:$0x1] 0.0
  %2144 = vst [vmem:[#allocation3 + $0x2e8] sm:$0x1] 0.0
  %2145 = vst [vmem:[#allocation3 + $0x300] sm:$0x1] 0.0
  %2146 = vst [vmem:[#allocation3 + $0x318] sm:$0x1] 0.0
  %2147 = vst [vmem:[#allocation3 + $0x330] sm:$0x1] 0.0
  %2148 = vst [vmem:[#allocation3 + $0x348] sm:$0x1] 0.0
  %2149 = vst [vmem:[#allocation3 + $0x11] sm:$0x1] 0.0
  %2150 = vst [vmem:[#allocation3 + $0x29] sm:$0x1] 0.0
  %2151 = vst [vmem:[#allocation3 + $0x41] sm:$0x1] 0.0
  %2152 = vst [vmem:[#allocation3 + $0x59] sm:$0x1] 0.0
  %2153 = vst [vmem:[#allocation3 + $0x71] sm:$0x1] 0.0
  %2154 = vst [vmem:[#allocation3 + $0x89] sm:$0x1] 0.0
  %2155 = vst [vmem:[#allocation3 + $0xa1] sm:$0x1] 0.0
  %2156 = vst [vmem:[#allocation3 + $0xb9] sm:$0x1] 0.0
  %2157 = vst [vmem:[#allocation3 + $0xd1] sm:$0x1] 0.0
  %2158 = vst [vmem:[#allocation3 + $0xe9] sm:$0x1] 0.0
  %2159 = vst [vmem:[#allocation3 + $0x101] sm:$0x1] 0.0
  %2160 = vst [vmem:[#allocation3 + $0x119] sm:$0x1] 0.0
  %2161 = vst [vmem:[#allocation3 + $0x131] sm:$0x1] 0.0
  %2162 = vst [vmem:[#allocation3 + $0x149] sm:$0x1] 0.0
  %2163 = vst [vmem:[#allocation3 + $0x161] sm:$0x1] 0.0
  %2164 = vst [vmem:[#allocation3 + $0x179] sm:$0x1] 0.0
  %2165 = vst [vmem:[#allocation3 + $0x191] sm:$0x1] 0.0
  %2166 = vst [vmem:[#allocation3 + $0x1a9] sm:$0x1] 0.0
  %2167 = vst [vmem:[#allocation3 + $0x1c1] sm:$0x1] 0.0
  %2168 = vst [vmem:[#allocation3 + $0x1d9] sm:$0x1] 0.0
  %2169 = vst [vmem:[#allocation3 + $0x1f1] sm:$0x1] 0.0
  %2170 = vst [vmem:[#allocation3 + $0x209] sm:$0x1] 0.0
  %2171 = vst [vmem:[#allocation3 + $0x221] sm:$0x1] 0.0
  %2172 = vst [vmem:[#allocation3 + $0x239] sm:$0x1] 0.0
  %2173 = vst [vmem:[#allocation3 + $0x251] sm:$0x1] 0.0
  %2174 = vst [vmem:[#allocation3 + $0x269] sm:$0x1] 0.0
  %2175 = vst [vmem:[#allocation3 + $0x281] sm:$0x1] 0.0
  %2176 = vst [vmem:[#allocation3 + $0x299] sm:$0x1] 0.0
  %2177 = vst [vmem:[#allocation3 + $0x2b1] sm:$0x1] 0.0
  %2178 = vst [vmem:[#allocation3 + $0x2c9] sm:$0x1] 0.0
  %2179 = vst [vmem:[#allocation3 + $0x2e1] sm:$0x1] 0.0
  %2180 = vst [vmem:[#allocation3 + $0x2f9] sm:$0x1] 0.0
  %2181 = vst [vmem:[#allocation3 + $0x311] sm:$0x1] 0.0
  %2182 = vst [vmem:[#allocation3 + $0x329] sm:$0x1] 0.0
  %2183 = vst [vmem:[#allocation3 + $0x341] sm:$0x1] 0.0
  %2184 = vst [vmem:[#allocation3 + $0x359] sm:$0x1] 0.0
  %2441 = vst [vmem:[#allocation1] ss:$4 sm:$0xff] %v1188
  %s2442 = scalar_lea.vmem [#allocation1], 1
  %2443 = vst [vmem:[%s2442] ss:$4 sm:$0xff] %v1189
  %s2444 = scalar_lea.vmem [#allocation1], 2
  %2445 = vst [vmem:[%s2444] ss:$4 sm:$0xff] %v1190
  %s2446 = scalar_lea.vmem [#allocation1], 3
  %2447 = vst [vmem:[%s2446] ss:$4 sm:$0xff] %v1191
  %s2448 = scalar_lea.vmem [#allocation1], 32
  %2449 = vst [vmem:[%s2448] ss:$4 sm:$0xff] %v1192
  %s2450 = scalar_lea.vmem [#allocation1], 33
  %2451 = vst [vmem:[%s2450] ss:$4 sm:$0xff] %v1193
  %s2452 = scalar_lea.vmem [#allocation1], 34
  %2453 = vst [vmem:[%s2452] ss:$4 sm:$0xff] %v1194
  %s2454 = scalar_lea.vmem [#allocation1], 35
  %2455 = vst [vmem:[%s2454] ss:$4 sm:$0xff] %v1195
  %v2456 = vld.sshfl [vmem:[#allocation1] sm:$0xff pattern:$0x73625140]
  %v2457 = vld.sshfl [vmem:[#allocation1 + $0x20] sm:$0xff pattern:$0x73625140]
  %2458 = vst [vmem:[#allocation1] ss:$4 sm:$0xff] %v1972
  %2459 = vst [vmem:[%s2442] ss:$4 sm:$0xff] %v1973
  %2460 = vst [vmem:[%s2444] ss:$4 sm:$0xff] %v1974
  %2461 = vst [vmem:[%s2446] ss:$4 sm:$0xff] %v1975
  %2462 = vst [vmem:[%s2448] ss:$4 sm:$0xff] %v1976
  %2463 = vst [vmem:[%s2450] ss:$4 sm:$0xff] %v1977
  %2464 = vst [vmem:[%s2452] ss:$4 sm:$0xff] %v1978
  %2465 = vst [vmem:[%s2454] ss:$4 sm:$0xff] %v1979
  %v2466 = vld.sshfl [vmem:[#allocation1] sm:$0xff pattern:$0x73625140]
  %v2467 = vld.sshfl [vmem:[#allocation1 + $0x20] sm:$0xff pattern:$0x73625140]
  %2468 = vst [vmem:[#allocation1] ss:$4 sm:$0xff] %v1196
  %2469 = vst [vmem:[%s2442] ss:$4 sm:$0xff] %v1197
  %2470 = vst [vmem:[%s2444] ss:$4 sm:$0xff] %v1198
  %2471 = vst [vmem:[%s2446] ss:$4 sm:$0xff] %v1199
  %2472 = vst [vmem:[%s2448] ss:$4 sm:$0xff] %v1200
  %2473 = vst [vmem:[%s2450] ss:$4 sm:$0xff] %v1201
  %2474 = vst [vmem:[%s2452] ss:$4 sm:$0xff] %v1202
  %2475 = vst [vmem:[%s2454] ss:$4 sm:$0xff] %v1203
  %v2476 = vld.sshfl [vmem:[#allocation1] sm:$0xff pattern:$0x73625140]
  %v2477 = vld.sshfl [vmem:[#allocation1 + $0x20] sm:$0xff pattern:$0x73625140]
  %2478 = vst [vmem:[#allocation1] ss:$4 sm:$0xff] %v1980
  %2479 = vst [vmem:[%s2442] ss:$4 sm:$0xff] %v1981
  %2480 = vst [vmem:[%s2444] ss:$4 sm:$0xff] %v1982
  %2481 = vst [vmem:[%s2446] ss:$4 sm:$0xff] %v1983
  %2482 = vst [vmem:[%s2448] ss:$4 sm:$0xff] %v1984
  %2483 = vst [vmem:[%s2450] ss:$4 sm:$0xff] %v1985
  %2484 = vst [vmem:[%s2452] ss:$4 sm:$0xff] %v1986
  %2485 = vst [vmem:[%s2454] ss:$4 sm:$0xff] %v1987
  %v2486 = vld.sshfl [vmem:[#allocation1] sm:$0xff pattern:$0x73625140]
  %v2487 = vld.sshfl [vmem:[#allocation1 + $0x20] sm:$0xff pattern:$0x73625140]
  %2488 = vst [vmem:[#allocation1] ss:$4 sm:$0xff] %v1204
  %2489 = vst [vmem:[%s2442] ss:$4 sm:$0xff] %v1205
  %2490 = vst [vmem:[%s2444] ss:$4 sm:$0xff] %v1206
  %2491 = vst [vmem:[%s2446] ss:$4 sm:$0xff] %v1207
  %2492 = vst [vmem:[%s2448] ss:$4 sm:$0xff] %v1208
  %2493 = vst [vmem:[%s2450] ss:$4 sm:$0xff] %v1209
  %2494 = vst [vmem:[%s2452] ss:$4 sm:$0xff] %v1210
  %2495 = vst [vmem:[%s2454] ss:$4 sm:$0xff] %v1211
  %v2496 = vld.sshfl [vmem:[#allocation1] sm:$0xff pattern:$0x73625140]
  %v2497 = vld.sshfl [vmem:[#allocation1 + $0x20] sm:$0xff pattern:$0x73625140]
  %2498 = vst [vmem:[#allocation1] ss:$4 sm:$0xff] %v1988
  %2499 = vst [vmem:[%s2442] ss:$4 sm:$0xff] %v1989
  %2500 = vst [vmem:[%s2444] ss:$4 sm:$0xff] %v1990
  %2501 = vst [vmem:[%s2446] ss:$4 sm:$0xff] %v1991
  %2502 = vst [vmem:[%s2448] ss:$4 sm:$0xff] %v1992
  %2503 = vst [vmem:[%s2450] ss:$4 sm:$0xff] %v1993
  %2504 = vst [vmem:[%s2452] ss:$4 sm:$0xff] %v1994
  %2505 = vst [vmem:[%s2454] ss:$4 sm:$0xff] %v1995
  %v2506 = vld.sshfl [vmem:[#allocation1] sm:$0xff pattern:$0x73625140]
  %v2507 = vld.sshfl [vmem:[#allocation1 + $0x20] sm:$0xff pattern:$0x73625140]
  %2508 = vst [vmem:[#allocation1] ss:$4 sm:$0xff] %v1212
  %2509 = vst [vmem:[%s2442] ss:$4 sm:$0xff] %v1213
  %2510 = vst [vmem:[%s2444] ss:$4 sm:$0xff] %v1214
  %2511 = vst [vmem:[%s2446] ss:$4 sm:$0xff] %v1215
  %2512 = vst [vmem:[%s2448] ss:$4 sm:$0xff] %v1216
  %2513 = vst [vmem:[%s2450] ss:$4 sm:$0xff] %v1217
  %2514 = vst [vmem:[%s2452] ss:$4 sm:$0xff] %v1218
  %2515 = vst [vmem:[%s2454] ss:$4 sm:$0xff] %v1219
  %v2516 = vld.sshfl [vmem:[#allocation1] sm:$0xff pattern:$0x73625140]
  %v2517 = vld.sshfl [vmem:[#allocation1 + $0x20] sm:$0xff pattern:$0x73625140]
  %2518 = vst [vmem:[#allocation1] ss:$4 sm:$0xff] %v1996
  %2519 = vst [vmem:[%s2442] ss:$4 sm:$0xff] %v1997
  %2520 = vst [vmem:[%s2444] ss:$4 sm:$0xff] %v1998
  %2521 = vst [vmem:[%s2446] ss:$4 sm:$0xff] %v1999
  %2522 = vst [vmem:[%s2448] ss:$4 sm:$0xff] %v2000
  %2523 = vst [vmem:[%s2450] ss:$4 sm:$0xff] %v2001
  %2524 = vst [vmem:[%s2452] ss:$4 sm:$0xff] %v2002
  %2525 = vst [vmem:[%s2454] ss:$4 sm:$0xff] %v2003
  %v2526 = vld.sshfl [vmem:[#allocation1] sm:$0xff pattern:$0x73625140]
  %v2527 = vld.sshfl [vmem:[#allocation1 + $0x20] sm:$0xff pattern:$0x73625140]
  %2528 = vst [vmem:[#allocation1] ss:$4 sm:$0xff] %v1220
  %2529 = vst [vmem:[%s2442] ss:$4 sm:$0xff] %v1221
  %2530 = vst [vmem:[%s2444] ss:$4 sm:$0xff] %v1222
  %2531 = vst [vmem:[%s2446] ss:$4 sm:$0xff] %v1223
  %2532 = vst [vmem:[%s2448] ss:$4 sm:$0xff] %v1224
  %2533 = vst [vmem:[%s2450] ss:$4 sm:$0xff] %v1225
  %2534 = vst [vmem:[%s2452] ss:$4 sm:$0xff] %v1226
  %2535 = vst [vmem:[%s2454] ss:$4 sm:$0xff] %v1227
  %v2536 = vld.sshfl [vmem:[#allocation1] sm:$0xff pattern:$0x73625140]
  %v2537 = vld.sshfl [vmem:[#allocation1 + $0x20] sm:$0xff pattern:$0x73625140]
  %2538 = vst [vmem:[#allocation1] ss:$4 sm:$0xff] %v2004
  %2539 = vst [vmem:[%s2442] ss:$4 sm:$0xff] %v2005
  %2540 = vst [vmem:[%s2444] ss:$4 sm:$0xff] %v2006
  %2541 = vst [vmem:[%s2446] ss:$4 sm:$0xff] %v2007
  %2542 = vst [vmem:[%s2448] ss:$4 sm:$0xff] %v2008
  %2543 = vst [vmem:[%s2450] ss:$4 sm:$0xff] %v2009
  %2544 = vst [vmem:[%s2452] ss:$4 sm:$0xff] %v2010
  %2545 = vst [vmem:[%s2454] ss:$4 sm:$0xff] %v2011
  %v2546 = vld.sshfl [vmem:[#allocation1] sm:$0xff pattern:$0x73625140]
  %v2547 = vld.sshfl [vmem:[#allocation1 + $0x20] sm:$0xff pattern:$0x73625140]
  %2548 = vst [vmem:[#allocation1] ss:$4 sm:$0xff] %v1228
  %2549 = vst [vmem:[%s2442] ss:$4 sm:$0xff] %v1229
  %2550 = vst [vmem:[%s2444] ss:$4 sm:$0xff] %v1230
  %2551 = vst [vmem:[%s2446] ss:$4 sm:$0xff] %v1231
  %2552 = vst [vmem:[%s2448] ss:$4 sm:$0xff] %v1232
  %2553 = vst [vmem:[%s2450] ss:$4 sm:$0xff] %v1233
  %2554 = vst [vmem:[%s2452] ss:$4 sm:$0xff] %v1234
  %2555 = vst [vmem:[%s2454] ss:$4 sm:$0xff] %v1235
  %v2556 = vld.sshfl [vmem:[#allocation1] sm:$0xff pattern:$0x73625140]
  %v2557 = vld.sshfl [vmem:[#allocation1 + $0x20] sm:$0xff pattern:$0x73625140]
  %2558 = vst [vmem:[#allocation1] ss:$4 sm:$0xff] %v2012
  %2559 = vst [vmem:[%s2442] ss:$4 sm:$0xff] %v2013
  %2560 = vst [vmem:[%s2444] ss:$4 sm:$0xff] %v2014
  %2561 = vst [vmem:[%s2446] ss:$4 sm:$0xff] %v2015
  %2562 = vst [vmem:[%s2448] ss:$4 sm:$0xff] %v2016
  %2563 = vst [vmem:[%s2450] ss:$4 sm:$0xff] %v2017
  %2564 = vst [vmem:[%s2452] ss:$4 sm:$0xff] %v2018
  %2565 = vst [vmem:[%s2454] ss:$4 sm:$0xff] %v2019
  %v2566 = vld.sshfl [vmem:[#allocation1] sm:$0xff pattern:$0x73625140]
  %v2567 = vld.sshfl [vmem:[#allocation1 + $0x20] sm:$0xff pattern:$0x73625140]
  %2568 = vst [vmem:[#allocation1] ss:$4 sm:$0xff] %v1236
  %2569 = vst [vmem:[%s2442] ss:$4 sm:$0xff] %v1237
  %2570 = vst [vmem:[%s2444] ss:$4 sm:$0xff] %v1238
  %2571 = vst [vmem:[%s2446] ss:$4 sm:$0xff] %v1239
  %2572 = vst [vmem:[%s2448] ss:$4 sm:$0xff] %v1240
  %2573 = vst [vmem:[%s2450] ss:$4 sm:$0xff] %v1241
  %2574 = vst [vmem:[%s2452] ss:$4 sm:$0xff] %v1242
  %2575 = vst [vmem:[%s2454] ss:$4 sm:$0xff] %v1243
  %v2576 = vld.sshfl [vmem:[#allocation1] sm:$0xff pattern:$0x73625140]
  %v2577 = vld.sshfl [vmem:[#allocation1 + $0x20] sm:$0xff pattern:$0x73625140]
  %2578 = vst [vmem:[#allocation1] ss:$4 sm:$0xff] %v2020
  %2579 = vst [vmem:[%s2442] ss:$4 sm:$0xff] %v2021
  %2580 = vst [vmem:[%s2444] ss:$4 sm:$0xff] %v2022
  %2581 = vst [vmem:[%s2446] ss:$4 sm:$0xff] %v2023
  %2582 = vst [vmem:[%s2448] ss:$4 sm:$0xff] %v2024
  %2583 = vst [vmem:[%s2450] ss:$4 sm:$0xff] %v2025
  %2584 = vst [vmem:[%s2452] ss:$4 sm:$0xff] %v2026
  %2585 = vst [vmem:[%s2454] ss:$4 sm:$0xff] %v2027
  %v2586 = vld.sshfl [vmem:[#allocation1] sm:$0xff pattern:$0x73625140]
  %v2587 = vld.sshfl [vmem:[#allocation1 + $0x20] sm:$0xff pattern:$0x73625140]
  %2588 = vst [vmem:[#allocation1] ss:$4 sm:$0xff] %v1244
  %2589 = vst [vmem:[%s2442] ss:$4 sm:$0xff] %v1245
  %2590 = vst [vmem:[%s2444] ss:$4 sm:$0xff] %v1246
  %2591 = vst [vmem:[%s2446] ss:$4 sm:$0xff] %v1247
  %2592 = vst [vmem:[%s2448] ss:$4 sm:$0xff] %v1248
  %2593 = vst [vmem:[%s2450] ss:$4 sm:$0xff] %v1249
  %2594 = vst [vmem:[%s2452] ss:$4 sm:$0xff] %v1250
  %2595 = vst [vmem:[%s2454] ss:$4 sm:$0xff] %v1251
  %v2596 = vld.sshfl [vmem:[#allocation1] sm:$0xff pattern:$0x73625140]
  %v2597 = vld.sshfl [vmem:[#allocation1 + $0x20] sm:$0xff pattern:$0x73625140]
  %2598 = vst [vmem:[#allocation1] ss:$4 sm:$0xff] %v2028
  %2599 = vst [vmem:[%s2442] ss:$4 sm:$0xff] %v2029
  %2600 = vst [vmem:[%s2444] ss:$4 sm:$0xff] %v2030
  %2601 = vst [vmem:[%s2446] ss:$4 sm:$0xff] %v2031
  %2602 = vst [vmem:[%s2448] ss:$4 sm:$0xff] %v2032
  %2603 = vst [vmem:[%s2450] ss:$4 sm:$0xff] %v2033
  %2604 = vst [vmem:[%s2452] ss:$4 sm:$0xff] %v2034
  %2605 = vst [vmem:[%s2454] ss:$4 sm:$0xff] %v2035
  %v2606 = vld.sshfl [vmem:[#allocation1] sm:$0xff pattern:$0x73625140]
  %v2607 = vld.sshfl [vmem:[#allocation1 + $0x20] sm:$0xff pattern:$0x73625140]
  %2608 = vst [vmem:[#allocation1] ss:$4 sm:$0xff] %v1252
  %2609 = vst [vmem:[%s2442] ss:$4 sm:$0xff] %v1253
  %2610 = vst [vmem:[%s2444] ss:$4 sm:$0xff] %v1254
  %2611 = vst [vmem:[%s2446] ss:$4 sm:$0xff] %v1255
  %2612 = vst [vmem:[%s2448] ss:$4 sm:$0xff] %v1256
  %2613 = vst [vmem:[%s2450] ss:$4 sm:$0xff] %v1257
  %2614 = vst [vmem:[%s2452] ss:$4 sm:$0xff] %v1258
  %2615 = vst [vmem:[%s2454] ss:$4 sm:$0xff] %v1259
  %v2616 = vld.sshfl [vmem:[#allocation1] sm:$0xff pattern:$0x73625140]
  %v2617 = vld.sshfl [vmem:[#allocation1 + $0x20] sm:$0xff pattern:$0x73625140]
  %2618 = vst [vmem:[#allocation1] ss:$4 sm:$0xff] %v2036
  %2619 = vst [vmem:[%s2442] ss:$4 sm:$0xff] %v2037
  %2620 = vst [vmem:[%s2444] ss:$4 sm:$0xff] %v2038
  %2621 = vst [vmem:[%s2446] ss:$4 sm:$0xff] %v2039
  %2622 = vst [vmem:[%s2448] ss:$4 sm:$0xff] %v2040
  %2623 = vst [vmem:[%s2450] ss:$4 sm:$0xff] %v2041
  %2624 = vst [vmem:[%s2452] ss:$4 sm:$0xff] %v2042
  %2625 = vst [vmem:[%s2454] ss:$4 sm:$0xff] %v2043
  %v2626 = vld.sshfl [vmem:[#allocation1] sm:$0xff pattern:$0x73625140]
  %v2627 = vld.sshfl [vmem:[#allocation1 + $0x20] sm:$0xff pattern:$0x73625140]
  %2628 = vst [vmem:[#allocation1] ss:$4 sm:$0xff] %v1260
  %2629 = vst [vmem:[%s2442] ss:$4 sm:$0xff] %v1261
  %2630 = vst [vmem:[%s2444] ss:$4 sm:$0xff] %v1262
  %2631 = vst [vmem:[%s2446] ss:$4 sm:$0xff] %v1263
  %2632 = vst [vmem:[%s2448] ss:$4 sm:$0xff] %v1264
  %2633 = vst [vmem:[%s2450] ss:$4 sm:$0xff] %v1265
  %2634 = vst [vmem:[%s2452] ss:$4 sm:$0xff] %v1266
  %2635 = vst [vmem:[%s2454] ss:$4 sm:$0xff] %v1267
  %v2636 = vld.sshfl [vmem:[#allocation1] sm:$0xff pattern:$0x73625140]
  %v2637 = vld.sshfl [vmem:[#allocation1 + $0x20] sm:$0xff pattern:$0x73625140]
  %2638 = vst [vmem:[#allocation1] ss:$4 sm:$0xff] %v2044
  %2639 = vst [vmem:[%s2442] ss:$4 sm:$0xff] %v2045
  %2640 = vst [vmem:[%s2444] ss:$4 sm:$0xff] %v2046
  %2641 = vst [vmem:[%s2446] ss:$4 sm:$0xff] %v2047
  %2642 = vst [vmem:[%s2448] ss:$4 sm:$0xff] %v2048
  %2643 = vst [vmem:[%s2450] ss:$4 sm:$0xff] %v2049
  %2644 = vst [vmem:[%s2452] ss:$4 sm:$0xff] %v2050
  %2645 = vst [vmem:[%s2454] ss:$4 sm:$0xff] %v2051
  %v2646 = vld.sshfl [vmem:[#allocation1] sm:$0xff pattern:$0x73625140]
  %v2647 = vld.sshfl [vmem:[#allocation1 + $0x20] sm:$0xff pattern:$0x73625140]
  %2648 = vst [vmem:[#allocation1] ss:$4 sm:$0xff] %v1268
  %2649 = vst [vmem:[%s2442] ss:$4 sm:$0xff] %v1269
  %2650 = vst [vmem:[%s2444] ss:$4 sm:$0xff] %v1270
  %2651 = vst [vmem:[%s2446] ss:$4 sm:$0xff] %v1271
  %2652 = vst [vmem:[%s2448] ss:$4 sm:$0xff] %v1272
  %2653 = vst [vmem:[%s2450] ss:$4 sm:$0xff] %v1273
  %2654 = vst [vmem:[%s2452] ss:$4 sm:$0xff] %v1274
  %2655 = vst [vmem:[%s2454] ss:$4 sm:$0xff] %v1275
  %v2656 = vld.sshfl [vmem:[#allocation1] sm:$0xff pattern:$0x73625140]
  %v2657 = vld.sshfl [vmem:[#allocation1 + $0x20] sm:$0xff pattern:$0x73625140]
  %2658 = vst [vmem:[#allocation1] ss:$4 sm:$0xff] %v2052
  %2659 = vst [vmem:[%s2442] ss:$4 sm:$0xff] %v2053
  %2660 = vst [vmem:[%s2444] ss:$4 sm:$0xff] %v2054
  %2661 = vst [vmem:[%s2446] ss:$4 sm:$0xff] %v2055
  %2662 = vst [vmem:[%s2448] ss:$4 sm:$0xff] %v2056
  %2663 = vst [vmem:[%s2450] ss:$4 sm:$0xff] %v2057
  %2664 = vst [vmem:[%s2452] ss:$4 sm:$0xff] %v2058
  %2665 = vst [vmem:[%s2454] ss:$4 sm:$0xff] %v2059
  %v2666 = vld.sshfl [vmem:[#allocation1] sm:$0xff pattern:$0x73625140]
  %v2667 = vld.sshfl [vmem:[#allocation1 + $0x20] sm:$0xff pattern:$0x73625140]
  %2668 = vst [vmem:[#allocation1] ss:$4 sm:$0xff] %v1276
  %2669 = vst [vmem:[%s2442] ss:$4 sm:$0xff] %v1277
  %2670 = vst [vmem:[%s2444] ss:$4 sm:$0xff] %v1278
  %2671 = vst [vmem:[%s2446] ss:$4 sm:$0xff] %v1279
  %2672 = vst [vmem:[%s2448] ss:$4 sm:$0xff] %v1280
  %2673 = vst [vmem:[%s2450] ss:$4 sm:$0xff] %v1281
  %2674 = vst [vmem:[%s2452] ss:$4 sm:$0xff] %v1282
  %2675 = vst [vmem:[%s2454] ss:$4 sm:$0xff] %v1283
  %v2676 = vld.sshfl [vmem:[#allocation1] sm:$0xff pattern:$0x73625140]
  %v2677 = vld.sshfl [vmem:[#allocation1 + $0x20] sm:$0xff pattern:$0x73625140]
  %2678 = vst [vmem:[#allocation1] ss:$4 sm:$0xff] %v2060
  %2679 = vst [vmem:[%s2442] ss:$4 sm:$0xff] %v2061
  %2680 = vst [vmem:[%s2444] ss:$4 sm:$0xff] %v2062
  %2681 = vst [vmem:[%s2446] ss:$4 sm:$0xff] %v2063
  %2682 = vst [vmem:[%s2448] ss:$4 sm:$0xff] %v2064
  %2683 = vst [vmem:[%s2450] ss:$4 sm:$0xff] %v2065
  %2684 = vst [vmem:[%s2452] ss:$4 sm:$0xff] %v2066
  %2685 = vst [vmem:[%s2454] ss:$4 sm:$0xff] %v2067
  %v2686 = vld.sshfl [vmem:[#allocation1] sm:$0xff pattern:$0x73625140]
  %v2687 = vld.sshfl [vmem:[#allocation1 + $0x20] sm:$0xff pattern:$0x73625140]
  %2688 = vst [vmem:[#allocation1] ss:$4 sm:$0xff] %v1284
  %2689 = vst [vmem:[%s2442] ss:$4 sm:$0xff] %v1285
  %2690 = vst [vmem:[%s2444] ss:$4 sm:$0xff] %v1286
  %2691 = vst [vmem:[%s2446] ss:$4 sm:$0xff] %v1287
  %2692 = vst [vmem:[%s2448] ss:$4 sm:$0xff] %v1288
  %2693 = vst [vmem:[%s2450] ss:$4 sm:$0xff] %v1289
  %2694 = vst [vmem:[%s2452] ss:$4 sm:$0xff] %v1290
  %2695 = vst [vmem:[%s2454] ss:$4 sm:$0xff] %v1291
  %v2696 = vld.sshfl [vmem:[#allocation1] sm:$0xff pattern:$0x73625140]
  %v2697 = vld.sshfl [vmem:[#allocation1 + $0x20] sm:$0xff pattern:$0x73625140]
  %2698 = vst [vmem:[#allocation1] ss:$4 sm:$0xff] %v2068
  %2699 = vst [vmem:[%s2442] ss:$4 sm:$0xff] %v2069
  %2700 = vst [vmem:[%s2444] ss:$4 sm:$0xff] %v2070
  %2701 = vst [vmem:[%s2446] ss:$4 sm:$0xff] %v2071
  %2702 = vst [vmem:[%s2448] ss:$4 sm:$0xff] %v2072
  %2703 = vst [vmem:[%s2450] ss:$4 sm:$0xff] %v2073
  %2704 = vst [vmem:[%s2452] ss:$4 sm:$0xff] %v2074
  %2705 = vst [vmem:[%s2454] ss:$4 sm:$0xff] %v2075
  %v2706 = vld.sshfl [vmem:[#allocation1] sm:$0xff pattern:$0x73625140]
  %v2707 = vld.sshfl [vmem:[#allocation1 + $0x20] sm:$0xff pattern:$0x73625140]
  %2708 = vst [vmem:[#allocation1] ss:$4 sm:$0xff] %v1292
  %2709 = vst [vmem:[%s2442] ss:$4 sm:$0xff] %v1293
  %2710 = vst [vmem:[%s2444] ss:$4 sm:$0xff] %v1294
  %2711 = vst [vmem:[%s2446] ss:$4 sm:$0xff] %v1295
  %2712 = vst [vmem:[%s2448] ss:$4 sm:$0xff] %v1296
  %2713 = vst [vmem:[%s2450] ss:$4 sm:$0xff] %v1297
  %2714 = vst [vmem:[%s2452] ss:$4 sm:$0xff] %v1298
  %2715 = vst [vmem:[%s2454] ss:$4 sm:$0xff] %v1299
  %v2716 = vld.sshfl [vmem:[#allocation1] sm:$0xff pattern:$0x73625140]
  %v2717 = vld.sshfl [vmem:[#allocation1 + $0x20] sm:$0xff pattern:$0x73625140]
  %2718 = vst [vmem:[#allocation1] ss:$4 sm:$0xff] %v2076
  %2719 = vst [vmem:[%s2442] ss:$4 sm:$0xff] %v2077
  %2720 = vst [vmem:[%s2444] ss:$4 sm:$0xff] %v2078
  %2721 = vst [vmem:[%s2446] ss:$4 sm:$0xff] %v2079
  %2722 = vst [vmem:[%s2448] ss:$4 sm:$0xff] %v2080
  %2723 = vst [vmem:[%s2450] ss:$4 sm:$0xff] %v2081
  %2724 = vst [vmem:[%s2452] ss:$4 sm:$0xff] %v2082
  %2725 = vst [vmem:[%s2454] ss:$4 sm:$0xff] %v2083
  %v2726 = vld.sshfl [vmem:[#allocation1] sm:$0xff pattern:$0x73625140]
  %v2727 = vld.sshfl [vmem:[#allocation1 + $0x20] sm:$0xff pattern:$0x73625140]
  %2728 = vst [vmem:[#allocation1] ss:$4 sm:$0xff] %v1300
  %2729 = vst [vmem:[%s2442] ss:$4 sm:$0xff] %v1301
  %2730 = vst [vmem:[%s2444] ss:$4 sm:$0xff] %v1302
  %2731 = vst [vmem:[%s2446] ss:$4 sm:$0xff] %v1303
  %2732 = vst [vmem:[%s2448] ss:$4 sm:$0xff] %v1304
  %2733 = vst [vmem:[%s2450] ss:$4 sm:$0xff] %v1305
  %2734 = vst [vmem:[%s2452] ss:$4 sm:$0xff] %v1306
  %2735 = vst [vmem:[%s2454] ss:$4 sm:$0xff] %v1307
  %v2736 = vld.sshfl [vmem:[#allocation1] sm:$0xff pattern:$0x73625140]
  %v2737 = vld.sshfl [vmem:[#allocation1 + $0x20] sm:$0xff pattern:$0x73625140]
  %2738 = vst [vmem:[#allocation1] ss:$4 sm:$0xff] %v2084
  %2739 = vst [vmem:[%s2442] ss:$4 sm:$0xff] %v2085
  %2740 = vst [vmem:[%s2444] ss:$4 sm:$0xff] %v2086
  %2741 = vst [vmem:[%s2446] ss:$4 sm:$0xff] %v2087
  %2742 = vst [vmem:[%s2448] ss:$4 sm:$0xff] %v2088
  %2743 = vst [vmem:[%s2450] ss:$4 sm:$0xff] %v2089
  %2744 = vst [vmem:[%s2452] ss:$4 sm:$0xff] %v2090
  %2745 = vst [vmem:[%s2454] ss:$4 sm:$0xff] %v2091
  %v2746 = vld.sshfl [vmem:[#allocation1] sm:$0xff pattern:$0x73625140]
  %v2747 = vld.sshfl [vmem:[#allocation1 + $0x20] sm:$0xff pattern:$0x73625140]
  %2748 = vst [vmem:[#allocation1] ss:$4 sm:$0xff] %v1308
  %2749 = vst [vmem:[%s2442] ss:$4 sm:$0xff] %v1309
  %2750 = vst [vmem:[%s2444] ss:$4 sm:$0xff] %v1310
  %2751 = vst [vmem:[%s2446] ss:$4 sm:$0xff] %v1311
  %2752 = vst [vmem:[%s2448] ss:$4 sm:$0xff] %v1312
  %2753 = vst [vmem:[%s2450] ss:$4 sm:$0xff] %v1313
  %2754 = vst [vmem:[%s2452] ss:$4 sm:$0xff] %v1314
  %2755 = vst [vmem:[%s2454] ss:$4 sm:$0xff] %v1315
  %v2756 = vld.sshfl [vmem:[#allocation1] sm:$0xff pattern:$0x73625140]
  %v2757 = vld.sshfl [vmem:[#allocation1 + $0x20] sm:$0xff pattern:$0x73625140]
  %2758 = vst [vmem:[#allocation1] ss:$4 sm:$0xff] %v2092
  %2759 = vst [vmem:[%s2442] ss:$4 sm:$0xff] %v2093
  %2760 = vst [vmem:[%s2444] ss:$4 sm:$0xff] %v2094
  %2761 = vst [vmem:[%s2446] ss:$4 sm:$0xff] %v2095
  %2762 = vst [vmem:[%s2448] ss:$4 sm:$0xff] %v2096
  %2763 = vst [vmem:[%s2450] ss:$4 sm:$0xff] %v2097
  %2764 = vst [vmem:[%s2452] ss:$4 sm:$0xff] %v2098
  %2765 = vst [vmem:[%s2454] ss:$4 sm:$0xff] %v2099
  %v2766 = vld.sshfl [vmem:[#allocation1] sm:$0xff pattern:$0x73625140]
  %v2767 = vld.sshfl [vmem:[#allocation1 + $0x20] sm:$0xff pattern:$0x73625140]
  %s2832 = scalar_lea.vmem [#allocation3], 24
  %2833 = vst [vmem:[%s2832 + $0x1] sm:$0xff] %v2456
  %2834 = vst [vmem:[%s2832 + $0x9] sm:$0xff] %v2457
  %2835 = vst [vmem:[%s2832 + $0x19] sm:$0xff] %v2466
  %2836 = vst [vmem:[%s2832 + $0x21] sm:$0xff] %v2467
  %2837 = vst [vmem:[%s2832 + $0x31] sm:$0xff] %v2476
  %2838 = vst [vmem:[%s2832 + $0x39] sm:$0xff] %v2477
  %2839 = vst [vmem:[%s2832 + $0x49] sm:$0xff] %v2486
  %2840 = vst [vmem:[%s2832 + $0x51] sm:$0xff] %v2487
  %2841 = vst [vmem:[%s2832 + $0x61] sm:$0xff] %v2496
  %2842 = vst [vmem:[%s2832 + $0x69] sm:$0xff] %v2497
  %2843 = vst [vmem:[%s2832 + $0x79] sm:$0xff] %v2506
  %2844 = vst [vmem:[%s2832 + $0x81] sm:$0xff] %v2507
  %2845 = vst [vmem:[%s2832 + $0x91] sm:$0xff] %v2516
  %2846 = vst [vmem:[%s2832 + $0x99] sm:$0xff] %v2517
  %2847 = vst [vmem:[%s2832 + $0xa9] sm:$0xff] %v2526
  %2848 = vst [vmem:[%s2832 + $0xb1] sm:$0xff] %v2527
  %2849 = vst [vmem:[%s2832 + $0xc1] sm:$0xff] %v2536
  %2850 = vst [vmem:[%s2832 + $0xc9] sm:$0xff] %v2537
  %2851 = vst [vmem:[%s2832 + $0xd9] sm:$0xff] %v2546
  %2852 = vst [vmem:[%s2832 + $0xe1] sm:$0xff] %v2547
  %2853 = vst [vmem:[%s2832 + $0xf1] sm:$0xff] %v2556
  %2854 = vst [vmem:[%s2832 + $0xf9] sm:$0xff] %v2557
  %2855 = vst [vmem:[%s2832 + $0x109] sm:$0xff] %v2566
  %2856 = vst [vmem:[%s2832 + $0x111] sm:$0xff] %v2567
  %2857 = vst [vmem:[%s2832 + $0x121] sm:$0xff] %v2576
  %2858 = vst [vmem:[%s2832 + $0x129] sm:$0xff] %v2577
  %2859 = vst [vmem:[%s2832 + $0x139] sm:$0xff] %v2586
  %2860 = vst [vmem:[%s2832 + $0x141] sm:$0xff] %v2587
  %2861 = vst [vmem:[%s2832 + $0x151] sm:$0xff] %v2596
  %2862 = vst [vmem:[%s2832 + $0x159] sm:$0xff] %v2597
  %2863 = vst [vmem:[%s2832 + $0x169] sm:$0xff] %v2606
  %2864 = vst [vmem:[%s2832 + $0x171] sm:$0xff] %v2607
  %2865 = vst [vmem:[%s2832 + $0x1b1] sm:$0xff] %v2616
  %2866 = vst [vmem:[%s2832 + $0x1b9] sm:$0xff] %v2617
  %2867 = vst [vmem:[%s2832 + $0x1c9] sm:$0xff] %v2626
  %2868 = vst [vmem:[%s2832 + $0x1d1] sm:$0xff] %v2627
  %2869 = vst [vmem:[%s2832 + $0x1e1] sm:$0xff] %v2636
  %2870 = vst [vmem:[%s2832 + $0x1e9] sm:$0xff] %v2637
  %2871 = vst [vmem:[%s2832 + $0x1f9] sm:$0xff] %v2646
  %2872 = vst [vmem:[%s2832 + $0x201] sm:$0xff] %v2647
  %2873 = vst [vmem:[%s2832 + $0x211] sm:$0xff] %v2656
  %2874 = vst [vmem:[%s2832 + $0x219] sm:$0xff] %v2657
  %2875 = vst [vmem:[%s2832 + $0x229] sm:$0xff] %v2666
  %2876 = vst [vmem:[%s2832 + $0x231] sm:$0xff] %v2667
  %2877 = vst [vmem:[%s2832 + $0x241] sm:$0xff] %v2676
  %2878 = vst [vmem:[%s2832 + $0x249] sm:$0xff] %v2677
  %2879 = vst [vmem:[%s2832 + $0x259] sm:$0xff] %v2686
  %2880 = vst [vmem:[%s2832 + $0x261] sm:$0xff] %v2687
  %2881 = vst [vmem:[%s2832 + $0x271] sm:$0xff] %v2696
  %2882 = vst [vmem:[%s2832 + $0x279] sm:$0xff] %v2697
  %2883 = vst [vmem:[%s2832 + $0x289] sm:$0xff] %v2706
  %2884 = vst [vmem:[%s2832 + $0x291] sm:$0xff] %v2707
  %2885 = vst [vmem:[%s2832 + $0x2a1] sm:$0xff] %v2716
  %2886 = vst [vmem:[%s2832 + $0x2a9] sm:$0xff] %v2717
  %2887 = vst [vmem:[%s2832 + $0x2b9] sm:$0xff] %v2726
  %2888 = vst [vmem:[%s2832 + $0x2c1] sm:$0xff] %v2727
  %2889 = vst [vmem:[%s2832 + $0x2d1] sm:$0xff] %v2736
  %2890 = vst [vmem:[%s2832 + $0x2d9] sm:$0xff] %v2737
  %2891 = vst [vmem:[%s2832 + $0x2e9] sm:$0xff] %v2746
  %2892 = vst [vmem:[%s2832 + $0x2f1] sm:$0xff] %v2747
  %2893 = vst [vmem:[%s2832 + $0x301] sm:$0xff] %v2756
  %2894 = vst [vmem:[%s2832 + $0x309] sm:$0xff] %v2757
  %2895 = vst [vmem:[%s2832 + $0x319] sm:$0xff] %v2766
  %2896 = vst [vmem:[%s2832 + $0x321] sm:$0xff] %v2767
  %v2897 = vld [vmem:[%s1] sm:$0xf]
  %v2898 = vld [vmem:[%s1 + $0x4] sm:$0xf]
  %v2899 = vld [vmem:[%s1 + $0x8] sm:$0xf]
  %v2900 = vld [vmem:[%s1 + $0xc] sm:$0xf]
  %v2901 = vld [vmem:[%s1 + $0x10] sm:$0xf]
  %v2902 = vld [vmem:[%s1 + $0x14] sm:$0xf]
  %v2903 = vld [vmem:[%s1 + $0x18] sm:$0xf]
  %v2904 = vld [vmem:[%s1 + $0x1c] sm:$0xf]
  %v2905 = vld [vmem:[%s1 + $0x20] sm:$0xf]
  %v2906 = vld [vmem:[%s1 + $0x24] sm:$0xf]
  %v2907 = vld [vmem:[%s1 + $0x28] sm:$0xf]
  %v2908 = vld [vmem:[%s1 + $0x2c] sm:$0xf]
  %v2909 = vld [vmem:[%s1 + $0x30] sm:$0xf]
  %v2910 = vld [vmem:[%s1 + $0x34] sm:$0xf]
  %v2911 = vld [vmem:[%s1 + $0x38] sm:$0xf]
  %v2912 = vld [vmem:[%s1 + $0x3c] sm:$0xf]
  %v2913 = vld [vmem:[%s1 + $0x40] sm:$0xf]
  %v2914 = vld [vmem:[%s1 + $0x44] sm:$0xf]
  %v2915 = vld [vmem:[%s1 + $0x48] sm:$0xf]
  %v2916 = vld [vmem:[%s1 + $0x4c] sm:$0xf]
  %v2917 = vld [vmem:[%s1 + $0x50] sm:$0xf]
  %v2918 = vld [vmem:[%s1 + $0x54] sm:$0xf]
  %v2919 = vld [vmem:[%s1 + $0x58] sm:$0xf]
  %v2920 = vld [vmem:[%s1 + $0x5c] sm:$0xf]
  %v2921 = vld [vmem:[%s1 + $0x60] sm:$0xf]
  %v2922 = vld [vmem:[%s1 + $0x64] sm:$0xf]
  %v2923 = vld [vmem:[%s1 + $0x68] sm:$0xf]
  %v2924 = vld [vmem:[%s1 + $0x6c] sm:$0xf]
  %v2925 = vld [vmem:[%s1 + $0x70] sm:$0xf]
  %v2926 = vld [vmem:[%s1 + $0x74] sm:$0xf]
  %v2927 = vld [vmem:[%s1 + $0x78] sm:$0xf]
  %v2928 = vld [vmem:[%s1 + $0x7c] sm:$0xf]
  %v2929 = vld [vmem:[%s1 + $0x80] sm:$0xf]
  %v2930 = vld [vmem:[%s1 + $0x84] sm:$0xf]
  %v2931 = vld [vmem:[%s1 + $0x88] sm:$0xf]
  %v2932 = vld [vmem:[%s1 + $0x8c] sm:$0xf]
  %v2933 = vld [vmem:[%s1 + $0x90] sm:$0xf]
  %v2934 = vld [vmem:[%s1 + $0x94] sm:$0xf]
  %v2935 = vld [vmem:[%s1 + $0x98] sm:$0xf]
  %v2936 = vld [vmem:[%s1 + $0x9c] sm:$0xf]
  %v2937 = vld [vmem:[%s1 + $0xa0] sm:$0xf]
  %v2938 = vld [vmem:[%s1 + $0xa4] sm:$0xf]
  %v2939 = vld [vmem:[%s1 + $0xa8] sm:$0xf]
  %v2940 = vld [vmem:[%s1 + $0xac] sm:$0xf]
  %v2941 = vld [vmem:[%s1 + $0xb0] sm:$0xf]
  %v2942 = vld [vmem:[%s1 + $0xb4] sm:$0xf]
  %v2943 = vld [vmem:[%s1 + $0xb8] sm:$0xf]
  %v2944 = vld [vmem:[%s1 + $0xbc] sm:$0xf]
  %v2945 = vld [vmem:[%s1 + $0xc0] sm:$0xf]
  %v2946 = vld [vmem:[%s1 + $0xc4] sm:$0xf]
  %v2947 = vld [vmem:[%s1 + $0xc8] sm:$0xf]
  %v2948 = vld [vmem:[%s1 + $0xcc] sm:$0xf]
  %v2949 = vld [vmem:[%s1 + $0xd0] sm:$0xf]
  %v2950 = vld [vmem:[%s1 + $0xd4] sm:$0xf]
  %v2951 = vld [vmem:[%s1 + $0xd8] sm:$0xf]
  %v2952 = vld [vmem:[%s1 + $0xdc] sm:$0xf]
  %v2953 = vld [vmem:[%s1 + $0xe0] sm:$0xf]
  %v2954 = vld [vmem:[%s1 + $0xe4] sm:$0xf]
  %v2955 = vld [vmem:[%s1 + $0xe8] sm:$0xf]
  %v2956 = vld [vmem:[%s1 + $0xec] sm:$0xf]
  %v2957 = vld [vmem:[%s1 + $0xf0] sm:$0xf]
  %v2958 = vld [vmem:[%s1 + $0xf4] sm:$0xf]
  %v2959 = vld [vmem:[%s1 + $0xf8] sm:$0xf]
  %v2960 = vld [vmem:[%s1 + $0xfc] sm:$0xf]
  %v2961 = vunpack.c.l.bf16 %v2897
  %v2962 = vunpack.c.l.bf16 %v2898
  %v2963 = vunpack.c.l.bf16 %v2899
  %v2964 = vunpack.c.l.bf16 %v2900
  %v2965 = vunpack.c.l.bf16 %v2901
  %v2966 = vunpack.c.l.bf16 %v2902
  %v2967 = vunpack.c.l.bf16 %v2903
  %v2968 = vunpack.c.l.bf16 %v2904
  %v2969 = vunpack.c.l.bf16 %v2905
  %v2970 = vunpack.c.l.bf16 %v2906
  %v2971 = vunpack.c.l.bf16 %v2907
  %v2972 = vunpack.c.l.bf16 %v2908
  %v2973 = vunpack.c.l.bf16 %v2909
  %v2974 = vunpack.c.l.bf16 %v2910
  %v2975 = vunpack.c.l.bf16 %v2911
  %v2976 = vunpack.c.l.bf16 %v2912
  %v2977 = vunpack.c.l.bf16 %v2913
  %v2978 = vunpack.c.l.bf16 %v2914
  %v2979 = vunpack.c.l.bf16 %v2915
  %v2980 = vunpack.c.l.bf16 %v2916
  %v2981 = vunpack.c.l.bf16 %v2917
  %v2982 = vunpack.c.l.bf16 %v2918
  %v2983 = vunpack.c.l.bf16 %v2919
  %v2984 = vunpack.c.l.bf16 %v2920
  %v2985 = vunpack.c.l.bf16 %v2921
  %v2986 = vunpack.c.l.bf16 %v2922
  %v2987 = vunpack.c.l.bf16 %v2923
  %v2988 = vunpack.c.l.bf16 %v2924
  %v2989 = vunpack.c.l.bf16 %v2925
  %v2990 = vunpack.c.l.bf16 %v2926
  %v2991 = vunpack.c.l.bf16 %v2927
  %v2992 = vunpack.c.l.bf16 %v2928
  %v2993 = vunpack.c.l.bf16 %v2929
  %v2994 = vunpack.c.l.bf16 %v2930
  %v2995 = vunpack.c.l.bf16 %v2931
  %v2996 = vunpack.c.l.bf16 %v2932
  %v2997 = vunpack.c.l.bf16 %v2933
  %v2998 = vunpack.c.l.bf16 %v2934
  %v2999 = vunpack.c.l.bf16 %v2935
  %v3000 = vunpack.c.l.bf16 %v2936
  %v3001 = vunpack.c.l.bf16 %v2937
  %v3002 = vunpack.c.l.bf16 %v2938
  %v3003 = vunpack.c.l.bf16 %v2939
  %v3004 = vunpack.c.l.bf16 %v2940
  %v3005 = vunpack.c.l.bf16 %v2941
  %v3006 = vunpack.c.l.bf16 %v2942
  %v3007 = vunpack.c.l.bf16 %v2943
  %v3008 = vunpack.c.l.bf16 %v2944
  %v3009 = vunpack.c.l.bf16 %v2945
  %v3010 = vunpack.c.l.bf16 %v2946
  %v3011 = vunpack.c.l.bf16 %v2947
  %v3012 = vunpack.c.l.bf16 %v2948
  %v3013 = vunpack.c.l.bf16 %v2949
  %v3014 = vunpack.c.l.bf16 %v2950
  %v3015 = vunpack.c.l.bf16 %v2951
  %v3016 = vunpack.c.l.bf16 %v2952
  %v3017 = vunpack.c.l.bf16 %v2953
  %v3018 = vunpack.c.l.bf16 %v2954
  %v3019 = vunpack.c.l.bf16 %v2955
  %v3020 = vunpack.c.l.bf16 %v2956
  %v3021 = vunpack.c.l.bf16 %v2957
  %v3022 = vunpack.c.l.bf16 %v2958
  %v3023 = vunpack.c.l.bf16 %v2959
  %v3024 = vunpack.c.l.bf16 %v2960
  %3089 = vrot.lane.b32.xlu0 %v2961, 4
  %v3090 = vpop.permute.xlu0 %3089
  %3091 = vrot.lane.b32.xlu0 %v2962, 4
  %v3092 = vpop.permute.xlu0 %3091
  %3093 = vrot.lane.b32.xlu0 %v2963, 4
  %v3094 = vpop.permute.xlu0 %3093
  %3095 = vrot.lane.b32.xlu0 %v2964, 4
  %v3096 = vpop.permute.xlu0 %3095
  %3097 = vrot.lane.b32.xlu0 %v2965, 4
  %v3098 = vpop.permute.xlu0 %3097
  %3099 = vrot.lane.b32.xlu0 %v2966, 4
  %v3100 = vpop.permute.xlu0 %3099
  %3101 = vrot.lane.b32.xlu0 %v2967, 4
  %v3102 = vpop.permute.xlu0 %3101
  %3103 = vrot.lane.b32.xlu0 %v2968, 4
  %v3104 = vpop.permute.xlu0 %3103
  %3105 = vrot.lane.b32.xlu0 %v2969, 4
  %v3106 = vpop.permute.xlu0 %3105
  %3107 = vrot.lane.b32.xlu0 %v2970, 4
  %v3108 = vpop.permute.xlu0 %3107
  %3109 = vrot.lane.b32.xlu0 %v2971, 4
  %v3110 = vpop.permute.xlu0 %3109
  %3111 = vrot.lane.b32.xlu0 %v2972, 4
  %v3112 = vpop.permute.xlu0 %3111
  %3113 = vrot.lane.b32.xlu0 %v2973, 4
  %v3114 = vpop.permute.xlu0 %3113
  %3115 = vrot.lane.b32.xlu0 %v2974, 4
  %v3116 = vpop.permute.xlu0 %3115
  %3117 = vrot.lane.b32.xlu0 %v2975, 4
  %v3118 = vpop.permute.xlu0 %3117
  %3119 = vrot.lane.b32.xlu0 %v2976, 4
  %v3120 = vpop.permute.xlu0 %3119
  %3121 = vrot.lane.b32.xlu0 %v2977, 4
  %v3122 = vpop.permute.xlu0 %3121
  %3123 = vrot.lane.b32.xlu0 %v2978, 4
  %v3124 = vpop.permute.xlu0 %3123
  %3125 = vrot.lane.b32.xlu0 %v2979, 4
  %v3126 = vpop.permute.xlu0 %3125
  %3127 = vrot.lane.b32.xlu0 %v2980, 4
  %v3128 = vpop.permute.xlu0 %3127
  %3129 = vrot.lane.b32.xlu0 %v2981, 4
  %v3130 = vpop.permute.xlu0 %3129
  %3131 = vrot.lane.b32.xlu0 %v2982, 4
  %v3132 = vpop.permute.xlu0 %3131
  %3133 = vrot.lane.b32.xlu0 %v2983, 4
  %v3134 = vpop.permute.xlu0 %3133
  %3135 = vrot.lane.b32.xlu0 %v2984, 4
  %v3136 = vpop.permute.xlu0 %3135
  %3137 = vrot.lane.b32.xlu0 %v2985, 4
  %v3138 = vpop.permute.xlu0 %3137
  %3139 = vrot.lane.b32.xlu0 %v2986, 4
  %v3140 = vpop.permute.xlu0 %3139
  %3141 = vrot.lane.b32.xlu0 %v2987, 4
  %v3142 = vpop.permute.xlu0 %3141
  %3143 = vrot.lane.b32.xlu0 %v2988, 4
  %v3144 = vpop.permute.xlu0 %3143
  %3145 = vrot.lane.b32.xlu0 %v2989, 4
  %v3146 = vpop.permute.xlu0 %3145
  %3147 = vrot.lane.b32.xlu0 %v2990, 4
  %v3148 = vpop.permute.xlu0 %3147
  %3149 = vrot.lane.b32.xlu0 %v2991, 4
  %v3150 = vpop.permute.xlu0 %3149
  %3151 = vrot.lane.b32.xlu0 %v2992, 4
  %v3152 = vpop.permute.xlu0 %3151
  %3153 = vrot.lane.b32.xlu0 %v2993, 4
  %v3154 = vpop.permute.xlu0 %3153
  %3155 = vrot.lane.b32.xlu0 %v2994, 4
  %v3156 = vpop.permute.xlu0 %3155
  %3157 = vrot.lane.b32.xlu0 %v2995, 4
  %v3158 = vpop.permute.xlu0 %3157
  %3159 = vrot.lane.b32.xlu0 %v2996, 4
  %v3160 = vpop.permute.xlu0 %3159
  %3161 = vrot.lane.b32.xlu0 %v2997, 4
  %v3162 = vpop.permute.xlu0 %3161
  %3163 = vrot.lane.b32.xlu0 %v2998, 4
  %v3164 = vpop.permute.xlu0 %3163
  %3165 = vrot.lane.b32.xlu0 %v2999, 4
  %v3166 = vpop.permute.xlu0 %3165
  %3167 = vrot.lane.b32.xlu0 %v3000, 4
  %v3168 = vpop.permute.xlu0 %3167
  %3169 = vrot.lane.b32.xlu0 %v3001, 4
  %v3170 = vpop.permute.xlu0 %3169
  %3171 = vrot.lane.b32.xlu0 %v3002, 4
  %v3172 = vpop.permute.xlu0 %3171
  %3173 = vrot.lane.b32.xlu0 %v3003, 4
  %v3174 = vpop.permute.xlu0 %3173
  %3175 = vrot.lane.b32.xlu0 %v3004, 4
  %v3176 = vpop.permute.xlu0 %3175
  %3177 = vrot.lane.b32.xlu0 %v3005, 4
  %v3178 = vpop.permute.xlu0 %3177
  %3179 = vrot.lane.b32.xlu0 %v3006, 4
  %v3180 = vpop.permute.xlu0 %3179
  %3181 = vrot.lane.b32.xlu0 %v3007, 4
  %v3182 = vpop.permute.xlu0 %3181
  %3183 = vrot.lane.b32.xlu0 %v3008, 4
  %v3184 = vpop.permute.xlu0 %3183
  %3185 = vrot.lane.b32.xlu0 %v3009, 4
  %v3186 = vpop.permute.xlu0 %3185
  %3187 = vrot.lane.b32.xlu0 %v3010, 4
  %v3188 = vpop.permute.xlu0 %3187
  %3189 = vrot.lane.b32.xlu0 %v3011, 4
  %v3190 = vpop.permute.xlu0 %3189
  %3191 = vrot.lane.b32.xlu0 %v3012, 4
  %v3192 = vpop.permute.xlu0 %3191
  %3193 = vrot.lane.b32.xlu0 %v3013, 4
  %v3194 = vpop.permute.xlu0 %3193
  %3195 = vrot.lane.b32.xlu0 %v3014, 4
  %v3196 = vpop.permute.xlu0 %3195
  %3197 = vrot.lane.b32.xlu0 %v3015, 4
  %v3198 = vpop.permute.xlu0 %3197
  %3199 = vrot.lane.b32.xlu0 %v3016, 4
  %v3200 = vpop.permute.xlu0 %3199
  %3201 = vrot.lane.b32.xlu0 %v3017, 4
  %v3202 = vpop.permute.xlu0 %3201
  %3203 = vrot.lane.b32.xlu0 %v3018, 4
  %v3204 = vpop.permute.xlu0 %3203
  %3205 = vrot.lane.b32.xlu0 %v3019, 4
  %v3206 = vpop.permute.xlu0 %3205
  %3207 = vrot.lane.b32.xlu0 %v3020, 4
  %v3208 = vpop.permute.xlu0 %3207
  %3209 = vrot.lane.b32.xlu0 %v3021, 4
  %v3210 = vpop.permute.xlu0 %3209
  %3211 = vrot.lane.b32.xlu0 %v3022, 4
  %v3212 = vpop.permute.xlu0 %3211
  %3213 = vrot.lane.b32.xlu0 %v3023, 4
  %v3214 = vpop.permute.xlu0 %3213
  %3215 = vrot.lane.b32.xlu0 %v3024, 4
  %v3216 = vpop.permute.xlu0 %3215
  %vm3281 = vcmask 64544
  %3282 = vst.msk [vmem:[%s2832 + $0x1] sm:$0xff] %vm3281, %v3090
  %3283 = vst.msk [vmem:[%s2832 + $0x9] sm:$0xff] %vm3281, %v3092
  %3284 = vst.msk [vmem:[%s2832 + $0x19] sm:$0xff] %vm3281, %v3094
  %3285 = vst.msk [vmem:[%s2832 + $0x21] sm:$0xff] %vm3281, %v3096
  %3286 = vst.msk [vmem:[%s2832 + $0x31] sm:$0xff] %vm3281, %v3098
  %3287 = vst.msk [vmem:[%s2832 + $0x39] sm:$0xff] %vm3281, %v3100
  %3288 = vst.msk [vmem:[%s2832 + $0x49] sm:$0xff] %vm3281, %v3102
  %3289 = vst.msk [vmem:[%s2832 + $0x51] sm:$0xff] %vm3281, %v3104
  %3290 = vst.msk [vmem:[%s2832 + $0x61] sm:$0xff] %vm3281, %v3106
  %3291 = vst.msk [vmem:[%s2832 + $0x69] sm:$0xff] %vm3281, %v3108
  %3292 = vst.msk [vmem:[%s2832 + $0x79] sm:$0xff] %vm3281, %v3110
  %3293 = vst.msk [vmem:[%s2832 + $0x81] sm:$0xff] %vm3281, %v3112
  %3294 = vst.msk [vmem:[%s2832 + $0x91] sm:$0xff] %vm3281, %v3114
  %3295 = vst.msk [vmem:[%s2832 + $0x99] sm:$0xff] %vm3281, %v3116
  %3296 = vst.msk [vmem:[%s2832 + $0xa9] sm:$0xff] %vm3281, %v3118
  %3297 = vst.msk [vmem:[%s2832 + $0xb1] sm:$0xff] %vm3281, %v3120
  %3298 = vst.msk [vmem:[%s2832 + $0xc1] sm:$0xff] %vm3281, %v3122
  %3299 = vst.msk [vmem:[%s2832 + $0xc9] sm:$0xff] %vm3281, %v3124
  %3300 = vst.msk [vmem:[%s2832 + $0xd9] sm:$0xff] %vm3281, %v3126
  %3301 = vst.msk [vmem:[%s2832 + $0xe1] sm:$0xff] %vm3281, %v3128
  %3302 = vst.msk [vmem:[%s2832 + $0xf1] sm:$0xff] %vm3281, %v3130
  %3303 = vst.msk [vmem:[%s2832 + $0xf9] sm:$0xff] %vm3281, %v3132
  %3304 = vst.msk [vmem:[%s2832 + $0x109] sm:$0xff] %vm3281, %v3134
  %3305 = vst.msk [vmem:[%s2832 + $0x111] sm:$0xff] %vm3281, %v3136
  %3306 = vst.msk [vmem:[%s2832 + $0x121] sm:$0xff] %vm3281, %v3138
  %3307 = vst.msk [vmem:[%s2832 + $0x129] sm:$0xff] %vm3281, %v3140
  %3308 = vst.msk [vmem:[%s2832 + $0x139] sm:$0xff] %vm3281, %v3142
  %3309 = vst.msk [vmem:[%s2832 + $0x141] sm:$0xff] %vm3281, %v3144
  %3310 = vst.msk [vmem:[%s2832 + $0x151] sm:$0xff] %vm3281, %v3146
  %3311 = vst.msk [vmem:[%s2832 + $0x159] sm:$0xff] %vm3281, %v3148
  %3312 = vst.msk [vmem:[%s2832 + $0x169] sm:$0xff] %vm3281, %v3150
  %3313 = vst.msk [vmem:[%s2832 + $0x171] sm:$0xff] %vm3281, %v3152
  %3314 = vst.msk [vmem:[%s2832 + $0x1b1] sm:$0xff] %vm3281, %v3154
  %3315 = vst.msk [vmem:[%s2832 + $0x1b9] sm:$0xff] %vm3281, %v3156
  %3316 = vst.msk [vmem:[%s2832 + $0x1c9] sm:$0xff] %vm3281, %v3158
  %3317 = vst.msk [vmem:[%s2832 + $0x1d1] sm:$0xff] %vm3281, %v3160
  %3318 = vst.msk [vmem:[%s2832 + $0x1e1] sm:$0xff] %vm3281, %v3162
  %3319 = vst.msk [vmem:[%s2832 + $0x1e9] sm:$0xff] %vm3281, %v3164
  %3320 = vst.msk [vmem:[%s2832 + $0x1f9] sm:$0xff] %vm3281, %v3166
  %3321 = vst.msk [vmem:[%s2832 + $0x201] sm:$0xff] %vm3281, %v3168
  %3322 = vst.msk [vmem:[%s2832 + $0x211] sm:$0xff] %vm3281, %v3170
  %3323 = vst.msk [vmem:[%s2832 + $0x219] sm:$0xff] %vm3281, %v3172
  %3324 = vst.msk [vmem:[%s2832 + $0x229] sm:$0xff] %vm3281, %v3174
  %3325 = vst.msk [vmem:[%s2832 + $0x231] sm:$0xff] %vm3281, %v3176
  %3326 = vst.msk [vmem:[%s2832 + $0x241] sm:$0xff] %vm3281, %v3178
  %3327 = vst.msk [vmem:[%s2832 + $0x249] sm:$0xff] %vm3281, %v3180
  %3328 = vst.msk [vmem:[%s2832 + $0x259] sm:$0xff] %vm3281, %v3182
  %3329 = vst.msk [vmem:[%s2832 + $0x261] sm:$0xff] %vm3281, %v3184
  %3330 = vst.msk [vmem:[%s2832 + $0x271] sm:$0xff] %vm3281, %v3186
  %3331 = vst.msk [vmem:[%s2832 + $0x279] sm:$0xff] %vm3281, %v3188
  %3332 = vst.msk [vmem:[%s2832 + $0x289] sm:$0xff] %vm3281, %v3190
  %3333 = vst.msk [vmem:[%s2832 + $0x291] sm:$0xff] %vm3281, %v3192
  %3334 = vst.msk [vmem:[%s2832 + $0x2a1] sm:$0xff] %vm3281, %v3194
  %3335 = vst.msk [vmem:[%s2832 + $0x2a9] sm:$0xff] %vm3281, %v3196
  %3336 = vst.msk [vmem:[%s2832 + $0x2b9] sm:$0xff] %vm3281, %v3198
  %3337 = vst.msk [vmem:[%s2832 + $0x2c1] sm:$0xff] %vm3281, %v3200
  %3338 = vst.msk [vmem:[%s2832 + $0x2d1] sm:$0xff] %vm3281, %v3202
  %3339 = vst.msk [vmem:[%s2832 + $0x2d9] sm:$0xff] %vm3281, %v3204
  %3340 = vst.msk [vmem:[%s2832 + $0x2e9] sm:$0xff] %vm3281, %v3206
  %3341 = vst.msk [vmem:[%s2832 + $0x2f1] sm:$0xff] %vm3281, %v3208
  %3342 = vst.msk [vmem:[%s2832 + $0x301] sm:$0xff] %vm3281, %v3210
  %3343 = vst.msk [vmem:[%s2832 + $0x309] sm:$0xff] %vm3281, %v3212
  %3344 = vst.msk [vmem:[%s2832 + $0x319] sm:$0xff] %vm3281, %v3214
  %3345 = vst.msk [vmem:[%s2832 + $0x321] sm:$0xff] %vm3281, %v3216
  %v3346 = vld [vmem:[#allocation3] sm:$0xff]
  %v3347 = vld [vmem:[#allocation3 + $0x8] sm:$0xff]
  %v3348 = vld [vmem:[#allocation3 + $0x18] sm:$0xff]
  %v3349 = vld [vmem:[#allocation3 + $0x20] sm:$0xff]
  %v3350 = vld [vmem:[#allocation3 + $0x30] sm:$0xff]
  %v3351 = vld [vmem:[#allocation3 + $0x38] sm:$0xff]
  %v3352 = vld [vmem:[#allocation3 + $0x48] sm:$0xff]
  %v3353 = vld [vmem:[#allocation3 + $0x50] sm:$0xff]
  %v3354 = vld [vmem:[#allocation3 + $0x60] sm:$0xff]
  %v3355 = vld [vmem:[#allocation3 + $0x68] sm:$0xff]
  %v3356 = vld [vmem:[#allocation3 + $0x78] sm:$0xff]
  %v3357 = vld [vmem:[#allocation3 + $0x80] sm:$0xff]
  %v3358 = vld [vmem:[#allocation3 + $0x90] sm:$0xff]
  %v3359 = vld [vmem:[#allocation3 + $0x98] sm:$0xff]
  %v3360 = vld [vmem:[#allocation3 + $0xa8] sm:$0xff]
  %v3361 = vld [vmem:[#allocation3 + $0xb0] sm:$0xff]
  %v3362 = vld [vmem:[#allocation3 + $0xc0] sm:$0xff]
  %v3363 = vld [vmem:[#allocation3 + $0xc8] sm:$0xff]
  %v3364 = vld [vmem:[#allocation3 + $0xd8] sm:$0xff]
  %v3365 = vld [vmem:[#allocation3 + $0xe0] sm:$0xff]
  %v3366 = vld [vmem:[#allocation3 + $0xf0] sm:$0xff]
  %v3367 = vld [vmem:[#allocation3 + $0xf8] sm:$0xff]
  %v3368 = vld [vmem:[#allocation3 + $0x108] sm:$0xff]
  %v3369 = vld [vmem:[#allocation3 + $0x110] sm:$0xff]
  %v3370 = vld [vmem:[#allocation3 + $0x120] sm:$0xff]
  %v3371 = vld [vmem:[#allocation3 + $0x128] sm:$0xff]
  %v3372 = vld [vmem:[#allocation3 + $0x138] sm:$0xff]
  %v3373 = vld [vmem:[#allocation3 + $0x140] sm:$0xff]
  %v3374 = vld [vmem:[#allocation3 + $0x150] sm:$0xff]
  %v3375 = vld [vmem:[#allocation3 + $0x158] sm:$0xff]
  %v3376 = vld [vmem:[#allocation3 + $0x168] sm:$0xff]
  %v3377 = vld [vmem:[#allocation3 + $0x170] sm:$0xff]
  %v3378 = vld [vmem:[#allocation3 + $0x1b0] sm:$0xff]
  %v3379 = vld [vmem:[#allocation3 + $0x1b8] sm:$0xff]
  %v3380 = vld [vmem:[#allocation3 + $0x1c8] sm:$0xff]
  %v3381 = vld [vmem:[#allocation3 + $0x1d0] sm:$0xff]
  %v3382 = vld [vmem:[#allocation3 + $0x1e0] sm:$0xff]
  %v3383 = vld [vmem:[#allocation3 + $0x1e8] sm:$0xff]
  %v3384 = vld [vmem:[#allocation3 + $0x1f8] sm:$0xff]
  %v3385 = vld [vmem:[#allocation3 + $0x200] sm:$0xff]
  %v3386 = vld [vmem:[#allocation3 + $0x210] sm:$0xff]
  %v3387 = vld [vmem:[#allocation3 + $0x218] sm:$0xff]
  %v3388 = vld [vmem:[#allocation3 + $0x228] sm:$0xff]
  %v3389 = vld [vmem:[#allocation3 + $0x230] sm:$0xff]
  %v3390 = vld [vmem:[#allocation3 + $0x240] sm:$0xff]
  %v3391 = vld [vmem:[#allocation3 + $0x248] sm:$0xff]
  %v3392 = vld [vmem:[#allocation3 + $0x258] sm:$0xff]
  %v3393 = vld [vmem:[#allocation3 + $0x260] sm:$0xff]
  %v3394 = vld [vmem:[#allocation3 + $0x270] sm:$0xff]
  %v3395 = vld [vmem:[#allocation3 + $0x278] sm:$0xff]
  %v3396 = vld [vmem:[#allocation3 + $0x288] sm:$0xff]
  %v3397 = vld [vmem:[#allocation3 + $0x290] sm:$0xff]
  %v3398 = vld [vmem:[#allocation3 + $0x2a0] sm:$0xff]
  %v3399 = vld [vmem:[#allocation3 + $0x2a8] sm:$0xff]
  %v3400 = vld [vmem:[#allocation3 + $0x2b8] sm:$0xff]
  %v3401 = vld [vmem:[#allocation3 + $0x2c0] sm:$0xff]
  %v3402 = vld [vmem:[#allocation3 + $0x2d0] sm:$0xff]
  %v3403 = vld [vmem:[#allocation3 + $0x2d8] sm:$0xff]
  %v3404 = vld [vmem:[#allocation3 + $0x2e8] sm:$0xff]
  %v3405 = vld [vmem:[#allocation3 + $0x2f0] sm:$0xff]
  %v3406 = vld [vmem:[#allocation3 + $0x300] sm:$0xff]
  %v3407 = vld [vmem:[#allocation3 + $0x308] sm:$0xff]
  %v3408 = vld [vmem:[#allocation3 + $0x318] sm:$0xff]
  %v3409 = vld [vmem:[#allocation3 + $0x320] sm:$0xff]
  %v3410 = vpack.c.bf16 %v3347, %v3346
  %v3411 = vpack.c.bf16 %v3349, %v3348
  %v3412 = vpack.c.bf16 %v3351, %v3350
  %v3413 = vpack.c.bf16 %v3353, %v3352
  %v3414 = vpack.c.bf16 %v3355, %v3354
  %v3415 = vpack.c.bf16 %v3357, %v3356
  %v3416 = vpack.c.bf16 %v3359, %v3358
  %v3417 = vpack.c.bf16 %v3361, %v3360
  %v3418 = vpack.c.bf16 %v3363, %v3362
  %v3419 = vpack.c.bf16 %v3365, %v3364
  %v3420 = vpack.c.bf16 %v3367, %v3366
  %v3421 = vpack.c.bf16 %v3369, %v3368
  %v3422 = vpack.c.bf16 %v3371, %v3370
  %v3423 = vpack.c.bf16 %v3373, %v3372
  %v3424 = vpack.c.bf16 %v3375, %v3374
  %v3425 = vpack.c.bf16 %v3377, %v3376
  %v3426 = vpack.c.bf16 %v3379, %v3378
  %v3427 = vpack.c.bf16 %v3381, %v3380
  %v3428 = vpack.c.bf16 %v3383, %v3382
  %v3429 = vpack.c.bf16 %v3385, %v3384
  %v3430 = vpack.c.bf16 %v3387, %v3386
  %v3431 = vpack.c.bf16 %v3389, %v3388
  %v3432 = vpack.c.bf16 %v3391, %v3390
  %v3433 = vpack.c.bf16 %v3393, %v3392
  %v3434 = vpack.c.bf16 %v3395, %v3394
  %v3435 = vpack.c.bf16 %v3397, %v3396
  %v3436 = vpack.c.bf16 %v3399, %v3398
  %v3437 = vpack.c.bf16 %v3401, %v3400
  %v3438 = vpack.c.bf16 %v3403, %v3402
  %v3439 = vpack.c.bf16 %v3405, %v3404
  %v3440 = vpack.c.bf16 %v3407, %v3406
  %v3441 = vpack.c.bf16 %v3409, %v3408
  %v3442 = vld [vmem:[%s3] sm:$0xf]
  %v3443 = vld [vmem:[%s3 + $0x4] sm:$0xf]
  %v3444 = vld [vmem:[%s3 + $0x8] sm:$0xf]
  %v3445 = vld [vmem:[%s3 + $0xc] sm:$0xf]
  %v3446 = vld [vmem:[%s3 + $0x10] sm:$0xf]
  %v3447 = vld [vmem:[%s3 + $0x14] sm:$0xf]
  %v3448 = vld [vmem:[%s3 + $0x18] sm:$0xf]
  %v3449 = vld [vmem:[%s3 + $0x1c] sm:$0xf]
  %v3450 = vld [vmem:[%s3 + $0x20] sm:$0xf]
  %v3451 = vld [vmem:[%s3 + $0x24] sm:$0xf]
  %v3452 = vld [vmem:[%s3 + $0x28] sm:$0xf]
  %v3453 = vld [vmem:[%s3 + $0x2c] sm:$0xf]
  %v3454 = vld [vmem:[%s3 + $0x30] sm:$0xf]
  %v3455 = vld [vmem:[%s3 + $0x34] sm:$0xf]
  %v3456 = vld [vmem:[%s3 + $0x38] sm:$0xf]
  %v3457 = vld [vmem:[%s3 + $0x3c] sm:$0xf]
  %v3458 = vld [vmem:[#allocation3 + $0x1] sm:$0xff]
  %v3459 = vld [vmem:[#allocation3 + $0x9] sm:$0xff]
  %v3460 = vld [vmem:[#allocation3 + $0x19] sm:$0xff]
  %v3461 = vld [vmem:[#allocation3 + $0x21] sm:$0xff]
  %v3462 = vld [vmem:[#allocation3 + $0x31] sm:$0xff]
  %v3463 = vld [vmem:[#allocation3 + $0x39] sm:$0xff]
  %v3464 = vld [vmem:[#allocation3 + $0x49] sm:$0xff]
  %v3465 = vld [vmem:[#allocation3 + $0x51] sm:$0xff]
  %v3466 = vld [vmem:[#allocation3 + $0x61] sm:$0xff]
  %v3467 = vld [vmem:[#allocation3 + $0x69] sm:$0xff]
  %v3468 = vld [vmem:[#allocation3 + $0x79] sm:$0xff]
  %v3469 = vld [vmem:[#allocation3 + $0x81] sm:$0xff]
  %v3470 = vld [vmem:[#allocation3 + $0x91] sm:$0xff]
  %v3471 = vld [vmem:[#allocation3 + $0x99] sm:$0xff]
  %v3472 = vld [vmem:[#allocation3 + $0xa9] sm:$0xff]
  %v3473 = vld [vmem:[#allocation3 + $0xb1] sm:$0xff]
  %v3474 = vld [vmem:[#allocation3 + $0xc1] sm:$0xff]
  %v3475 = vld [vmem:[#allocation3 + $0xc9] sm:$0xff]
  %v3476 = vld [vmem:[#allocation3 + $0xd9] sm:$0xff]
  %v3477 = vld [vmem:[#allocation3 + $0xe1] sm:$0xff]
  %v3478 = vld [vmem:[#allocation3 + $0xf1] sm:$0xff]
  %v3479 = vld [vmem:[#allocation3 + $0xf9] sm:$0xff]
  %v3480 = vld [vmem:[#allocation3 + $0x109] sm:$0xff]
  %v3481 = vld [vmem:[#allocation3 + $0x111] sm:$0xff]
  %v3482 = vld [vmem:[#allocation3 + $0x121] sm:$0xff]
  %v3483 = vld [vmem:[#allocation3 + $0x129] sm:$0xff]
  %v3484 = vld [vmem:[#allocation3 + $0x139] sm:$0xff]
  %v3485 = vld [vmem:[#allocation3 + $0x141] sm:$0xff]
  %v3486 = vld [vmem:[#allocation3 + $0x151] sm:$0xff]
  %v3487 = vld [vmem:[#allocation3 + $0x159] sm:$0xff]
  %v3488 = vld [vmem:[#allocation3 + $0x169] sm:$0xff]
  %v3489 = vld [vmem:[#allocation3 + $0x171] sm:$0xff]
  %v3490 = vld [vmem:[#allocation3 + $0x1b1] sm:$0xff]
  %v3491 = vld [vmem:[#allocation3 + $0x1b9] sm:$0xff]
  %v3492 = vld [vmem:[#allocation3 + $0x1c9] sm:$0xff]
  %v3493 = vld [vmem:[#allocation3 + $0x1d1] sm:$0xff]
  %v3494 = vld [vmem:[#allocation3 + $0x1e1] sm:$0xff]
  %v3495 = vld [vmem:[#allocation3 + $0x1e9] sm:$0xff]
  %v3496 = vld [vmem:[#allocation3 + $0x1f9] sm:$0xff]
  %v3497 = vld [vmem:[#allocation3 + $0x201] sm:$0xff]
  %v3498 = vld [vmem:[#allocation3 + $0x211] sm:$0xff]
  %v3499 = vld [vmem:[#allocation3 + $0x219] sm:$0xff]
  %v3500 = vld [vmem:[#allocation3 + $0x229] sm:$0xff]
  %v3501 = vld [vmem:[#allocation3 + $0x231] sm:$0xff]
  %v3502 = vld [vmem:[#allocation3 + $0x241] sm:$0xff]
  %v3503 = vld [vmem:[#allocation3 + $0x249] sm:$0xff]
  %v3504 = vld [vmem:[#allocation3 + $0x259] sm:$0xff]
  %v3505 = vld [vmem:[#allocation3 + $0x261] sm:$0xff]
  %v3506 = vld [vmem:[#allocation3 + $0x271] sm:$0xff]
  %v3507 = vld [vmem:[#allocation3 + $0x279] sm:$0xff]
  %v3508 = vld [vmem:[#allocation3 + $0x289] sm:$0xff]
  %v3509 = vld [vmem:[#allocation3 + $0x291] sm:$0xff]
  %v3510 = vld [vmem:[#allocation3 + $0x2a1] sm:$0xff]
  %v3511 = vld [vmem:[#allocation3 + $0x2a9] sm:$0xff]
  %v3512 = vld [vmem:[#allocation3 + $0x2b9] sm:$0xff]
  %v3513 = vld [vmem:[#allocation3 + $0x2c1] sm:$0xff]
  %v3514 = vld [vmem:[#allocation3 + $0x2d1] sm:$0xff]
  %v3515 = vld [vmem:[#allocation3 + $0x2d9] sm:$0xff]
  %v3516 = vld [vmem:[#allocation3 + $0x2e9] sm:$0xff]
  %v3517 = vld [vmem:[#allocation3 + $0x2f1] sm:$0xff]
  %v3518 = vld [vmem:[#allocation3 + $0x301] sm:$0xff]
  %v3519 = vld [vmem:[#allocation3 + $0x309] sm:$0xff]
  %v3520 = vld [vmem:[#allocation3 + $0x319] sm:$0xff]
  %v3521 = vld [vmem:[#allocation3 + $0x321] sm:$0xff]
  %v3522 = vpack.c.bf16 %v3459, %v3458
  %v3523 = vpack.c.bf16 %v3461, %v3460
  %v3524 = vpack.c.bf16 %v3463, %v3462
  %v3525 = vpack.c.bf16 %v3465, %v3464
  %v3526 = vpack.c.bf16 %v3467, %v3466
  %v3527 = vpack.c.bf16 %v3469, %v3468
  %v3528 = vpack.c.bf16 %v3471, %v3470
  %v3529 = vpack.c.bf16 %v3473, %v3472
  %v3530 = vpack.c.bf16 %v3475, %v3474
  %v3531 = vpack.c.bf16 %v3477, %v3476
  %v3532 = vpack.c.bf16 %v3479, %v3478
  %v3533 = vpack.c.bf16 %v3481, %v3480
  %v3534 = vpack.c.bf16 %v3483, %v3482
  %v3535 = vpack.c.bf16 %v3485, %v3484
  %v3536 = vpack.c.bf16 %v3487, %v3486
  %v3537 = vpack.c.bf16 %v3489, %v3488
  %v3538 = vpack.c.bf16 %v3491, %v3490
  %v3539 = vpack.c.bf16 %v3493, %v3492
  %v3540 = vpack.c.bf16 %v3495, %v3494
  %v3541 = vpack.c.bf16 %v3497, %v3496
  %v3542 = vpack.c.bf16 %v3499, %v3498
  %v3543 = vpack.c.bf16 %v3501, %v3500
  %v3544 = vpack.c.bf16 %v3503, %v3502
  %v3545 = vpack.c.bf16 %v3505, %v3504
  %v3546 = vpack.c.bf16 %v3507, %v3506
  %v3547 = vpack.c.bf16 %v3509, %v3508
  %v3548 = vpack.c.bf16 %v3511, %v3510
  %v3549 = vpack.c.bf16 %v3513, %v3512
  %v3550 = vpack.c.bf16 %v3515, %v3514
  %v3551 = vpack.c.bf16 %v3517, %v3516
  %v3552 = vpack.c.bf16 %v3519, %v3518
  %v3553 = vpack.c.bf16 %v3521, %v3520
  %v3554 = vld [vmem:[%s3 + $0x40] sm:$0xf]
  %v3555 = vld [vmem:[%s3 + $0x44] sm:$0xf]
  %v3556 = vld [vmem:[%s3 + $0x48] sm:$0xf]
  %v3557 = vld [vmem:[%s3 + $0x4c] sm:$0xf]
  %v3558 = vld [vmem:[%s3 + $0x50] sm:$0xf]
  %v3559 = vld [vmem:[%s3 + $0x54] sm:$0xf]
  %v3560 = vld [vmem:[%s3 + $0x58] sm:$0xf]
  %v3561 = vld [vmem:[%s3 + $0x5c] sm:$0xf]
  %v3562 = vld [vmem:[%s3 + $0x60] sm:$0xf]
  %v3563 = vld [vmem:[%s3 + $0x64] sm:$0xf]
  %v3564 = vld [vmem:[%s3 + $0x68] sm:$0xf]
  %v3565 = vld [vmem:[%s3 + $0x6c] sm:$0xf]
  %v3566 = vld [vmem:[%s3 + $0x70] sm:$0xf]
  %v3567 = vld [vmem:[%s3 + $0x74] sm:$0xf]
  %v3568 = vld [vmem:[%s3 + $0x78] sm:$0xf]
  %v3569 = vld [vmem:[%s3 + $0x7c] sm:$0xf]
  %v3586 = vunpack.c.l.b16 %v3554
  %v3587 = vunpack.c.l.b16 %v3555
  %v3588 = vunpack.c.l.b16 %v3556
  %v3589 = vunpack.c.l.b16 %v3557
  %v3590 = vunpack.c.l.b16 %v3558
  %v3591 = vunpack.c.l.b16 %v3559
  %v3592 = vunpack.c.l.b16 %v3560
  %v3593 = vunpack.c.l.b16 %v3561
  %v3594 = vunpack.c.l.b16 %v3562
  %v3595 = vunpack.c.l.b16 %v3563
  %v3596 = vunpack.c.l.b16 %v3564
  %v3597 = vunpack.c.l.b16 %v3565
  %v3598 = vunpack.c.l.b16 %v3566
  %v3599 = vunpack.c.l.b16 %v3567
  %v3600 = vunpack.c.l.b16 %v3568
  %v3601 = vunpack.c.l.b16 %v3569
  %v3602 = vpack.c.b16 %v3587, %v3586
  %v3603 = vpack.c.b16 %v3589, %v3588
  %v3604 = vpack.c.b16 %v3591, %v3590
  %v3605 = vpack.c.b16 %v3593, %v3592
  %v3606 = vpack.c.b16 %v3595, %v3594
  %v3607 = vpack.c.b16 %v3597, %v3596
  %v3608 = vpack.c.b16 %v3599, %v3598
  %v3609 = vpack.c.b16 %v3601, %v3600
  %3618 = vmatpush.bf16.msra.mxu0 %v3609
  %3619 = vmatpush.bf16.msra.mxu0 %v3608
  %3620 = vmatpush.bf16.msra.mxu0 %v3607
  %3621 = vmatpush.bf16.msra.mxu0 %v3606
  %3622 = vmatpush.bf16.msra.mxu0 %v3605
  %3623 = vmatpush.bf16.msra.mxu0 %v3604
  %3624 = vmatpush.bf16.msra.mxu0 %v3603
  %3625 = vmatpush.bf16.msra.mxu0 %v3602
  %3626 = vmatmul.bf16.gmra.mxu0 %v3522
  %v3627 = vpop.f32.mrf.mxu0
  %v3628 = vadd.f32 0.0, %v3627
  %v3629 = vpop.f32.mrf.mxu0
  %v3630 = vadd.f32 0.0, %v3629
  %3631 = vmatmul.bf16.gmra.mxu0 %v3523
  %v3632 = vpop.f32.mrf.mxu0
  %v3633 = vadd.f32 0.0, %v3632
  %v3634 = vpop.f32.mrf.mxu0
  %v3635 = vadd.f32 0.0, %v3634
  %3636 = vmatmul.bf16.gmra.mxu0 %v3524
  %v3637 = vpop.f32.mrf.mxu0
  %v3638 = vadd.f32 0.0, %v3637
  %v3639 = vpop.f32.mrf.mxu0
  %v3640 = vadd.f32 0.0, %v3639
  %3641 = vmatmul.bf16.gmra.mxu0 %v3525
  %v3642 = vpop.f32.mrf.mxu0
  %v3643 = vadd.f32 0.0, %v3642
  %v3644 = vpop.f32.mrf.mxu0
  %v3645 = vadd.f32 0.0, %v3644
  %3646 = vmatmul.bf16.gmra.mxu0 %v3526
  %v3647 = vpop.f32.mrf.mxu0
  %v3648 = vadd.f32 0.0, %v3647
  %v3649 = vpop.f32.mrf.mxu0
  %v3650 = vadd.f32 0.0, %v3649
  %3651 = vmatmul.bf16.gmra.mxu0 %v3527
  %v3652 = vpop.f32.mrf.mxu0
  %v3653 = vadd.f32 0.0, %v3652
  %v3654 = vpop.f32.mrf.mxu0
  %v3655 = vadd.f32 0.0, %v3654
  %3656 = vmatmul.bf16.gmra.mxu0 %v3528
  %v3657 = vpop.f32.mrf.mxu0
  %v3658 = vadd.f32 0.0, %v3657
  %v3659 = vpop.f32.mrf.mxu0
  %v3660 = vadd.f32 0.0, %v3659
  %3661 = vmatmul.bf16.gmra.mxu0 %v3529
  %v3662 = vpop.f32.mrf.mxu0
  %v3663 = vadd.f32 0.0, %v3662
  %v3664 = vpop.f32.mrf.mxu0
  %v3665 = vadd.f32 0.0, %v3664
  %3666 = vmatmul.bf16.gmra.mxu0 %v3530
  %v3667 = vpop.f32.mrf.mxu0
  %v3668 = vadd.f32 0.0, %v3667
  %v3669 = vpop.f32.mrf.mxu0
  %v3670 = vadd.f32 0.0, %v3669
  %3671 = vmatmul.bf16.gmra.mxu0 %v3531
  %v3672 = vpop.f32.mrf.mxu0
  %v3673 = vadd.f32 0.0, %v3672
  %v3674 = vpop.f32.mrf.mxu0
  %v3675 = vadd.f32 0.0, %v3674
  %3676 = vmatmul.bf16.gmra.mxu0 %v3532
  %v3677 = vpop.f32.mrf.mxu0
  %v3678 = vadd.f32 0.0, %v3677
  %v3679 = vpop.f32.mrf.mxu0
  %v3680 = vadd.f32 0.0, %v3679
  %3681 = vmatmul.bf16.gmra.mxu0 %v3533
  %v3682 = vpop.f32.mrf.mxu0
  %v3683 = vadd.f32 0.0, %v3682
  %v3684 = vpop.f32.mrf.mxu0
  %v3685 = vadd.f32 0.0, %v3684
  %3686 = vmatmul.bf16.gmra.mxu0 %v3534
  %v3687 = vpop.f32.mrf.mxu0
  %v3688 = vadd.f32 0.0, %v3687
  %v3689 = vpop.f32.mrf.mxu0
  %v3690 = vadd.f32 0.0, %v3689
  %3691 = vmatmul.bf16.gmra.mxu0 %v3535
  %v3692 = vpop.f32.mrf.mxu0
  %v3693 = vadd.f32 0.0, %v3692
  %v3694 = vpop.f32.mrf.mxu0
  %v3695 = vadd.f32 0.0, %v3694
  %3696 = vmatmul.bf16.gmra.mxu0 %v3536
  %v3697 = vpop.f32.mrf.mxu0
  %v3698 = vadd.f32 0.0, %v3697
  %v3699 = vpop.f32.mrf.mxu0
  %v3700 = vadd.f32 0.0, %v3699
  %3701 = vmatmul.bf16.gmra.mxu0 %v3537
  %v3702 = vpop.f32.mrf.mxu0
  %v3703 = vadd.f32 0.0, %v3702
  %v3704 = vpop.f32.mrf.mxu0
  %v3705 = vadd.f32 0.0, %v3704
  %3706 = vmatmul.bf16.gmra.mxu0 %v3538
  %v3707 = vpop.f32.mrf.mxu0
  %v3708 = vadd.f32 0.0, %v3707
  %v3709 = vpop.f32.mrf.mxu0
  %v3710 = vadd.f32 0.0, %v3709
  %3711 = vmatmul.bf16.gmra.mxu0 %v3539
  %v3712 = vpop.f32.mrf.mxu0
  %v3713 = vadd.f32 0.0, %v3712
  %v3714 = vpop.f32.mrf.mxu0
  %v3715 = vadd.f32 0.0, %v3714
  %3716 = vmatmul.bf16.gmra.mxu0 %v3540
  %v3717 = vpop.f32.mrf.mxu0
  %v3718 = vadd.f32 0.0, %v3717
  %v3719 = vpop.f32.mrf.mxu0
  %v3720 = vadd.f32 0.0, %v3719
  %3721 = vmatmul.bf16.gmra.mxu0 %v3541
  %v3722 = vpop.f32.mrf.mxu0
  %v3723 = vadd.f32 0.0, %v3722
  %v3724 = vpop.f32.mrf.mxu0
  %v3725 = vadd.f32 0.0, %v3724
  %3726 = vmatmul.bf16.gmra.mxu0 %v3542
  %v3727 = vpop.f32.mrf.mxu0
  %v3728 = vadd.f32 0.0, %v3727
  %v3729 = vpop.f32.mrf.mxu0
  %v3730 = vadd.f32 0.0, %v3729
  %3731 = vmatmul.bf16.gmra.mxu0 %v3543
  %v3732 = vpop.f32.mrf.mxu0
  %v3733 = vadd.f32 0.0, %v3732
  %v3734 = vpop.f32.mrf.mxu0
  %v3735 = vadd.f32 0.0, %v3734
  %3736 = vmatmul.bf16.gmra.mxu0 %v3544
  %v3737 = vpop.f32.mrf.mxu0
  %v3738 = vadd.f32 0.0, %v3737
  %v3739 = vpop.f32.mrf.mxu0
  %v3740 = vadd.f32 0.0, %v3739
  %3741 = vmatmul.bf16.gmra.mxu0 %v3545
  %v3742 = vpop.f32.mrf.mxu0
  %v3743 = vadd.f32 0.0, %v3742
  %v3744 = vpop.f32.mrf.mxu0
  %v3745 = vadd.f32 0.0, %v3744
  %3746 = vmatmul.bf16.gmra.mxu0 %v3546
  %v3747 = vpop.f32.mrf.mxu0
  %v3748 = vadd.f32 0.0, %v3747
  %v3749 = vpop.f32.mrf.mxu0
  %v3750 = vadd.f32 0.0, %v3749
  %3751 = vmatmul.bf16.gmra.mxu0 %v3547
  %v3752 = vpop.f32.mrf.mxu0
  %v3753 = vadd.f32 0.0, %v3752
  %v3754 = vpop.f32.mrf.mxu0
  %v3755 = vadd.f32 0.0, %v3754
  %3756 = vmatmul.bf16.gmra.mxu0 %v3548
  %v3757 = vpop.f32.mrf.mxu0
  %v3758 = vadd.f32 0.0, %v3757
  %v3759 = vpop.f32.mrf.mxu0
  %v3760 = vadd.f32 0.0, %v3759
  %3761 = vmatmul.bf16.gmra.mxu0 %v3549
  %v3762 = vpop.f32.mrf.mxu0
  %v3763 = vadd.f32 0.0, %v3762
  %v3764 = vpop.f32.mrf.mxu0
  %v3765 = vadd.f32 0.0, %v3764
  %3766 = vmatmul.bf16.gmra.mxu0 %v3550
  %v3767 = vpop.f32.mrf.mxu0
  %v3768 = vadd.f32 0.0, %v3767
  %v3769 = vpop.f32.mrf.mxu0
  %v3770 = vadd.f32 0.0, %v3769
  %3771 = vmatmul.bf16.gmra.mxu0 %v3551
  %v3772 = vpop.f32.mrf.mxu0
  %v3773 = vadd.f32 0.0, %v3772
  %v3774 = vpop.f32.mrf.mxu0
  %v3775 = vadd.f32 0.0, %v3774
  %3776 = vmatmul.bf16.gmra.mxu0 %v3552
  %v3777 = vpop.f32.mrf.mxu0
  %v3778 = vadd.f32 0.0, %v3777
  %v3779 = vpop.f32.mrf.mxu0
  %v3780 = vadd.f32 0.0, %v3779
  %3781 = vmatmul.bf16.gmra.mxu0 %v3553
  %v3782 = vpop.f32.mrf.mxu0
  %v3783 = vadd.f32 0.0, %v3782
  %v3784 = vpop.f32.mrf.mxu0
  %v3785 = vadd.f32 0.0, %v3784
  %3786 = vdwg.mxu0
  %v3803 = vunpack.c.l.b16 %v3442
  %v3804 = vunpack.c.l.b16 %v3443
  %v3805 = vunpack.c.l.b16 %v3444
  %v3806 = vunpack.c.l.b16 %v3445
  %v3807 = vunpack.c.l.b16 %v3446
  %v3808 = vunpack.c.l.b16 %v3447
  %v3809 = vunpack.c.l.b16 %v3448
  %v3810 = vunpack.c.l.b16 %v3449
  %v3811 = vunpack.c.l.b16 %v3450
  %v3812 = vunpack.c.l.b16 %v3451
  %v3813 = vunpack.c.l.b16 %v3452
  %v3814 = vunpack.c.l.b16 %v3453
  %v3815 = vunpack.c.l.b16 %v3454
  %v3816 = vunpack.c.l.b16 %v3455
  %v3817 = vunpack.c.l.b16 %v3456
  %v3818 = vunpack.c.l.b16 %v3457
  %v3819 = vpack.c.b16 %v3804, %v3803
  %v3820 = vpack.c.b16 %v3806, %v3805
  %v3821 = vpack.c.b16 %v3808, %v3807
  %v3822 = vpack.c.b16 %v3810, %v3809
  %v3823 = vpack.c.b16 %v3812, %v3811
  %v3824 = vpack.c.b16 %v3814, %v3813
  %v3825 = vpack.c.b16 %v3816, %v3815
  %v3826 = vpack.c.b16 %v3818, %v3817
  %3835 = vmatpush.bf16.msra.mxu0 %v3826
  %3836 = vmatpush.bf16.msra.mxu0 %v3825
  %3837 = vmatpush.bf16.msra.mxu0 %v3824
  %3838 = vmatpush.bf16.msra.mxu0 %v3823
  %3839 = vmatpush.bf16.msra.mxu0 %v3822
  %3840 = vmatpush.bf16.msra.mxu0 %v3821
  %3841 = vmatpush.bf16.msra.mxu0 %v3820
  %3842 = vmatpush.bf16.msra.mxu0 %v3819
  %3843 = vmatmul.bf16.gmra.mxu0 %v3410
  %v3844 = vpop.f32.mrf.mxu0
  %v3845 = vadd.f32 %v3628, %v3844
  %v3846 = vpop.f32.mrf.mxu0
  %v3847 = vadd.f32 %v3630, %v3846
  %3848 = vmatmul.bf16.gmra.mxu0 %v3411
  %v3849 = vpop.f32.mrf.mxu0
  %v3850 = vadd.f32 %v3633, %v3849
  %v3851 = vpop.f32.mrf.mxu0
  %v3852 = vadd.f32 %v3635, %v3851
  %3853 = vmatmul.bf16.gmra.mxu0 %v3412
  %v3854 = vpop.f32.mrf.mxu0
  %v3855 = vadd.f32 %v3638, %v3854
  %v3856 = vpop.f32.mrf.mxu0
  %v3857 = vadd.f32 %v3640, %v3856
  %3858 = vmatmul.bf16.gmra.mxu0 %v3413
  %v3859 = vpop.f32.mrf.mxu0
  %v3860 = vadd.f32 %v3643, %v3859
  %v3861 = vpop.f32.mrf.mxu0
  %v3862 = vadd.f32 %v3645, %v3861
  %3863 = vmatmul.bf16.gmra.mxu0 %v3414
  %v3864 = vpop.f32.mrf.mxu0
  %v3865 = vadd.f32 %v3648, %v3864
  %v3866 = vpop.f32.mrf.mxu0
  %v3867 = vadd.f32 %v3650, %v3866
  %3868 = vmatmul.bf16.gmra.mxu0 %v3415
  %v3869 = vpop.f32.mrf.mxu0
  %v3870 = vadd.f32 %v3653, %v3869
  %v3871 = vpop.f32.mrf.mxu0
  %v3872 = vadd.f32 %v3655, %v3871
  %3873 = vmatmul.bf16.gmra.mxu0 %v3416
  %v3874 = vpop.f32.mrf.mxu0
  %v3875 = vadd.f32 %v3658, %v3874
  %v3876 = vpop.f32.mrf.mxu0
  %v3877 = vadd.f32 %v3660, %v3876
  %3878 = vmatmul.bf16.gmra.mxu0 %v3417
  %v3879 = vpop.f32.mrf.mxu0
  %v3880 = vadd.f32 %v3663, %v3879
  %v3881 = vpop.f32.mrf.mxu0
  %v3882 = vadd.f32 %v3665, %v3881
  %3883 = vmatmul.bf16.gmra.mxu0 %v3418
  %v3884 = vpop.f32.mrf.mxu0
  %v3885 = vadd.f32 %v3668, %v3884
  %v3886 = vpop.f32.mrf.mxu0
  %v3887 = vadd.f32 %v3670, %v3886
  %3888 = vmatmul.bf16.gmra.mxu0 %v3419
  %v3889 = vpop.f32.mrf.mxu0
  %v3890 = vadd.f32 %v3673, %v3889
  %v3891 = vpop.f32.mrf.mxu0
  %v3892 = vadd.f32 %v3675, %v3891
  %3893 = vmatmul.bf16.gmra.mxu0 %v3420
  %v3894 = vpop.f32.mrf.mxu0
  %v3895 = vadd.f32 %v3678, %v3894
  %v3896 = vpop.f32.mrf.mxu0
  %v3897 = vadd.f32 %v3680, %v3896
  %3898 = vmatmul.bf16.gmra.mxu0 %v3421
  %v3899 = vpop.f32.mrf.mxu0
  %v3900 = vadd.f32 %v3683, %v3899
  %v3901 = vpop.f32.mrf.mxu0
  %v3902 = vadd.f32 %v3685, %v3901
  %3903 = vmatmul.bf16.gmra.mxu0 %v3422
  %v3904 = vpop.f32.mrf.mxu0
  %v3905 = vadd.f32 %v3688, %v3904
  %v3906 = vpop.f32.mrf.mxu0
  %v3907 = vadd.f32 %v3690, %v3906
  %3908 = vmatmul.bf16.gmra.mxu0 %v3423
  %v3909 = vpop.f32.mrf.mxu0
  %v3910 = vadd.f32 %v3693, %v3909
  %v3911 = vpop.f32.mrf.mxu0
  %v3912 = vadd.f32 %v3695, %v3911
  %3913 = vmatmul.bf16.gmra.mxu0 %v3424
  %v3914 = vpop.f32.mrf.mxu0
  %v3915 = vadd.f32 %v3698, %v3914
  %v3916 = vpop.f32.mrf.mxu0
  %v3917 = vadd.f32 %v3700, %v3916
  %3918 = vmatmul.bf16.gmra.mxu0 %v3425
  %v3919 = vpop.f32.mrf.mxu0
  %v3920 = vadd.f32 %v3703, %v3919
  %v3921 = vpop.f32.mrf.mxu0
  %v3922 = vadd.f32 %v3705, %v3921
  %3923 = vmatmul.bf16.gmra.mxu0 %v3426
  %v3924 = vpop.f32.mrf.mxu0
  %v3925 = vadd.f32 %v3708, %v3924
  %v3926 = vpop.f32.mrf.mxu0
  %v3927 = vadd.f32 %v3710, %v3926
  %3928 = vmatmul.bf16.gmra.mxu0 %v3427
  %v3929 = vpop.f32.mrf.mxu0
  %v3930 = vadd.f32 %v3713, %v3929
  %v3931 = vpop.f32.mrf.mxu0
  %v3932 = vadd.f32 %v3715, %v3931
  %3933 = vmatmul.bf16.gmra.mxu0 %v3428
  %v3934 = vpop.f32.mrf.mxu0
  %v3935 = vadd.f32 %v3718, %v3934
  %v3936 = vpop.f32.mrf.mxu0
  %v3937 = vadd.f32 %v3720, %v3936
  %3938 = vmatmul.bf16.gmra.mxu0 %v3429
  %v3939 = vpop.f32.mrf.mxu0
  %v3940 = vadd.f32 %v3723, %v3939
  %v3941 = vpop.f32.mrf.mxu0
  %v3942 = vadd.f32 %v3725, %v3941
  %3943 = vmatmul.bf16.gmra.mxu0 %v3430
  %v3944 = vpop.f32.mrf.mxu0
  %v3945 = vadd.f32 %v3728, %v3944
  %v3946 = vpop.f32.mrf.mxu0
  %v3947 = vadd.f32 %v3730, %v3946
  %3948 = vmatmul.bf16.gmra.mxu0 %v3431
  %v3949 = vpop.f32.mrf.mxu0
  %v3950 = vadd.f32 %v3733, %v3949
  %v3951 = vpop.f32.mrf.mxu0
  %v3952 = vadd.f32 %v3735, %v3951
  %3953 = vmatmul.bf16.gmra.mxu0 %v3432
  %v3954 = vpop.f32.mrf.mxu0
  %v3955 = vadd.f32 %v3738, %v3954
  %v3956 = vpop.f32.mrf.mxu0
  %v3957 = vadd.f32 %v3740, %v3956
  %3958 = vmatmul.bf16.gmra.mxu0 %v3433
  %v3959 = vpop.f32.mrf.mxu0
  %v3960 = vadd.f32 %v3743, %v3959
  %v3961 = vpop.f32.mrf.mxu0
  %v3962 = vadd.f32 %v3745, %v3961
  %3963 = vmatmul.bf16.gmra.mxu0 %v3434
  %v3964 = vpop.f32.mrf.mxu0
  %v3965 = vadd.f32 %v3748, %v3964
  %v3966 = vpop.f32.mrf.mxu0
  %v3967 = vadd.f32 %v3750, %v3966
  %3968 = vmatmul.bf16.gmra.mxu0 %v3435
  %v3969 = vpop.f32.mrf.mxu0
  %v3970 = vadd.f32 %v3753, %v3969
  %v3971 = vpop.f32.mrf.mxu0
  %v3972 = vadd.f32 %v3755, %v3971
  %3973 = vmatmul.bf16.gmra.mxu0 %v3436
  %v3974 = vpop.f32.mrf.mxu0
  %v3975 = vadd.f32 %v3758, %v3974
  %v3976 = vpop.f32.mrf.mxu0
  %v3977 = vadd.f32 %v3760, %v3976
  %3978 = vmatmul.bf16.gmra.mxu0 %v3437
  %v3979 = vpop.f32.mrf.mxu0
  %v3980 = vadd.f32 %v3763, %v3979
  %v3981 = vpop.f32.mrf.mxu0
  %v3982 = vadd.f32 %v3765, %v3981
  %3983 = vmatmul.bf16.gmra.mxu0 %v3438
  %v3984 = vpop.f32.mrf.mxu0
  %v3985 = vadd.f32 %v3768, %v3984
  %v3986 = vpop.f32.mrf.mxu0
  %v3987 = vadd.f32 %v3770, %v3986
  %3988 = vmatmul.bf16.gmra.mxu0 %v3439
  %v3989 = vpop.f32.mrf.mxu0
  %v3990 = vadd.f32 %v3773, %v3989
  %v3991 = vpop.f32.mrf.mxu0
  %v3992 = vadd.f32 %v3775, %v3991
  %3993 = vmatmul.bf16.gmra.mxu0 %v3440
  %v3994 = vpop.f32.mrf.mxu0
  %v3995 = vadd.f32 %v3778, %v3994
  %v3996 = vpop.f32.mrf.mxu0
  %v3997 = vadd.f32 %v3780, %v3996
  %3998 = vmatmul.bf16.gmra.mxu0 %v3441
  %v3999 = vpop.f32.mrf.mxu0
  %v4000 = vadd.f32 %v3783, %v3999
  %v4001 = vpop.f32.mrf.mxu0
  %v4002 = vadd.f32 %v3785, %v4001
  %4003 = vdwg.mxu0
  %v4004 = vld [vmem:[#allocation3 + $0x2] sm:$0xff]
  %v4005 = vld [vmem:[#allocation3 + $0xa] sm:$0xff]
  %v4006 = vld [vmem:[#allocation3 + $0x1a] sm:$0xff]
  %v4007 = vld [vmem:[#allocation3 + $0x22] sm:$0xff]
  %v4008 = vld [vmem:[#allocation3 + $0x32] sm:$0xff]
  %v4009 = vld [vmem:[#allocation3 + $0x3a] sm:$0xff]
  %v4010 = vld [vmem:[#allocation3 + $0x4a] sm:$0xff]
  %v4011 = vld [vmem:[#allocation3 + $0x52] sm:$0xff]
  %v4012 = vld [vmem:[#allocation3 + $0x62] sm:$0xff]
  %v4013 = vld [vmem:[#allocation3 + $0x6a] sm:$0xff]
  %v4014 = vld [vmem:[#allocation3 + $0x7a] sm:$0xff]
  %v4015 = vld [vmem:[#allocation3 + $0x82] sm:$0xff]
  %v4016 = vld [vmem:[#allocation3 + $0x92] sm:$0xff]
  %v4017 = vld [vmem:[#allocation3 + $0x9a] sm:$0xff]
  %v4018 = vld [vmem:[#allocation3 + $0xaa] sm:$0xff]
  %v4019 = vld [vmem:[#allocation3 + $0xb2] sm:$0xff]
  %v4020 = vld [vmem:[#allocation3 + $0xc2] sm:$0xff]
  %v4021 = vld [vmem:[#allocation3 + $0xca] sm:$0xff]
  %v4022 = vld [vmem:[#allocation3 + $0xda] sm:$0xff]
  %v4023 = vld [vmem:[#allocation3 + $0xe2] sm:$0xff]
  %v4024 = vld [vmem:[#allocation3 + $0xf2] sm:$0xff]
  %v4025 = vld [vmem:[#allocation3 + $0xfa] sm:$0xff]
  %v4026 = vld [vmem:[#allocation3 + $0x10a] sm:$0xff]
  %v4027 = vld [vmem:[#allocation3 + $0x112] sm:$0xff]
  %v4028 = vld [vmem:[#allocation3 + $0x122] sm:$0xff]
  %v4029 = vld [vmem:[#allocation3 + $0x12a] sm:$0xff]
  %v4030 = vld [vmem:[#allocation3 + $0x13a] sm:$0xff]
  %v4031 = vld [vmem:[#allocation3 + $0x142] sm:$0xff]
  %v4032 = vld [vmem:[#allocation3 + $0x152] sm:$0xff]
  %v4033 = vld [vmem:[#allocation3 + $0x15a] sm:$0xff]
  %v4034 = vld [vmem:[#allocation3 + $0x16a] sm:$0xff]
  %v4035 = vld [vmem:[#allocation3 + $0x172] sm:$0xff]
  %v4036 = vld [vmem:[#allocation3 + $0x1b2] sm:$0xff]
  %v4037 = vld [vmem:[#allocation3 + $0x1ba] sm:$0xff]
  %v4038 = vld [vmem:[#allocation3 + $0x1ca] sm:$0xff]
  %v4039 = vld [vmem:[#allocation3 + $0x1d2] sm:$0xff]
  %v4040 = vld [vmem:[#allocation3 + $0x1e2] sm:$0xff]
  %v4041 = vld [vmem:[#allocation3 + $0x1ea] sm:$0xff]
  %v4042 = vld [vmem:[#allocation3 + $0x1fa] sm:$0xff]
  %v4043 = vld [vmem:[#allocation3 + $0x202] sm:$0xff]
  %v4044 = vld [vmem:[#allocation3 + $0x212] sm:$0xff]
  %v4045 = vld [vmem:[#allocation3 + $0x21a] sm:$0xff]
  %v4046 = vld [vmem:[#allocation3 + $0x22a] sm:$0xff]
  %v4047 = vld [vmem:[#allocation3 + $0x232] sm:$0xff]
  %v4048 = vld [vmem:[#allocation3 + $0x242] sm:$0xff]
  %v4049 = vld [vmem:[#allocation3 + $0x24a] sm:$0xff]
  %v4050 = vld [vmem:[#allocation3 + $0x25a] sm:$0xff]
  %v4051 = vld [vmem:[#allocation3 + $0x262] sm:$0xff]
  %v4052 = vld [vmem:[#allocation3 + $0x272] sm:$0xff]
  %v4053 = vld [vmem:[#allocation3 + $0x27a] sm:$0xff]
  %v4054 = vld [vmem:[#allocation3 + $0x28a] sm:$0xff]
  %v4055 = vld [vmem:[#allocation3 + $0x292] sm:$0xff]
  %v4056 = vld [vmem:[#allocation3 + $0x2a2] sm:$0xff]
  %v4057 = vld [vmem:[#allocation3 + $0x2aa] sm:$0xff]
  %v4058 = vld [vmem:[#allocation3 + $0x2ba] sm:$0xff]
  %v4059 = vld [vmem:[#allocation3 + $0x2c2] sm:$0xff]
  %v4060 = vld [vmem:[#allocation3 + $0x2d2] sm:$0xff]
  %v4061 = vld [vmem:[#allocation3 + $0x2da] sm:$0xff]
  %v4062 = vld [vmem:[#allocation3 + $0x2ea] sm:$0xff]
  %v4063 = vld [vmem:[#allocation3 + $0x2f2] sm:$0xff]
  %v4064 = vld [vmem:[#allocation3 + $0x302] sm:$0xff]
  %v4065 = vld [vmem:[#allocation3 + $0x30a] sm:$0xff]
  %v4066 = vld [vmem:[#allocation3 + $0x31a] sm:$0xff]
  %v4067 = vld [vmem:[#allocation3 + $0x322] sm:$0xff]
  %v4068 = vpack.c.bf16 %v4005, %v4004
  %v4069 = vpack.c.bf16 %v4007, %v4006
  %v4070 = vpack.c.bf16 %v4009, %v4008
  %v4071 = vpack.c.bf16 %v4011, %v4010
  %v4072 = vpack.c.bf16 %v4013, %v4012
  %v4073 = vpack.c.bf16 %v4015, %v4014
  %v4074 = vpack.c.bf16 %v4017, %v4016
  %v4075 = vpack.c.bf16 %v4019, %v4018
  %v4076 = vpack.c.bf16 %v4021, %v4020
  %v4077 = vpack.c.bf16 %v4023, %v4022
  %v4078 = vpack.c.bf16 %v4025, %v4024
  %v4079 = vpack.c.bf16 %v4027, %v4026
  %v4080 = vpack.c.bf16 %v4029, %v4028
  %v4081 = vpack.c.bf16 %v4031, %v4030
  %v4082 = vpack.c.bf16 %v4033, %v4032
  %v4083 = vpack.c.bf16 %v4035, %v4034
  %v4084 = vpack.c.bf16 %v4037, %v4036
  %v4085 = vpack.c.bf16 %v4039, %v4038
  %v4086 = vpack.c.bf16 %v4041, %v4040
  %v4087 = vpack.c.bf16 %v4043, %v4042
  %v4088 = vpack.c.bf16 %v4045, %v4044
  %v4089 = vpack.c.bf16 %v4047, %v4046
  %v4090 = vpack.c.bf16 %v4049, %v4048
  %v4091 = vpack.c.bf16 %v4051, %v4050
  %v4092 = vpack.c.bf16 %v4053, %v4052
  %v4093 = vpack.c.bf16 %v4055, %v4054
  %v4094 = vpack.c.bf16 %v4057, %v4056
  %v4095 = vpack.c.bf16 %v4059, %v4058
  %v4096 = vpack.c.bf16 %v4061, %v4060
  %v4097 = vpack.c.bf16 %v4063, %v4062
  %v4098 = vpack.c.bf16 %v4065, %v4064
  %v4099 = vpack.c.bf16 %v4067, %v4066
  %v4100 = vld [vmem:[%s3 + $0x80] sm:$0xf]
  %v4101 = vld [vmem:[%s3 + $0x84] sm:$0xf]
  %v4102 = vld [vmem:[%s3 + $0x88] sm:$0xf]
  %v4103 = vld [vmem:[%s3 + $0x8c] sm:$0xf]
  %v4104 = vld [vmem:[%s3 + $0x90] sm:$0xf]
  %v4105 = vld [vmem:[%s3 + $0x94] sm:$0xf]
  %v4106 = vld [vmem:[%s3 + $0x98] sm:$0xf]
  %v4107 = vld [vmem:[%s3 + $0x9c] sm:$0xf]
  %v4108 = vld [vmem:[%s3 + $0xa0] sm:$0xf]
  %v4109 = vld [vmem:[%s3 + $0xa4] sm:$0xf]
  %v4110 = vld [vmem:[%s3 + $0xa8] sm:$0xf]
  %v4111 = vld [vmem:[%s3 + $0xac] sm:$0xf]
  %v4112 = vld [vmem:[%s3 + $0xb0] sm:$0xf]
  %v4113 = vld [vmem:[%s3 + $0xb4] sm:$0xf]
  %v4114 = vld [vmem:[%s3 + $0xb8] sm:$0xf]
  %v4115 = vld [vmem:[%s3 + $0xbc] sm:$0xf]
  %v4132 = vunpack.c.l.b16 %v4100
  %v4133 = vunpack.c.l.b16 %v4101
  %v4134 = vunpack.c.l.b16 %v4102
  %v4135 = vunpack.c.l.b16 %v4103
  %v4136 = vunpack.c.l.b16 %v4104
  %v4137 = vunpack.c.l.b16 %v4105
  %v4138 = vunpack.c.l.b16 %v4106
  %v4139 = vunpack.c.l.b16 %v4107
  %v4140 = vunpack.c.l.b16 %v4108
  %v4141 = vunpack.c.l.b16 %v4109
  %v4142 = vunpack.c.l.b16 %v4110
  %v4143 = vunpack.c.l.b16 %v4111
  %v4144 = vunpack.c.l.b16 %v4112
  %v4145 = vunpack.c.l.b16 %v4113
  %v4146 = vunpack.c.l.b16 %v4114
  %v4147 = vunpack.c.l.b16 %v4115
  %v4148 = vpack.c.b16 %v4133, %v4132
  %v4149 = vpack.c.b16 %v4135, %v4134
  %v4150 = vpack.c.b16 %v4137, %v4136
  %v4151 = vpack.c.b16 %v4139, %v4138
  %v4152 = vpack.c.b16 %v4141, %v4140
  %v4153 = vpack.c.b16 %v4143, %v4142
  %v4154 = vpack.c.b16 %v4145, %v4144
  %v4155 = vpack.c.b16 %v4147, %v4146
  %4164 = vmatpush.bf16.msra.mxu0 %v4155
  %4165 = vmatpush.bf16.msra.mxu0 %v4154
  %4166 = vmatpush.bf16.msra.mxu0 %v4153
  %4167 = vmatpush.bf16.msra.mxu0 %v4152
  %4168 = vmatpush.bf16.msra.mxu0 %v4151
  %4169 = vmatpush.bf16.msra.mxu0 %v4150
  %4170 = vmatpush.bf16.msra.mxu0 %v4149
  %4171 = vmatpush.bf16.msra.mxu0 %v4148
  %4172 = vmatmul.bf16.gmra.mxu0 %v4068
  %v4173 = vpop.f32.mrf.mxu0
  %v4174 = vadd.f32 0.0, %v4173
  %v4175 = vpop.f32.mrf.mxu0
  %v4176 = vadd.f32 0.0, %v4175
  %4177 = vmatmul.bf16.gmra.mxu0 %v4069
  %v4178 = vpop.f32.mrf.mxu0
  %v4179 = vadd.f32 0.0, %v4178
  %v4180 = vpop.f32.mrf.mxu0
  %v4181 = vadd.f32 0.0, %v4180
  %4182 = vmatmul.bf16.gmra.mxu0 %v4070
  %v4183 = vpop.f32.mrf.mxu0
  %v4184 = vadd.f32 0.0, %v4183
  %v4185 = vpop.f32.mrf.mxu0
  %v4186 = vadd.f32 0.0, %v4185
  %4187 = vmatmul.bf16.gmra.mxu0 %v4071
  %v4188 = vpop.f32.mrf.mxu0
  %v4189 = vadd.f32 0.0, %v4188
  %v4190 = vpop.f32.mrf.mxu0
  %v4191 = vadd.f32 0.0, %v4190
  %4192 = vmatmul.bf16.gmra.mxu0 %v4072
  %v4193 = vpop.f32.mrf.mxu0
  %v4194 = vadd.f32 0.0, %v4193
  %v4195 = vpop.f32.mrf.mxu0
  %v4196 = vadd.f32 0.0, %v4195
  %4197 = vmatmul.bf16.gmra.mxu0 %v4073
  %v4198 = vpop.f32.mrf.mxu0
  %v4199 = vadd.f32 0.0, %v4198
  %v4200 = vpop.f32.mrf.mxu0
  %v4201 = vadd.f32 0.0, %v4200
  %4202 = vmatmul.bf16.gmra.mxu0 %v4074
  %v4203 = vpop.f32.mrf.mxu0
  %v4204 = vadd.f32 0.0, %v4203
  %v4205 = vpop.f32.mrf.mxu0
  %v4206 = vadd.f32 0.0, %v4205
  %4207 = vmatmul.bf16.gmra.mxu0 %v4075
  %v4208 = vpop.f32.mrf.mxu0
  %v4209 = vadd.f32 0.0, %v4208
  %v4210 = vpop.f32.mrf.mxu0
  %v4211 = vadd.f32 0.0, %v4210
  %4212 = vmatmul.bf16.gmra.mxu0 %v4076
  %v4213 = vpop.f32.mrf.mxu0
  %v4214 = vadd.f32 0.0, %v4213
  %v4215 = vpop.f32.mrf.mxu0
  %v4216 = vadd.f32 0.0, %v4215
  %4217 = vmatmul.bf16.gmra.mxu0 %v4077
  %v4218 = vpop.f32.mrf.mxu0
  %v4219 = vadd.f32 0.0, %v4218
  %v4220 = vpop.f32.mrf.mxu0
  %v4221 = vadd.f32 0.0, %v4220
  %4222 = vmatmul.bf16.gmra.mxu0 %v4078
  %v4223 = vpop.f32.mrf.mxu0
  %v4224 = vadd.f32 0.0, %v4223
  %v4225 = vpop.f32.mrf.mxu0
  %v4226 = vadd.f32 0.0, %v4225
  %4227 = vmatmul.bf16.gmra.mxu0 %v4079
  %v4228 = vpop.f32.mrf.mxu0
  %v4229 = vadd.f32 0.0, %v4228
  %v4230 = vpop.f32.mrf.mxu0
  %v4231 = vadd.f32 0.0, %v4230
  %4232 = vmatmul.bf16.gmra.mxu0 %v4080
  %v4233 = vpop.f32.mrf.mxu0
  %v4234 = vadd.f32 0.0, %v4233
  %v4235 = vpop.f32.mrf.mxu0
  %v4236 = vadd.f32 0.0, %v4235
  %4237 = vmatmul.bf16.gmra.mxu0 %v4081
  %v4238 = vpop.f32.mrf.mxu0
  %v4239 = vadd.f32 0.0, %v4238
  %v4240 = vpop.f32.mrf.mxu0
  %v4241 = vadd.f32 0.0, %v4240
  %4242 = vmatmul.bf16.gmra.mxu0 %v4082
  %v4243 = vpop.f32.mrf.mxu0
  %v4244 = vadd.f32 0.0, %v4243
  %v4245 = vpop.f32.mrf.mxu0
  %v4246 = vadd.f32 0.0, %v4245
  %4247 = vmatmul.bf16.gmra.mxu0 %v4083
  %v4248 = vpop.f32.mrf.mxu0
  %v4249 = vadd.f32 0.0, %v4248
  %v4250 = vpop.f32.mrf.mxu0
  %v4251 = vadd.f32 0.0, %v4250
  %4252 = vmatmul.bf16.gmra.mxu0 %v4084
  %v4253 = vpop.f32.mrf.mxu0
  %v4254 = vadd.f32 0.0, %v4253
  %v4255 = vpop.f32.mrf.mxu0
  %v4256 = vadd.f32 0.0, %v4255
  %4257 = vmatmul.bf16.gmra.mxu0 %v4085
  %v4258 = vpop.f32.mrf.mxu0
  %v4259 = vadd.f32 0.0, %v4258
  %v4260 = vpop.f32.mrf.mxu0
  %v4261 = vadd.f32 0.0, %v4260
  %4262 = vmatmul.bf16.gmra.mxu0 %v4086
  %v4263 = vpop.f32.mrf.mxu0
  %v4264 = vadd.f32 0.0, %v4263
  %v4265 = vpop.f32.mrf.mxu0
  %v4266 = vadd.f32 0.0, %v4265
  %4267 = vmatmul.bf16.gmra.mxu0 %v4087
  %v4268 = vpop.f32.mrf.mxu0
  %v4269 = vadd.f32 0.0, %v4268
  %v4270 = vpop.f32.mrf.mxu0
  %v4271 = vadd.f32 0.0, %v4270
  %4272 = vmatmul.bf16.gmra.mxu0 %v4088
  %v4273 = vpop.f32.mrf.mxu0
  %v4274 = vadd.f32 0.0, %v4273
  %v4275 = vpop.f32.mrf.mxu0
  %v4276 = vadd.f32 0.0, %v4275
  %4277 = vmatmul.bf16.gmra.mxu0 %v4089
  %v4278 = vpop.f32.mrf.mxu0
  %v4279 = vadd.f32 0.0, %v4278
  %v4280 = vpop.f32.mrf.mxu0
  %v4281 = vadd.f32 0.0, %v4280
  %4282 = vmatmul.bf16.gmra.mxu0 %v4090
  %v4283 = vpop.f32.mrf.mxu0
  %v4284 = vadd.f32 0.0, %v4283
  %v4285 = vpop.f32.mrf.mxu0
  %v4286 = vadd.f32 0.0, %v4285
  %4287 = vmatmul.bf16.gmra.mxu0 %v4091
  %v4288 = vpop.f32.mrf.mxu0
  %v4289 = vadd.f32 0.0, %v4288
  %v4290 = vpop.f32.mrf.mxu0
  %v4291 = vadd.f32 0.0, %v4290
  %4292 = vmatmul.bf16.gmra.mxu0 %v4092
  %v4293 = vpop.f32.mrf.mxu0
  %v4294 = vadd.f32 0.0, %v4293
  %v4295 = vpop.f32.mrf.mxu0
  %v4296 = vadd.f32 0.0, %v4295
  %4297 = vmatmul.bf16.gmra.mxu0 %v4093
  %v4298 = vpop.f32.mrf.mxu0
  %v4299 = vadd.f32 0.0, %v4298
  %v4300 = vpop.f32.mrf.mxu0
  %v4301 = vadd.f32 0.0, %v4300
  %4302 = vmatmul.bf16.gmra.mxu0 %v4094
  %v4303 = vpop.f32.mrf.mxu0
  %v4304 = vadd.f32 0.0, %v4303
  %v4305 = vpop.f32.mrf.mxu0
  %v4306 = vadd.f32 0.0, %v4305
  %4307 = vmatmul.bf16.gmra.mxu0 %v4095
  %v4308 = vpop.f32.mrf.mxu0
  %v4309 = vadd.f32 0.0, %v4308
  %v4310 = vpop.f32.mrf.mxu0
  %v4311 = vadd.f32 0.0, %v4310
  %4312 = vmatmul.bf16.gmra.mxu0 %v4096
  %v4313 = vpop.f32.mrf.mxu0
  %v4314 = vadd.f32 0.0, %v4313
  %v4315 = vpop.f32.mrf.mxu0
  %v4316 = vadd.f32 0.0, %v4315
  %4317 = vmatmul.bf16.gmra.mxu0 %v4097
  %v4318 = vpop.f32.mrf.mxu0
  %v4319 = vadd.f32 0.0, %v4318
  %v4320 = vpop.f32.mrf.mxu0
  %v4321 = vadd.f32 0.0, %v4320
  %4322 = vmatmul.bf16.gmra.mxu0 %v4098
  %v4323 = vpop.f32.mrf.mxu0
  %v4324 = vadd.f32 0.0, %v4323
  %v4325 = vpop.f32.mrf.mxu0
  %v4326 = vadd.f32 0.0, %v4325
  %4327 = vmatmul.bf16.gmra.mxu0 %v4099
  %v4328 = vpop.f32.mrf.mxu0
  %v4329 = vadd.f32 0.0, %v4328
  %v4330 = vpop.f32.mrf.mxu0
  %v4331 = vadd.f32 0.0, %v4330
  %4332 = vdwg.mxu0
  %v4333 = vadd.f32 %v3845, %v4174
  %v4334 = vadd.f32 %v3847, %v4176
  %v4335 = vadd.f32 %v3850, %v4179
  %v4336 = vadd.f32 %v3852, %v4181
  %v4337 = vadd.f32 %v3855, %v4184
  %v4338 = vadd.f32 %v3857, %v4186
  %v4339 = vadd.f32 %v3860, %v4189
  %v4340 = vadd.f32 %v3862, %v4191
  %v4341 = vadd.f32 %v3865, %v4194
  %v4342 = vadd.f32 %v3867, %v4196
  %v4343 = vadd.f32 %v3870, %v4199
  %v4344 = vadd.f32 %v3872, %v4201
  %v4345 = vadd.f32 %v3875, %v4204
  %v4346 = vadd.f32 %v3877, %v4206
  %v4347 = vadd.f32 %v3880, %v4209
  %v4348 = vadd.f32 %v3882, %v4211
  %v4349 = vadd.f32 %v3885, %v4214
  %v4350 = vadd.f32 %v3887, %v4216
  %v4351 = vadd.f32 %v3890, %v4219
  %v4352 = vadd.f32 %v3892, %v4221
  %v4353 = vadd.f32 %v3895, %v4224
  %v4354 = vadd.f32 %v3897, %v4226
  %v4355 = vadd.f32 %v3900, %v4229
  %v4356 = vadd.f32 %v3902, %v4231
  %v4357 = vadd.f32 %v3905, %v4234
  %v4358 = vadd.f32 %v3907, %v4236
  %v4359 = vadd.f32 %v3910, %v4239
  %v4360 = vadd.f32 %v3912, %v4241
  %v4361 = vadd.f32 %v3915, %v4244
  %v4362 = vadd.f32 %v3917, %v4246
  %v4363 = vadd.f32 %v3920, %v4249
  %v4364 = vadd.f32 %v3922, %v4251
  %v4365 = vadd.f32 %v3925, %v4254
  %v4366 = vadd.f32 %v3927, %v4256
  %v4367 = vadd.f32 %v3930, %v4259
  %v4368 = vadd.f32 %v3932, %v4261
  %v4369 = vadd.f32 %v3935, %v4264
  %v4370 = vadd.f32 %v3937, %v4266
  %v4371 = vadd.f32 %v3940, %v4269
  %v4372 = vadd.f32 %v3942, %v4271
  %v4373 = vadd.f32 %v3945, %v4274
  %v4374 = vadd.f32 %v3947, %v4276
  %v4375 = vadd.f32 %v3950, %v4279
  %v4376 = vadd.f32 %v3952, %v4281
  %v4377 = vadd.f32 %v3955, %v4284
  %v4378 = vadd.f32 %v3957, %v4286
  %v4379 = vadd.f32 %v3960, %v4289
  %v4380 = vadd.f32 %v3962, %v4291
  %v4381 = vadd.f32 %v3965, %v4294
  %v4382 = vadd.f32 %v3967, %v4296
  %v4383 = vadd.f32 %v3970, %v4299
  %v4384 = vadd.f32 %v3972, %v4301
  %v4385 = vadd.f32 %v3975, %v4304
  %v4386 = vadd.f32 %v3977, %v4306
  %v4387 = vadd.f32 %v3980, %v4309
  %v4388 = vadd.f32 %v3982, %v4311
  %v4389 = vadd.f32 %v3985, %v4314
  %v4390 = vadd.f32 %v3987, %v4316
  %v4391 = vadd.f32 %v3990, %v4319
  %v4392 = vadd.f32 %v3992, %v4321
  %v4393 = vadd.f32 %v3995, %v4324
  %v4394 = vadd.f32 %v3997, %v4326
  %v4395 = vadd.f32 %v4000, %v4329
  %v4396 = vadd.f32 %v4002, %v4331
  %v4397 = vld [vmem:[%s2832] sm:$0xff]
  %v4398 = vld [vmem:[%s2832 + $0x8] sm:$0xff]
  %v4399 = vld [vmem:[%s2832 + $0x18] sm:$0xff]
  %v4400 = vld [vmem:[%s2832 + $0x20] sm:$0xff]
  %v4401 = vld [vmem:[%s2832 + $0x30] sm:$0xff]
  %v4402 = vld [vmem:[%s2832 + $0x38] sm:$0xff]
  %v4403 = vld [vmem:[%s2832 + $0x48] sm:$0xff]
  %v4404 = vld [vmem:[%s2832 + $0x50] sm:$0xff]
  %v4405 = vld [vmem:[%s2832 + $0x60] sm:$0xff]
  %v4406 = vld [vmem:[%s2832 + $0x68] sm:$0xff]
  %v4407 = vld [vmem:[%s2832 + $0x78] sm:$0xff]
  %v4408 = vld [vmem:[%s2832 + $0x80] sm:$0xff]
  %v4409 = vld [vmem:[%s2832 + $0x90] sm:$0xff]
  %v4410 = vld [vmem:[%s2832 + $0x98] sm:$0xff]
  %v4411 = vld [vmem:[%s2832 + $0xa8] sm:$0xff]
  %v4412 = vld [vmem:[%s2832 + $0xb0] sm:$0xff]
  %v4413 = vld [vmem:[%s2832 + $0xc0] sm:$0xff]
  %v4414 = vld [vmem:[%s2832 + $0xc8] sm:$0xff]
  %v4415 = vld [vmem:[%s2832 + $0xd8] sm:$0xff]
  %v4416 = vld [vmem:[%s2832 + $0xe0] sm:$0xff]
  %v4417 = vld [vmem:[%s2832 + $0xf0] sm:$0xff]
  %v4418 = vld [vmem:[%s2832 + $0xf8] sm:$0xff]
  %v4419 = vld [vmem:[%s2832 + $0x108] sm:$0xff]
  %v4420 = vld [vmem:[%s2832 + $0x110] sm:$0xff]
  %v4421 = vld [vmem:[%s2832 + $0x120] sm:$0xff]
  %v4422 = vld [vmem:[%s2832 + $0x128] sm:$0xff]
  %v4423 = vld [vmem:[%s2832 + $0x138] sm:$0xff]
  %v4424 = vld [vmem:[%s2832 + $0x140] sm:$0xff]
  %v4425 = vld [vmem:[%s2832 + $0x150] sm:$0xff]
  %v4426 = vld [vmem:[%s2832 + $0x158] sm:$0xff]
  %v4427 = vld [vmem:[%s2832 + $0x168] sm:$0xff]
  %v4428 = vld [vmem:[%s2832 + $0x170] sm:$0xff]
  %v4429 = vld [vmem:[%s2832 + $0x1b0] sm:$0xff]
  %v4430 = vld [vmem:[%s2832 + $0x1b8] sm:$0xff]
  %v4431 = vld [vmem:[%s2832 + $0x1c8] sm:$0xff]
  %v4432 = vld [vmem:[%s2832 + $0x1d0] sm:$0xff]
  %v4433 = vld [vmem:[%s2832 + $0x1e0] sm:$0xff]
  %v4434 = vld [vmem:[%s2832 + $0x1e8] sm:$0xff]
  %v4435 = vld [vmem:[%s2832 + $0x1f8] sm:$0xff]
  %v4436 = vld [vmem:[%s2832 + $0x200] sm:$0xff]
  %v4437 = vld [vmem:[%s2832 + $0x210] sm:$0xff]
  %v4438 = vld [vmem:[%s2832 + $0x218] sm:$0xff]
  %v4439 = vld [vmem:[%s2832 + $0x228] sm:$0xff]
  %v4440 = vld [vmem:[%s2832 + $0x230] sm:$0xff]
  %v4441 = vld [vmem:[%s2832 + $0x240] sm:$0xff]
  %v4442 = vld [vmem:[%s2832 + $0x248] sm:$0xff]
  %v4443 = vld [vmem:[%s2832 + $0x258] sm:$0xff]
  %v4444 = vld [vmem:[%s2832 + $0x260] sm:$0xff]
  %v4445 = vld [vmem:[%s2832 + $0x270] sm:$0xff]
  %v4446 = vld [vmem:[%s2832 + $0x278] sm:$0xff]
  %v4447 = vld [vmem:[%s2832 + $0x288] sm:$0xff]
  %v4448 = vld [vmem:[%s2832 + $0x290] sm:$0xff]
  %v4449 = vld [vmem:[%s2832 + $0x2a0] sm:$0xff]
  %v4450 = vld [vmem:[%s2832 + $0x2a8] sm:$0xff]
  %v4451 = vld [vmem:[%s2832 + $0x2b8] sm:$0xff]
  %v4452 = vld [vmem:[%s2832 + $0x2c0] sm:$0xff]
  %v4453 = vld [vmem:[%s2832 + $0x2d0] sm:$0xff]
  %v4454 = vld [vmem:[%s2832 + $0x2d8] sm:$0xff]
  %v4455 = vld [vmem:[%s2832 + $0x2e8] sm:$0xff]
  %v4456 = vld [vmem:[%s2832 + $0x2f0] sm:$0xff]
  %v4457 = vld [vmem:[%s2832 + $0x300] sm:$0xff]
  %v4458 = vld [vmem:[%s2832 + $0x308] sm:$0xff]
  %v4459 = vld [vmem:[%s2832 + $0x318] sm:$0xff]
  %v4460 = vld [vmem:[%s2832 + $0x320] sm:$0xff]
  %v4461 = vpack.c.bf16 %v4398, %v4397
  %v4462 = vpack.c.bf16 %v4400, %v4399
  %v4463 = vpack.c.bf16 %v4402, %v4401
  %v4464 = vpack.c.bf16 %v4404, %v4403
  %v4465 = vpack.c.bf16 %v4406, %v4405
  %v4466 = vpack.c.bf16 %v4408, %v4407
  %v4467 = vpack.c.bf16 %v4410, %v4409
  %v4468 = vpack.c.bf16 %v4412, %v4411
  %v4469 = vpack.c.bf16 %v4414, %v4413
  %v4470 = vpack.c.bf16 %v4416, %v4415
  %v4471 = vpack.c.bf16 %v4418, %v4417
  %v4472 = vpack.c.bf16 %v4420, %v4419
  %v4473 = vpack.c.bf16 %v4422, %v4421
  %v4474 = vpack.c.bf16 %v4424, %v4423
  %v4475 = vpack.c.bf16 %v4426, %v4425
  %v4476 = vpack.c.bf16 %v4428, %v4427
  %v4477 = vpack.c.bf16 %v4430, %v4429
  %v4478 = vpack.c.bf16 %v4432, %v4431
  %v4479 = vpack.c.bf16 %v4434, %v4433
  %v4480 = vpack.c.bf16 %v4436, %v4435
  %v4481 = vpack.c.bf16 %v4438, %v4437
  %v4482 = vpack.c.bf16 %v4440, %v4439
  %v4483 = vpack.c.bf16 %v4442, %v4441
  %v4484 = vpack.c.bf16 %v4444, %v4443
  %v4485 = vpack.c.bf16 %v4446, %v4445
  %v4486 = vpack.c.bf16 %v4448, %v4447
  %v4487 = vpack.c.bf16 %v4450, %v4449
  %v4488 = vpack.c.bf16 %v4452, %v4451
  %v4489 = vpack.c.bf16 %v4454, %v4453
  %v4490 = vpack.c.bf16 %v4456, %v4455
  %v4491 = vpack.c.bf16 %v4458, %v4457
  %v4492 = vpack.c.bf16 %v4460, %v4459
  %v4493 = vld [vmem:[%s3 + $0xc0] sm:$0xf]
  %v4494 = vld [vmem:[%s3 + $0xc4] sm:$0xf]
  %v4495 = vld [vmem:[%s3 + $0xc8] sm:$0xf]
  %v4496 = vld [vmem:[%s3 + $0xcc] sm:$0xf]
  %v4497 = vld [vmem:[%s3 + $0xd0] sm:$0xf]
  %v4498 = vld [vmem:[%s3 + $0xd4] sm:$0xf]
  %v4499 = vld [vmem:[%s3 + $0xd8] sm:$0xf]
  %v4500 = vld [vmem:[%s3 + $0xdc] sm:$0xf]
  %v4501 = vld [vmem:[%s3 + $0xe0] sm:$0xf]
  %v4502 = vld [vmem:[%s3 + $0xe4] sm:$0xf]
  %v4503 = vld [vmem:[%s3 + $0xe8] sm:$0xf]
  %v4504 = vld [vmem:[%s3 + $0xec] sm:$0xf]
  %v4505 = vld [vmem:[%s3 + $0xf0] sm:$0xf]
  %v4506 = vld [vmem:[%s3 + $0xf4] sm:$0xf]
  %v4507 = vld [vmem:[%s3 + $0xf8] sm:$0xf]
  %v4508 = vld [vmem:[%s3 + $0xfc] sm:$0xf]
  %v4525 = vunpack.c.l.b16 %v4493
  %v4526 = vunpack.c.l.b16 %v4494
  %v4527 = vunpack.c.l.b16 %v4495
  %v4528 = vunpack.c.l.b16 %v4496
  %v4529 = vunpack.c.l.b16 %v4497
  %v4530 = vunpack.c.l.b16 %v4498
  %v4531 = vunpack.c.l.b16 %v4499
  %v4532 = vunpack.c.l.b16 %v4500
  %v4533 = vunpack.c.l.b16 %v4501
  %v4534 = vunpack.c.l.b16 %v4502
  %v4535 = vunpack.c.l.b16 %v4503
  %v4536 = vunpack.c.l.b16 %v4504
  %v4537 = vunpack.c.l.b16 %v4505
  %v4538 = vunpack.c.l.b16 %v4506
  %v4539 = vunpack.c.l.b16 %v4507
  %v4540 = vunpack.c.l.b16 %v4508
  %v4541 = vpack.c.b16 %v4526, %v4525
  %v4542 = vpack.c.b16 %v4528, %v4527
  %v4543 = vpack.c.b16 %v4530, %v4529
  %v4544 = vpack.c.b16 %v4532, %v4531
  %v4545 = vpack.c.b16 %v4534, %v4533
  %v4546 = vpack.c.b16 %v4536, %v4535
  %v4547 = vpack.c.b16 %v4538, %v4537
  %v4548 = vpack.c.b16 %v4540, %v4539
  %4557 = vmatpush.bf16.msra.mxu0 %v4548
  %4558 = vmatpush.bf16.msra.mxu0 %v4547
  %4559 = vmatpush.bf16.msra.mxu0 %v4546
  %4560 = vmatpush.bf16.msra.mxu0 %v4545
  %4561 = vmatpush.bf16.msra.mxu0 %v4544
  %4562 = vmatpush.bf16.msra.mxu0 %v4543
  %4563 = vmatpush.bf16.msra.mxu0 %v4542
  %4564 = vmatpush.bf16.msra.mxu0 %v4541
  %4565 = vmatmul.bf16.gmra.mxu0 %v4461
  %v4566 = vpop.f32.mrf.mxu0
  %v4567 = vadd.f32 0.0, %v4566
  %v4568 = vpop.f32.mrf.mxu0
  %v4569 = vadd.f32 0.0, %v4568
  %4570 = vmatmul.bf16.gmra.mxu0 %v4462
  %v4571 = vpop.f32.mrf.mxu0
  %v4572 = vadd.f32 0.0, %v4571
  %v4573 = vpop.f32.mrf.mxu0
  %v4574 = vadd.f32 0.0, %v4573
  %4575 = vmatmul.bf16.gmra.mxu0 %v4463
  %v4576 = vpop.f32.mrf.mxu0
  %v4577 = vadd.f32 0.0, %v4576
  %v4578 = vpop.f32.mrf.mxu0
  %v4579 = vadd.f32 0.0, %v4578
  %4580 = vmatmul.bf16.gmra.mxu0 %v4464
  %v4581 = vpop.f32.mrf.mxu0
  %v4582 = vadd.f32 0.0, %v4581
  %v4583 = vpop.f32.mrf.mxu0
  %v4584 = vadd.f32 0.0, %v4583
  %4585 = vmatmul.bf16.gmra.mxu0 %v4465
  %v4586 = vpop.f32.mrf.mxu0
  %v4587 = vadd.f32 0.0, %v4586
  %v4588 = vpop.f32.mrf.mxu0
  %v4589 = vadd.f32 0.0, %v4588
  %4590 = vmatmul.bf16.gmra.mxu0 %v4466
  %v4591 = vpop.f32.mrf.mxu0
  %v4592 = vadd.f32 0.0, %v4591
  %v4593 = vpop.f32.mrf.mxu0
  %v4594 = vadd.f32 0.0, %v4593
  %4595 = vmatmul.bf16.gmra.mxu0 %v4467
  %v4596 = vpop.f32.mrf.mxu0
  %v4597 = vadd.f32 0.0, %v4596
  %v4598 = vpop.f32.mrf.mxu0
  %v4599 = vadd.f32 0.0, %v4598
  %4600 = vmatmul.bf16.gmra.mxu0 %v4468
  %v4601 = vpop.f32.mrf.mxu0
  %v4602 = vadd.f32 0.0, %v4601
  %v4603 = vpop.f32.mrf.mxu0
  %v4604 = vadd.f32 0.0, %v4603
  %4605 = vmatmul.bf16.gmra.mxu0 %v4469
  %v4606 = vpop.f32.mrf.mxu0
  %v4607 = vadd.f32 0.0, %v4606
  %v4608 = vpop.f32.mrf.mxu0
  %v4609 = vadd.f32 0.0, %v4608
  %4610 = vmatmul.bf16.gmra.mxu0 %v4470
  %v4611 = vpop.f32.mrf.mxu0
  %v4612 = vadd.f32 0.0, %v4611
  %v4613 = vpop.f32.mrf.mxu0
  %v4614 = vadd.f32 0.0, %v4613
  %4615 = vmatmul.bf16.gmra.mxu0 %v4471
  %v4616 = vpop.f32.mrf.mxu0
  %v4617 = vadd.f32 0.0, %v4616
  %v4618 = vpop.f32.mrf.mxu0
  %v4619 = vadd.f32 0.0, %v4618
  %4620 = vmatmul.bf16.gmra.mxu0 %v4472
  %v4621 = vpop.f32.mrf.mxu0
  %v4622 = vadd.f32 0.0, %v4621
  %v4623 = vpop.f32.mrf.mxu0
  %v4624 = vadd.f32 0.0, %v4623
  %4625 = vmatmul.bf16.gmra.mxu0 %v4473
  %v4626 = vpop.f32.mrf.mxu0
  %v4627 = vadd.f32 0.0, %v4626
  %v4628 = vpop.f32.mrf.mxu0
  %v4629 = vadd.f32 0.0, %v4628
  %4630 = vmatmul.bf16.gmra.mxu0 %v4474
  %v4631 = vpop.f32.mrf.mxu0
  %v4632 = vadd.f32 0.0, %v4631
  %v4633 = vpop.f32.mrf.mxu0
  %v4634 = vadd.f32 0.0, %v4633
  %4635 = vmatmul.bf16.gmra.mxu0 %v4475
  %v4636 = vpop.f32.mrf.mxu0
  %v4637 = vadd.f32 0.0, %v4636
  %v4638 = vpop.f32.mrf.mxu0
  %v4639 = vadd.f32 0.0, %v4638
  %4640 = vmatmul.bf16.gmra.mxu0 %v4476
  %v4641 = vpop.f32.mrf.mxu0
  %v4642 = vadd.f32 0.0, %v4641
  %v4643 = vpop.f32.mrf.mxu0
  %v4644 = vadd.f32 0.0, %v4643
  %4645 = vmatmul.bf16.gmra.mxu0 %v4477
  %v4646 = vpop.f32.mrf.mxu0
  %v4647 = vadd.f32 0.0, %v4646
  %v4648 = vpop.f32.mrf.mxu0
  %v4649 = vadd.f32 0.0, %v4648
  %4650 = vmatmul.bf16.gmra.mxu0 %v4478
  %v4651 = vpop.f32.mrf.mxu0
  %v4652 = vadd.f32 0.0, %v4651
  %v4653 = vpop.f32.mrf.mxu0
  %v4654 = vadd.f32 0.0, %v4653
  %4655 = vmatmul.bf16.gmra.mxu0 %v4479
  %v4656 = vpop.f32.mrf.mxu0
  %v4657 = vadd.f32 0.0, %v4656
  %v4658 = vpop.f32.mrf.mxu0
  %v4659 = vadd.f32 0.0, %v4658
  %4660 = vmatmul.bf16.gmra.mxu0 %v4480
  %v4661 = vpop.f32.mrf.mxu0
  %v4662 = vadd.f32 0.0, %v4661
  %v4663 = vpop.f32.mrf.mxu0
  %v4664 = vadd.f32 0.0, %v4663
  %4665 = vmatmul.bf16.gmra.mxu0 %v4481
  %v4666 = vpop.f32.mrf.mxu0
  %v4667 = vadd.f32 0.0, %v4666
  %v4668 = vpop.f32.mrf.mxu0
  %v4669 = vadd.f32 0.0, %v4668
  %4670 = vmatmul.bf16.gmra.mxu0 %v4482
  %v4671 = vpop.f32.mrf.mxu0
  %v4672 = vadd.f32 0.0, %v4671
  %v4673 = vpop.f32.mrf.mxu0
  %v4674 = vadd.f32 0.0, %v4673
  %4675 = vmatmul.bf16.gmra.mxu0 %v4483
  %v4676 = vpop.f32.mrf.mxu0
  %v4677 = vadd.f32 0.0, %v4676
  %v4678 = vpop.f32.mrf.mxu0
  %v4679 = vadd.f32 0.0, %v4678
  %4680 = vmatmul.bf16.gmra.mxu0 %v4484
  %v4681 = vpop.f32.mrf.mxu0
  %v4682 = vadd.f32 0.0, %v4681
  %v4683 = vpop.f32.mrf.mxu0
  %v4684 = vadd.f32 0.0, %v4683
  %4685 = vmatmul.bf16.gmra.mxu0 %v4485
  %v4686 = vpop.f32.mrf.mxu0
  %v4687 = vadd.f32 0.0, %v4686
  %v4688 = vpop.f32.mrf.mxu0
  %v4689 = vadd.f32 0.0, %v4688
  %4690 = vmatmul.bf16.gmra.mxu0 %v4486
  %v4691 = vpop.f32.mrf.mxu0
  %v4692 = vadd.f32 0.0, %v4691
  %v4693 = vpop.f32.mrf.mxu0
  %v4694 = vadd.f32 0.0, %v4693
  %4695 = vmatmul.bf16.gmra.mxu0 %v4487
  %v4696 = vpop.f32.mrf.mxu0
  %v4697 = vadd.f32 0.0, %v4696
  %v4698 = vpop.f32.mrf.mxu0
  %v4699 = vadd.f32 0.0, %v4698
  %4700 = vmatmul.bf16.gmra.mxu0 %v4488
  %v4701 = vpop.f32.mrf.mxu0
  %v4702 = vadd.f32 0.0, %v4701
  %v4703 = vpop.f32.mrf.mxu0
  %v4704 = vadd.f32 0.0, %v4703
  %4705 = vmatmul.bf16.gmra.mxu0 %v4489
  %v4706 = vpop.f32.mrf.mxu0
  %v4707 = vadd.f32 0.0, %v4706
  %v4708 = vpop.f32.mrf.mxu0
  %v4709 = vadd.f32 0.0, %v4708
  %4710 = vmatmul.bf16.gmra.mxu0 %v4490
  %v4711 = vpop.f32.mrf.mxu0
  %v4712 = vadd.f32 0.0, %v4711
  %v4713 = vpop.f32.mrf.mxu0
  %v4714 = vadd.f32 0.0, %v4713
  %4715 = vmatmul.bf16.gmra.mxu0 %v4491
  %v4716 = vpop.f32.mrf.mxu0
  %v4717 = vadd.f32 0.0, %v4716
  %v4718 = vpop.f32.mrf.mxu0
  %v4719 = vadd.f32 0.0, %v4718
  %4720 = vmatmul.bf16.gmra.mxu0 %v4492
  %v4721 = vpop.f32.mrf.mxu0
  %v4722 = vadd.f32 0.0, %v4721
  %v4723 = vpop.f32.mrf.mxu0
  %v4724 = vadd.f32 0.0, %v4723
  %4725 = vdwg.mxu0
  %v4726 = vadd.f32 %v4333, %v4567
  %v4727 = vadd.f32 %v4334, %v4569
  %v4728 = vadd.f32 %v4335, %v4572
  %v4729 = vadd.f32 %v4336, %v4574
  %v4730 = vadd.f32 %v4337, %v4577
  %v4731 = vadd.f32 %v4338, %v4579
  %v4732 = vadd.f32 %v4339, %v4582
  %v4733 = vadd.f32 %v4340, %v4584
  %v4734 = vadd.f32 %v4341, %v4587
  %v4735 = vadd.f32 %v4342, %v4589
  %v4736 = vadd.f32 %v4343, %v4592
  %v4737 = vadd.f32 %v4344, %v4594
  %v4738 = vadd.f32 %v4345, %v4597
  %v4739 = vadd.f32 %v4346, %v4599
  %v4740 = vadd.f32 %v4347, %v4602
  %v4741 = vadd.f32 %v4348, %v4604
  %v4742 = vadd.f32 %v4349, %v4607
  %v4743 = vadd.f32 %v4350, %v4609
  %v4744 = vadd.f32 %v4351, %v4612
  %v4745 = vadd.f32 %v4352, %v4614
  %v4746 = vadd.f32 %v4353, %v4617
  %v4747 = vadd.f32 %v4354, %v4619
  %v4748 = vadd.f32 %v4355, %v4622
  %v4749 = vadd.f32 %v4356, %v4624
  %v4750 = vadd.f32 %v4357, %v4627
  %v4751 = vadd.f32 %v4358, %v4629
  %v4752 = vadd.f32 %v4359, %v4632
  %v4753 = vadd.f32 %v4360, %v4634
  %v4754 = vadd.f32 %v4361, %v4637
  %v4755 = vadd.f32 %v4362, %v4639
  %v4756 = vadd.f32 %v4363, %v4642
  %v4757 = vadd.f32 %v4364, %v4644
  %v4758 = vadd.f32 %v4365, %v4647
  %v4759 = vadd.f32 %v4366, %v4649
  %v4760 = vadd.f32 %v4367, %v4652
  %v4761 = vadd.f32 %v4368, %v4654
  %v4762 = vadd.f32 %v4369, %v4657
  %v4763 = vadd.f32 %v4370, %v4659
  %v4764 = vadd.f32 %v4371, %v4662
  %v4765 = vadd.f32 %v4372, %v4664
  %v4766 = vadd.f32 %v4373, %v4667
  %v4767 = vadd.f32 %v4374, %v4669
  %v4768 = vadd.f32 %v4375, %v4672
  %v4769 = vadd.f32 %v4376, %v4674
  %v4770 = vadd.f32 %v4377, %v4677
  %v4771 = vadd.f32 %v4378, %v4679
  %v4772 = vadd.f32 %v4379, %v4682
  %v4773 = vadd.f32 %v4380, %v4684
  %v4774 = vadd.f32 %v4381, %v4687
  %v4775 = vadd.f32 %v4382, %v4689
  %v4776 = vadd.f32 %v4383, %v4692
  %v4777 = vadd.f32 %v4384, %v4694
  %v4778 = vadd.f32 %v4385, %v4697
  %v4779 = vadd.f32 %v4386, %v4699
  %v4780 = vadd.f32 %v4387, %v4702
  %v4781 = vadd.f32 %v4388, %v4704
  %v4782 = vadd.f32 %v4389, %v4707
  %v4783 = vadd.f32 %v4390, %v4709
  %v4784 = vadd.f32 %v4391, %v4712
  %v4785 = vadd.f32 %v4392, %v4714
  %v4786 = vadd.f32 %v4393, %v4717
  %v4787 = vadd.f32 %v4394, %v4719
  %v4788 = vadd.f32 %v4395, %v4722
  %v4789 = vadd.f32 %v4396, %v4724
  %v4790 = vld [vmem:[%s2832 + $0x1] sm:$0xff]
  %v4791 = vld [vmem:[%s2832 + $0x9] sm:$0xff]
  %v4792 = vld [vmem:[%s2832 + $0x19] sm:$0xff]
  %v4793 = vld [vmem:[%s2832 + $0x21] sm:$0xff]
  %v4794 = vld [vmem:[%s2832 + $0x31] sm:$0xff]
  %v4795 = vld [vmem:[%s2832 + $0x39] sm:$0xff]
  %v4796 = vld [vmem:[%s2832 + $0x49] sm:$0xff]
  %v4797 = vld [vmem:[%s2832 + $0x51] sm:$0xff]
  %v4798 = vld [vmem:[%s2832 + $0x61] sm:$0xff]
  %v4799 = vld [vmem:[%s2832 + $0x69] sm:$0xff]
  %v4800 = vld [vmem:[%s2832 + $0x79] sm:$0xff]
  %v4801 = vld [vmem:[%s2832 + $0x81] sm:$0xff]
  %v4802 = vld [vmem:[%s2832 + $0x91] sm:$0xff]
  %v4803 = vld [vmem:[%s2832 + $0x99] sm:$0xff]
  %v4804 = vld [vmem:[%s2832 + $0xa9] sm:$0xff]
  %v4805 = vld [vmem:[%s2832 + $0xb1] sm:$0xff]
  %v4806 = vld [vmem:[%s2832 + $0xc1] sm:$0xff]
  %v4807 = vld [vmem:[%s2832 + $0xc9] sm:$0xff]
  %v4808 = vld [vmem:[%s2832 + $0xd9] sm:$0xff]
  %v4809 = vld [vmem:[%s2832 + $0xe1] sm:$0xff]
  %v4810 = vld [vmem:[%s2832 + $0xf1] sm:$0xff]
  %v4811 = vld [vmem:[%s2832 + $0xf9] sm:$0xff]
  %v4812 = vld [vmem:[%s2832 + $0x109] sm:$0xff]
  %v4813 = vld [vmem:[%s2832 + $0x111] sm:$0xff]
  %v4814 = vld [vmem:[%s2832 + $0x121] sm:$0xff]
  %v4815 = vld [vmem:[%s2832 + $0x129] sm:$0xff]
  %v4816 = vld [vmem:[%s2832 + $0x139] sm:$0xff]
  %v4817 = vld [vmem:[%s2832 + $0x141] sm:$0xff]
  %v4818 = vld [vmem:[%s2832 + $0x151] sm:$0xff]
  %v4819 = vld [vmem:[%s2832 + $0x159] sm:$0xff]
  %v4820 = vld [vmem:[%s2832 + $0x169] sm:$0xff]
  %v4821 = vld [vmem:[%s2832 + $0x171] sm:$0xff]
  %v4822 = vld [vmem:[%s2832 + $0x1b1] sm:$0xff]
  %v4823 = vld [vmem:[%s2832 + $0x1b9] sm:$0xff]
  %v4824 = vld [vmem:[%s2832 + $0x1c9] sm:$0xff]
  %v4825 = vld [vmem:[%s2832 + $0x1d1] sm:$0xff]
  %v4826 = vld [vmem:[%s2832 + $0x1e1] sm:$0xff]
  %v4827 = vld [vmem:[%s2832 + $0x1e9] sm:$0xff]
  %v4828 = vld [vmem:[%s2832 + $0x1f9] sm:$0xff]
  %v4829 = vld [vmem:[%s2832 + $0x201] sm:$0xff]
  %v4830 = vld [vmem:[%s2832 + $0x211] sm:$0xff]
  %v4831 = vld [vmem:[%s2832 + $0x219] sm:$0xff]
  %v4832 = vld [vmem:[%s2832 + $0x229] sm:$0xff]
  %v4833 = vld [vmem:[%s2832 + $0x231] sm:$0xff]
  %v4834 = vld [vmem:[%s2832 + $0x241] sm:$0xff]
  %v4835 = vld [vmem:[%s2832 + $0x249] sm:$0xff]
  %v4836 = vld [vmem:[%s2832 + $0x259] sm:$0xff]
  %v4837 = vld [vmem:[%s2832 + $0x261] sm:$0xff]
  %v4838 = vld [vmem:[%s2832 + $0x271] sm:$0xff]
  %v4839 = vld [vmem:[%s2832 + $0x279] sm:$0xff]
  %v4840 = vld [vmem:[%s2832 + $0x289] sm:$0xff]
  %v4841 = vld [vmem:[%s2832 + $0x291] sm:$0xff]
  %v4842 = vld [vmem:[%s2832 + $0x2a1] sm:$0xff]
  %v4843 = vld [vmem:[%s2832 + $0x2a9] sm:$0xff]
  %v4844 = vld [vmem:[%s2832 + $0x2b9] sm:$0xff]
  %v4845 = vld [vmem:[%s2832 + $0x2c1] sm:$0xff]
  %v4846 = vld [vmem:[%s2832 + $0x2d1] sm:$0xff]
  %v4847 = vld [vmem:[%s2832 + $0x2d9] sm:$0xff]
  %v4848 = vld [vmem:[%s2832 + $0x2e9] sm:$0xff]
  %v4849 = vld [vmem:[%s2832 + $0x2f1] sm:$0xff]
  %v4850 = vld [vmem:[%s2832 + $0x301] sm:$0xff]
  %v4851 = vld [vmem:[%s2832 + $0x309] sm:$0xff]
  %v4852 = vld [vmem:[%s2832 + $0x319] sm:$0xff]
  %v4853 = vld [vmem:[%s2832 + $0x321] sm:$0xff]
  %v4854 = vpack.c.bf16 %v4791, %v4790
  %v4855 = vpack.c.bf16 %v4793, %v4792
  %v4856 = vpack.c.bf16 %v4795, %v4794
  %v4857 = vpack.c.bf16 %v4797, %v4796
  %v4858 = vpack.c.bf16 %v4799, %v4798
  %v4859 = vpack.c.bf16 %v4801, %v4800
  %v4860 = vpack.c.bf16 %v4803, %v4802
  %v4861 = vpack.c.bf16 %v4805, %v4804
  %v4862 = vpack.c.bf16 %v4807, %v4806
  %v4863 = vpack.c.bf16 %v4809, %v4808
  %v4864 = vpack.c.bf16 %v4811, %v4810
  %v4865 = vpack.c.bf16 %v4813, %v4812
  %v4866 = vpack.c.bf16 %v4815, %v4814
  %v4867 = vpack.c.bf16 %v4817, %v4816
  %v4868 = vpack.c.bf16 %v4819, %v4818
  %v4869 = vpack.c.bf16 %v4821, %v4820
  %v4870 = vpack.c.bf16 %v4823, %v4822
  %v4871 = vpack.c.bf16 %v4825, %v4824
  %v4872 = vpack.c.bf16 %v4827, %v4826
  %v4873 = vpack.c.bf16 %v4829, %v4828
  %v4874 = vpack.c.bf16 %v4831, %v4830
  %v4875 = vpack.c.bf16 %v4833, %v4832
  %v4876 = vpack.c.bf16 %v4835, %v4834
  %v4877 = vpack.c.bf16 %v4837, %v4836
  %v4878 = vpack.c.bf16 %v4839, %v4838
  %v4879 = vpack.c.bf16 %v4841, %v4840
  %v4880 = vpack.c.bf16 %v4843, %v4842
  %v4881 = vpack.c.bf16 %v4845, %v4844
  %v4882 = vpack.c.bf16 %v4847, %v4846
  %v4883 = vpack.c.bf16 %v4849, %v4848
  %v4884 = vpack.c.bf16 %v4851, %v4850
  %v4885 = vpack.c.bf16 %v4853, %v4852
  %v4886 = vld [vmem:[%s3 + $0x100] sm:$0xf]
  %v4887 = vld [vmem:[%s3 + $0x104] sm:$0xf]
  %v4888 = vld [vmem:[%s3 + $0x108] sm:$0xf]
  %v4889 = vld [vmem:[%s3 + $0x10c] sm:$0xf]
  %v4890 = vld [vmem:[%s3 + $0x110] sm:$0xf]
  %v4891 = vld [vmem:[%s3 + $0x114] sm:$0xf]
  %v4892 = vld [vmem:[%s3 + $0x118] sm:$0xf]
  %v4893 = vld [vmem:[%s3 + $0x11c] sm:$0xf]
  %v4894 = vld [vmem:[%s3 + $0x120] sm:$0xf]
  %v4895 = vld [vmem:[%s3 + $0x124] sm:$0xf]
  %v4896 = vld [vmem:[%s3 + $0x128] sm:$0xf]
  %v4897 = vld [vmem:[%s3 + $0x12c] sm:$0xf]
  %v4898 = vld [vmem:[%s3 + $0x130] sm:$0xf]
  %v4899 = vld [vmem:[%s3 + $0x134] sm:$0xf]
  %v4900 = vld [vmem:[%s3 + $0x138] sm:$0xf]
  %v4901 = vld [vmem:[%s3 + $0x13c] sm:$0xf]
  %v4918 = vunpack.c.l.b16 %v4886
  %v4919 = vunpack.c.l.b16 %v4887
  %v4920 = vunpack.c.l.b16 %v4888
  %v4921 = vunpack.c.l.b16 %v4889
  %v4922 = vunpack.c.l.b16 %v4890
  %v4923 = vunpack.c.l.b16 %v4891
  %v4924 = vunpack.c.l.b16 %v4892
  %v4925 = vunpack.c.l.b16 %v4893
  %v4926 = vunpack.c.l.b16 %v4894
  %v4927 = vunpack.c.l.b16 %v4895
  %v4928 = vunpack.c.l.b16 %v4896
  %v4929 = vunpack.c.l.b16 %v4897
  %v4930 = vunpack.c.l.b16 %v4898
  %v4931 = vunpack.c.l.b16 %v4899
  %v4932 = vunpack.c.l.b16 %v4900
  %v4933 = vunpack.c.l.b16 %v4901
  %v4934 = vpack.c.b16 %v4919, %v4918
  %v4935 = vpack.c.b16 %v4921, %v4920
  %v4936 = vpack.c.b16 %v4923, %v4922
  %v4937 = vpack.c.b16 %v4925, %v4924
  %v4938 = vpack.c.b16 %v4927, %v4926
  %v4939 = vpack.c.b16 %v4929, %v4928
  %v4940 = vpack.c.b16 %v4931, %v4930
  %v4941 = vpack.c.b16 %v4933, %v4932
  %4950 = vmatpush.bf16.msra.mxu0 %v4941
  %4951 = vmatpush.bf16.msra.mxu0 %v4940
  %4952 = vmatpush.bf16.msra.mxu0 %v4939
  %4953 = vmatpush.bf16.msra.mxu0 %v4938
  %4954 = vmatpush.bf16.msra.mxu0 %v4937
  %4955 = vmatpush.bf16.msra.mxu0 %v4936
  %4956 = vmatpush.bf16.msra.mxu0 %v4935
  %4957 = vmatpush.bf16.msra.mxu0 %v4934
  %4958 = vmatmul.bf16.gmra.mxu0 %v4854
  %v4959 = vpop.f32.mrf.mxu0
  %v4960 = vadd.f32 0.0, %v4959
  %v4961 = vpop.f32.mrf.mxu0
  %v4962 = vadd.f32 0.0, %v4961
  %4963 = vmatmul.bf16.gmra.mxu0 %v4855
  %v4964 = vpop.f32.mrf.mxu0
  %v4965 = vadd.f32 0.0, %v4964
  %v4966 = vpop.f32.mrf.mxu0
  %v4967 = vadd.f32 0.0, %v4966
  %4968 = vmatmul.bf16.gmra.mxu0 %v4856
  %v4969 = vpop.f32.mrf.mxu0
  %v4970 = vadd.f32 0.0, %v4969
  %v4971 = vpop.f32.mrf.mxu0
  %v4972 = vadd.f32 0.0, %v4971
  %4973 = vmatmul.bf16.gmra.mxu0 %v4857
  %v4974 = vpop.f32.mrf.mxu0
  %v4975 = vadd.f32 0.0, %v4974
  %v4976 = vpop.f32.mrf.mxu0
  %v4977 = vadd.f32 0.0, %v4976
  %4978 = vmatmul.bf16.gmra.mxu0 %v4858
  %v4979 = vpop.f32.mrf.mxu0
  %v4980 = vadd.f32 0.0, %v4979
  %v4981 = vpop.f32.mrf.mxu0
  %v4982 = vadd.f32 0.0, %v4981
  %4983 = vmatmul.bf16.gmra.mxu0 %v4859
  %v4984 = vpop.f32.mrf.mxu0
  %v4985 = vadd.f32 0.0, %v4984
  %v4986 = vpop.f32.mrf.mxu0
  %v4987 = vadd.f32 0.0, %v4986
  %4988 = vmatmul.bf16.gmra.mxu0 %v4860
  %v4989 = vpop.f32.mrf.mxu0
  %v4990 = vadd.f32 0.0, %v4989
  %v4991 = vpop.f32.mrf.mxu0
  %v4992 = vadd.f32 0.0, %v4991
  %4993 = vmatmul.bf16.gmra.mxu0 %v4861
  %v4994 = vpop.f32.mrf.mxu0
  %v4995 = vadd.f32 0.0, %v4994
  %v4996 = vpop.f32.mrf.mxu0
  %v4997 = vadd.f32 0.0, %v4996
  %4998 = vmatmul.bf16.gmra.mxu0 %v4862
  %v4999 = vpop.f32.mrf.mxu0
  %v5000 = vadd.f32 0.0, %v4999
  %v5001 = vpop.f32.mrf.mxu0
  %v5002 = vadd.f32 0.0, %v5001
  %5003 = vmatmul.bf16.gmra.mxu0 %v4863
  %v5004 = vpop.f32.mrf.mxu0
  %v5005 = vadd.f32 0.0, %v5004
  %v5006 = vpop.f32.mrf.mxu0
  %v5007 = vadd.f32 0.0, %v5006
  %5008 = vmatmul.bf16.gmra.mxu0 %v4864
  %v5009 = vpop.f32.mrf.mxu0
  %v5010 = vadd.f32 0.0, %v5009
  %v5011 = vpop.f32.mrf.mxu0
  %v5012 = vadd.f32 0.0, %v5011
  %5013 = vmatmul.bf16.gmra.mxu0 %v4865
  %v5014 = vpop.f32.mrf.mxu0
  %v5015 = vadd.f32 0.0, %v5014
  %v5016 = vpop.f32.mrf.mxu0
  %v5017 = vadd.f32 0.0, %v5016
  %5018 = vmatmul.bf16.gmra.mxu0 %v4866
  %v5019 = vpop.f32.mrf.mxu0
  %v5020 = vadd.f32 0.0, %v5019
  %v5021 = vpop.f32.mrf.mxu0
  %v5022 = vadd.f32 0.0, %v5021
  %5023 = vmatmul.bf16.gmra.mxu0 %v4867
  %v5024 = vpop.f32.mrf.mxu0
  %v5025 = vadd.f32 0.0, %v5024
  %v5026 = vpop.f32.mrf.mxu0
  %v5027 = vadd.f32 0.0, %v5026
  %5028 = vmatmul.bf16.gmra.mxu0 %v4868
  %v5029 = vpop.f32.mrf.mxu0
  %v5030 = vadd.f32 0.0, %v5029
  %v5031 = vpop.f32.mrf.mxu0
  %v5032 = vadd.f32 0.0, %v5031
  %5033 = vmatmul.bf16.gmra.mxu0 %v4869
  %v5034 = vpop.f32.mrf.mxu0
  %v5035 = vadd.f32 0.0, %v5034
  %v5036 = vpop.f32.mrf.mxu0
  %v5037 = vadd.f32 0.0, %v5036
  %5038 = vmatmul.bf16.gmra.mxu0 %v4870
  %v5039 = vpop.f32.mrf.mxu0
  %v5040 = vadd.f32 0.0, %v5039
  %v5041 = vpop.f32.mrf.mxu0
  %v5042 = vadd.f32 0.0, %v5041
  %5043 = vmatmul.bf16.gmra.mxu0 %v4871
  %v5044 = vpop.f32.mrf.mxu0
  %v5045 = vadd.f32 0.0, %v5044
  %v5046 = vpop.f32.mrf.mxu0
  %v5047 = vadd.f32 0.0, %v5046
  %5048 = vmatmul.bf16.gmra.mxu0 %v4872
  %v5049 = vpop.f32.mrf.mxu0
  %v5050 = vadd.f32 0.0, %v5049
  %v5051 = vpop.f32.mrf.mxu0
  %v5052 = vadd.f32 0.0, %v5051
  %5053 = vmatmul.bf16.gmra.mxu0 %v4873
  %v5054 = vpop.f32.mrf.mxu0
  %v5055 = vadd.f32 0.0, %v5054
  %v5056 = vpop.f32.mrf.mxu0
  %v5057 = vadd.f32 0.0, %v5056
  %5058 = vmatmul.bf16.gmra.mxu0 %v4874
  %v5059 = vpop.f32.mrf.mxu0
  %v5060 = vadd.f32 0.0, %v5059
  %v5061 = vpop.f32.mrf.mxu0
  %v5062 = vadd.f32 0.0, %v5061
  %5063 = vmatmul.bf16.gmra.mxu0 %v4875
  %v5064 = vpop.f32.mrf.mxu0
  %v5065 = vadd.f32 0.0, %v5064
  %v5066 = vpop.f32.mrf.mxu0
  %v5067 = vadd.f32 0.0, %v5066
  %5068 = vmatmul.bf16.gmra.mxu0 %v4876
  %v5069 = vpop.f32.mrf.mxu0
  %v5070 = vadd.f32 0.0, %v5069
  %v5071 = vpop.f32.mrf.mxu0
  %v5072 = vadd.f32 0.0, %v5071
  %5073 = vmatmul.bf16.gmra.mxu0 %v4877
  %v5074 = vpop.f32.mrf.mxu0
  %v5075 = vadd.f32 0.0, %v5074
  %v5076 = vpop.f32.mrf.mxu0
  %v5077 = vadd.f32 0.0, %v5076
  %5078 = vmatmul.bf16.gmra.mxu0 %v4878
  %v5079 = vpop.f32.mrf.mxu0
  %v5080 = vadd.f32 0.0, %v5079
  %v5081 = vpop.f32.mrf.mxu0
  %v5082 = vadd.f32 0.0, %v5081
  %5083 = vmatmul.bf16.gmra.mxu0 %v4879
  %v5084 = vpop.f32.mrf.mxu0
  %v5085 = vadd.f32 0.0, %v5084
  %v5086 = vpop.f32.mrf.mxu0
  %v5087 = vadd.f32 0.0, %v5086
  %5088 = vmatmul.bf16.gmra.mxu0 %v4880
  %v5089 = vpop.f32.mrf.mxu0
  %v5090 = vadd.f32 0.0, %v5089
  %v5091 = vpop.f32.mrf.mxu0
  %v5092 = vadd.f32 0.0, %v5091
  %5093 = vmatmul.bf16.gmra.mxu0 %v4881
  %v5094 = vpop.f32.mrf.mxu0
  %v5095 = vadd.f32 0.0, %v5094
  %v5096 = vpop.f32.mrf.mxu0
  %v5097 = vadd.f32 0.0, %v5096
  %5098 = vmatmul.bf16.gmra.mxu0 %v4882
  %v5099 = vpop.f32.mrf.mxu0
  %v5100 = vadd.f32 0.0, %v5099
  %v5101 = vpop.f32.mrf.mxu0
  %v5102 = vadd.f32 0.0, %v5101
  %5103 = vmatmul.bf16.gmra.mxu0 %v4883
  %v5104 = vpop.f32.mrf.mxu0
  %v5105 = vadd.f32 0.0, %v5104
  %v5106 = vpop.f32.mrf.mxu0
  %v5107 = vadd.f32 0.0, %v5106
  %5108 = vmatmul.bf16.gmra.mxu0 %v4884
  %v5109 = vpop.f32.mrf.mxu0
  %v5110 = vadd.f32 0.0, %v5109
  %v5111 = vpop.f32.mrf.mxu0
  %v5112 = vadd.f32 0.0, %v5111
  %5113 = vmatmul.bf16.gmra.mxu0 %v4885
  %v5114 = vpop.f32.mrf.mxu0
  %v5115 = vadd.f32 0.0, %v5114
  %v5116 = vpop.f32.mrf.mxu0
  %v5117 = vadd.f32 0.0, %v5116
  %5118 = vdwg.mxu0
  %v5119 = vadd.f32 %v4726, %v4960
  %v5120 = vadd.f32 %v4727, %v4962
  %v5121 = vadd.f32 %v4728, %v4965
  %v5122 = vadd.f32 %v4729, %v4967
  %v5123 = vadd.f32 %v4730, %v4970
  %v5124 = vadd.f32 %v4731, %v4972
  %v5125 = vadd.f32 %v4732, %v4975
  %v5126 = vadd.f32 %v4733, %v4977
  %v5127 = vadd.f32 %v4734, %v4980
  %v5128 = vadd.f32 %v4735, %v4982
  %v5129 = vadd.f32 %v4736, %v4985
  %v5130 = vadd.f32 %v4737, %v4987
  %v5131 = vadd.f32 %v4738, %v4990
  %v5132 = vadd.f32 %v4739, %v4992
  %v5133 = vadd.f32 %v4740, %v4995
  %v5134 = vadd.f32 %v4741, %v4997
  %v5135 = vadd.f32 %v4742, %v5000
  %v5136 = vadd.f32 %v4743, %v5002
  %v5137 = vadd.f32 %v4744, %v5005
  %v5138 = vadd.f32 %v4745, %v5007
  %v5139 = vadd.f32 %v4746, %v5010
  %v5140 = vadd.f32 %v4747, %v5012
  %v5141 = vadd.f32 %v4748, %v5015
  %v5142 = vadd.f32 %v4749, %v5017
  %v5143 = vadd.f32 %v4750, %v5020
  %v5144 = vadd.f32 %v4751, %v5022
  %v5145 = vadd.f32 %v4752, %v5025
  %v5146 = vadd.f32 %v4753, %v5027
  %v5147 = vadd.f32 %v4754, %v5030
  %v5148 = vadd.f32 %v4755, %v5032
  %v5149 = vadd.f32 %v4756, %v5035
  %v5150 = vadd.f32 %v4757, %v5037
  %v5151 = vadd.f32 %v4758, %v5040
  %v5152 = vadd.f32 %v4759, %v5042
  %v5153 = vadd.f32 %v4760, %v5045
  %v5154 = vadd.f32 %v4761, %v5047
  %v5155 = vadd.f32 %v4762, %v5050
  %v5156 = vadd.f32 %v4763, %v5052
  %v5157 = vadd.f32 %v4764, %v5055
  %v5158 = vadd.f32 %v4765, %v5057
  %v5159 = vadd.f32 %v4766, %v5060
  %v5160 = vadd.f32 %v4767, %v5062
  %v5161 = vadd.f32 %v4768, %v5065
  %v5162 = vadd.f32 %v4769, %v5067
  %v5163 = vadd.f32 %v4770, %v5070
  %v5164 = vadd.f32 %v4771, %v5072
  %v5165 = vadd.f32 %v4772, %v5075
  %v5166 = vadd.f32 %v4773, %v5077
  %v5167 = vadd.f32 %v4774, %v5080
  %v5168 = vadd.f32 %v4775, %v5082
  %v5169 = vadd.f32 %v4776, %v5085
  %v5170 = vadd.f32 %v4777, %v5087
  %v5171 = vadd.f32 %v4778, %v5090
  %v5172 = vadd.f32 %v4779, %v5092
  %v5173 = vadd.f32 %v4780, %v5095
  %v5174 = vadd.f32 %v4781, %v5097
  %v5175 = vadd.f32 %v4782, %v5100
  %v5176 = vadd.f32 %v4783, %v5102
  %v5177 = vadd.f32 %v4784, %v5105
  %v5178 = vadd.f32 %v4785, %v5107
  %v5179 = vadd.f32 %v4786, %v5110
  %v5180 = vadd.f32 %v4787, %v5112
  %v5181 = vadd.f32 %v4788, %v5115
  %v5182 = vadd.f32 %v4789, %v5117
  %v5183 = vld [vmem:[%s2832 + $0x2] sm:$0xff]
  %v5184 = vld [vmem:[%s2832 + $0xa] sm:$0xff]
  %v5185 = vld [vmem:[%s2832 + $0x1a] sm:$0xff]
  %v5186 = vld [vmem:[%s2832 + $0x22] sm:$0xff]
  %v5187 = vld [vmem:[%s2832 + $0x32] sm:$0xff]
  %v5188 = vld [vmem:[%s2832 + $0x3a] sm:$0xff]
  %v5189 = vld [vmem:[%s2832 + $0x4a] sm:$0xff]
  %v5190 = vld [vmem:[%s2832 + $0x52] sm:$0xff]
  %v5191 = vld [vmem:[%s2832 + $0x62] sm:$0xff]
  %v5192 = vld [vmem:[%s2832 + $0x6a] sm:$0xff]
  %v5193 = vld [vmem:[%s2832 + $0x7a] sm:$0xff]
  %v5194 = vld [vmem:[%s2832 + $0x82] sm:$0xff]
  %v5195 = vld [vmem:[%s2832 + $0x92] sm:$0xff]
  %v5196 = vld [vmem:[%s2832 + $0x9a] sm:$0xff]
  %v5197 = vld [vmem:[%s2832 + $0xaa] sm:$0xff]
  %v5198 = vld [vmem:[%s2832 + $0xb2] sm:$0xff]
  %v5199 = vld [vmem:[%s2832 + $0xc2] sm:$0xff]
  %v5200 = vld [vmem:[%s2832 + $0xca] sm:$0xff]
  %v5201 = vld [vmem:[%s2832 + $0xda] sm:$0xff]
  %v5202 = vld [vmem:[%s2832 + $0xe2] sm:$0xff]
  %v5203 = vld [vmem:[%s2832 + $0xf2] sm:$0xff]
  %v5204 = vld [vmem:[%s2832 + $0xfa] sm:$0xff]
  %v5205 = vld [vmem:[%s2832 + $0x10a] sm:$0xff]
  %v5206 = vld [vmem:[%s2832 + $0x112] sm:$0xff]
  %v5207 = vld [vmem:[%s2832 + $0x122] sm:$0xff]
  %v5208 = vld [vmem:[%s2832 + $0x12a] sm:$0xff]
  %v5209 = vld [vmem:[%s2832 + $0x13a] sm:$0xff]
  %v5210 = vld [vmem:[%s2832 + $0x142] sm:$0xff]
  %v5211 = vld [vmem:[%s2832 + $0x152] sm:$0xff]
  %v5212 = vld [vmem:[%s2832 + $0x15a] sm:$0xff]
  %v5213 = vld [vmem:[%s2832 + $0x16a] sm:$0xff]
  %v5214 = vld [vmem:[%s2832 + $0x172] sm:$0xff]
  %v5215 = vld [vmem:[%s2832 + $0x1b2] sm:$0xff]
  %v5216 = vld [vmem:[%s2832 + $0x1ba] sm:$0xff]
  %v5217 = vld [vmem:[%s2832 + $0x1ca] sm:$0xff]
  %v5218 = vld [vmem:[%s2832 + $0x1d2] sm:$0xff]
  %v5219 = vld [vmem:[%s2832 + $0x1e2] sm:$0xff]
  %v5220 = vld [vmem:[%s2832 + $0x1ea] sm:$0xff]
  %v5221 = vld [vmem:[%s2832 + $0x1fa] sm:$0xff]
  %v5222 = vld [vmem:[%s2832 + $0x202] sm:$0xff]
  %v5223 = vld [vmem:[%s2832 + $0x212] sm:$0xff]
  %v5224 = vld [vmem:[%s2832 + $0x21a] sm:$0xff]
  %v5225 = vld [vmem:[%s2832 + $0x22a] sm:$0xff]
  %v5226 = vld [vmem:[%s2832 + $0x232] sm:$0xff]
  %v5227 = vld [vmem:[%s2832 + $0x242] sm:$0xff]
  %v5228 = vld [vmem:[%s2832 + $0x24a] sm:$0xff]
  %v5229 = vld [vmem:[%s2832 + $0x25a] sm:$0xff]
  %v5230 = vld [vmem:[%s2832 + $0x262] sm:$0xff]
  %v5231 = vld [vmem:[%s2832 + $0x272] sm:$0xff]
  %v5232 = vld [vmem:[%s2832 + $0x27a] sm:$0xff]
  %v5233 = vld [vmem:[%s2832 + $0x28a] sm:$0xff]
  %v5234 = vld [vmem:[%s2832 + $0x292] sm:$0xff]
  %v5235 = vld [vmem:[%s2832 + $0x2a2] sm:$0xff]
  %v5236 = vld [vmem:[%s2832 + $0x2aa] sm:$0xff]
  %v5237 = vld [vmem:[%s2832 + $0x2ba] sm:$0xff]
  %v5238 = vld [vmem:[%s2832 + $0x2c2] sm:$0xff]
  %v5239 = vld [vmem:[%s2832 + $0x2d2] sm:$0xff]
  %v5240 = vld [vmem:[%s2832 + $0x2da] sm:$0xff]
  %v5241 = vld [vmem:[%s2832 + $0x2ea] sm:$0xff]
  %v5242 = vld [vmem:[%s2832 + $0x2f2] sm:$0xff]
  %v5243 = vld [vmem:[%s2832 + $0x302] sm:$0xff]
  %v5244 = vld [vmem:[%s2832 + $0x30a] sm:$0xff]
  %v5245 = vld [vmem:[%s2832 + $0x31a] sm:$0xff]
  %v5246 = vld [vmem:[%s2832 + $0x322] sm:$0xff]
  %v5247 = vpack.c.bf16 %v5184, %v5183
  %v5248 = vpack.c.bf16 %v5186, %v5185
  %v5249 = vpack.c.bf16 %v5188, %v5187
  %v5250 = vpack.c.bf16 %v5190, %v5189
  %v5251 = vpack.c.bf16 %v5192, %v5191
  %v5252 = vpack.c.bf16 %v5194, %v5193
  %v5253 = vpack.c.bf16 %v5196, %v5195
  %v5254 = vpack.c.bf16 %v5198, %v5197
  %v5255 = vpack.c.bf16 %v5200, %v5199
  %v5256 = vpack.c.bf16 %v5202, %v5201
  %v5257 = vpack.c.bf16 %v5204, %v5203
  %v5258 = vpack.c.bf16 %v5206, %v5205
  %v5259 = vpack.c.bf16 %v5208, %v5207
  %v5260 = vpack.c.bf16 %v5210, %v5209
  %v5261 = vpack.c.bf16 %v5212, %v5211
  %v5262 = vpack.c.bf16 %v5214, %v5213
  %v5263 = vpack.c.bf16 %v5216, %v5215
  %v5264 = vpack.c.bf16 %v5218, %v5217
  %v5265 = vpack.c.bf16 %v5220, %v5219
  %v5266 = vpack.c.bf16 %v5222, %v5221
  %v5267 = vpack.c.bf16 %v5224, %v5223
  %v5268 = vpack.c.bf16 %v5226, %v5225
  %v5269 = vpack.c.bf16 %v5228, %v5227
  %v5270 = vpack.c.bf16 %v5230, %v5229
  %v5271 = vpack.c.bf16 %v5232, %v5231
  %v5272 = vpack.c.bf16 %v5234, %v5233
  %v5273 = vpack.c.bf16 %v5236, %v5235
  %v5274 = vpack.c.bf16 %v5238, %v5237
  %v5275 = vpack.c.bf16 %v5240, %v5239
  %v5276 = vpack.c.bf16 %v5242, %v5241
  %v5277 = vpack.c.bf16 %v5244, %v5243
  %v5278 = vpack.c.bf16 %v5246, %v5245
  %v5279 = vld [vmem:[%s3 + $0x140] sm:$0xf]
  %v5280 = vld [vmem:[%s3 + $0x144] sm:$0xf]
  %v5281 = vld [vmem:[%s3 + $0x148] sm:$0xf]
  %v5282 = vld [vmem:[%s3 + $0x14c] sm:$0xf]
  %v5283 = vld [vmem:[%s3 + $0x150] sm:$0xf]
  %v5284 = vld [vmem:[%s3 + $0x154] sm:$0xf]
  %v5285 = vld [vmem:[%s3 + $0x158] sm:$0xf]
  %v5286 = vld [vmem:[%s3 + $0x15c] sm:$0xf]
  %v5287 = vld [vmem:[%s3 + $0x160] sm:$0xf]
  %v5288 = vld [vmem:[%s3 + $0x164] sm:$0xf]
  %v5289 = vld [vmem:[%s3 + $0x168] sm:$0xf]
  %v5290 = vld [vmem:[%s3 + $0x16c] sm:$0xf]
  %v5291 = vld [vmem:[%s3 + $0x170] sm:$0xf]
  %v5292 = vld [vmem:[%s3 + $0x174] sm:$0xf]
  %v5293 = vld [vmem:[%s3 + $0x178] sm:$0xf]
  %v5294 = vld [vmem:[%s3 + $0x17c] sm:$0xf]
  %v5311 = vunpack.c.l.b16 %v5279
  %v5312 = vunpack.c.l.b16 %v5280
  %v5313 = vunpack.c.l.b16 %v5281
  %v5314 = vunpack.c.l.b16 %v5282
  %v5315 = vunpack.c.l.b16 %v5283
  %v5316 = vunpack.c.l.b16 %v5284
  %v5317 = vunpack.c.l.b16 %v5285
  %v5318 = vunpack.c.l.b16 %v5286
  %v5319 = vunpack.c.l.b16 %v5287
  %v5320 = vunpack.c.l.b16 %v5288
  %v5321 = vunpack.c.l.b16 %v5289
  %v5322 = vunpack.c.l.b16 %v5290
  %v5323 = vunpack.c.l.b16 %v5291
  %v5324 = vunpack.c.l.b16 %v5292
  %v5325 = vunpack.c.l.b16 %v5293
  %v5326 = vunpack.c.l.b16 %v5294
  %v5327 = vpack.c.b16 %v5312, %v5311
  %v5328 = vpack.c.b16 %v5314, %v5313
  %v5329 = vpack.c.b16 %v5316, %v5315
  %v5330 = vpack.c.b16 %v5318, %v5317
  %v5331 = vpack.c.b16 %v5320, %v5319
  %v5332 = vpack.c.b16 %v5322, %v5321
  %v5333 = vpack.c.b16 %v5324, %v5323
  %v5334 = vpack.c.b16 %v5326, %v5325
  %5343 = vmatpush.bf16.msra.mxu0 %v5334
  %5344 = vmatpush.bf16.msra.mxu0 %v5333
  %5345 = vmatpush.bf16.msra.mxu0 %v5332
  %5346 = vmatpush.bf16.msra.mxu0 %v5331
  %5347 = vmatpush.bf16.msra.mxu0 %v5330
  %5348 = vmatpush.bf16.msra.mxu0 %v5329
  %5349 = vmatpush.bf16.msra.mxu0 %v5328
  %5350 = vmatpush.bf16.msra.mxu0 %v5327
  %5351 = vmatmul.bf16.gmra.mxu0 %v5247
  %v5352 = vpop.f32.mrf.mxu0
  %v5353 = vadd.f32 0.0, %v5352
  %v5354 = vpop.f32.mrf.mxu0
  %v5355 = vadd.f32 0.0, %v5354
  %5356 = vmatmul.bf16.gmra.mxu0 %v5248
  %v5357 = vpop.f32.mrf.mxu0
  %v5358 = vadd.f32 0.0, %v5357
  %v5359 = vpop.f32.mrf.mxu0
  %v5360 = vadd.f32 0.0, %v5359
  %5361 = vmatmul.bf16.gmra.mxu0 %v5249
  %v5362 = vpop.f32.mrf.mxu0
  %v5363 = vadd.f32 0.0, %v5362
  %v5364 = vpop.f32.mrf.mxu0
  %v5365 = vadd.f32 0.0, %v5364
  %5366 = vmatmul.bf16.gmra.mxu0 %v5250
  %v5367 = vpop.f32.mrf.mxu0
  %v5368 = vadd.f32 0.0, %v5367
  %v5369 = vpop.f32.mrf.mxu0
  %v5370 = vadd.f32 0.0, %v5369
  %5371 = vmatmul.bf16.gmra.mxu0 %v5251
  %v5372 = vpop.f32.mrf.mxu0
  %v5373 = vadd.f32 0.0, %v5372
  %v5374 = vpop.f32.mrf.mxu0
  %v5375 = vadd.f32 0.0, %v5374
  %5376 = vmatmul.bf16.gmra.mxu0 %v5252
  %v5377 = vpop.f32.mrf.mxu0
  %v5378 = vadd.f32 0.0, %v5377
  %v5379 = vpop.f32.mrf.mxu0
  %v5380 = vadd.f32 0.0, %v5379
  %5381 = vmatmul.bf16.gmra.mxu0 %v5253
  %v5382 = vpop.f32.mrf.mxu0
  %v5383 = vadd.f32 0.0, %v5382
  %v5384 = vpop.f32.mrf.mxu0
  %v5385 = vadd.f32 0.0, %v5384
  %5386 = vmatmul.bf16.gmra.mxu0 %v5254
  %v5387 = vpop.f32.mrf.mxu0
  %v5388 = vadd.f32 0.0, %v5387
  %v5389 = vpop.f32.mrf.mxu0
  %v5390 = vadd.f32 0.0, %v5389
  %5391 = vmatmul.bf16.gmra.mxu0 %v5255
  %v5392 = vpop.f32.mrf.mxu0
  %v5393 = vadd.f32 0.0, %v5392
  %v5394 = vpop.f32.mrf.mxu0
  %v5395 = vadd.f32 0.0, %v5394
  %5396 = vmatmul.bf16.gmra.mxu0 %v5256
  %v5397 = vpop.f32.mrf.mxu0
  %v5398 = vadd.f32 0.0, %v5397
  %v5399 = vpop.f32.mrf.mxu0
  %v5400 = vadd.f32 0.0, %v5399
  %5401 = vmatmul.bf16.gmra.mxu0 %v5257
  %v5402 = vpop.f32.mrf.mxu0
  %v5403 = vadd.f32 0.0, %v5402
  %v5404 = vpop.f32.mrf.mxu0
  %v5405 = vadd.f32 0.0, %v5404
  %5406 = vmatmul.bf16.gmra.mxu0 %v5258
  %v5407 = vpop.f32.mrf.mxu0
  %v5408 = vadd.f32 0.0, %v5407
  %v5409 = vpop.f32.mrf.mxu0
  %v5410 = vadd.f32 0.0, %v5409
  %5411 = vmatmul.bf16.gmra.mxu0 %v5259
  %v5412 = vpop.f32.mrf.mxu0
  %v5413 = vadd.f32 0.0, %v5412
  %v5414 = vpop.f32.mrf.mxu0
  %v5415 = vadd.f32 0.0, %v5414
  %5416 = vmatmul.bf16.gmra.mxu0 %v5260
  %v5417 = vpop.f32.mrf.mxu0
  %v5418 = vadd.f32 0.0, %v5417
  %v5419 = vpop.f32.mrf.mxu0
  %v5420 = vadd.f32 0.0, %v5419
  %5421 = vmatmul.bf16.gmra.mxu0 %v5261
  %v5422 = vpop.f32.mrf.mxu0
  %v5423 = vadd.f32 0.0, %v5422
  %v5424 = vpop.f32.mrf.mxu0
  %v5425 = vadd.f32 0.0, %v5424
  %5426 = vmatmul.bf16.gmra.mxu0 %v5262
  %v5427 = vpop.f32.mrf.mxu0
  %v5428 = vadd.f32 0.0, %v5427
  %v5429 = vpop.f32.mrf.mxu0
  %v5430 = vadd.f32 0.0, %v5429
  %5431 = vmatmul.bf16.gmra.mxu0 %v5263
  %v5432 = vpop.f32.mrf.mxu0
  %v5433 = vadd.f32 0.0, %v5432
  %v5434 = vpop.f32.mrf.mxu0
  %v5435 = vadd.f32 0.0, %v5434
  %5436 = vmatmul.bf16.gmra.mxu0 %v5264
  %v5437 = vpop.f32.mrf.mxu0
  %v5438 = vadd.f32 0.0, %v5437
  %v5439 = vpop.f32.mrf.mxu0
  %v5440 = vadd.f32 0.0, %v5439
  %5441 = vmatmul.bf16.gmra.mxu0 %v5265
  %v5442 = vpop.f32.mrf.mxu0
  %v5443 = vadd.f32 0.0, %v5442
  %v5444 = vpop.f32.mrf.mxu0
  %v5445 = vadd.f32 0.0, %v5444
  %5446 = vmatmul.bf16.gmra.mxu0 %v5266
  %v5447 = vpop.f32.mrf.mxu0
  %v5448 = vadd.f32 0.0, %v5447
  %v5449 = vpop.f32.mrf.mxu0
  %v5450 = vadd.f32 0.0, %v5449
  %5451 = vmatmul.bf16.gmra.mxu0 %v5267
  %v5452 = vpop.f32.mrf.mxu0
  %v5453 = vadd.f32 0.0, %v5452
  %v5454 = vpop.f32.mrf.mxu0
  %v5455 = vadd.f32 0.0, %v5454
  %5456 = vmatmul.bf16.gmra.mxu0 %v5268
  %v5457 = vpop.f32.mrf.mxu0
  %v5458 = vadd.f32 0.0, %v5457
  %v5459 = vpop.f32.mrf.mxu0
  %v5460 = vadd.f32 0.0, %v5459
  %5461 = vmatmul.bf16.gmra.mxu0 %v5269
  %v5462 = vpop.f32.mrf.mxu0
  %v5463 = vadd.f32 0.0, %v5462
  %v5464 = vpop.f32.mrf.mxu0
  %v5465 = vadd.f32 0.0, %v5464
  %5466 = vmatmul.bf16.gmra.mxu0 %v5270
  %v5467 = vpop.f32.mrf.mxu0
  %v5468 = vadd.f32 0.0, %v5467
  %v5469 = vpop.f32.mrf.mxu0
  %v5470 = vadd.f32 0.0, %v5469
  %5471 = vmatmul.bf16.gmra.mxu0 %v5271
  %v5472 = vpop.f32.mrf.mxu0
  %v5473 = vadd.f32 0.0, %v5472
  %v5474 = vpop.f32.mrf.mxu0
  %v5475 = vadd.f32 0.0, %v5474
  %5476 = vmatmul.bf16.gmra.mxu0 %v5272
  %v5477 = vpop.f32.mrf.mxu0
  %v5478 = vadd.f32 0.0, %v5477
  %v5479 = vpop.f32.mrf.mxu0
  %v5480 = vadd.f32 0.0, %v5479
  %5481 = vmatmul.bf16.gmra.mxu0 %v5273
  %v5482 = vpop.f32.mrf.mxu0
  %v5483 = vadd.f32 0.0, %v5482
  %v5484 = vpop.f32.mrf.mxu0
  %v5485 = vadd.f32 0.0, %v5484
  %5486 = vmatmul.bf16.gmra.mxu0 %v5274
  %v5487 = vpop.f32.mrf.mxu0
  %v5488 = vadd.f32 0.0, %v5487
  %v5489 = vpop.f32.mrf.mxu0
  %v5490 = vadd.f32 0.0, %v5489
  %5491 = vmatmul.bf16.gmra.mxu0 %v5275
  %v5492 = vpop.f32.mrf.mxu0
  %v5493 = vadd.f32 0.0, %v5492
  %v5494 = vpop.f32.mrf.mxu0
  %v5495 = vadd.f32 0.0, %v5494
  %5496 = vmatmul.bf16.gmra.mxu0 %v5276
  %v5497 = vpop.f32.mrf.mxu0
  %v5498 = vadd.f32 0.0, %v5497
  %v5499 = vpop.f32.mrf.mxu0
  %v5500 = vadd.f32 0.0, %v5499
  %5501 = vmatmul.bf16.gmra.mxu0 %v5277
  %v5502 = vpop.f32.mrf.mxu0
  %v5503 = vadd.f32 0.0, %v5502
  %v5504 = vpop.f32.mrf.mxu0
  %v5505 = vadd.f32 0.0, %v5504
  %5506 = vmatmul.bf16.gmra.mxu0 %v5278
  %v5507 = vpop.f32.mrf.mxu0
  %v5508 = vadd.f32 0.0, %v5507
  %v5509 = vpop.f32.mrf.mxu0
  %v5510 = vadd.f32 0.0, %v5509
  %5511 = vdwg.mxu0
  %v5512 = vadd.f32 %v5119, %v5353
  %v5513 = vadd.f32 %v5120, %v5355
  %v5514 = vadd.f32 %v5121, %v5358
  %v5515 = vadd.f32 %v5122, %v5360
  %v5516 = vadd.f32 %v5123, %v5363
  %v5517 = vadd.f32 %v5124, %v5365
  %v5518 = vadd.f32 %v5125, %v5368
  %v5519 = vadd.f32 %v5126, %v5370
  %v5520 = vadd.f32 %v5127, %v5373
  %v5521 = vadd.f32 %v5128, %v5375
  %v5522 = vadd.f32 %v5129, %v5378
  %v5523 = vadd.f32 %v5130, %v5380
  %v5524 = vadd.f32 %v5131, %v5383
  %v5525 = vadd.f32 %v5132, %v5385
  %v5526 = vadd.f32 %v5133, %v5388
  %v5527 = vadd.f32 %v5134, %v5390
  %v5528 = vadd.f32 %v5135, %v5393
  %v5529 = vadd.f32 %v5136, %v5395
  %v5530 = vadd.f32 %v5137, %v5398
  %v5531 = vadd.f32 %v5138, %v5400
  %v5532 = vadd.f32 %v5139, %v5403
  %v5533 = vadd.f32 %v5140, %v5405
  %v5534 = vadd.f32 %v5141, %v5408
  %v5535 = vadd.f32 %v5142, %v5410
  %v5536 = vadd.f32 %v5143, %v5413
  %v5537 = vadd.f32 %v5144, %v5415
  %v5538 = vadd.f32 %v5145, %v5418
  %v5539 = vadd.f32 %v5146, %v5420
  %v5540 = vadd.f32 %v5147, %v5423
  %v5541 = vadd.f32 %v5148, %v5425
  %v5542 = vadd.f32 %v5149, %v5428
  %v5543 = vadd.f32 %v5150, %v5430
  %v5544 = vadd.f32 %v5151, %v5433
  %v5545 = vadd.f32 %v5152, %v5435
  %v5546 = vadd.f32 %v5153, %v5438
  %v5547 = vadd.f32 %v5154, %v5440
  %v5548 = vadd.f32 %v5155, %v5443
  %v5549 = vadd.f32 %v5156, %v5445
  %v5550 = vadd.f32 %v5157, %v5448
  %v5551 = vadd.f32 %v5158, %v5450
  %v5552 = vadd.f32 %v5159, %v5453
  %v5553 = vadd.f32 %v5160, %v5455
  %v5554 = vadd.f32 %v5161, %v5458
  %v5555 = vadd.f32 %v5162, %v5460
  %v5556 = vadd.f32 %v5163, %v5463
  %v5557 = vadd.f32 %v5164, %v5465
  %v5558 = vadd.f32 %v5165, %v5468
  %v5559 = vadd.f32 %v5166, %v5470
  %v5560 = vadd.f32 %v5167, %v5473
  %v5561 = vadd.f32 %v5168, %v5475
  %v5562 = vadd.f32 %v5169, %v5478
  %v5563 = vadd.f32 %v5170, %v5480
  %v5564 = vadd.f32 %v5171, %v5483
  %v5565 = vadd.f32 %v5172, %v5485
  %v5566 = vadd.f32 %v5173, %v5488
  %v5567 = vadd.f32 %v5174, %v5490
  %v5568 = vadd.f32 %v5175, %v5493
  %v5569 = vadd.f32 %v5176, %v5495
  %v5570 = vadd.f32 %v5177, %v5498
  %v5571 = vadd.f32 %v5178, %v5500
  %v5572 = vadd.f32 %v5179, %v5503
  %v5573 = vadd.f32 %v5180, %v5505
  %v5574 = vadd.f32 %v5181, %v5508
  %v5575 = vadd.f32 %v5182, %v5510
  %s5576 = scalar_lea.vmem [#allocation3], 48
  %v5577 = vld [vmem:[%s5576] sm:$0xff]
  %v5578 = vld [vmem:[%s5576 + $0x8] sm:$0xff]
  %v5579 = vld [vmem:[%s5576 + $0x18] sm:$0xff]
  %v5580 = vld [vmem:[%s5576 + $0x20] sm:$0xff]
  %v5581 = vld [vmem:[%s5576 + $0x30] sm:$0xff]
  %v5582 = vld [vmem:[%s5576 + $0x38] sm:$0xff]
  %v5583 = vld [vmem:[%s5576 + $0x48] sm:$0xff]
  %v5584 = vld [vmem:[%s5576 + $0x50] sm:$0xff]
  %v5585 = vld [vmem:[%s5576 + $0x60] sm:$0xff]
  %v5586 = vld [vmem:[%s5576 + $0x68] sm:$0xff]
  %v5587 = vld [vmem:[%s5576 + $0x78] sm:$0xff]
  %v5588 = vld [vmem:[%s5576 + $0x80] sm:$0xff]
  %v5589 = vld [vmem:[%s5576 + $0x90] sm:$0xff]
  %v5590 = vld [vmem:[%s5576 + $0x98] sm:$0xff]
  %v5591 = vld [vmem:[%s5576 + $0xa8] sm:$0xff]
  %v5592 = vld [vmem:[%s5576 + $0xb0] sm:$0xff]
  %v5593 = vld [vmem:[%s5576 + $0xc0] sm:$0xff]
  %v5594 = vld [vmem:[%s5576 + $0xc8] sm:$0xff]
  %v5595 = vld [vmem:[%s5576 + $0xd8] sm:$0xff]
  %v5596 = vld [vmem:[%s5576 + $0xe0] sm:$0xff]
  %v5597 = vld [vmem:[%s5576 + $0xf0] sm:$0xff]
  %v5598 = vld [vmem:[%s5576 + $0xf8] sm:$0xff]
  %v5599 = vld [vmem:[%s5576 + $0x108] sm:$0xff]
  %v5600 = vld [vmem:[%s5576 + $0x110] sm:$0xff]
  %v5601 = vld [vmem:[%s5576 + $0x120] sm:$0xff]
  %v5602 = vld [vmem:[%s5576 + $0x128] sm:$0xff]
  %v5603 = vld [vmem:[%s5576 + $0x138] sm:$0xff]
  %v5604 = vld [vmem:[%s5576 + $0x140] sm:$0xff]
  %v5605 = vld [vmem:[%s5576 + $0x150] sm:$0xff]
  %v5606 = vld [vmem:[%s5576 + $0x158] sm:$0xff]
  %v5607 = vld [vmem:[%s5576 + $0x168] sm:$0xff]
  %v5608 = vld [vmem:[%s5576 + $0x170] sm:$0xff]
  %v5609 = vld [vmem:[%s5576 + $0x1b0] sm:$0xff]
  %v5610 = vld [vmem:[%s5576 + $0x1b8] sm:$0xff]
  %v5611 = vld [vmem:[%s5576 + $0x1c8] sm:$0xff]
  %v5612 = vld [vmem:[%s5576 + $0x1d0] sm:$0xff]
  %v5613 = vld [vmem:[%s5576 + $0x1e0] sm:$0xff]
  %v5614 = vld [vmem:[%s5576 + $0x1e8] sm:$0xff]
  %v5615 = vld [vmem:[%s5576 + $0x1f8] sm:$0xff]
  %v5616 = vld [vmem:[%s5576 + $0x200] sm:$0xff]
  %v5617 = vld [vmem:[%s5576 + $0x210] sm:$0xff]
  %v5618 = vld [vmem:[%s5576 + $0x218] sm:$0xff]
  %v5619 = vld [vmem:[%s5576 + $0x228] sm:$0xff]
  %v5620 = vld [vmem:[%s5576 + $0x230] sm:$0xff]
  %v5621 = vld [vmem:[%s5576 + $0x240] sm:$0xff]
  %v5622 = vld [vmem:[%s5576 + $0x248] sm:$0xff]
  %v5623 = vld [vmem:[%s5576 + $0x258] sm:$0xff]
  %v5624 = vld [vmem:[%s5576 + $0x260] sm:$0xff]
  %v5625 = vld [vmem:[%s5576 + $0x270] sm:$0xff]
  %v5626 = vld [vmem:[%s5576 + $0x278] sm:$0xff]
  %v5627 = vld [vmem:[%s5576 + $0x288] sm:$0xff]
  %v5628 = vld [vmem:[%s5576 + $0x290] sm:$0xff]
  %v5629 = vld [vmem:[%s5576 + $0x2a0] sm:$0xff]
  %v5630 = vld [vmem:[%s5576 + $0x2a8] sm:$0xff]
  %v5631 = vld [vmem:[%s5576 + $0x2b8] sm:$0xff]
  %v5632 = vld [vmem:[%s5576 + $0x2c0] sm:$0xff]
  %v5633 = vld [vmem:[%s5576 + $0x2d0] sm:$0xff]
  %v5634 = vld [vmem:[%s5576 + $0x2d8] sm:$0xff]
  %v5635 = vld [vmem:[%s5576 + $0x2e8] sm:$0xff]
  %v5636 = vld [vmem:[%s5576 + $0x2f0] sm:$0xff]
  %v5637 = vld [vmem:[%s5576 + $0x300] sm:$0xff]
  %v5638 = vld [vmem:[%s5576 + $0x308] sm:$0xff]
  %v5639 = vld [vmem:[%s5576 + $0x318] sm:$0xff]
  %v5640 = vld [vmem:[%s5576 + $0x320] sm:$0xff]
  %v5641 = vpack.c.bf16 %v5578, %v5577
  %v5642 = vpack.c.bf16 %v5580, %v5579
  %v5643 = vpack.c.bf16 %v5582, %v5581
  %v5644 = vpack.c.bf16 %v5584, %v5583
  %v5645 = vpack.c.bf16 %v5586, %v5585
  %v5646 = vpack.c.bf16 %v5588, %v5587
  %v5647 = vpack.c.bf16 %v5590, %v5589
  %v5648 = vpack.c.bf16 %v5592, %v5591
  %v5649 = vpack.c.bf16 %v5594, %v5593
  %v5650 = vpack.c.bf16 %v5596, %v5595
  %v5651 = vpack.c.bf16 %v5598, %v5597
  %v5652 = vpack.c.bf16 %v5600, %v5599
  %v5653 = vpack.c.bf16 %v5602, %v5601
  %v5654 = vpack.c.bf16 %v5604, %v5603
  %v5655 = vpack.c.bf16 %v5606, %v5605
  %v5656 = vpack.c.bf16 %v5608, %v5607
  %v5657 = vpack.c.bf16 %v5610, %v5609
  %v5658 = vpack.c.bf16 %v5612, %v5611
  %v5659 = vpack.c.bf16 %v5614, %v5613
  %v5660 = vpack.c.bf16 %v5616, %v5615
  %v5661 = vpack.c.bf16 %v5618, %v5617
  %v5662 = vpack.c.bf16 %v5620, %v5619
  %v5663 = vpack.c.bf16 %v5622, %v5621
  %v5664 = vpack.c.bf16 %v5624, %v5623
  %v5665 = vpack.c.bf16 %v5626, %v5625
  %v5666 = vpack.c.bf16 %v5628, %v5627
  %v5667 = vpack.c.bf16 %v5630, %v5629
  %v5668 = vpack.c.bf16 %v5632, %v5631
  %v5669 = vpack.c.bf16 %v5634, %v5633
  %v5670 = vpack.c.bf16 %v5636, %v5635
  %v5671 = vpack.c.bf16 %v5638, %v5637
  %v5672 = vpack.c.bf16 %v5640, %v5639
  %v5673 = vld [vmem:[%s3 + $0x180] sm:$0xf]
  %v5674 = vld [vmem:[%s3 + $0x184] sm:$0xf]
  %v5675 = vld [vmem:[%s3 + $0x188] sm:$0xf]
  %v5676 = vld [vmem:[%s3 + $0x18c] sm:$0xf]
  %v5677 = vld [vmem:[%s3 + $0x190] sm:$0xf]
  %v5678 = vld [vmem:[%s3 + $0x194] sm:$0xf]
  %v5679 = vld [vmem:[%s3 + $0x198] sm:$0xf]
  %v5680 = vld [vmem:[%s3 + $0x19c] sm:$0xf]
  %v5681 = vld [vmem:[%s3 + $0x1a0] sm:$0xf]
  %v5682 = vld [vmem:[%s3 + $0x1a4] sm:$0xf]
  %v5683 = vld [vmem:[%s3 + $0x1a8] sm:$0xf]
  %v5684 = vld [vmem:[%s3 + $0x1ac] sm:$0xf]
  %v5685 = vld [vmem:[%s3 + $0x1b0] sm:$0xf]
  %v5686 = vld [vmem:[%s3 + $0x1b4] sm:$0xf]
  %v5687 = vld [vmem:[%s3 + $0x1b8] sm:$0xf]
  %v5688 = vld [vmem:[%s3 + $0x1bc] sm:$0xf]
  %v5705 = vunpack.c.l.b16 %v5673
  %v5706 = vunpack.c.l.b16 %v5674
  %v5707 = vunpack.c.l.b16 %v5675
  %v5708 = vunpack.c.l.b16 %v5676
  %v5709 = vunpack.c.l.b16 %v5677
  %v5710 = vunpack.c.l.b16 %v5678
  %v5711 = vunpack.c.l.b16 %v5679
  %v5712 = vunpack.c.l.b16 %v5680
  %v5713 = vunpack.c.l.b16 %v5681
  %v5714 = vunpack.c.l.b16 %v5682
  %v5715 = vunpack.c.l.b16 %v5683
  %v5716 = vunpack.c.l.b16 %v5684
  %v5717 = vunpack.c.l.b16 %v5685
  %v5718 = vunpack.c.l.b16 %v5686
  %v5719 = vunpack.c.l.b16 %v5687
  %v5720 = vunpack.c.l.b16 %v5688
  %v5721 = vpack.c.b16 %v5706, %v5705
  %v5722 = vpack.c.b16 %v5708, %v5707
  %v5723 = vpack.c.b16 %v5710, %v5709
  %v5724 = vpack.c.b16 %v5712, %v5711
  %v5725 = vpack.c.b16 %v5714, %v5713
  %v5726 = vpack.c.b16 %v5716, %v5715
  %v5727 = vpack.c.b16 %v5718, %v5717
  %v5728 = vpack.c.b16 %v5720, %v5719
  %5737 = vmatpush.bf16.msra.mxu0 %v5728
  %5738 = vmatpush.bf16.msra.mxu0 %v5727
  %5739 = vmatpush.bf16.msra.mxu0 %v5726
  %5740 = vmatpush.bf16.msra.mxu0 %v5725
  %5741 = vmatpush.bf16.msra.mxu0 %v5724
  %5742 = vmatpush.bf16.msra.mxu0 %v5723
  %5743 = vmatpush.bf16.msra.mxu0 %v5722
  %5744 = vmatpush.bf16.msra.mxu0 %v5721
  %5745 = vmatmul.bf16.gmra.mxu0 %v5641
  %v5746 = vpop.f32.mrf.mxu0
  %v5747 = vadd.f32 0.0, %v5746
  %v5748 = vpop.f32.mrf.mxu0
  %v5749 = vadd.f32 0.0, %v5748
  %5750 = vmatmul.bf16.gmra.mxu0 %v5642
  %v5751 = vpop.f32.mrf.mxu0
  %v5752 = vadd.f32 0.0, %v5751
  %v5753 = vpop.f32.mrf.mxu0
  %v5754 = vadd.f32 0.0, %v5753
  %5755 = vmatmul.bf16.gmra.mxu0 %v5643
  %v5756 = vpop.f32.mrf.mxu0
  %v5757 = vadd.f32 0.0, %v5756
  %v5758 = vpop.f32.mrf.mxu0
  %v5759 = vadd.f32 0.0, %v5758
  %5760 = vmatmul.bf16.gmra.mxu0 %v5644
  %v5761 = vpop.f32.mrf.mxu0
  %v5762 = vadd.f32 0.0, %v5761
  %v5763 = vpop.f32.mrf.mxu0
  %v5764 = vadd.f32 0.0, %v5763
  %5765 = vmatmul.bf16.gmra.mxu0 %v5645
  %v5766 = vpop.f32.mrf.mxu0
  %v5767 = vadd.f32 0.0, %v5766
  %v5768 = vpop.f32.mrf.mxu0
  %v5769 = vadd.f32 0.0, %v5768
  %5770 = vmatmul.bf16.gmra.mxu0 %v5646
  %v5771 = vpop.f32.mrf.mxu0
  %v5772 = vadd.f32 0.0, %v5771
  %v5773 = vpop.f32.mrf.mxu0
  %v5774 = vadd.f32 0.0, %v5773
  %5775 = vmatmul.bf16.gmra.mxu0 %v5647
  %v5776 = vpop.f32.mrf.mxu0
  %v5777 = vadd.f32 0.0, %v5776
  %v5778 = vpop.f32.mrf.mxu0
  %v5779 = vadd.f32 0.0, %v5778
  %5780 = vmatmul.bf16.gmra.mxu0 %v5648
  %v5781 = vpop.f32.mrf.mxu0
  %v5782 = vadd.f32 0.0, %v5781
  %v5783 = vpop.f32.mrf.mxu0
  %v5784 = vadd.f32 0.0, %v5783
  %5785 = vmatmul.bf16.gmra.mxu0 %v5649
  %v5786 = vpop.f32.mrf.mxu0
  %v5787 = vadd.f32 0.0, %v5786
  %v5788 = vpop.f32.mrf.mxu0
  %v5789 = vadd.f32 0.0, %v5788
  %5790 = vmatmul.bf16.gmra.mxu0 %v5650
  %v5791 = vpop.f32.mrf.mxu0
  %v5792 = vadd.f32 0.0, %v5791
  %v5793 = vpop.f32.mrf.mxu0
  %v5794 = vadd.f32 0.0, %v5793
  %5795 = vmatmul.bf16.gmra.mxu0 %v5651
  %v5796 = vpop.f32.mrf.mxu0
  %v5797 = vadd.f32 0.0, %v5796
  %v5798 = vpop.f32.mrf.mxu0
  %v5799 = vadd.f32 0.0, %v5798
  %5800 = vmatmul.bf16.gmra.mxu0 %v5652
  %v5801 = vpop.f32.mrf.mxu0
  %v5802 = vadd.f32 0.0, %v5801
  %v5803 = vpop.f32.mrf.mxu0
  %v5804 = vadd.f32 0.0, %v5803
  %5805 = vmatmul.bf16.gmra.mxu0 %v5653
  %v5806 = vpop.f32.mrf.mxu0
  %v5807 = vadd.f32 0.0, %v5806
  %v5808 = vpop.f32.mrf.mxu0
  %v5809 = vadd.f32 0.0, %v5808
  %5810 = vmatmul.bf16.gmra.mxu0 %v5654
  %v5811 = vpop.f32.mrf.mxu0
  %v5812 = vadd.f32 0.0, %v5811
  %v5813 = vpop.f32.mrf.mxu0
  %v5814 = vadd.f32 0.0, %v5813
  %5815 = vmatmul.bf16.gmra.mxu0 %v5655
  %v5816 = vpop.f32.mrf.mxu0
  %v5817 = vadd.f32 0.0, %v5816
  %v5818 = vpop.f32.mrf.mxu0
  %v5819 = vadd.f32 0.0, %v5818
  %5820 = vmatmul.bf16.gmra.mxu0 %v5656
  %v5821 = vpop.f32.mrf.mxu0
  %v5822 = vadd.f32 0.0, %v5821
  %v5823 = vpop.f32.mrf.mxu0
  %v5824 = vadd.f32 0.0, %v5823
  %5825 = vmatmul.bf16.gmra.mxu0 %v5657
  %v5826 = vpop.f32.mrf.mxu0
  %v5827 = vadd.f32 0.0, %v5826
  %v5828 = vpop.f32.mrf.mxu0
  %v5829 = vadd.f32 0.0, %v5828
  %5830 = vmatmul.bf16.gmra.mxu0 %v5658
  %v5831 = vpop.f32.mrf.mxu0
  %v5832 = vadd.f32 0.0, %v5831
  %v5833 = vpop.f32.mrf.mxu0
  %v5834 = vadd.f32 0.0, %v5833
  %5835 = vmatmul.bf16.gmra.mxu0 %v5659
  %v5836 = vpop.f32.mrf.mxu0
  %v5837 = vadd.f32 0.0, %v5836
  %v5838 = vpop.f32.mrf.mxu0
  %v5839 = vadd.f32 0.0, %v5838
  %5840 = vmatmul.bf16.gmra.mxu0 %v5660
  %v5841 = vpop.f32.mrf.mxu0
  %v5842 = vadd.f32 0.0, %v5841
  %v5843 = vpop.f32.mrf.mxu0
  %v5844 = vadd.f32 0.0, %v5843
  %5845 = vmatmul.bf16.gmra.mxu0 %v5661
  %v5846 = vpop.f32.mrf.mxu0
  %v5847 = vadd.f32 0.0, %v5846
  %v5848 = vpop.f32.mrf.mxu0
  %v5849 = vadd.f32 0.0, %v5848
  %5850 = vmatmul.bf16.gmra.mxu0 %v5662
  %v5851 = vpop.f32.mrf.mxu0
  %v5852 = vadd.f32 0.0, %v5851
  %v5853 = vpop.f32.mrf.mxu0
  %v5854 = vadd.f32 0.0, %v5853
  %5855 = vmatmul.bf16.gmra.mxu0 %v5663
  %v5856 = vpop.f32.mrf.mxu0
  %v5857 = vadd.f32 0.0, %v5856
  %v5858 = vpop.f32.mrf.mxu0
  %v5859 = vadd.f32 0.0, %v5858
  %5860 = vmatmul.bf16.gmra.mxu0 %v5664
  %v5861 = vpop.f32.mrf.mxu0
  %v5862 = vadd.f32 0.0, %v5861
  %v5863 = vpop.f32.mrf.mxu0
  %v5864 = vadd.f32 0.0, %v5863
  %5865 = vmatmul.bf16.gmra.mxu0 %v5665
  %v5866 = vpop.f32.mrf.mxu0
  %v5867 = vadd.f32 0.0, %v5866
  %v5868 = vpop.f32.mrf.mxu0
  %v5869 = vadd.f32 0.0, %v5868
  %5870 = vmatmul.bf16.gmra.mxu0 %v5666
  %v5871 = vpop.f32.mrf.mxu0
  %v5872 = vadd.f32 0.0, %v5871
  %v5873 = vpop.f32.mrf.mxu0
  %v5874 = vadd.f32 0.0, %v5873
  %5875 = vmatmul.bf16.gmra.mxu0 %v5667
  %v5876 = vpop.f32.mrf.mxu0
  %v5877 = vadd.f32 0.0, %v5876
  %v5878 = vpop.f32.mrf.mxu0
  %v5879 = vadd.f32 0.0, %v5878
  %5880 = vmatmul.bf16.gmra.mxu0 %v5668
  %v5881 = vpop.f32.mrf.mxu0
  %v5882 = vadd.f32 0.0, %v5881
  %v5883 = vpop.f32.mrf.mxu0
  %v5884 = vadd.f32 0.0, %v5883
  %5885 = vmatmul.bf16.gmra.mxu0 %v5669
  %v5886 = vpop.f32.mrf.mxu0
  %v5887 = vadd.f32 0.0, %v5886
  %v5888 = vpop.f32.mrf.mxu0
  %v5889 = vadd.f32 0.0, %v5888
  %5890 = vmatmul.bf16.gmra.mxu0 %v5670
  %v5891 = vpop.f32.mrf.mxu0
  %v5892 = vadd.f32 0.0, %v5891
  %v5893 = vpop.f32.mrf.mxu0
  %v5894 = vadd.f32 0.0, %v5893
  %5895 = vmatmul.bf16.gmra.mxu0 %v5671
  %v5896 = vpop.f32.mrf.mxu0
  %v5897 = vadd.f32 0.0, %v5896
  %v5898 = vpop.f32.mrf.mxu0
  %v5899 = vadd.f32 0.0, %v5898
  %5900 = vmatmul.bf16.gmra.mxu0 %v5672
  %v5901 = vpop.f32.mrf.mxu0
  %v5902 = vadd.f32 0.0, %v5901
  %v5903 = vpop.f32.mrf.mxu0
  %v5904 = vadd.f32 0.0, %v5903
  %5905 = vdwg.mxu0
  %v5906 = vadd.f32 %v5512, %v5747
  %v5907 = vadd.f32 %v5513, %v5749
  %v5908 = vadd.f32 %v5514, %v5752
  %v5909 = vadd.f32 %v5515, %v5754
  %v5910 = vadd.f32 %v5516, %v5757
  %v5911 = vadd.f32 %v5517, %v5759
  %v5912 = vadd.f32 %v5518, %v5762
  %v5913 = vadd.f32 %v5519, %v5764
  %v5914 = vadd.f32 %v5520, %v5767
  %v5915 = vadd.f32 %v5521, %v5769
  %v5916 = vadd.f32 %v5522, %v5772
  %v5917 = vadd.f32 %v5523, %v5774
  %v5918 = vadd.f32 %v5524, %v5777
  %v5919 = vadd.f32 %v5525, %v5779
  %v5920 = vadd.f32 %v5526, %v5782
  %v5921 = vadd.f32 %v5527, %v5784
  %v5922 = vadd.f32 %v5528, %v5787
  %v5923 = vadd.f32 %v5529, %v5789
  %v5924 = vadd.f32 %v5530, %v5792
  %v5925 = vadd.f32 %v5531, %v5794
  %v5926 = vadd.f32 %v5532, %v5797
  %v5927 = vadd.f32 %v5533, %v5799
  %v5928 = vadd.f32 %v5534, %v5802
  %v5929 = vadd.f32 %v5535, %v5804
  %v5930 = vadd.f32 %v5536, %v5807
  %v5931 = vadd.f32 %v5537, %v5809
  %v5932 = vadd.f32 %v5538, %v5812
  %v5933 = vadd.f32 %v5539, %v5814
  %v5934 = vadd.f32 %v5540, %v5817
  %v5935 = vadd.f32 %v5541, %v5819
  %v5936 = vadd.f32 %v5542, %v5822
  %v5937 = vadd.f32 %v5543, %v5824
  %v5938 = vadd.f32 %v5544, %v5827
  %v5939 = vadd.f32 %v5545, %v5829
  %v5940 = vadd.f32 %v5546, %v5832
  %v5941 = vadd.f32 %v5547, %v5834
  %v5942 = vadd.f32 %v5548, %v5837
  %v5943 = vadd.f32 %v5549, %v5839
  %v5944 = vadd.f32 %v5550, %v5842
  %v5945 = vadd.f32 %v5551, %v5844
  %v5946 = vadd.f32 %v5552, %v5847
  %v5947 = vadd.f32 %v5553, %v5849
  %v5948 = vadd.f32 %v5554, %v5852
  %v5949 = vadd.f32 %v5555, %v5854
  %v5950 = vadd.f32 %v5556, %v5857
  %v5951 = vadd.f32 %v5557, %v5859
  %v5952 = vadd.f32 %v5558, %v5862
  %v5953 = vadd.f32 %v5559, %v5864
  %v5954 = vadd.f32 %v5560, %v5867
  %v5955 = vadd.f32 %v5561, %v5869
  %v5956 = vadd.f32 %v5562, %v5872
  %v5957 = vadd.f32 %v5563, %v5874
  %v5958 = vadd.f32 %v5564, %v5877
  %v5959 = vadd.f32 %v5565, %v5879
  %v5960 = vadd.f32 %v5566, %v5882
  %v5961 = vadd.f32 %v5567, %v5884
  %v5962 = vadd.f32 %v5568, %v5887
  %v5963 = vadd.f32 %v5569, %v5889
  %v5964 = vadd.f32 %v5570, %v5892
  %v5965 = vadd.f32 %v5571, %v5894
  %v5966 = vadd.f32 %v5572, %v5897
  %v5967 = vadd.f32 %v5573, %v5899
  %v5968 = vadd.f32 %v5574, %v5902
  %v5969 = vadd.f32 %v5575, %v5904
  %v5970 = vld [vmem:[%s5576 + $0x1] sm:$0xff]
  %v5971 = vld [vmem:[%s5576 + $0x9] sm:$0xff]
  %v5972 = vld [vmem:[%s5576 + $0x19] sm:$0xff]
  %v5973 = vld [vmem:[%s5576 + $0x21] sm:$0xff]
  %v5974 = vld [vmem:[%s5576 + $0x31] sm:$0xff]
  %v5975 = vld [vmem:[%s5576 + $0x39] sm:$0xff]
  %v5976 = vld [vmem:[%s5576 + $0x49] sm:$0xff]
  %v5977 = vld [vmem:[%s5576 + $0x51] sm:$0xff]
  %v5978 = vld [vmem:[%s5576 + $0x61] sm:$0xff]
  %v5979 = vld [vmem:[%s5576 + $0x69] sm:$0xff]
  %v5980 = vld [vmem:[%s5576 + $0x79] sm:$0xff]
  %v5981 = vld [vmem:[%s5576 + $0x81] sm:$0xff]
  %v5982 = vld [vmem:[%s5576 + $0x91] sm:$0xff]
  %v5983 = vld [vmem:[%s5576 + $0x99] sm:$0xff]
  %v5984 = vld [vmem:[%s5576 + $0xa9] sm:$0xff]
  %v5985 = vld [vmem:[%s5576 + $0xb1] sm:$0xff]
  %v5986 = vld [vmem:[%s5576 + $0xc1] sm:$0xff]
  %v5987 = vld [vmem:[%s5576 + $0xc9] sm:$0xff]
  %v5988 = vld [vmem:[%s5576 + $0xd9] sm:$0xff]
  %v5989 = vld [vmem:[%s5576 + $0xe1] sm:$0xff]
  %v5990 = vld [vmem:[%s5576 + $0xf1] sm:$0xff]
  %v5991 = vld [vmem:[%s5576 + $0xf9] sm:$0xff]
  %v5992 = vld [vmem:[%s5576 + $0x109] sm:$0xff]
  %v5993 = vld [vmem:[%s5576 + $0x111] sm:$0xff]
  %v5994 = vld [vmem:[%s5576 + $0x121] sm:$0xff]
  %v5995 = vld [vmem:[%s5576 + $0x129] sm:$0xff]
  %v5996 = vld [vmem:[%s5576 + $0x139] sm:$0xff]
  %v5997 = vld [vmem:[%s5576 + $0x141] sm:$0xff]
  %v5998 = vld [vmem:[%s5576 + $0x151] sm:$0xff]
  %v5999 = vld [vmem:[%s5576 + $0x159] sm:$0xff]
  %v6000 = vld [vmem:[%s5576 + $0x169] sm:$0xff]
  %v6001 = vld [vmem:[%s5576 + $0x171] sm:$0xff]
  %v6002 = vld [vmem:[%s5576 + $0x1b1] sm:$0xff]
  %v6003 = vld [vmem:[%s5576 + $0x1b9] sm:$0xff]
  %v6004 = vld [vmem:[%s5576 + $0x1c9] sm:$0xff]
  %v6005 = vld [vmem:[%s5576 + $0x1d1] sm:$0xff]
  %v6006 = vld [vmem:[%s5576 + $0x1e1] sm:$0xff]
  %v6007 = vld [vmem:[%s5576 + $0x1e9] sm:$0xff]
  %v6008 = vld [vmem:[%s5576 + $0x1f9] sm:$0xff]
  %v6009 = vld [vmem:[%s5576 + $0x201] sm:$0xff]
  %v6010 = vld [vmem:[%s5576 + $0x211] sm:$0xff]
  %v6011 = vld [vmem:[%s5576 + $0x219] sm:$0xff]
  %v6012 = vld [vmem:[%s5576 + $0x229] sm:$0xff]
  %v6013 = vld [vmem:[%s5576 + $0x231] sm:$0xff]
  %v6014 = vld [vmem:[%s5576 + $0x241] sm:$0xff]
  %v6015 = vld [vmem:[%s5576 + $0x249] sm:$0xff]
  %v6016 = vld [vmem:[%s5576 + $0x259] sm:$0xff]
  %v6017 = vld [vmem:[%s5576 + $0x261] sm:$0xff]
  %v6018 = vld [vmem:[%s5576 + $0x271] sm:$0xff]
  %v6019 = vld [vmem:[%s5576 + $0x279] sm:$0xff]
  %v6020 = vld [vmem:[%s5576 + $0x289] sm:$0xff]
  %v6021 = vld [vmem:[%s5576 + $0x291] sm:$0xff]
  %v6022 = vld [vmem:[%s5576 + $0x2a1] sm:$0xff]
  %v6023 = vld [vmem:[%s5576 + $0x2a9] sm:$0xff]
  %v6024 = vld [vmem:[%s5576 + $0x2b9] sm:$0xff]
  %v6025 = vld [vmem:[%s5576 + $0x2c1] sm:$0xff]
  %v6026 = vld [vmem:[%s5576 + $0x2d1] sm:$0xff]
  %v6027 = vld [vmem:[%s5576 + $0x2d9] sm:$0xff]
  %v6028 = vld [vmem:[%s5576 + $0x2e9] sm:$0xff]
  %v6029 = vld [vmem:[%s5576 + $0x2f1] sm:$0xff]
  %v6030 = vld [vmem:[%s5576 + $0x301] sm:$0xff]
  %v6031 = vld [vmem:[%s5576 + $0x309] sm:$0xff]
  %v6032 = vld [vmem:[%s5576 + $0x319] sm:$0xff]
  %v6033 = vld [vmem:[%s5576 + $0x321] sm:$0xff]
  %v6034 = vpack.c.bf16 %v5971, %v5970
  %v6035 = vpack.c.bf16 %v5973, %v5972
  %v6036 = vpack.c.bf16 %v5975, %v5974
  %v6037 = vpack.c.bf16 %v5977, %v5976
  %v6038 = vpack.c.bf16 %v5979, %v5978
  %v6039 = vpack.c.bf16 %v5981, %v5980
  %v6040 = vpack.c.bf16 %v5983, %v5982
  %v6041 = vpack.c.bf16 %v5985, %v5984
  %v6042 = vpack.c.bf16 %v5987, %v5986
  %v6043 = vpack.c.bf16 %v5989, %v5988
  %v6044 = vpack.c.bf16 %v5991, %v5990
  %v6045 = vpack.c.bf16 %v5993, %v5992
  %v6046 = vpack.c.bf16 %v5995, %v5994
  %v6047 = vpack.c.bf16 %v5997, %v5996
  %v6048 = vpack.c.bf16 %v5999, %v5998
  %v6049 = vpack.c.bf16 %v6001, %v6000
  %v6050 = vpack.c.bf16 %v6003, %v6002
  %v6051 = vpack.c.bf16 %v6005, %v6004
  %v6052 = vpack.c.bf16 %v6007, %v6006
  %v6053 = vpack.c.bf16 %v6009, %v6008
  %v6054 = vpack.c.bf16 %v6011, %v6010
  %v6055 = vpack.c.bf16 %v6013, %v6012
  %v6056 = vpack.c.bf16 %v6015, %v6014
  %v6057 = vpack.c.bf16 %v6017, %v6016
  %v6058 = vpack.c.bf16 %v6019, %v6018
  %v6059 = vpack.c.bf16 %v6021, %v6020
  %v6060 = vpack.c.bf16 %v6023, %v6022
  %v6061 = vpack.c.bf16 %v6025, %v6024
  %v6062 = vpack.c.bf16 %v6027, %v6026
  %v6063 = vpack.c.bf16 %v6029, %v6028
  %v6064 = vpack.c.bf16 %v6031, %v6030
  %v6065 = vpack.c.bf16 %v6033, %v6032
  %v6066 = vld [vmem:[%s3 + $0x1c0] sm:$0xf]
  %v6067 = vld [vmem:[%s3 + $0x1c4] sm:$0xf]
  %v6068 = vld [vmem:[%s3 + $0x1c8] sm:$0xf]
  %v6069 = vld [vmem:[%s3 + $0x1cc] sm:$0xf]
  %v6070 = vld [vmem:[%s3 + $0x1d0] sm:$0xf]
  %v6071 = vld [vmem:[%s3 + $0x1d4] sm:$0xf]
  %v6072 = vld [vmem:[%s3 + $0x1d8] sm:$0xf]
  %v6073 = vld [vmem:[%s3 + $0x1dc] sm:$0xf]
  %v6074 = vld [vmem:[%s3 + $0x1e0] sm:$0xf]
  %v6075 = vld [vmem:[%s3 + $0x1e4] sm:$0xf]
  %v6076 = vld [vmem:[%s3 + $0x1e8] sm:$0xf]
  %v6077 = vld [vmem:[%s3 + $0x1ec] sm:$0xf]
  %v6078 = vld [vmem:[%s3 + $0x1f0] sm:$0xf]
  %v6079 = vld [vmem:[%s3 + $0x1f4] sm:$0xf]
  %v6080 = vld [vmem:[%s3 + $0x1f8] sm:$0xf]
  %v6081 = vld [vmem:[%s3 + $0x1fc] sm:$0xf]
  %v6098 = vunpack.c.l.b16 %v6066
  %v6099 = vunpack.c.l.b16 %v6067
  %v6100 = vunpack.c.l.b16 %v6068
  %v6101 = vunpack.c.l.b16 %v6069
  %v6102 = vunpack.c.l.b16 %v6070
  %v6103 = vunpack.c.l.b16 %v6071
  %v6104 = vunpack.c.l.b16 %v6072
  %v6105 = vunpack.c.l.b16 %v6073
  %v6106 = vunpack.c.l.b16 %v6074
  %v6107 = vunpack.c.l.b16 %v6075
  %v6108 = vunpack.c.l.b16 %v6076
  %v6109 = vunpack.c.l.b16 %v6077
  %v6110 = vunpack.c.l.b16 %v6078
  %v6111 = vunpack.c.l.b16 %v6079
  %v6112 = vunpack.c.l.b16 %v6080
  %v6113 = vunpack.c.l.b16 %v6081
  %v6114 = vpack.c.b16 %v6099, %v6098
  %v6115 = vpack.c.b16 %v6101, %v6100
  %v6116 = vpack.c.b16 %v6103, %v6102
  %v6117 = vpack.c.b16 %v6105, %v6104
  %v6118 = vpack.c.b16 %v6107, %v6106
  %v6119 = vpack.c.b16 %v6109, %v6108
  %v6120 = vpack.c.b16 %v6111, %v6110
  %v6121 = vpack.c.b16 %v6113, %v6112
  %6130 = vmatpush.bf16.msra.mxu0 %v6121
  %6131 = vmatpush.bf16.msra.mxu0 %v6120
  %6132 = vmatpush.bf16.msra.mxu0 %v6119
  %6133 = vmatpush.bf16.msra.mxu0 %v6118
  %6134 = vmatpush.bf16.msra.mxu0 %v6117
  %6135 = vmatpush.bf16.msra.mxu0 %v6116
  %6136 = vmatpush.bf16.msra.mxu0 %v6115
  %6137 = vmatpush.bf16.msra.mxu0 %v6114
  %6138 = vmatmul.bf16.gmra.mxu0 %v6034
  %v6139 = vpop.f32.mrf.mxu0
  %v6140 = vadd.f32 0.0, %v6139
  %v6141 = vpop.f32.mrf.mxu0
  %v6142 = vadd.f32 0.0, %v6141
  %6143 = vmatmul.bf16.gmra.mxu0 %v6035
  %v6144 = vpop.f32.mrf.mxu0
  %v6145 = vadd.f32 0.0, %v6144
  %v6146 = vpop.f32.mrf.mxu0
  %v6147 = vadd.f32 0.0, %v6146
  %6148 = vmatmul.bf16.gmra.mxu0 %v6036
  %v6149 = vpop.f32.mrf.mxu0
  %v6150 = vadd.f32 0.0, %v6149
  %v6151 = vpop.f32.mrf.mxu0
  %v6152 = vadd.f32 0.0, %v6151
  %6153 = vmatmul.bf16.gmra.mxu0 %v6037
  %v6154 = vpop.f32.mrf.mxu0
  %v6155 = vadd.f32 0.0, %v6154
  %v6156 = vpop.f32.mrf.mxu0
  %v6157 = vadd.f32 0.0, %v6156
  %6158 = vmatmul.bf16.gmra.mxu0 %v6038
  %v6159 = vpop.f32.mrf.mxu0
  %v6160 = vadd.f32 0.0, %v6159
  %v6161 = vpop.f32.mrf.mxu0
  %v6162 = vadd.f32 0.0, %v6161
  %6163 = vmatmul.bf16.gmra.mxu0 %v6039
  %v6164 = vpop.f32.mrf.mxu0
  %v6165 = vadd.f32 0.0, %v6164
  %v6166 = vpop.f32.mrf.mxu0
  %v6167 = vadd.f32 0.0, %v6166
  %6168 = vmatmul.bf16.gmra.mxu0 %v6040
  %v6169 = vpop.f32.mrf.mxu0
  %v6170 = vadd.f32 0.0, %v6169
  %v6171 = vpop.f32.mrf.mxu0
  %v6172 = vadd.f32 0.0, %v6171
  %6173 = vmatmul.bf16.gmra.mxu0 %v6041
  %v6174 = vpop.f32.mrf.mxu0
  %v6175 = vadd.f32 0.0, %v6174
  %v6176 = vpop.f32.mrf.mxu0
  %v6177 = vadd.f32 0.0, %v6176
  %6178 = vmatmul.bf16.gmra.mxu0 %v6042
  %v6179 = vpop.f32.mrf.mxu0
  %v6180 = vadd.f32 0.0, %v6179
  %v6181 = vpop.f32.mrf.mxu0
  %v6182 = vadd.f32 0.0, %v6181
  %6183 = vmatmul.bf16.gmra.mxu0 %v6043
  %v6184 = vpop.f32.mrf.mxu0
  %v6185 = vadd.f32 0.0, %v6184
  %v6186 = vpop.f32.mrf.mxu0
  %v6187 = vadd.f32 0.0, %v6186
  %6188 = vmatmul.bf16.gmra.mxu0 %v6044
  %v6189 = vpop.f32.mrf.mxu0
  %v6190 = vadd.f32 0.0, %v6189
  %v6191 = vpop.f32.mrf.mxu0
  %v6192 = vadd.f32 0.0, %v6191
  %6193 = vmatmul.bf16.gmra.mxu0 %v6045
  %v6194 = vpop.f32.mrf.mxu0
  %v6195 = vadd.f32 0.0, %v6194
  %v6196 = vpop.f32.mrf.mxu0
  %v6197 = vadd.f32 0.0, %v6196
  %6198 = vmatmul.bf16.gmra.mxu0 %v6046
  %v6199 = vpop.f32.mrf.mxu0
  %v6200 = vadd.f32 0.0, %v6199
  %v6201 = vpop.f32.mrf.mxu0
  %v6202 = vadd.f32 0.0, %v6201
  %6203 = vmatmul.bf16.gmra.mxu0 %v6047
  %v6204 = vpop.f32.mrf.mxu0
  %v6205 = vadd.f32 0.0, %v6204
  %v6206 = vpop.f32.mrf.mxu0
  %v6207 = vadd.f32 0.0, %v6206
  %6208 = vmatmul.bf16.gmra.mxu0 %v6048
  %v6209 = vpop.f32.mrf.mxu0
  %v6210 = vadd.f32 0.0, %v6209
  %v6211 = vpop.f32.mrf.mxu0
  %v6212 = vadd.f32 0.0, %v6211
  %6213 = vmatmul.bf16.gmra.mxu0 %v6049
  %v6214 = vpop.f32.mrf.mxu0
  %v6215 = vadd.f32 0.0, %v6214
  %v6216 = vpop.f32.mrf.mxu0
  %v6217 = vadd.f32 0.0, %v6216
  %6218 = vmatmul.bf16.gmra.mxu0 %v6050
  %v6219 = vpop.f32.mrf.mxu0
  %v6220 = vadd.f32 0.0, %v6219
  %v6221 = vpop.f32.mrf.mxu0
  %v6222 = vadd.f32 0.0, %v6221
  %6223 = vmatmul.bf16.gmra.mxu0 %v6051
  %v6224 = vpop.f32.mrf.mxu0
  %v6225 = vadd.f32 0.0, %v6224
  %v6226 = vpop.f32.mrf.mxu0
  %v6227 = vadd.f32 0.0, %v6226
  %6228 = vmatmul.bf16.gmra.mxu0 %v6052
  %v6229 = vpop.f32.mrf.mxu0
  %v6230 = vadd.f32 0.0, %v6229
  %v6231 = vpop.f32.mrf.mxu0
  %v6232 = vadd.f32 0.0, %v6231
  %6233 = vmatmul.bf16.gmra.mxu0 %v6053
  %v6234 = vpop.f32.mrf.mxu0
  %v6235 = vadd.f32 0.0, %v6234
  %v6236 = vpop.f32.mrf.mxu0
  %v6237 = vadd.f32 0.0, %v6236
  %6238 = vmatmul.bf16.gmra.mxu0 %v6054
  %v6239 = vpop.f32.mrf.mxu0
  %v6240 = vadd.f32 0.0, %v6239
  %v6241 = vpop.f32.mrf.mxu0
  %v6242 = vadd.f32 0.0, %v6241
  %6243 = vmatmul.bf16.gmra.mxu0 %v6055
  %v6244 = vpop.f32.mrf.mxu0
  %v6245 = vadd.f32 0.0, %v6244
  %v6246 = vpop.f32.mrf.mxu0
  %v6247 = vadd.f32 0.0, %v6246
  %6248 = vmatmul.bf16.gmra.mxu0 %v6056
  %v6249 = vpop.f32.mrf.mxu0
  %v6250 = vadd.f32 0.0, %v6249
  %v6251 = vpop.f32.mrf.mxu0
  %v6252 = vadd.f32 0.0, %v6251
  %6253 = vmatmul.bf16.gmra.mxu0 %v6057
  %v6254 = vpop.f32.mrf.mxu0
  %v6255 = vadd.f32 0.0, %v6254
  %v6256 = vpop.f32.mrf.mxu0
  %v6257 = vadd.f32 0.0, %v6256
  %6258 = vmatmul.bf16.gmra.mxu0 %v6058
  %v6259 = vpop.f32.mrf.mxu0
  %v6260 = vadd.f32 0.0, %v6259
  %v6261 = vpop.f32.mrf.mxu0
  %v6262 = vadd.f32 0.0, %v6261
  %6263 = vmatmul.bf16.gmra.mxu0 %v6059
  %v6264 = vpop.f32.mrf.mxu0
  %v6265 = vadd.f32 0.0, %v6264
  %v6266 = vpop.f32.mrf.mxu0
  %v6267 = vadd.f32 0.0, %v6266
  %6268 = vmatmul.bf16.gmra.mxu0 %v6060
  %v6269 = vpop.f32.mrf.mxu0
  %v6270 = vadd.f32 0.0, %v6269
  %v6271 = vpop.f32.mrf.mxu0
  %v6272 = vadd.f32 0.0, %v6271
  %6273 = vmatmul.bf16.gmra.mxu0 %v6061
  %v6274 = vpop.f32.mrf.mxu0
  %v6275 = vadd.f32 0.0, %v6274
  %v6276 = vpop.f32.mrf.mxu0
  %v6277 = vadd.f32 0.0, %v6276
  %6278 = vmatmul.bf16.gmra.mxu0 %v6062
  %v6279 = vpop.f32.mrf.mxu0
  %v6280 = vadd.f32 0.0, %v6279
  %v6281 = vpop.f32.mrf.mxu0
  %v6282 = vadd.f32 0.0, %v6281
  %6283 = vmatmul.bf16.gmra.mxu0 %v6063
  %v6284 = vpop.f32.mrf.mxu0
  %v6285 = vadd.f32 0.0, %v6284
  %v6286 = vpop.f32.mrf.mxu0
  %v6287 = vadd.f32 0.0, %v6286
  %6288 = vmatmul.bf16.gmra.mxu0 %v6064
  %v6289 = vpop.f32.mrf.mxu0
  %v6290 = vadd.f32 0.0, %v6289
  %v6291 = vpop.f32.mrf.mxu0
  %v6292 = vadd.f32 0.0, %v6291
  %6293 = vmatmul.bf16.gmra.mxu0 %v6065
  %v6294 = vpop.f32.mrf.mxu0
  %v6295 = vadd.f32 0.0, %v6294
  %v6296 = vpop.f32.mrf.mxu0
  %v6297 = vadd.f32 0.0, %v6296
  %6298 = vdwg.mxu0
  %v6299 = vadd.f32 %v5906, %v6140
  %v6300 = vadd.f32 %v5907, %v6142
  %v6301 = vadd.f32 %v5908, %v6145
  %v6302 = vadd.f32 %v5909, %v6147
  %v6303 = vadd.f32 %v5910, %v6150
  %v6304 = vadd.f32 %v5911, %v6152
  %v6305 = vadd.f32 %v5912, %v6155
  %v6306 = vadd.f32 %v5913, %v6157
  %v6307 = vadd.f32 %v5914, %v6160
  %v6308 = vadd.f32 %v5915, %v6162
  %v6309 = vadd.f32 %v5916, %v6165
  %v6310 = vadd.f32 %v5917, %v6167
  %v6311 = vadd.f32 %v5918, %v6170
  %v6312 = vadd.f32 %v5919, %v6172
  %v6313 = vadd.f32 %v5920, %v6175
  %v6314 = vadd.f32 %v5921, %v6177
  %v6315 = vadd.f32 %v5922, %v6180
  %v6316 = vadd.f32 %v5923, %v6182
  %v6317 = vadd.f32 %v5924, %v6185
  %v6318 = vadd.f32 %v5925, %v6187
  %v6319 = vadd.f32 %v5926, %v6190
  %v6320 = vadd.f32 %v5927, %v6192
  %v6321 = vadd.f32 %v5928, %v6195
  %v6322 = vadd.f32 %v5929, %v6197
  %v6323 = vadd.f32 %v5930, %v6200
  %v6324 = vadd.f32 %v5931, %v6202
  %v6325 = vadd.f32 %v5932, %v6205
  %v6326 = vadd.f32 %v5933, %v6207
  %v6327 = vadd.f32 %v5934, %v6210
  %v6328 = vadd.f32 %v5935, %v6212
  %v6329 = vadd.f32 %v5936, %v6215
  %v6330 = vadd.f32 %v5937, %v6217
  %v6331 = vadd.f32 %v5938, %v6220
  %v6332 = vadd.f32 %v5939, %v6222
  %v6333 = vadd.f32 %v5940, %v6225
  %v6334 = vadd.f32 %v5941, %v6227
  %v6335 = vadd.f32 %v5942, %v6230
  %v6336 = vadd.f32 %v5943, %v6232
  %v6337 = vadd.f32 %v5944, %v6235
  %v6338 = vadd.f32 %v5945, %v6237
  %v6339 = vadd.f32 %v5946, %v6240
  %v6340 = vadd.f32 %v5947, %v6242
  %v6341 = vadd.f32 %v5948, %v6245
  %v6342 = vadd.f32 %v5949, %v6247
  %v6343 = vadd.f32 %v5950, %v6250
  %v6344 = vadd.f32 %v5951, %v6252
  %v6345 = vadd.f32 %v5952, %v6255
  %v6346 = vadd.f32 %v5953, %v6257
  %v6347 = vadd.f32 %v5954, %v6260
  %v6348 = vadd.f32 %v5955, %v6262
  %v6349 = vadd.f32 %v5956, %v6265
  %v6350 = vadd.f32 %v5957, %v6267
  %v6351 = vadd.f32 %v5958, %v6270
  %v6352 = vadd.f32 %v5959, %v6272
  %v6353 = vadd.f32 %v5960, %v6275
  %v6354 = vadd.f32 %v5961, %v6277
  %v6355 = vadd.f32 %v5962, %v6280
  %v6356 = vadd.f32 %v5963, %v6282
  %v6357 = vadd.f32 %v5964, %v6285
  %v6358 = vadd.f32 %v5965, %v6287
  %v6359 = vadd.f32 %v5966, %v6290
  %v6360 = vadd.f32 %v5967, %v6292
  %v6361 = vadd.f32 %v5968, %v6295
  %v6362 = vadd.f32 %v5969, %v6297
  %v6363 = vld [vmem:[%s5576 + $0x2] sm:$0xff]
  %v6364 = vld [vmem:[%s5576 + $0xa] sm:$0xff]
  %v6365 = vld [vmem:[%s5576 + $0x1a] sm:$0xff]
  %v6366 = vld [vmem:[%s5576 + $0x22] sm:$0xff]
  %v6367 = vld [vmem:[%s5576 + $0x32] sm:$0xff]
  %v6368 = vld [vmem:[%s5576 + $0x3a] sm:$0xff]
  %v6369 = vld [vmem:[%s5576 + $0x4a] sm:$0xff]
  %v6370 = vld [vmem:[%s5576 + $0x52] sm:$0xff]
  %v6371 = vld [vmem:[%s5576 + $0x62] sm:$0xff]
  %v6372 = vld [vmem:[%s5576 + $0x6a] sm:$0xff]
  %v6373 = vld [vmem:[%s5576 + $0x7a] sm:$0xff]
  %v6374 = vld [vmem:[%s5576 + $0x82] sm:$0xff]
  %v6375 = vld [vmem:[%s5576 + $0x92] sm:$0xff]
  %v6376 = vld [vmem:[%s5576 + $0x9a] sm:$0xff]
  %v6377 = vld [vmem:[%s5576 + $0xaa] sm:$0xff]
  %v6378 = vld [vmem:[%s5576 + $0xb2] sm:$0xff]
  %v6379 = vld [vmem:[%s5576 + $0xc2] sm:$0xff]
  %v6380 = vld [vmem:[%s5576 + $0xca] sm:$0xff]
  %v6381 = vld [vmem:[%s5576 + $0xda] sm:$0xff]
  %v6382 = vld [vmem:[%s5576 + $0xe2] sm:$0xff]
  %v6383 = vld [vmem:[%s5576 + $0xf2] sm:$0xff]
  %v6384 = vld [vmem:[%s5576 + $0xfa] sm:$0xff]
  %v6385 = vld [vmem:[%s5576 + $0x10a] sm:$0xff]
  %v6386 = vld [vmem:[%s5576 + $0x112] sm:$0xff]
  %v6387 = vld [vmem:[%s5576 + $0x122] sm:$0xff]
  %v6388 = vld [vmem:[%s5576 + $0x12a] sm:$0xff]
  %v6389 = vld [vmem:[%s5576 + $0x13a] sm:$0xff]
  %v6390 = vld [vmem:[%s5576 + $0x142] sm:$0xff]
  %v6391 = vld [vmem:[%s5576 + $0x152] sm:$0xff]
  %v6392 = vld [vmem:[%s5576 + $0x15a] sm:$0xff]
  %v6393 = vld [vmem:[%s5576 + $0x16a] sm:$0xff]
  %v6394 = vld [vmem:[%s5576 + $0x172] sm:$0xff]
  %v6395 = vld [vmem:[%s5576 + $0x1b2] sm:$0xff]
  %v6396 = vld [vmem:[%s5576 + $0x1ba] sm:$0xff]
  %v6397 = vld [vmem:[%s5576 + $0x1ca] sm:$0xff]
  %v6398 = vld [vmem:[%s5576 + $0x1d2] sm:$0xff]
  %v6399 = vld [vmem:[%s5576 + $0x1e2] sm:$0xff]
  %v6400 = vld [vmem:[%s5576 + $0x1ea] sm:$0xff]
  %v6401 = vld [vmem:[%s5576 + $0x1fa] sm:$0xff]
  %v6402 = vld [vmem:[%s5576 + $0x202] sm:$0xff]
  %v6403 = vld [vmem:[%s5576 + $0x212] sm:$0xff]
  %v6404 = vld [vmem:[%s5576 + $0x21a] sm:$0xff]
  %v6405 = vld [vmem:[%s5576 + $0x22a] sm:$0xff]
  %v6406 = vld [vmem:[%s5576 + $0x232] sm:$0xff]
  %v6407 = vld [vmem:[%s5576 + $0x242] sm:$0xff]
  %v6408 = vld [vmem:[%s5576 + $0x24a] sm:$0xff]
  %v6409 = vld [vmem:[%s5576 + $0x25a] sm:$0xff]
  %v6410 = vld [vmem:[%s5576 + $0x262] sm:$0xff]
  %v6411 = vld [vmem:[%s5576 + $0x272] sm:$0xff]
  %v6412 = vld [vmem:[%s5576 + $0x27a] sm:$0xff]
  %v6413 = vld [vmem:[%s5576 + $0x28a] sm:$0xff]
  %v6414 = vld [vmem:[%s5576 + $0x292] sm:$0xff]
  %v6415 = vld [vmem:[%s5576 + $0x2a2] sm:$0xff]
  %v6416 = vld [vmem:[%s5576 + $0x2aa] sm:$0xff]
  %v6417 = vld [vmem:[%s5576 + $0x2ba] sm:$0xff]
  %v6418 = vld [vmem:[%s5576 + $0x2c2] sm:$0xff]
  %v6419 = vld [vmem:[%s5576 + $0x2d2] sm:$0xff]
  %v6420 = vld [vmem:[%s5576 + $0x2da] sm:$0xff]
  %v6421 = vld [vmem:[%s5576 + $0x2ea] sm:$0xff]
  %v6422 = vld [vmem:[%s5576 + $0x2f2] sm:$0xff]
  %v6423 = vld [vmem:[%s5576 + $0x302] sm:$0xff]
  %v6424 = vld [vmem:[%s5576 + $0x30a] sm:$0xff]
  %v6425 = vld [vmem:[%s5576 + $0x31a] sm:$0xff]
  %v6426 = vld [vmem:[%s5576 + $0x322] sm:$0xff]
  %v6427 = vpack.c.bf16 %v6364, %v6363
  %v6428 = vpack.c.bf16 %v6366, %v6365
  %v6429 = vpack.c.bf16 %v6368, %v6367
  %v6430 = vpack.c.bf16 %v6370, %v6369
  %v6431 = vpack.c.bf16 %v6372, %v6371
  %v6432 = vpack.c.bf16 %v6374, %v6373
  %v6433 = vpack.c.bf16 %v6376, %v6375
  %v6434 = vpack.c.bf16 %v6378, %v6377
  %v6435 = vpack.c.bf16 %v6380, %v6379
  %v6436 = vpack.c.bf16 %v6382, %v6381
  %v6437 = vpack.c.bf16 %v6384, %v6383
  %v6438 = vpack.c.bf16 %v6386, %v6385
  %v6439 = vpack.c.bf16 %v6388, %v6387
  %v6440 = vpack.c.bf16 %v6390, %v6389
  %v6441 = vpack.c.bf16 %v6392, %v6391
  %v6442 = vpack.c.bf16 %v6394, %v6393
  %v6443 = vpack.c.bf16 %v6396, %v6395
  %v6444 = vpack.c.bf16 %v6398, %v6397
  %v6445 = vpack.c.bf16 %v6400, %v6399
  %v6446 = vpack.c.bf16 %v6402, %v6401
  %v6447 = vpack.c.bf16 %v6404, %v6403
  %v6448 = vpack.c.bf16 %v6406, %v6405
  %v6449 = vpack.c.bf16 %v6408, %v6407
  %v6450 = vpack.c.bf16 %v6410, %v6409
  %v6451 = vpack.c.bf16 %v6412, %v6411
  %v6452 = vpack.c.bf16 %v6414, %v6413
  %v6453 = vpack.c.bf16 %v6416, %v6415
  %v6454 = vpack.c.bf16 %v6418, %v6417
  %v6455 = vpack.c.bf16 %v6420, %v6419
  %v6456 = vpack.c.bf16 %v6422, %v6421
  %v6457 = vpack.c.bf16 %v6424, %v6423
  %v6458 = vpack.c.bf16 %v6426, %v6425
  %v6459 = vld [vmem:[%s3 + $0x200] sm:$0xf]
  %v6460 = vld [vmem:[%s3 + $0x204] sm:$0xf]
  %v6461 = vld [vmem:[%s3 + $0x208] sm:$0xf]
  %v6462 = vld [vmem:[%s3 + $0x20c] sm:$0xf]
  %v6463 = vld [vmem:[%s3 + $0x210] sm:$0xf]
  %v6464 = vld [vmem:[%s3 + $0x214] sm:$0xf]
  %v6465 = vld [vmem:[%s3 + $0x218] sm:$0xf]
  %v6466 = vld [vmem:[%s3 + $0x21c] sm:$0xf]
  %v6467 = vld [vmem:[%s3 + $0x220] sm:$0xf]
  %v6468 = vld [vmem:[%s3 + $0x224] sm:$0xf]
  %v6469 = vld [vmem:[%s3 + $0x228] sm:$0xf]
  %v6470 = vld [vmem:[%s3 + $0x22c] sm:$0xf]
  %v6471 = vld [vmem:[%s3 + $0x230] sm:$0xf]
  %v6472 = vld [vmem:[%s3 + $0x234] sm:$0xf]
  %v6473 = vld [vmem:[%s3 + $0x238] sm:$0xf]
  %v6474 = vld [vmem:[%s3 + $0x23c] sm:$0xf]
  %v6491 = vunpack.c.l.b16 %v6459
  %v6492 = vunpack.c.l.b16 %v6460
  %v6493 = vunpack.c.l.b16 %v6461
  %v6494 = vunpack.c.l.b16 %v6462
  %v6495 = vunpack.c.l.b16 %v6463
  %v6496 = vunpack.c.l.b16 %v6464
  %v6497 = vunpack.c.l.b16 %v6465
  %v6498 = vunpack.c.l.b16 %v6466
  %v6499 = vunpack.c.l.b16 %v6467
  %v6500 = vunpack.c.l.b16 %v6468
  %v6501 = vunpack.c.l.b16 %v6469
  %v6502 = vunpack.c.l.b16 %v6470
  %v6503 = vunpack.c.l.b16 %v6471
  %v6504 = vunpack.c.l.b16 %v6472
  %v6505 = vunpack.c.l.b16 %v6473
  %v6506 = vunpack.c.l.b16 %v6474
  %v6507 = vpack.c.b16 %v6492, %v6491
  %v6508 = vpack.c.b16 %v6494, %v6493
  %v6509 = vpack.c.b16 %v6496, %v6495
  %v6510 = vpack.c.b16 %v6498, %v6497
  %v6511 = vpack.c.b16 %v6500, %v6499
  %v6512 = vpack.c.b16 %v6502, %v6501
  %v6513 = vpack.c.b16 %v6504, %v6503
  %v6514 = vpack.c.b16 %v6506, %v6505
  %6523 = vmatpush.bf16.msra.mxu0 %v6514
  %6524 = vmatpush.bf16.msra.mxu0 %v6513
  %6525 = vmatpush.bf16.msra.mxu0 %v6512
  %6526 = vmatpush.bf16.msra.mxu0 %v6511
  %6527 = vmatpush.bf16.msra.mxu0 %v6510
  %6528 = vmatpush.bf16.msra.mxu0 %v6509
  %6529 = vmatpush.bf16.msra.mxu0 %v6508
  %6530 = vmatpush.bf16.msra.mxu0 %v6507
  %6531 = vmatmul.bf16.gmra.mxu0 %v6427
  %v6532 = vpop.f32.mrf.mxu0
  %v6533 = vadd.f32 0.0, %v6532
  %v6534 = vpop.f32.mrf.mxu0
  %v6535 = vadd.f32 0.0, %v6534
  %6536 = vmatmul.bf16.gmra.mxu0 %v6428
  %v6537 = vpop.f32.mrf.mxu0
  %v6538 = vadd.f32 0.0, %v6537
  %v6539 = vpop.f32.mrf.mxu0
  %v6540 = vadd.f32 0.0, %v6539
  %6541 = vmatmul.bf16.gmra.mxu0 %v6429
  %v6542 = vpop.f32.mrf.mxu0
  %v6543 = vadd.f32 0.0, %v6542
  %v6544 = vpop.f32.mrf.mxu0
  %v6545 = vadd.f32 0.0, %v6544
  %6546 = vmatmul.bf16.gmra.mxu0 %v6430
  %v6547 = vpop.f32.mrf.mxu0
  %v6548 = vadd.f32 0.0, %v6547
  %v6549 = vpop.f32.mrf.mxu0
  %v6550 = vadd.f32 0.0, %v6549
  %6551 = vmatmul.bf16.gmra.mxu0 %v6431
  %v6552 = vpop.f32.mrf.mxu0
  %v6553 = vadd.f32 0.0, %v6552
  %v6554 = vpop.f32.mrf.mxu0
  %v6555 = vadd.f32 0.0, %v6554
  %6556 = vmatmul.bf16.gmra.mxu0 %v6432
  %v6557 = vpop.f32.mrf.mxu0
  %v6558 = vadd.f32 0.0, %v6557
  %v6559 = vpop.f32.mrf.mxu0
  %v6560 = vadd.f32 0.0, %v6559
  %6561 = vmatmul.bf16.gmra.mxu0 %v6433
  %v6562 = vpop.f32.mrf.mxu0
  %v6563 = vadd.f32 0.0, %v6562
  %v6564 = vpop.f32.mrf.mxu0
  %v6565 = vadd.f32 0.0, %v6564
  %6566 = vmatmul.bf16.gmra.mxu0 %v6434
  %v6567 = vpop.f32.mrf.mxu0
  %v6568 = vadd.f32 0.0, %v6567
  %v6569 = vpop.f32.mrf.mxu0
  %v6570 = vadd.f32 0.0, %v6569
  %6571 = vmatmul.bf16.gmra.mxu0 %v6435
  %v6572 = vpop.f32.mrf.mxu0
  %v6573 = vadd.f32 0.0, %v6572
  %v6574 = vpop.f32.mrf.mxu0
  %v6575 = vadd.f32 0.0, %v6574
  %6576 = vmatmul.bf16.gmra.mxu0 %v6436
  %v6577 = vpop.f32.mrf.mxu0
  %v6578 = vadd.f32 0.0, %v6577
  %v6579 = vpop.f32.mrf.mxu0
  %v6580 = vadd.f32 0.0, %v6579
  %6581 = vmatmul.bf16.gmra.mxu0 %v6437
  %v6582 = vpop.f32.mrf.mxu0
  %v6583 = vadd.f32 0.0, %v6582
  %v6584 = vpop.f32.mrf.mxu0
  %v6585 = vadd.f32 0.0, %v6584
  %6586 = vmatmul.bf16.gmra.mxu0 %v6438
  %v6587 = vpop.f32.mrf.mxu0
  %v6588 = vadd.f32 0.0, %v6587
  %v6589 = vpop.f32.mrf.mxu0
  %v6590 = vadd.f32 0.0, %v6589
  %6591 = vmatmul.bf16.gmra.mxu0 %v6439
  %v6592 = vpop.f32.mrf.mxu0
  %v6593 = vadd.f32 0.0, %v6592
  %v6594 = vpop.f32.mrf.mxu0
  %v6595 = vadd.f32 0.0, %v6594
  %6596 = vmatmul.bf16.gmra.mxu0 %v6440
  %v6597 = vpop.f32.mrf.mxu0
  %v6598 = vadd.f32 0.0, %v6597
  %v6599 = vpop.f32.mrf.mxu0
  %v6600 = vadd.f32 0.0, %v6599
  %6601 = vmatmul.bf16.gmra.mxu0 %v6441
  %v6602 = vpop.f32.mrf.mxu0
  %v6603 = vadd.f32 0.0, %v6602
  %v6604 = vpop.f32.mrf.mxu0
  %v6605 = vadd.f32 0.0, %v6604
  %6606 = vmatmul.bf16.gmra.mxu0 %v6442
  %v6607 = vpop.f32.mrf.mxu0
  %v6608 = vadd.f32 0.0, %v6607
  %v6609 = vpop.f32.mrf.mxu0
  %v6610 = vadd.f32 0.0, %v6609
  %6611 = vmatmul.bf16.gmra.mxu0 %v6443
  %v6612 = vpop.f32.mrf.mxu0
  %v6613 = vadd.f32 0.0, %v6612
  %v6614 = vpop.f32.mrf.mxu0
  %v6615 = vadd.f32 0.0, %v6614
  %6616 = vmatmul.bf16.gmra.mxu0 %v6444
  %v6617 = vpop.f32.mrf.mxu0
  %v6618 = vadd.f32 0.0, %v6617
  %v6619 = vpop.f32.mrf.mxu0
  %v6620 = vadd.f32 0.0, %v6619
  %6621 = vmatmul.bf16.gmra.mxu0 %v6445
  %v6622 = vpop.f32.mrf.mxu0
  %v6623 = vadd.f32 0.0, %v6622
  %v6624 = vpop.f32.mrf.mxu0
  %v6625 = vadd.f32 0.0, %v6624
  %6626 = vmatmul.bf16.gmra.mxu0 %v6446
  %v6627 = vpop.f32.mrf.mxu0
  %v6628 = vadd.f32 0.0, %v6627
  %v6629 = vpop.f32.mrf.mxu0
  %v6630 = vadd.f32 0.0, %v6629
  %6631 = vmatmul.bf16.gmra.mxu0 %v6447
  %v6632 = vpop.f32.mrf.mxu0
  %v6633 = vadd.f32 0.0, %v6632
  %v6634 = vpop.f32.mrf.mxu0
  %v6635 = vadd.f32 0.0, %v6634
  %6636 = vmatmul.bf16.gmra.mxu0 %v6448
  %v6637 = vpop.f32.mrf.mxu0
  %v6638 = vadd.f32 0.0, %v6637
  %v6639 = vpop.f32.mrf.mxu0
  %v6640 = vadd.f32 0.0, %v6639
  %6641 = vmatmul.bf16.gmra.mxu0 %v6449
  %v6642 = vpop.f32.mrf.mxu0
  %v6643 = vadd.f32 0.0, %v6642
  %v6644 = vpop.f32.mrf.mxu0
  %v6645 = vadd.f32 0.0, %v6644
  %6646 = vmatmul.bf16.gmra.mxu0 %v6450
  %v6647 = vpop.f32.mrf.mxu0
  %v6648 = vadd.f32 0.0, %v6647
  %v6649 = vpop.f32.mrf.mxu0
  %v6650 = vadd.f32 0.0, %v6649
  %6651 = vmatmul.bf16.gmra.mxu0 %v6451
  %v6652 = vpop.f32.mrf.mxu0
  %v6653 = vadd.f32 0.0, %v6652
  %v6654 = vpop.f32.mrf.mxu0
  %v6655 = vadd.f32 0.0, %v6654
  %6656 = vmatmul.bf16.gmra.mxu0 %v6452
  %v6657 = vpop.f32.mrf.mxu0
  %v6658 = vadd.f32 0.0, %v6657
  %v6659 = vpop.f32.mrf.mxu0
  %v6660 = vadd.f32 0.0, %v6659
  %6661 = vmatmul.bf16.gmra.mxu0 %v6453
  %v6662 = vpop.f32.mrf.mxu0
  %v6663 = vadd.f32 0.0, %v6662
  %v6664 = vpop.f32.mrf.mxu0
  %v6665 = vadd.f32 0.0, %v6664
  %6666 = vmatmul.bf16.gmra.mxu0 %v6454
  %v6667 = vpop.f32.mrf.mxu0
  %v6668 = vadd.f32 0.0, %v6667
  %v6669 = vpop.f32.mrf.mxu0
  %v6670 = vadd.f32 0.0, %v6669
  %6671 = vmatmul.bf16.gmra.mxu0 %v6455
  %v6672 = vpop.f32.mrf.mxu0
  %v6673 = vadd.f32 0.0, %v6672
  %v6674 = vpop.f32.mrf.mxu0
  %v6675 = vadd.f32 0.0, %v6674
  %6676 = vmatmul.bf16.gmra.mxu0 %v6456
  %v6677 = vpop.f32.mrf.mxu0
  %v6678 = vadd.f32 0.0, %v6677
  %v6679 = vpop.f32.mrf.mxu0
  %v6680 = vadd.f32 0.0, %v6679
  %6681 = vmatmul.bf16.gmra.mxu0 %v6457
  %v6682 = vpop.f32.mrf.mxu0
  %v6683 = vadd.f32 0.0, %v6682
  %v6684 = vpop.f32.mrf.mxu0
  %v6685 = vadd.f32 0.0, %v6684
  %6686 = vmatmul.bf16.gmra.mxu0 %v6458
  %v6687 = vpop.f32.mrf.mxu0
  %v6688 = vadd.f32 0.0, %v6687
  %v6689 = vpop.f32.mrf.mxu0
  %v6690 = vadd.f32 0.0, %v6689
  %6691 = vdwg.mxu0
  %v6692 = vadd.f32 %v6299, %v6533
  %v6693 = vadd.f32 %v6300, %v6535
  %v6694 = vadd.f32 %v6301, %v6538
  %v6695 = vadd.f32 %v6302, %v6540
  %v6696 = vadd.f32 %v6303, %v6543
  %v6697 = vadd.f32 %v6304, %v6545
  %v6698 = vadd.f32 %v6305, %v6548
  %v6699 = vadd.f32 %v6306, %v6550
  %v6700 = vadd.f32 %v6307, %v6553
  %v6701 = vadd.f32 %v6308, %v6555
  %v6702 = vadd.f32 %v6309, %v6558
  %v6703 = vadd.f32 %v6310, %v6560
  %v6704 = vadd.f32 %v6311, %v6563
  %v6705 = vadd.f32 %v6312, %v6565
  %v6706 = vadd.f32 %v6313, %v6568
  %v6707 = vadd.f32 %v6314, %v6570
  %v6708 = vadd.f32 %v6315, %v6573
  %v6709 = vadd.f32 %v6316, %v6575
  %v6710 = vadd.f32 %v6317, %v6578
  %v6711 = vadd.f32 %v6318, %v6580
  %v6712 = vadd.f32 %v6319, %v6583
  %v6713 = vadd.f32 %v6320, %v6585
  %v6714 = vadd.f32 %v6321, %v6588
  %v6715 = vadd.f32 %v6322, %v6590
  %v6716 = vadd.f32 %v6323, %v6593
  %v6717 = vadd.f32 %v6324, %v6595
  %v6718 = vadd.f32 %v6325, %v6598
  %v6719 = vadd.f32 %v6326, %v6600
  %v6720 = vadd.f32 %v6327, %v6603
  %v6721 = vadd.f32 %v6328, %v6605
  %v6722 = vadd.f32 %v6329, %v6608
  %v6723 = vadd.f32 %v6330, %v6610
  %v6724 = vadd.f32 %v6331, %v6613
  %v6725 = vadd.f32 %v6332, %v6615
  %v6726 = vadd.f32 %v6333, %v6618
  %v6727 = vadd.f32 %v6334, %v6620
  %v6728 = vadd.f32 %v6335, %v6623
  %v6729 = vadd.f32 %v6336, %v6625
  %v6730 = vadd.f32 %v6337, %v6628
  %v6731 = vadd.f32 %v6338, %v6630
  %v6732 = vadd.f32 %v6339, %v6633
  %v6733 = vadd.f32 %v6340, %v6635
  %v6734 = vadd.f32 %v6341, %v6638
  %v6735 = vadd.f32 %v6342, %v6640
  %v6736 = vadd.f32 %v6343, %v6643
  %v6737 = vadd.f32 %v6344, %v6645
  %v6738 = vadd.f32 %v6345, %v6648
  %v6739 = vadd.f32 %v6346, %v6650
  %v6740 = vadd.f32 %v6347, %v6653
  %v6741 = vadd.f32 %v6348, %v6655
  %v6742 = vadd.f32 %v6349, %v6658
  %v6743 = vadd.f32 %v6350, %v6660
  %v6744 = vadd.f32 %v6351, %v6663
  %v6745 = vadd.f32 %v6352, %v6665
  %v6746 = vadd.f32 %v6353, %v6668
  %v6747 = vadd.f32 %v6354, %v6670
  %v6748 = vadd.f32 %v6355, %v6673
  %v6749 = vadd.f32 %v6356, %v6675
  %v6750 = vadd.f32 %v6357, %v6678
  %v6751 = vadd.f32 %v6358, %v6680
  %v6752 = vadd.f32 %v6359, %v6683
  %v6753 = vadd.f32 %v6360, %v6685
  %v6754 = vadd.f32 %v6361, %v6688
  %v6755 = vadd.f32 %v6362, %v6690
  %v6756 = vadd.f32 %v6692, %v6693
  %v6757 = vadd.f32 %v6756, %v6694
  %v6758 = vadd.f32 %v6757, %v6695
  %v6759 = vadd.f32 %v6758, %v6696
  %v6760 = vadd.f32 %v6759, %v6697
  %v6761 = vadd.f32 %v6760, %v6698
  %v6762 = vadd.f32 %v6761, %v6699
  %v6763 = vadd.f32 %v6762, %v6700
  %v6764 = vadd.f32 %v6763, %v6701
  %v6765 = vadd.f32 %v6764, %v6702
  %v6766 = vadd.f32 %v6765, %v6703
  %v6767 = vadd.f32 %v6766, %v6704
  %v6768 = vadd.f32 %v6767, %v6705
  %v6769 = vadd.f32 %v6768, %v6706
  %v6770 = vadd.f32 %v6769, %v6707
  %v6771 = vadd.f32 %v6770, %v6708
  %v6772 = vadd.f32 %v6771, %v6709
  %v6773 = vadd.f32 %v6772, %v6710
  %v6774 = vadd.f32 %v6773, %v6711
  %v6775 = vadd.f32 %v6774, %v6712
  %v6776 = vadd.f32 %v6775, %v6713
  %v6777 = vadd.f32 %v6776, %v6714
  %v6778 = vadd.f32 %v6777, %v6715
  %v6779 = vadd.f32 %v6778, %v6716
  %v6780 = vadd.f32 %v6779, %v6717
  %v6781 = vadd.f32 %v6780, %v6718
  %v6782 = vadd.f32 %v6781, %v6719
  %v6783 = vadd.f32 %v6782, %v6720
  %v6784 = vadd.f32 %v6783, %v6721
  %v6785 = vadd.f32 %v6784, %v6722
  %v6786 = vadd.f32 %v6785, %v6723
  %v6787 = vadd.f32 %v6786, %v6724
  %v6788 = vadd.f32 %v6787, %v6725
  %v6789 = vadd.f32 %v6788, %v6726
  %v6790 = vadd.f32 %v6789, %v6727
  %v6791 = vadd.f32 %v6790, %v6728
  %v6792 = vadd.f32 %v6791, %v6729
  %v6793 = vadd.f32 %v6792, %v6730
  %v6794 = vadd.f32 %v6793, %v6731
  %v6795 = vadd.f32 %v6794, %v6732
  %v6796 = vadd.f32 %v6795, %v6733
  %v6797 = vadd.f32 %v6796, %v6734
  %v6798 = vadd.f32 %v6797, %v6735
  %v6799 = vadd.f32 %v6798, %v6736
  %v6800 = vadd.f32 %v6799, %v6737
  %v6801 = vadd.f32 %v6800, %v6738
  %v6802 = vadd.f32 %v6801, %v6739
  %v6803 = vadd.f32 %v6802, %v6740
  %v6804 = vadd.f32 %v6803, %v6741
  %v6805 = vadd.f32 %v6804, %v6742
  %v6806 = vadd.f32 %v6805, %v6743
  %v6807 = vadd.f32 %v6806, %v6744
  %v6808 = vadd.f32 %v6807, %v6745
  %v6809 = vadd.f32 %v6808, %v6746
  %v6810 = vadd.f32 %v6809, %v6747
  %v6811 = vadd.f32 %v6810, %v6748
  %v6812 = vadd.f32 %v6811, %v6749
  %v6813 = vadd.f32 %v6812, %v6750
  %v6814 = vadd.f32 %v6813, %v6751
  %v6815 = vadd.f32 %v6814, %v6752
  %v6816 = vadd.f32 %v6815, %v6753
  %v6817 = vadd.f32 %v6816, %v6754
  %v6818 = vadd.f32 %v6817, %v6755
  %v6819 = vrot.slane %v6818, 4
  %v6820 = vadd.f32 %v6818, %v6819
  %v6821 = vrot.slane %v6820, 2
  %v6822 = vadd.f32 %v6820, %v6821
  %v6823 = vrot.slane %v6822, 1
  %v6824 = vadd.f32 %v6822, %v6823
  %v6825 = vrcp.pop 512.0
  %v6826 = vmul.f32 512.0, %v6825
  %v6827 = vsub.f32 1.0, %v6826
  %v6828 = vmul.f32 %v6825, %v6827
  %v6829 = vadd.f32 %v6825, %v6828
  %vm6830 = vweird.f32 %v6825
  %v6831 = vsel %vm6830, %v6825, %v6829
  %v6832 = vmul.f32 %v6824, %v6831
  %v6833 = vsub.f32 %v6692, %v6832
  %v6834 = vsub.f32 %v6693, %v6832
  %v6835 = vsub.f32 %v6694, %v6832
  %v6836 = vsub.f32 %v6695, %v6832
  %v6837 = vsub.f32 %v6696, %v6832
  %v6838 = vsub.f32 %v6697, %v6832
  %v6839 = vsub.f32 %v6698, %v6832
  %v6840 = vsub.f32 %v6699, %v6832
  %v6841 = vsub.f32 %v6700, %v6832
  %v6842 = vsub.f32 %v6701, %v6832
  %v6843 = vsub.f32 %v6702, %v6832
  %v6844 = vsub.f32 %v6703, %v6832
  %v6845 = vsub.f32 %v6704, %v6832
  %v6846 = vsub.f32 %v6705, %v6832
  %v6847 = vsub.f32 %v6706, %v6832
  %v6848 = vsub.f32 %v6707, %v6832
  %v6849 = vsub.f32 %v6708, %v6832
  %v6850 = vsub.f32 %v6709, %v6832
  %v6851 = vsub.f32 %v6710, %v6832
  %v6852 = vsub.f32 %v6711, %v6832
  %v6853 = vsub.f32 %v6712, %v6832
  %v6854 = vsub.f32 %v6713, %v6832
  %v6855 = vsub.f32 %v6714, %v6832
  %v6856 = vsub.f32 %v6715, %v6832
  %v6857 = vsub.f32 %v6716, %v6832
  %v6858 = vsub.f32 %v6717, %v6832
  %v6859 = vsub.f32 %v6718, %v6832
  %v6860 = vsub.f32 %v6719, %v6832
  %v6861 = vsub.f32 %v6720, %v6832
  %v6862 = vsub.f32 %v6721, %v6832
  %v6863 = vsub.f32 %v6722, %v6832
  %v6864 = vsub.f32 %v6723, %v6832
  %v6865 = vsub.f32 %v6724, %v6832
  %v6866 = vsub.f32 %v6725, %v6832
  %v6867 = vsub.f32 %v6726, %v6832
  %v6868 = vsub.f32 %v6727, %v6832
  %v6869 = vsub.f32 %v6728, %v6832
  %v6870 = vsub.f32 %v6729, %v6832
  %v6871 = vsub.f32 %v6730, %v6832
  %v6872 = vsub.f32 %v6731, %v6832
  %v6873 = vsub.f32 %v6732, %v6832
  %v6874 = vsub.f32 %v6733, %v6832
  %v6875 = vsub.f32 %v6734, %v6832
  %v6876 = vsub.f32 %v6735, %v6832
  %v6877 = vsub.f32 %v6736, %v6832
  %v6878 = vsub.f32 %v6737, %v6832
  %v6879 = vsub.f32 %v6738, %v6832
  %v6880 = vsub.f32 %v6739, %v6832
  %v6881 = vsub.f32 %v6740, %v6832
  %v6882 = vsub.f32 %v6741, %v6832
  %v6883 = vsub.f32 %v6742, %v6832
  %v6884 = vsub.f32 %v6743, %v6832
  %v6885 = vsub.f32 %v6744, %v6832
  %v6886 = vsub.f32 %v6745, %v6832
  %v6887 = vsub.f32 %v6746, %v6832
  %v6888 = vsub.f32 %v6747, %v6832
  %v6889 = vsub.f32 %v6748, %v6832
  %v6890 = vsub.f32 %v6749, %v6832
  %v6891 = vsub.f32 %v6750, %v6832
  %v6892 = vsub.f32 %v6751, %v6832
  %v6893 = vsub.f32 %v6752, %v6832
  %v6894 = vsub.f32 %v6753, %v6832
  %v6895 = vsub.f32 %v6754, %v6832
  %v6896 = vsub.f32 %v6755, %v6832
  %v6897 = vmul.f32 %v6833, %v6833
  %v6898 = vmul.f32 %v6834, %v6834
  %v6899 = vmul.f32 %v6835, %v6835
  %v6900 = vmul.f32 %v6836, %v6836
  %v6901 = vmul.f32 %v6837, %v6837
  %v6902 = vmul.f32 %v6838, %v6838
  %v6903 = vmul.f32 %v6839, %v6839
  %v6904 = vmul.f32 %v6840, %v6840
  %v6905 = vmul.f32 %v6841, %v6841
  %v6906 = vmul.f32 %v6842, %v6842
  %v6907 = vmul.f32 %v6843, %v6843
  %v6908 = vmul.f32 %v6844, %v6844
  %v6909 = vmul.f32 %v6845, %v6845
  %v6910 = vmul.f32 %v6846, %v6846
  %v6911 = vmul.f32 %v6847, %v6847
  %v6912 = vmul.f32 %v6848, %v6848
  %v6913 = vmul.f32 %v6849, %v6849
  %v6914 = vmul.f32 %v6850, %v6850
  %v6915 = vmul.f32 %v6851, %v6851
  %v6916 = vmul.f32 %v6852, %v6852
  %v6917 = vmul.f32 %v6853, %v6853
  %v6918 = vmul.f32 %v6854, %v6854
  %v6919 = vmul.f32 %v6855, %v6855
  %v6920 = vmul.f32 %v6856, %v6856
  %v6921 = vmul.f32 %v6857, %v6857
  %v6922 = vmul.f32 %v6858, %v6858
  %v6923 = vmul.f32 %v6859, %v6859
  %v6924 = vmul.f32 %v6860, %v6860
  %v6925 = vmul.f32 %v6861, %v6861
  %v6926 = vmul.f32 %v6862, %v6862
  %v6927 = vmul.f32 %v6863, %v6863
  %v6928 = vmul.f32 %v6864, %v6864
  %v6929 = vmul.f32 %v6865, %v6865
  %v6930 = vmul.f32 %v6866, %v6866
  %v6931 = vmul.f32 %v6867, %v6867
  %v6932 = vmul.f32 %v6868, %v6868
  %v6933 = vmul.f32 %v6869, %v6869
  %v6934 = vmul.f32 %v6870, %v6870
  %v6935 = vmul.f32 %v6871, %v6871
  %v6936 = vmul.f32 %v6872, %v6872
  %v6937 = vmul.f32 %v6873, %v6873
  %v6938 = vmul.f32 %v6874, %v6874
  %v6939 = vmul.f32 %v6875, %v6875
  %v6940 = vmul.f32 %v6876, %v6876
  %v6941 = vmul.f32 %v6877, %v6877
  %v6942 = vmul.f32 %v6878, %v6878
  %v6943 = vmul.f32 %v6879, %v6879
  %v6944 = vmul.f32 %v6880, %v6880
  %v6945 = vmul.f32 %v6881, %v6881
  %v6946 = vmul.f32 %v6882, %v6882
  %v6947 = vmul.f32 %v6883, %v6883
  %v6948 = vmul.f32 %v6884, %v6884
  %v6949 = vmul.f32 %v6885, %v6885
  %v6950 = vmul.f32 %v6886, %v6886
  %v6951 = vmul.f32 %v6887, %v6887
  %v6952 = vmul.f32 %v6888, %v6888
  %v6953 = vmul.f32 %v6889, %v6889
  %v6954 = vmul.f32 %v6890, %v6890
  %v6955 = vmul.f32 %v6891, %v6891
  %v6956 = vmul.f32 %v6892, %v6892
  %v6957 = vmul.f32 %v6893, %v6893
  %v6958 = vmul.f32 %v6894, %v6894
  %v6959 = vmul.f32 %v6895, %v6895
  %v6960 = vmul.f32 %v6896, %v6896
  %v6961 = vadd.f32 %v6897, %v6898
  %v6962 = vadd.f32 %v6961, %v6899
  %v6963 = vadd.f32 %v6962, %v6900
  %v6964 = vadd.f32 %v6963, %v6901
  %v6965 = vadd.f32 %v6964, %v6902
  %v6966 = vadd.f32 %v6965, %v6903
  %v6967 = vadd.f32 %v6966, %v6904
  %v6968 = vadd.f32 %v6967, %v6905
  %v6969 = vadd.f32 %v6968, %v6906
  %v6970 = vadd.f32 %v6969, %v6907
  %v6971 = vadd.f32 %v6970, %v6908
  %v6972 = vadd.f32 %v6971, %v6909
  %v6973 = vadd.f32 %v6972, %v6910
  %v6974 = vadd.f32 %v6973, %v6911
  %v6975 = vadd.f32 %v6974, %v6912
  %v6976 = vadd.f32 %v6975, %v6913
  %v6977 = vadd.f32 %v6976, %v6914
  %v6978 = vadd.f32 %v6977, %v6915
  %v6979 = vadd.f32 %v6978, %v6916
  %v6980 = vadd.f32 %v6979, %v6917
  %v6981 = vadd.f32 %v6980, %v6918
  %v6982 = vadd.f32 %v6981, %v6919
  %v6983 = vadd.f32 %v6982, %v6920
  %v6984 = vadd.f32 %v6983, %v6921
  %v6985 = vadd.f32 %v6984, %v6922
  %v6986 = vadd.f32 %v6985, %v6923
  %v6987 = vadd.f32 %v6986, %v6924
  %v6988 = vadd.f32 %v6987, %v6925
  %v6989 = vadd.f32 %v6988, %v6926
  %v6990 = vadd.f32 %v6989, %v6927
  %v6991 = vadd.f32 %v6990, %v6928
  %v6992 = vadd.f32 %v6991, %v6929
  %v6993 = vadd.f32 %v6992, %v6930
  %v6994 = vadd.f32 %v6993, %v6931
  %v6995 = vadd.f32 %v6994, %v6932
  %v6996 = vadd.f32 %v6995, %v6933
  %v6997 = vadd.f32 %v6996, %v6934
  %v6998 = vadd.f32 %v6997, %v6935
  %v6999 = vadd.f32 %v6998, %v6936
  %v7000 = vadd.f32 %v6999, %v6937
  %v7001 = vadd.f32 %v7000, %v6938
  %v7002 = vadd.f32 %v7001, %v6939
  %v7003 = vadd.f32 %v7002, %v6940
  %v7004 = vadd.f32 %v7003, %v6941
  %v7005 = vadd.f32 %v7004, %v6942
  %v7006 = vadd.f32 %v7005, %v6943
  %v7007 = vadd.f32 %v7006, %v6944
  %v7008 = vadd.f32 %v7007, %v6945
  %v7009 = vadd.f32 %v7008, %v6946
  %v7010 = vadd.f32 %v7009, %v6947
  %v7011 = vadd.f32 %v7010, %v6948
  %v7012 = vadd.f32 %v7011, %v6949
  %v7013 = vadd.f32 %v7012, %v6950
  %v7014 = vadd.f32 %v7013, %v6951
  %v7015 = vadd.f32 %v7014, %v6952
  %v7016 = vadd.f32 %v7015, %v6953
  %v7017 = vadd.f32 %v7016, %v6954
  %v7018 = vadd.f32 %v7017, %v6955
  %v7019 = vadd.f32 %v7018, %v6956
  %v7020 = vadd.f32 %v7019, %v6957
  %v7021 = vadd.f32 %v7020, %v6958
  %v7022 = vadd.f32 %v7021, %v6959
  %v7023 = vadd.f32 %v7022, %v6960
  %v7024 = vrot.slane %v7023, 4
  %v7025 = vadd.f32 %v7023, %v7024
  %v7026 = vrot.slane %v7025, 2
  %v7027 = vadd.f32 %v7025, %v7026
  %v7028 = vrot.slane %v7027, 1
  %v7029 = vadd.f32 %v7027, %v7028
  %v7030 = vmul.f32 %v7029, %v6831
  %v7031 = vadd.f32 %v7030, 1e-05
  %v7032 = vrsqrt.pop %v7031
  %v7033 = vmul.f32 %v7032, %v7031
  %v7034 = vmul.f32 %v7033, %v7032
  %v7035 = vmul.f32 0.5, %v7034
  %v7036 = vsub.f32 1.5, %v7035
  %v7037 = vmul.f32 %v7032, %v7036
  %vm7038 = vweird.f32 %v7031
  %vm7039 = vweird.f32 %v7032
  %vm7040 = vmor %vm7038, %vm7039
  %v7041 = vsel %vm7040, %v7032, %v7037
  %v7042 = vmul.f32 %v25, %v7041
  %v7043 = vperm.slane %v7042, 0
  %v7044 = vmul.f32 %v6833, %v7043
  %v7045 = vmul.f32 %v6834, %v7043
  %v7046 = vmul.f32 %v6835, %v7043
  %v7047 = vmul.f32 %v6836, %v7043
  %v7048 = vmul.f32 %v6837, %v7043
  %v7049 = vmul.f32 %v6838, %v7043
  %v7050 = vmul.f32 %v6839, %v7043
  %v7051 = vmul.f32 %v6840, %v7043
  %v7052 = vmul.f32 %v6841, %v7043
  %v7053 = vmul.f32 %v6842, %v7043
  %v7054 = vmul.f32 %v6843, %v7043
  %v7055 = vmul.f32 %v6844, %v7043
  %v7056 = vmul.f32 %v6845, %v7043
  %v7057 = vmul.f32 %v6846, %v7043
  %v7058 = vmul.f32 %v6847, %v7043
  %v7059 = vmul.f32 %v6848, %v7043
  %v7060 = vmul.f32 %v6849, %v7043
  %v7061 = vmul.f32 %v6850, %v7043
  %v7062 = vmul.f32 %v6851, %v7043
  %v7063 = vmul.f32 %v6852, %v7043
  %v7064 = vmul.f32 %v6853, %v7043
  %v7065 = vmul.f32 %v6854, %v7043
  %v7066 = vmul.f32 %v6855, %v7043
  %v7067 = vmul.f32 %v6856, %v7043
  %v7068 = vmul.f32 %v6857, %v7043
  %v7069 = vmul.f32 %v6858, %v7043
  %v7070 = vmul.f32 %v6859, %v7043
  %v7071 = vmul.f32 %v6860, %v7043
  %v7072 = vmul.f32 %v6861, %v7043
  %v7073 = vmul.f32 %v6862, %v7043
  %v7074 = vmul.f32 %v6863, %v7043
  %v7075 = vmul.f32 %v6864, %v7043
  %v7076 = vmul.f32 %v6865, %v7043
  %v7077 = vmul.f32 %v6866, %v7043
  %v7078 = vmul.f32 %v6867, %v7043
  %v7079 = vmul.f32 %v6868, %v7043
  %v7080 = vmul.f32 %v6869, %v7043
  %v7081 = vmul.f32 %v6870, %v7043
  %v7082 = vmul.f32 %v6871, %v7043
  %v7083 = vmul.f32 %v6872, %v7043
  %v7084 = vmul.f32 %v6873, %v7043
  %v7085 = vmul.f32 %v6874, %v7043
  %v7086 = vmul.f32 %v6875, %v7043
  %v7087 = vmul.f32 %v6876, %v7043
  %v7088 = vmul.f32 %v6877, %v7043
  %v7089 = vmul.f32 %v6878, %v7043
  %v7090 = vmul.f32 %v6879, %v7043
  %v7091 = vmul.f32 %v6880, %v7043
  %v7092 = vmul.f32 %v6881, %v7043
  %v7093 = vmul.f32 %v6882, %v7043
  %v7094 = vmul.f32 %v6883, %v7043
  %v7095 = vmul.f32 %v6884, %v7043
  %v7096 = vmul.f32 %v6885, %v7043
  %v7097 = vmul.f32 %v6886, %v7043
  %v7098 = vmul.f32 %v6887, %v7043
  %v7099 = vmul.f32 %v6888, %v7043
  %v7100 = vmul.f32 %v6889, %v7043
  %v7101 = vmul.f32 %v6890, %v7043
  %v7102 = vmul.f32 %v6891, %v7043
  %v7103 = vmul.f32 %v6892, %v7043
  %v7104 = vmul.f32 %v6893, %v7043
  %v7105 = vmul.f32 %v6894, %v7043
  %v7106 = vmul.f32 %v6895, %v7043
  %v7107 = vmul.f32 %v6896, %v7043
  %v7108 = vperm.slane %v26, 0
  %v7109 = vadd.f32 %v7044, %v7108
  %v7110 = vadd.f32 %v7045, %v7108
  %v7111 = vadd.f32 %v7046, %v7108
  %v7112 = vadd.f32 %v7047, %v7108
  %v7113 = vadd.f32 %v7048, %v7108
  %v7114 = vadd.f32 %v7049, %v7108
  %v7115 = vadd.f32 %v7050, %v7108
  %v7116 = vadd.f32 %v7051, %v7108
  %v7117 = vadd.f32 %v7052, %v7108
  %v7118 = vadd.f32 %v7053, %v7108
  %v7119 = vadd.f32 %v7054, %v7108
  %v7120 = vadd.f32 %v7055, %v7108
  %v7121 = vadd.f32 %v7056, %v7108
  %v7122 = vadd.f32 %v7057, %v7108
  %v7123 = vadd.f32 %v7058, %v7108
  %v7124 = vadd.f32 %v7059, %v7108
  %v7125 = vadd.f32 %v7060, %v7108
  %v7126 = vadd.f32 %v7061, %v7108
  %v7127 = vadd.f32 %v7062, %v7108
  %v7128 = vadd.f32 %v7063, %v7108
  %v7129 = vadd.f32 %v7064, %v7108
  %v7130 = vadd.f32 %v7065, %v7108
  %v7131 = vadd.f32 %v7066, %v7108
  %v7132 = vadd.f32 %v7067, %v7108
  %v7133 = vadd.f32 %v7068, %v7108
  %v7134 = vadd.f32 %v7069, %v7108
  %v7135 = vadd.f32 %v7070, %v7108
  %v7136 = vadd.f32 %v7071, %v7108
  %v7137 = vadd.f32 %v7072, %v7108
  %v7138 = vadd.f32 %v7073, %v7108
  %v7139 = vadd.f32 %v7074, %v7108
  %v7140 = vadd.f32 %v7075, %v7108
  %v7141 = vadd.f32 %v7076, %v7108
  %v7142 = vadd.f32 %v7077, %v7108
  %v7143 = vadd.f32 %v7078, %v7108
  %v7144 = vadd.f32 %v7079, %v7108
  %v7145 = vadd.f32 %v7080, %v7108
  %v7146 = vadd.f32 %v7081, %v7108
  %v7147 = vadd.f32 %v7082, %v7108
  %v7148 = vadd.f32 %v7083, %v7108
  %v7149 = vadd.f32 %v7084, %v7108
  %v7150 = vadd.f32 %v7085, %v7108
  %v7151 = vadd.f32 %v7086, %v7108
  %v7152 = vadd.f32 %v7087, %v7108
  %v7153 = vadd.f32 %v7088, %v7108
  %v7154 = vadd.f32 %v7089, %v7108
  %v7155 = vadd.f32 %v7090, %v7108
  %v7156 = vadd.f32 %v7091, %v7108
  %v7157 = vadd.f32 %v7092, %v7108
  %v7158 = vadd.f32 %v7093, %v7108
  %v7159 = vadd.f32 %v7094, %v7108
  %v7160 = vadd.f32 %v7095, %v7108
  %v7161 = vadd.f32 %v7096, %v7108
  %v7162 = vadd.f32 %v7097, %v7108
  %v7163 = vadd.f32 %v7098, %v7108
  %v7164 = vadd.f32 %v7099, %v7108
  %v7165 = vadd.f32 %v7100, %v7108
  %v7166 = vadd.f32 %v7101, %v7108
  %v7167 = vadd.f32 %v7102, %v7108
  %v7168 = vadd.f32 %v7103, %v7108
  %v7169 = vadd.f32 %v7104, %v7108
  %v7170 = vadd.f32 %v7105, %v7108
  %v7171 = vadd.f32 %v7106, %v7108
  %v7172 = vadd.f32 %v7107, %v7108
  %v7173 = vmax.f32 %v7109, 0.0
  %v7174 = vmax.f32 %v7110, 0.0
  %v7175 = vmax.f32 %v7111, 0.0
  %v7176 = vmax.f32 %v7112, 0.0
  %v7177 = vmax.f32 %v7113, 0.0
  %v7178 = vmax.f32 %v7114, 0.0
  %v7179 = vmax.f32 %v7115, 0.0
  %v7180 = vmax.f32 %v7116, 0.0
  %v7181 = vmax.f32 %v7117, 0.0
  %v7182 = vmax.f32 %v7118, 0.0
  %v7183 = vmax.f32 %v7119, 0.0
  %v7184 = vmax.f32 %v7120, 0.0
  %v7185 = vmax.f32 %v7121, 0.0
  %v7186 = vmax.f32 %v7122, 0.0
  %v7187 = vmax.f32 %v7123, 0.0
  %v7188 = vmax.f32 %v7124, 0.0
  %v7189 = vmax.f32 %v7125, 0.0
  %v7190 = vmax.f32 %v7126, 0.0
  %v7191 = vmax.f32 %v7127, 0.0
  %v7192 = vmax.f32 %v7128, 0.0
  %v7193 = vmax.f32 %v7129, 0.0
  %v7194 = vmax.f32 %v7130, 0.0
  %v7195 = vmax.f32 %v7131, 0.0
  %v7196 = vmax.f32 %v7132, 0.0
  %v7197 = vmax.f32 %v7133, 0.0
  %v7198 = vmax.f32 %v7134, 0.0
  %v7199 = vmax.f32 %v7135, 0.0
  %v7200 = vmax.f32 %v7136, 0.0
  %v7201 = vmax.f32 %v7137, 0.0
  %v7202 = vmax.f32 %v7138, 0.0
  %v7203 = vmax.f32 %v7139, 0.0
  %v7204 = vmax.f32 %v7140, 0.0
  %v7205 = vmax.f32 %v7141, 0.0
  %v7206 = vmax.f32 %v7142, 0.0
  %v7207 = vmax.f32 %v7143, 0.0
  %v7208 = vmax.f32 %v7144, 0.0
  %v7209 = vmax.f32 %v7145, 0.0
  %v7210 = vmax.f32 %v7146, 0.0
  %v7211 = vmax.f32 %v7147, 0.0
  %v7212 = vmax.f32 %v7148, 0.0
  %v7213 = vmax.f32 %v7149, 0.0
  %v7214 = vmax.f32 %v7150, 0.0
  %v7215 = vmax.f32 %v7151, 0.0
  %v7216 = vmax.f32 %v7152, 0.0
  %v7217 = vmax.f32 %v7153, 0.0
  %v7218 = vmax.f32 %v7154, 0.0
  %v7219 = vmax.f32 %v7155, 0.0
  %v7220 = vmax.f32 %v7156, 0.0
  %v7221 = vmax.f32 %v7157, 0.0
  %v7222 = vmax.f32 %v7158, 0.0
  %v7223 = vmax.f32 %v7159, 0.0
  %v7224 = vmax.f32 %v7160, 0.0
  %v7225 = vmax.f32 %v7161, 0.0
  %v7226 = vmax.f32 %v7162, 0.0
  %v7227 = vmax.f32 %v7163, 0.0
  %v7228 = vmax.f32 %v7164, 0.0
  %v7229 = vmax.f32 %v7165, 0.0
  %v7230 = vmax.f32 %v7166, 0.0
  %v7231 = vmax.f32 %v7167, 0.0
  %v7232 = vmax.f32 %v7168, 0.0
  %v7233 = vmax.f32 %v7169, 0.0
  %v7234 = vmax.f32 %v7170, 0.0
  %v7235 = vmax.f32 %v7171, 0.0
  %v7236 = vmax.f32 %v7172, 0.0
  %7237 = vst [vmem:[%s2832 + $0x1] sm:$0xff] %v7173
  %7238 = vst [vmem:[%s2832 + $0x9] sm:$0xff] %v7174
  %7239 = vst [vmem:[%s2832 + $0x19] sm:$0xff] %v7175
  %7240 = vst [vmem:[%s2832 + $0x21] sm:$0xff] %v7176
  %7241 = vst [vmem:[%s2832 + $0x31] sm:$0xff] %v7177
  %7242 = vst [vmem:[%s2832 + $0x39] sm:$0xff] %v7178
  %7243 = vst [vmem:[%s2832 + $0x49] sm:$0xff] %v7179
  %7244 = vst [vmem:[%s2832 + $0x51] sm:$0xff] %v7180
  %7245 = vst [vmem:[%s2832 + $0x61] sm:$0xff] %v7181
  %7246 = vst [vmem:[%s2832 + $0x69] sm:$0xff] %v7182
  %7247 = vst [vmem:[%s2832 + $0x79] sm:$0xff] %v7183
  %7248 = vst [vmem:[%s2832 + $0x81] sm:$0xff] %v7184
  %7249 = vst [vmem:[%s2832 + $0x91] sm:$0xff] %v7185
  %7250 = vst [vmem:[%s2832 + $0x99] sm:$0xff] %v7186
  %7251 = vst [vmem:[%s2832 + $0xa9] sm:$0xff] %v7187
  %7252 = vst [vmem:[%s2832 + $0xb1] sm:$0xff] %v7188
  %7253 = vst [vmem:[%s2832 + $0xc1] sm:$0xff] %v7189
  %7254 = vst [vmem:[%s2832 + $0xc9] sm:$0xff] %v7190
  %7255 = vst [vmem:[%s2832 + $0xd9] sm:$0xff] %v7191
  %7256 = vst [vmem:[%s2832 + $0xe1] sm:$0xff] %v7192
  %7257 = vst [vmem:[%s2832 + $0xf1] sm:$0xff] %v7193
  %7258 = vst [vmem:[%s2832 + $0xf9] sm:$0xff] %v7194
  %7259 = vst [vmem:[%s2832 + $0x109] sm:$0xff] %v7195
  %7260 = vst [vmem:[%s2832 + $0x111] sm:$0xff] %v7196
  %7261 = vst [vmem:[%s2832 + $0x121] sm:$0xff] %v7197
  %7262 = vst [vmem:[%s2832 + $0x129] sm:$0xff] %v7198
  %7263 = vst [vmem:[%s2832 + $0x139] sm:$0xff] %v7199
  %7264 = vst [vmem:[%s2832 + $0x141] sm:$0xff] %v7200
  %7265 = vst [vmem:[%s2832 + $0x151] sm:$0xff] %v7201
  %7266 = vst [vmem:[%s2832 + $0x159] sm:$0xff] %v7202
  %7267 = vst [vmem:[%s2832 + $0x169] sm:$0xff] %v7203
  %7268 = vst [vmem:[%s2832 + $0x171] sm:$0xff] %v7204
  %7269 = vst [vmem:[%s2832 + $0x1b1] sm:$0xff] %v7205
  %7270 = vst [vmem:[%s2832 + $0x1b9] sm:$0xff] %v7206
  %7271 = vst [vmem:[%s2832 + $0x1c9] sm:$0xff] %v7207
  %7272 = vst [vmem:[%s2832 + $0x1d1] sm:$0xff] %v7208
  %7273 = vst [vmem:[%s2832 + $0x1e1] sm:$0xff] %v7209
  %7274 = vst [vmem:[%s2832 + $0x1e9] sm:$0xff] %v7210
  %7275 = vst [vmem:[%s2832 + $0x1f9] sm:$0xff] %v7211
  %7276 = vst [vmem:[%s2832 + $0x201] sm:$0xff] %v7212
  %7277 = vst [vmem:[%s2832 + $0x211] sm:$0xff] %v7213
  %7278 = vst [vmem:[%s2832 + $0x219] sm:$0xff] %v7214
  %7279 = vst [vmem:[%s2832 + $0x229] sm:$0xff] %v7215
  %7280 = vst [vmem:[%s2832 + $0x231] sm:$0xff] %v7216
  %7281 = vst [vmem:[%s2832 + $0x241] sm:$0xff] %v7217
  %7282 = vst [vmem:[%s2832 + $0x249] sm:$0xff] %v7218
  %7283 = vst [vmem:[%s2832 + $0x259] sm:$0xff] %v7219
  %7284 = vst [vmem:[%s2832 + $0x261] sm:$0xff] %v7220
  %7285 = vst [vmem:[%s2832 + $0x271] sm:$0xff] %v7221
  %7286 = vst [vmem:[%s2832 + $0x279] sm:$0xff] %v7222
  %7287 = vst [vmem:[%s2832 + $0x289] sm:$0xff] %v7223
  %7288 = vst [vmem:[%s2832 + $0x291] sm:$0xff] %v7224
  %7289 = vst [vmem:[%s2832 + $0x2a1] sm:$0xff] %v7225
  %7290 = vst [vmem:[%s2832 + $0x2a9] sm:$0xff] %v7226
  %7291 = vst [vmem:[%s2832 + $0x2b9] sm:$0xff] %v7227
  %7292 = vst [vmem:[%s2832 + $0x2c1] sm:$0xff] %v7228
  %7293 = vst [vmem:[%s2832 + $0x2d1] sm:$0xff] %v7229
  %7294 = vst [vmem:[%s2832 + $0x2d9] sm:$0xff] %v7230
  %7295 = vst [vmem:[%s2832 + $0x2e9] sm:$0xff] %v7231
  %7296 = vst [vmem:[%s2832 + $0x2f1] sm:$0xff] %v7232
  %7297 = vst [vmem:[%s2832 + $0x301] sm:$0xff] %v7233
  %7298 = vst [vmem:[%s2832 + $0x309] sm:$0xff] %v7234
  %7299 = vst [vmem:[%s2832 + $0x319] sm:$0xff] %v7235
  %7300 = vst [vmem:[%s2832 + $0x321] sm:$0xff] %v7236
  %v7301 = vld [vmem:[#allocation3] sm:$0xff]
  %v7302 = vld [vmem:[#allocation3 + $0x8] sm:$0xff]
  %v7303 = vld [vmem:[#allocation3 + $0x18] sm:$0xff]
  %v7304 = vld [vmem:[#allocation3 + $0x20] sm:$0xff]
  %v7305 = vld [vmem:[#allocation3 + $0x30] sm:$0xff]
  %v7306 = vld [vmem:[#allocation3 + $0x38] sm:$0xff]
  %v7307 = vld [vmem:[#allocation3 + $0x48] sm:$0xff]
  %v7308 = vld [vmem:[#allocation3 + $0x50] sm:$0xff]
  %v7309 = vld [vmem:[#allocation3 + $0x60] sm:$0xff]
  %v7310 = vld [vmem:[#allocation3 + $0x68] sm:$0xff]
  %v7311 = vld [vmem:[#allocation3 + $0x78] sm:$0xff]
  %v7312 = vld [vmem:[#allocation3 + $0x80] sm:$0xff]
  %v7313 = vld [vmem:[#allocation3 + $0x90] sm:$0xff]
  %v7314 = vld [vmem:[#allocation3 + $0x98] sm:$0xff]
  %v7315 = vld [vmem:[#allocation3 + $0xa8] sm:$0xff]
  %v7316 = vld [vmem:[#allocation3 + $0xb0] sm:$0xff]
  %v7317 = vld [vmem:[#allocation3 + $0xc0] sm:$0xff]
  %v7318 = vld [vmem:[#allocation3 + $0xc8] sm:$0xff]
  %v7319 = vld [vmem:[#allocation3 + $0xd8] sm:$0xff]
  %v7320 = vld [vmem:[#allocation3 + $0xe0] sm:$0xff]
  %v7321 = vld [vmem:[#allocation3 + $0xf0] sm:$0xff]
  %v7322 = vld [vmem:[#allocation3 + $0xf8] sm:$0xff]
  %v7323 = vld [vmem:[#allocation3 + $0x108] sm:$0xff]
  %v7324 = vld [vmem:[#allocation3 + $0x110] sm:$0xff]
  %v7325 = vld [vmem:[#allocation3 + $0x120] sm:$0xff]
  %v7326 = vld [vmem:[#allocation3 + $0x128] sm:$0xff]
  %v7327 = vld [vmem:[#allocation3 + $0x138] sm:$0xff]
  %v7328 = vld [vmem:[#allocation3 + $0x140] sm:$0xff]
  %v7329 = vld [vmem:[#allocation3 + $0x150] sm:$0xff]
  %v7330 = vld [vmem:[#allocation3 + $0x158] sm:$0xff]
  %v7331 = vld [vmem:[#allocation3 + $0x168] sm:$0xff]
  %v7332 = vld [vmem:[#allocation3 + $0x170] sm:$0xff]
  %v7333 = vld [vmem:[#allocation3 + $0x1b0] sm:$0xff]
  %v7334 = vld [vmem:[#allocation3 + $0x1b8] sm:$0xff]
  %v7335 = vld [vmem:[#allocation3 + $0x1c8] sm:$0xff]
  %v7336 = vld [vmem:[#allocation3 + $0x1d0] sm:$0xff]
  %v7337 = vld [vmem:[#allocation3 + $0x1e0] sm:$0xff]
  %v7338 = vld [vmem:[#allocation3 + $0x1e8] sm:$0xff]
  %v7339 = vld [vmem:[#allocation3 + $0x1f8] sm:$0xff]
  %v7340 = vld [vmem:[#allocation3 + $0x200] sm:$0xff]
  %v7341 = vld [vmem:[#allocation3 + $0x210] sm:$0xff]
  %v7342 = vld [vmem:[#allocation3 + $0x218] sm:$0xff]
  %v7343 = vld [vmem:[#allocation3 + $0x228] sm:$0xff]
  %v7344 = vld [vmem:[#allocation3 + $0x230] sm:$0xff]
  %v7345 = vld [vmem:[#allocation3 + $0x240] sm:$0xff]
  %v7346 = vld [vmem:[#allocation3 + $0x248] sm:$0xff]
  %v7347 = vld [vmem:[#allocation3 + $0x258] sm:$0xff]
  %v7348 = vld [vmem:[#allocation3 + $0x260] sm:$0xff]
  %v7349 = vld [vmem:[#allocation3 + $0x270] sm:$0xff]
  %v7350 = vld [vmem:[#allocation3 + $0x278] sm:$0xff]
  %v7351 = vld [vmem:[#allocation3 + $0x288] sm:$0xff]
  %v7352 = vld [vmem:[#allocation3 + $0x290] sm:$0xff]
  %v7353 = vld [vmem:[#allocation3 + $0x2a0] sm:$0xff]
  %v7354 = vld [vmem:[#allocation3 + $0x2a8] sm:$0xff]
  %v7355 = vld [vmem:[#allocation3 + $0x2b8] sm:$0xff]
  %v7356 = vld [vmem:[#allocation3 + $0x2c0] sm:$0xff]
  %v7357 = vld [vmem:[#allocation3 + $0x2d0] sm:$0xff]
  %v7358 = vld [vmem:[#allocation3 + $0x2d8] sm:$0xff]
  %v7359 = vld [vmem:[#allocation3 + $0x2e8] sm:$0xff]
  %v7360 = vld [vmem:[#allocation3 + $0x2f0] sm:$0xff]
  %v7361 = vld [vmem:[#allocation3 + $0x300] sm:$0xff]
  %v7362 = vld [vmem:[#allocation3 + $0x308] sm:$0xff]
  %v7363 = vld [vmem:[#allocation3 + $0x318] sm:$0xff]
  %v7364 = vld [vmem:[#allocation3 + $0x320] sm:$0xff]
  %v7365 = vpack.c.bf16 %v7302, %v7301
  %v7366 = vpack.c.bf16 %v7304, %v7303
  %v7367 = vpack.c.bf16 %v7306, %v7305
  %v7368 = vpack.c.bf16 %v7308, %v7307
  %v7369 = vpack.c.bf16 %v7310, %v7309
  %v7370 = vpack.c.bf16 %v7312, %v7311
  %v7371 = vpack.c.bf16 %v7314, %v7313
  %v7372 = vpack.c.bf16 %v7316, %v7315
  %v7373 = vpack.c.bf16 %v7318, %v7317
  %v7374 = vpack.c.bf16 %v7320, %v7319
  %v7375 = vpack.c.bf16 %v7322, %v7321
  %v7376 = vpack.c.bf16 %v7324, %v7323
  %v7377 = vpack.c.bf16 %v7326, %v7325
  %v7378 = vpack.c.bf16 %v7328, %v7327
  %v7379 = vpack.c.bf16 %v7330, %v7329
  %v7380 = vpack.c.bf16 %v7332, %v7331
  %v7381 = vpack.c.bf16 %v7334, %v7333
  %v7382 = vpack.c.bf16 %v7336, %v7335
  %v7383 = vpack.c.bf16 %v7338, %v7337
  %v7384 = vpack.c.bf16 %v7340, %v7339
  %v7385 = vpack.c.bf16 %v7342, %v7341
  %v7386 = vpack.c.bf16 %v7344, %v7343
  %v7387 = vpack.c.bf16 %v7346, %v7345
  %v7388 = vpack.c.bf16 %v7348, %v7347
  %v7389 = vpack.c.bf16 %v7350, %v7349
  %v7390 = vpack.c.bf16 %v7352, %v7351
  %v7391 = vpack.c.bf16 %v7354, %v7353
  %v7392 = vpack.c.bf16 %v7356, %v7355
  %v7393 = vpack.c.bf16 %v7358, %v7357
  %v7394 = vpack.c.bf16 %v7360, %v7359
  %v7395 = vpack.c.bf16 %v7362, %v7361
  %v7396 = vpack.c.bf16 %v7364, %v7363
  %v7397 = vld [vmem:[%s4] sm:$0xf]
  %v7398 = vld [vmem:[%s4 + $0x4] sm:$0xf]
  %v7399 = vld [vmem:[%s4 + $0x8] sm:$0xf]
  %v7400 = vld [vmem:[%s4 + $0xc] sm:$0xf]
  %v7401 = vld [vmem:[%s4 + $0x10] sm:$0xf]
  %v7402 = vld [vmem:[%s4 + $0x14] sm:$0xf]
  %v7403 = vld [vmem:[%s4 + $0x18] sm:$0xf]
  %v7404 = vld [vmem:[%s4 + $0x1c] sm:$0xf]
  %v7405 = vld [vmem:[%s4 + $0x20] sm:$0xf]
  %v7406 = vld [vmem:[%s4 + $0x24] sm:$0xf]
  %v7407 = vld [vmem:[%s4 + $0x28] sm:$0xf]
  %v7408 = vld [vmem:[%s4 + $0x2c] sm:$0xf]
  %v7409 = vld [vmem:[%s4 + $0x30] sm:$0xf]
  %v7410 = vld [vmem:[%s4 + $0x34] sm:$0xf]
  %v7411 = vld [vmem:[%s4 + $0x38] sm:$0xf]
  %v7412 = vld [vmem:[%s4 + $0x3c] sm:$0xf]
  %v7413 = vld [vmem:[#allocation3 + $0x1] sm:$0xff]
  %v7414 = vld [vmem:[#allocation3 + $0x9] sm:$0xff]
  %v7415 = vld [vmem:[#allocation3 + $0x19] sm:$0xff]
  %v7416 = vld [vmem:[#allocation3 + $0x21] sm:$0xff]
  %v7417 = vld [vmem:[#allocation3 + $0x31] sm:$0xff]
  %v7418 = vld [vmem:[#allocation3 + $0x39] sm:$0xff]
  %v7419 = vld [vmem:[#allocation3 + $0x49] sm:$0xff]
  %v7420 = vld [vmem:[#allocation3 + $0x51] sm:$0xff]
  %v7421 = vld [vmem:[#allocation3 + $0x61] sm:$0xff]
  %v7422 = vld [vmem:[#allocation3 + $0x69] sm:$0xff]
  %v7423 = vld [vmem:[#allocation3 + $0x79] sm:$0xff]
  %v7424 = vld [vmem:[#allocation3 + $0x81] sm:$0xff]
  %v7425 = vld [vmem:[#allocation3 + $0x91] sm:$0xff]
  %v7426 = vld [vmem:[#allocation3 + $0x99] sm:$0xff]
  %v7427 = vld [vmem:[#allocation3 + $0xa9] sm:$0xff]
  %v7428 = vld [vmem:[#allocation3 + $0xb1] sm:$0xff]
  %v7429 = vld [vmem:[#allocation3 + $0xc1] sm:$0xff]
  %v7430 = vld [vmem:[#allocation3 + $0xc9] sm:$0xff]
  %v7431 = vld [vmem:[#allocation3 + $0xd9] sm:$0xff]
  %v7432 = vld [vmem:[#allocation3 + $0xe1] sm:$0xff]
  %v7433 = vld [vmem:[#allocation3 + $0xf1] sm:$0xff]
  %v7434 = vld [vmem:[#allocation3 + $0xf9] sm:$0xff]
  %v7435 = vld [vmem:[#allocation3 + $0x109] sm:$0xff]
  %v7436 = vld [vmem:[#allocation3 + $0x111] sm:$0xff]
  %v7437 = vld [vmem:[#allocation3 + $0x121] sm:$0xff]
  %v7438 = vld [vmem:[#allocation3 + $0x129] sm:$0xff]
  %v7439 = vld [vmem:[#allocation3 + $0x139] sm:$0xff]
  %v7440 = vld [vmem:[#allocation3 + $0x141] sm:$0xff]
  %v7441 = vld [vmem:[#allocation3 + $0x151] sm:$0xff]
  %v7442 = vld [vmem:[#allocation3 + $0x159] sm:$0xff]
  %v7443 = vld [vmem:[#allocation3 + $0x169] sm:$0xff]
  %v7444 = vld [vmem:[#allocation3 + $0x171] sm:$0xff]
  %v7445 = vld [vmem:[#allocation3 + $0x1b1] sm:$0xff]
  %v7446 = vld [vmem:[#allocation3 + $0x1b9] sm:$0xff]
  %v7447 = vld [vmem:[#allocation3 + $0x1c9] sm:$0xff]
  %v7448 = vld [vmem:[#allocation3 + $0x1d1] sm:$0xff]
  %v7449 = vld [vmem:[#allocation3 + $0x1e1] sm:$0xff]
  %v7450 = vld [vmem:[#allocation3 + $0x1e9] sm:$0xff]
  %v7451 = vld [vmem:[#allocation3 + $0x1f9] sm:$0xff]
  %v7452 = vld [vmem:[#allocation3 + $0x201] sm:$0xff]
  %v7453 = vld [vmem:[#allocation3 + $0x211] sm:$0xff]
  %v7454 = vld [vmem:[#allocation3 + $0x219] sm:$0xff]
  %v7455 = vld [vmem:[#allocation3 + $0x229] sm:$0xff]
  %v7456 = vld [vmem:[#allocation3 + $0x231] sm:$0xff]
  %v7457 = vld [vmem:[#allocation3 + $0x241] sm:$0xff]
  %v7458 = vld [vmem:[#allocation3 + $0x249] sm:$0xff]
  %v7459 = vld [vmem:[#allocation3 + $0x259] sm:$0xff]
  %v7460 = vld [vmem:[#allocation3 + $0x261] sm:$0xff]
  %v7461 = vld [vmem:[#allocation3 + $0x271] sm:$0xff]
  %v7462 = vld [vmem:[#allocation3 + $0x279] sm:$0xff]
  %v7463 = vld [vmem:[#allocation3 + $0x289] sm:$0xff]
  %v7464 = vld [vmem:[#allocation3 + $0x291] sm:$0xff]
  %v7465 = vld [vmem:[#allocation3 + $0x2a1] sm:$0xff]
  %v7466 = vld [vmem:[#allocation3 + $0x2a9] sm:$0xff]
  %v7467 = vld [vmem:[#allocation3 + $0x2b9] sm:$0xff]
  %v7468 = vld [vmem:[#allocation3 + $0x2c1] sm:$0xff]
  %v7469 = vld [vmem:[#allocation3 + $0x2d1] sm:$0xff]
  %v7470 = vld [vmem:[#allocation3 + $0x2d9] sm:$0xff]
  %v7471 = vld [vmem:[#allocation3 + $0x2e9] sm:$0xff]
  %v7472 = vld [vmem:[#allocation3 + $0x2f1] sm:$0xff]
  %v7473 = vld [vmem:[#allocation3 + $0x301] sm:$0xff]
  %v7474 = vld [vmem:[#allocation3 + $0x309] sm:$0xff]
  %v7475 = vld [vmem:[#allocation3 + $0x319] sm:$0xff]
  %v7476 = vld [vmem:[#allocation3 + $0x321] sm:$0xff]
  %v7477 = vpack.c.bf16 %v7414, %v7413
  %v7478 = vpack.c.bf16 %v7416, %v7415
  %v7479 = vpack.c.bf16 %v7418, %v7417
  %v7480 = vpack.c.bf16 %v7420, %v7419
  %v7481 = vpack.c.bf16 %v7422, %v7421
  %v7482 = vpack.c.bf16 %v7424, %v7423
  %v7483 = vpack.c.bf16 %v7426, %v7425
  %v7484 = vpack.c.bf16 %v7428, %v7427
  %v7485 = vpack.c.bf16 %v7430, %v7429
  %v7486 = vpack.c.bf16 %v7432, %v7431
  %v7487 = vpack.c.bf16 %v7434, %v7433
  %v7488 = vpack.c.bf16 %v7436, %v7435
  %v7489 = vpack.c.bf16 %v7438, %v7437
  %v7490 = vpack.c.bf16 %v7440, %v7439
  %v7491 = vpack.c.bf16 %v7442, %v7441
  %v7492 = vpack.c.bf16 %v7444, %v7443
  %v7493 = vpack.c.bf16 %v7446, %v7445
  %v7494 = vpack.c.bf16 %v7448, %v7447
  %v7495 = vpack.c.bf16 %v7450, %v7449
  %v7496 = vpack.c.bf16 %v7452, %v7451
  %v7497 = vpack.c.bf16 %v7454, %v7453
  %v7498 = vpack.c.bf16 %v7456, %v7455
  %v7499 = vpack.c.bf16 %v7458, %v7457
  %v7500 = vpack.c.bf16 %v7460, %v7459
  %v7501 = vpack.c.bf16 %v7462, %v7461
  %v7502 = vpack.c.bf16 %v7464, %v7463
  %v7503 = vpack.c.bf16 %v7466, %v7465
  %v7504 = vpack.c.bf16 %v7468, %v7467
  %v7505 = vpack.c.bf16 %v7470, %v7469
  %v7506 = vpack.c.bf16 %v7472, %v7471
  %v7507 = vpack.c.bf16 %v7474, %v7473
  %v7508 = vpack.c.bf16 %v7476, %v7475
  %v7509 = vld [vmem:[%s4 + $0x40] sm:$0xf]
  %v7510 = vld [vmem:[%s4 + $0x44] sm:$0xf]
  %v7511 = vld [vmem:[%s4 + $0x48] sm:$0xf]
  %v7512 = vld [vmem:[%s4 + $0x4c] sm:$0xf]
  %v7513 = vld [vmem:[%s4 + $0x50] sm:$0xf]
  %v7514 = vld [vmem:[%s4 + $0x54] sm:$0xf]
  %v7515 = vld [vmem:[%s4 + $0x58] sm:$0xf]
  %v7516 = vld [vmem:[%s4 + $0x5c] sm:$0xf]
  %v7517 = vld [vmem:[%s4 + $0x60] sm:$0xf]
  %v7518 = vld [vmem:[%s4 + $0x64] sm:$0xf]
  %v7519 = vld [vmem:[%s4 + $0x68] sm:$0xf]
  %v7520 = vld [vmem:[%s4 + $0x6c] sm:$0xf]
  %v7521 = vld [vmem:[%s4 + $0x70] sm:$0xf]
  %v7522 = vld [vmem:[%s4 + $0x74] sm:$0xf]
  %v7523 = vld [vmem:[%s4 + $0x78] sm:$0xf]
  %v7524 = vld [vmem:[%s4 + $0x7c] sm:$0xf]
  %v7541 = vunpack.c.l.b16 %v7509
  %v7542 = vunpack.c.l.b16 %v7510
  %v7543 = vunpack.c.l.b16 %v7511
  %v7544 = vunpack.c.l.b16 %v7512
  %v7545 = vunpack.c.l.b16 %v7513
  %v7546 = vunpack.c.l.b16 %v7514
  %v7547 = vunpack.c.l.b16 %v7515
  %v7548 = vunpack.c.l.b16 %v7516
  %v7549 = vunpack.c.l.b16 %v7517
  %v7550 = vunpack.c.l.b16 %v7518
  %v7551 = vunpack.c.l.b16 %v7519
  %v7552 = vunpack.c.l.b16 %v7520
  %v7553 = vunpack.c.l.b16 %v7521
  %v7554 = vunpack.c.l.b16 %v7522
  %v7555 = vunpack.c.l.b16 %v7523
  %v7556 = vunpack.c.l.b16 %v7524
  %v7557 = vpack.c.b16 %v7542, %v7541
  %v7558 = vpack.c.b16 %v7544, %v7543
  %v7559 = vpack.c.b16 %v7546, %v7545
  %v7560 = vpack.c.b16 %v7548, %v7547
  %v7561 = vpack.c.b16 %v7550, %v7549
  %v7562 = vpack.c.b16 %v7552, %v7551
  %v7563 = vpack.c.b16 %v7554, %v7553
  %v7564 = vpack.c.b16 %v7556, %v7555
  %7573 = vmatpush.bf16.msra.mxu0 %v7564
  %7574 = vmatpush.bf16.msra.mxu0 %v7563
  %7575 = vmatpush.bf16.msra.mxu0 %v7562
  %7576 = vmatpush.bf16.msra.mxu0 %v7561
  %7577 = vmatpush.bf16.msra.mxu0 %v7560
  %7578 = vmatpush.bf16.msra.mxu0 %v7559
  %7579 = vmatpush.bf16.msra.mxu0 %v7558
  %7580 = vmatpush.bf16.msra.mxu0 %v7557
  %7581 = vmatmul.bf16.gmra.mxu0 %v7477
  %v7582 = vpop.f32.mrf.mxu0
  %v7583 = vadd.f32 0.0, %v7582
  %v7584 = vpop.f32.mrf.mxu0
  %v7585 = vadd.f32 0.0, %v7584
  %7586 = vmatmul.bf16.gmra.mxu0 %v7478
  %v7587 = vpop.f32.mrf.mxu0
  %v7588 = vadd.f32 0.0, %v7587
  %v7589 = vpop.f32.mrf.mxu0
  %v7590 = vadd.f32 0.0, %v7589
  %7591 = vmatmul.bf16.gmra.mxu0 %v7479
  %v7592 = vpop.f32.mrf.mxu0
  %v7593 = vadd.f32 0.0, %v7592
  %v7594 = vpop.f32.mrf.mxu0
  %v7595 = vadd.f32 0.0, %v7594
  %7596 = vmatmul.bf16.gmra.mxu0 %v7480
  %v7597 = vpop.f32.mrf.mxu0
  %v7598 = vadd.f32 0.0, %v7597
  %v7599 = vpop.f32.mrf.mxu0
  %v7600 = vadd.f32 0.0, %v7599
  %7601 = vmatmul.bf16.gmra.mxu0 %v7481
  %v7602 = vpop.f32.mrf.mxu0
  %v7603 = vadd.f32 0.0, %v7602
  %v7604 = vpop.f32.mrf.mxu0
  %v7605 = vadd.f32 0.0, %v7604
  %7606 = vmatmul.bf16.gmra.mxu0 %v7482
  %v7607 = vpop.f32.mrf.mxu0
  %v7608 = vadd.f32 0.0, %v7607
  %v7609 = vpop.f32.mrf.mxu0
  %v7610 = vadd.f32 0.0, %v7609
  %7611 = vmatmul.bf16.gmra.mxu0 %v7483
  %v7612 = vpop.f32.mrf.mxu0
  %v7613 = vadd.f32 0.0, %v7612
  %v7614 = vpop.f32.mrf.mxu0
  %v7615 = vadd.f32 0.0, %v7614
  %7616 = vmatmul.bf16.gmra.mxu0 %v7484
  %v7617 = vpop.f32.mrf.mxu0
  %v7618 = vadd.f32 0.0, %v7617
  %v7619 = vpop.f32.mrf.mxu0
  %v7620 = vadd.f32 0.0, %v7619
  %7621 = vmatmul.bf16.gmra.mxu0 %v7485
  %v7622 = vpop.f32.mrf.mxu0
  %v7623 = vadd.f32 0.0, %v7622
  %v7624 = vpop.f32.mrf.mxu0
  %v7625 = vadd.f32 0.0, %v7624
  %7626 = vmatmul.bf16.gmra.mxu0 %v7486
  %v7627 = vpop.f32.mrf.mxu0
  %v7628 = vadd.f32 0.0, %v7627
  %v7629 = vpop.f32.mrf.mxu0
  %v7630 = vadd.f32 0.0, %v7629
  %7631 = vmatmul.bf16.gmra.mxu0 %v7487
  %v7632 = vpop.f32.mrf.mxu0
  %v7633 = vadd.f32 0.0, %v7632
  %v7634 = vpop.f32.mrf.mxu0
  %v7635 = vadd.f32 0.0, %v7634
  %7636 = vmatmul.bf16.gmra.mxu0 %v7488
  %v7637 = vpop.f32.mrf.mxu0
  %v7638 = vadd.f32 0.0, %v7637
  %v7639 = vpop.f32.mrf.mxu0
  %v7640 = vadd.f32 0.0, %v7639
  %7641 = vmatmul.bf16.gmra.mxu0 %v7489
  %v7642 = vpop.f32.mrf.mxu0
  %v7643 = vadd.f32 0.0, %v7642
  %v7644 = vpop.f32.mrf.mxu0
  %v7645 = vadd.f32 0.0, %v7644
  %7646 = vmatmul.bf16.gmra.mxu0 %v7490
  %v7647 = vpop.f32.mrf.mxu0
  %v7648 = vadd.f32 0.0, %v7647
  %v7649 = vpop.f32.mrf.mxu0
  %v7650 = vadd.f32 0.0, %v7649
  %7651 = vmatmul.bf16.gmra.mxu0 %v7491
  %v7652 = vpop.f32.mrf.mxu0
  %v7653 = vadd.f32 0.0, %v7652
  %v7654 = vpop.f32.mrf.mxu0
  %v7655 = vadd.f32 0.0, %v7654
  %7656 = vmatmul.bf16.gmra.mxu0 %v7492
  %v7657 = vpop.f32.mrf.mxu0
  %v7658 = vadd.f32 0.0, %v7657
  %v7659 = vpop.f32.mrf.mxu0
  %v7660 = vadd.f32 0.0, %v7659
  %7661 = vmatmul.bf16.gmra.mxu0 %v7493
  %v7662 = vpop.f32.mrf.mxu0
  %v7663 = vadd.f32 0.0, %v7662
  %v7664 = vpop.f32.mrf.mxu0
  %v7665 = vadd.f32 0.0, %v7664
  %7666 = vmatmul.bf16.gmra.mxu0 %v7494
  %v7667 = vpop.f32.mrf.mxu0
  %v7668 = vadd.f32 0.0, %v7667
  %v7669 = vpop.f32.mrf.mxu0
  %v7670 = vadd.f32 0.0, %v7669
  %7671 = vmatmul.bf16.gmra.mxu0 %v7495
  %v7672 = vpop.f32.mrf.mxu0
  %v7673 = vadd.f32 0.0, %v7672
  %v7674 = vpop.f32.mrf.mxu0
  %v7675 = vadd.f32 0.0, %v7674
  %7676 = vmatmul.bf16.gmra.mxu0 %v7496
  %v7677 = vpop.f32.mrf.mxu0
  %v7678 = vadd.f32 0.0, %v7677
  %v7679 = vpop.f32.mrf.mxu0
  %v7680 = vadd.f32 0.0, %v7679
  %7681 = vmatmul.bf16.gmra.mxu0 %v7497
  %v7682 = vpop.f32.mrf.mxu0
  %v7683 = vadd.f32 0.0, %v7682
  %v7684 = vpop.f32.mrf.mxu0
  %v7685 = vadd.f32 0.0, %v7684
  %7686 = vmatmul.bf16.gmra.mxu0 %v7498
  %v7687 = vpop.f32.mrf.mxu0
  %v7688 = vadd.f32 0.0, %v7687
  %v7689 = vpop.f32.mrf.mxu0
  %v7690 = vadd.f32 0.0, %v7689
  %7691 = vmatmul.bf16.gmra.mxu0 %v7499
  %v7692 = vpop.f32.mrf.mxu0
  %v7693 = vadd.f32 0.0, %v7692
  %v7694 = vpop.f32.mrf.mxu0
  %v7695 = vadd.f32 0.0, %v7694
  %7696 = vmatmul.bf16.gmra.mxu0 %v7500
  %v7697 = vpop.f32.mrf.mxu0
  %v7698 = vadd.f32 0.0, %v7697
  %v7699 = vpop.f32.mrf.mxu0
  %v7700 = vadd.f32 0.0, %v7699
  %7701 = vmatmul.bf16.gmra.mxu0 %v7501
  %v7702 = vpop.f32.mrf.mxu0
  %v7703 = vadd.f32 0.0, %v7702
  %v7704 = vpop.f32.mrf.mxu0
  %v7705 = vadd.f32 0.0, %v7704
  %7706 = vmatmul.bf16.gmra.mxu0 %v7502
  %v7707 = vpop.f32.mrf.mxu0
  %v7708 = vadd.f32 0.0, %v7707
  %v7709 = vpop.f32.mrf.mxu0
  %v7710 = vadd.f32 0.0, %v7709
  %7711 = vmatmul.bf16.gmra.mxu0 %v7503
  %v7712 = vpop.f32.mrf.mxu0
  %v7713 = vadd.f32 0.0, %v7712
  %v7714 = vpop.f32.mrf.mxu0
  %v7715 = vadd.f32 0.0, %v7714
  %7716 = vmatmul.bf16.gmra.mxu0 %v7504
  %v7717 = vpop.f32.mrf.mxu0
  %v7718 = vadd.f32 0.0, %v7717
  %v7719 = vpop.f32.mrf.mxu0
  %v7720 = vadd.f32 0.0, %v7719
  %7721 = vmatmul.bf16.gmra.mxu0 %v7505
  %v7722 = vpop.f32.mrf.mxu0
  %v7723 = vadd.f32 0.0, %v7722
  %v7724 = vpop.f32.mrf.mxu0
  %v7725 = vadd.f32 0.0, %v7724
  %7726 = vmatmul.bf16.gmra.mxu0 %v7506
  %v7727 = vpop.f32.mrf.mxu0
  %v7728 = vadd.f32 0.0, %v7727
  %v7729 = vpop.f32.mrf.mxu0
  %v7730 = vadd.f32 0.0, %v7729
  %7731 = vmatmul.bf16.gmra.mxu0 %v7507
  %v7732 = vpop.f32.mrf.mxu0
  %v7733 = vadd.f32 0.0, %v7732
  %v7734 = vpop.f32.mrf.mxu0
  %v7735 = vadd.f32 0.0, %v7734
  %7736 = vmatmul.bf16.gmra.mxu0 %v7508
  %v7737 = vpop.f32.mrf.mxu0
  %v7738 = vadd.f32 0.0, %v7737
  %v7739 = vpop.f32.mrf.mxu0
  %v7740 = vadd.f32 0.0, %v7739
  %7741 = vdwg.mxu0
  %v7758 = vunpack.c.l.b16 %v7397
  %v7759 = vunpack.c.l.b16 %v7398
  %v7760 = vunpack.c.l.b16 %v7399
  %v7761 = vunpack.c.l.b16 %v7400
  %v7762 = vunpack.c.l.b16 %v7401
  %v7763 = vunpack.c.l.b16 %v7402
  %v7764 = vunpack.c.l.b16 %v7403
  %v7765 = vunpack.c.l.b16 %v7404
  %v7766 = vunpack.c.l.b16 %v7405
  %v7767 = vunpack.c.l.b16 %v7406
  %v7768 = vunpack.c.l.b16 %v7407
  %v7769 = vunpack.c.l.b16 %v7408
  %v7770 = vunpack.c.l.b16 %v7409
  %v7771 = vunpack.c.l.b16 %v7410
  %v7772 = vunpack.c.l.b16 %v7411
  %v7773 = vunpack.c.l.b16 %v7412
  %v7774 = vpack.c.b16 %v7759, %v7758
  %v7775 = vpack.c.b16 %v7761, %v7760
  %v7776 = vpack.c.b16 %v7763, %v7762
  %v7777 = vpack.c.b16 %v7765, %v7764
  %v7778 = vpack.c.b16 %v7767, %v7766
  %v7779 = vpack.c.b16 %v7769, %v7768
  %v7780 = vpack.c.b16 %v7771, %v7770
  %v7781 = vpack.c.b16 %v7773, %v7772
  %7790 = vmatpush.bf16.msra.mxu0 %v7781
  %7791 = vmatpush.bf16.msra.mxu0 %v7780
  %7792 = vmatpush.bf16.msra.mxu0 %v7779
  %7793 = vmatpush.bf16.msra.mxu0 %v7778
  %7794 = vmatpush.bf16.msra.mxu0 %v7777
  %7795 = vmatpush.bf16.msra.mxu0 %v7776
  %7796 = vmatpush.bf16.msra.mxu0 %v7775
  %7797 = vmatpush.bf16.msra.mxu0 %v7774
  %7798 = vmatmul.bf16.gmra.mxu0 %v7365
  %v7799 = vpop.f32.mrf.mxu0
  %v7800 = vadd.f32 %v7583, %v7799
  %v7801 = vpop.f32.mrf.mxu0
  %v7802 = vadd.f32 %v7585, %v7801
  %7803 = vmatmul.bf16.gmra.mxu0 %v7366
  %v7804 = vpop.f32.mrf.mxu0
  %v7805 = vadd.f32 %v7588, %v7804
  %v7806 = vpop.f32.mrf.mxu0
  %v7807 = vadd.f32 %v7590, %v7806
  %7808 = vmatmul.bf16.gmra.mxu0 %v7367
  %v7809 = vpop.f32.mrf.mxu0
  %v7810 = vadd.f32 %v7593, %v7809
  %v7811 = vpop.f32.mrf.mxu0
  %v7812 = vadd.f32 %v7595, %v7811
  %7813 = vmatmul.bf16.gmra.mxu0 %v7368
  %v7814 = vpop.f32.mrf.mxu0
  %v7815 = vadd.f32 %v7598, %v7814
  %v7816 = vpop.f32.mrf.mxu0
  %v7817 = vadd.f32 %v7600, %v7816
  %7818 = vmatmul.bf16.gmra.mxu0 %v7369
  %v7819 = vpop.f32.mrf.mxu0
  %v7820 = vadd.f32 %v7603, %v7819
  %v7821 = vpop.f32.mrf.mxu0
  %v7822 = vadd.f32 %v7605, %v7821
  %7823 = vmatmul.bf16.gmra.mxu0 %v7370
  %v7824 = vpop.f32.mrf.mxu0
  %v7825 = vadd.f32 %v7608, %v7824
  %v7826 = vpop.f32.mrf.mxu0
  %v7827 = vadd.f32 %v7610, %v7826
  %7828 = vmatmul.bf16.gmra.mxu0 %v7371
  %v7829 = vpop.f32.mrf.mxu0
  %v7830 = vadd.f32 %v7613, %v7829
  %v7831 = vpop.f32.mrf.mxu0
  %v7832 = vadd.f32 %v7615, %v7831
  %7833 = vmatmul.bf16.gmra.mxu0 %v7372
  %v7834 = vpop.f32.mrf.mxu0
  %v7835 = vadd.f32 %v7618, %v7834
  %v7836 = vpop.f32.mrf.mxu0
  %v7837 = vadd.f32 %v7620, %v7836
  %7838 = vmatmul.bf16.gmra.mxu0 %v7373
  %v7839 = vpop.f32.mrf.mxu0
  %v7840 = vadd.f32 %v7623, %v7839
  %v7841 = vpop.f32.mrf.mxu0
  %v7842 = vadd.f32 %v7625, %v7841
  %7843 = vmatmul.bf16.gmra.mxu0 %v7374
  %v7844 = vpop.f32.mrf.mxu0
  %v7845 = vadd.f32 %v7628, %v7844
  %v7846 = vpop.f32.mrf.mxu0
  %v7847 = vadd.f32 %v7630, %v7846
  %7848 = vmatmul.bf16.gmra.mxu0 %v7375
  %v7849 = vpop.f32.mrf.mxu0
  %v7850 = vadd.f32 %v7633, %v7849
  %v7851 = vpop.f32.mrf.mxu0
  %v7852 = vadd.f32 %v7635, %v7851
  %7853 = vmatmul.bf16.gmra.mxu0 %v7376
  %v7854 = vpop.f32.mrf.mxu0
  %v7855 = vadd.f32 %v7638, %v7854
  %v7856 = vpop.f32.mrf.mxu0
  %v7857 = vadd.f32 %v7640, %v7856
  %7858 = vmatmul.bf16.gmra.mxu0 %v7377
  %v7859 = vpop.f32.mrf.mxu0
  %v7860 = vadd.f32 %v7643, %v7859
  %v7861 = vpop.f32.mrf.mxu0
  %v7862 = vadd.f32 %v7645, %v7861
  %7863 = vmatmul.bf16.gmra.mxu0 %v7378
  %v7864 = vpop.f32.mrf.mxu0
  %v7865 = vadd.f32 %v7648, %v7864
  %v7866 = vpop.f32.mrf.mxu0
  %v7867 = vadd.f32 %v7650, %v7866
  %7868 = vmatmul.bf16.gmra.mxu0 %v7379
  %v7869 = vpop.f32.mrf.mxu0
  %v7870 = vadd.f32 %v7653, %v7869
  %v7871 = vpop.f32.mrf.mxu0
  %v7872 = vadd.f32 %v7655, %v7871
  %7873 = vmatmul.bf16.gmra.mxu0 %v7380
  %v7874 = vpop.f32.mrf.mxu0
  %v7875 = vadd.f32 %v7658, %v7874
  %v7876 = vpop.f32.mrf.mxu0
  %v7877 = vadd.f32 %v7660, %v7876
  %7878 = vmatmul.bf16.gmra.mxu0 %v7381
  %v7879 = vpop.f32.mrf.mxu0
  %v7880 = vadd.f32 %v7663, %v7879
  %v7881 = vpop.f32.mrf.mxu0
  %v7882 = vadd.f32 %v7665, %v7881
  %7883 = vmatmul.bf16.gmra.mxu0 %v7382
  %v7884 = vpop.f32.mrf.mxu0
  %v7885 = vadd.f32 %v7668, %v7884
  %v7886 = vpop.f32.mrf.mxu0
  %v7887 = vadd.f32 %v7670, %v7886
  %7888 = vmatmul.bf16.gmra.mxu0 %v7383
  %v7889 = vpop.f32.mrf.mxu0
  %v7890 = vadd.f32 %v7673, %v7889
  %v7891 = vpop.f32.mrf.mxu0
  %v7892 = vadd.f32 %v7675, %v7891
  %7893 = vmatmul.bf16.gmra.mxu0 %v7384
  %v7894 = vpop.f32.mrf.mxu0
  %v7895 = vadd.f32 %v7678, %v7894
  %v7896 = vpop.f32.mrf.mxu0
  %v7897 = vadd.f32 %v7680, %v7896
  %7898 = vmatmul.bf16.gmra.mxu0 %v7385
  %v7899 = vpop.f32.mrf.mxu0
  %v7900 = vadd.f32 %v7683, %v7899
  %v7901 = vpop.f32.mrf.mxu0
  %v7902 = vadd.f32 %v7685, %v7901
  %7903 = vmatmul.bf16.gmra.mxu0 %v7386
  %v7904 = vpop.f32.mrf.mxu0
  %v7905 = vadd.f32 %v7688, %v7904
  %v7906 = vpop.f32.mrf.mxu0
  %v7907 = vadd.f32 %v7690, %v7906
  %7908 = vmatmul.bf16.gmra.mxu0 %v7387
  %v7909 = vpop.f32.mrf.mxu0
  %v7910 = vadd.f32 %v7693, %v7909
  %v7911 = vpop.f32.mrf.mxu0
  %v7912 = vadd.f32 %v7695, %v7911
  %7913 = vmatmul.bf16.gmra.mxu0 %v7388
  %v7914 = vpop.f32.mrf.mxu0
  %v7915 = vadd.f32 %v7698, %v7914
  %v7916 = vpop.f32.mrf.mxu0
  %v7917 = vadd.f32 %v7700, %v7916
  %7918 = vmatmul.bf16.gmra.mxu0 %v7389
  %v7919 = vpop.f32.mrf.mxu0
  %v7920 = vadd.f32 %v7703, %v7919
  %v7921 = vpop.f32.mrf.mxu0
  %v7922 = vadd.f32 %v7705, %v7921
  %7923 = vmatmul.bf16.gmra.mxu0 %v7390
  %v7924 = vpop.f32.mrf.mxu0
  %v7925 = vadd.f32 %v7708, %v7924
  %v7926 = vpop.f32.mrf.mxu0
  %v7927 = vadd.f32 %v7710, %v7926
  %7928 = vmatmul.bf16.gmra.mxu0 %v7391
  %v7929 = vpop.f32.mrf.mxu0
  %v7930 = vadd.f32 %v7713, %v7929
  %v7931 = vpop.f32.mrf.mxu0
  %v7932 = vadd.f32 %v7715, %v7931
  %7933 = vmatmul.bf16.gmra.mxu0 %v7392
  %v7934 = vpop.f32.mrf.mxu0
  %v7935 = vadd.f32 %v7718, %v7934
  %v7936 = vpop.f32.mrf.mxu0
  %v7937 = vadd.f32 %v7720, %v7936
  %7938 = vmatmul.bf16.gmra.mxu0 %v7393
  %v7939 = vpop.f32.mrf.mxu0
  %v7940 = vadd.f32 %v7723, %v7939
  %v7941 = vpop.f32.mrf.mxu0
  %v7942 = vadd.f32 %v7725, %v7941
  %7943 = vmatmul.bf16.gmra.mxu0 %v7394
  %v7944 = vpop.f32.mrf.mxu0
  %v7945 = vadd.f32 %v7728, %v7944
  %v7946 = vpop.f32.mrf.mxu0
  %v7947 = vadd.f32 %v7730, %v7946
  %7948 = vmatmul.bf16.gmra.mxu0 %v7395
  %v7949 = vpop.f32.mrf.mxu0
  %v7950 = vadd.f32 %v7733, %v7949
  %v7951 = vpop.f32.mrf.mxu0
  %v7952 = vadd.f32 %v7735, %v7951
  %7953 = vmatmul.bf16.gmra.mxu0 %v7396
  %v7954 = vpop.f32.mrf.mxu0
  %v7955 = vadd.f32 %v7738, %v7954
  %v7956 = vpop.f32.mrf.mxu0
  %v7957 = vadd.f32 %v7740, %v7956
  %7958 = vdwg.mxu0
  %v7959 = vld [vmem:[#allocation3 + $0x2] sm:$0xff]
  %v7960 = vld [vmem:[#allocation3 + $0xa] sm:$0xff]
  %v7961 = vld [vmem:[#allocation3 + $0x1a] sm:$0xff]
  %v7962 = vld [vmem:[#allocation3 + $0x22] sm:$0xff]
  %v7963 = vld [vmem:[#allocation3 + $0x32] sm:$0xff]
  %v7964 = vld [vmem:[#allocation3 + $0x3a] sm:$0xff]
  %v7965 = vld [vmem:[#allocation3 + $0x4a] sm:$0xff]
  %v7966 = vld [vmem:[#allocation3 + $0x52] sm:$0xff]
  %v7967 = vld [vmem:[#allocation3 + $0x62] sm:$0xff]
  %v7968 = vld [vmem:[#allocation3 + $0x6a] sm:$0xff]
  %v7969 = vld [vmem:[#allocation3 + $0x7a] sm:$0xff]
  %v7970 = vld [vmem:[#allocation3 + $0x82] sm:$0xff]
  %v7971 = vld [vmem:[#allocation3 + $0x92] sm:$0xff]
  %v7972 = vld [vmem:[#allocation3 + $0x9a] sm:$0xff]
  %v7973 = vld [vmem:[#allocation3 + $0xaa] sm:$0xff]
  %v7974 = vld [vmem:[#allocation3 + $0xb2] sm:$0xff]
  %v7975 = vld [vmem:[#allocation3 + $0xc2] sm:$0xff]
  %v7976 = vld [vmem:[#allocation3 + $0xca] sm:$0xff]
  %v7977 = vld [vmem:[#allocation3 + $0xda] sm:$0xff]
  %v7978 = vld [vmem:[#allocation3 + $0xe2] sm:$0xff]
  %v7979 = vld [vmem:[#allocation3 + $0xf2] sm:$0xff]
  %v7980 = vld [vmem:[#allocation3 + $0xfa] sm:$0xff]
  %v7981 = vld [vmem:[#allocation3 + $0x10a] sm:$0xff]
  %v7982 = vld [vmem:[#allocation3 + $0x112] sm:$0xff]
  %v7983 = vld [vmem:[#allocation3 + $0x122] sm:$0xff]
  %v7984 = vld [vmem:[#allocation3 + $0x12a] sm:$0xff]
  %v7985 = vld [vmem:[#allocation3 + $0x13a] sm:$0xff]
  %v7986 = vld [vmem:[#allocation3 + $0x142] sm:$0xff]
  %v7987 = vld [vmem:[#allocation3 + $0x152] sm:$0xff]
  %v7988 = vld [vmem:[#allocation3 + $0x15a] sm:$0xff]
  %v7989 = vld [vmem:[#allocation3 + $0x16a] sm:$0xff]
  %v7990 = vld [vmem:[#allocation3 + $0x172] sm:$0xff]
  %v7991 = vld [vmem:[#allocation3 + $0x1b2] sm:$0xff]
  %v7992 = vld [vmem:[#allocation3 + $0x1ba] sm:$0xff]
  %v7993 = vld [vmem:[#allocation3 + $0x1ca] sm:$0xff]
  %v7994 = vld [vmem:[#allocation3 + $0x1d2] sm:$0xff]
  %v7995 = vld [vmem:[#allocation3 + $0x1e2] sm:$0xff]
  %v7996 = vld [vmem:[#allocation3 + $0x1ea] sm:$0xff]
  %v7997 = vld [vmem:[#allocation3 + $0x1fa] sm:$0xff]
  %v7998 = vld [vmem:[#allocation3 + $0x202] sm:$0xff]
  %v7999 = vld [vmem:[#allocation3 + $0x212] sm:$0xff]
  %v8000 = vld [vmem:[#allocation3 + $0x21a] sm:$0xff]
  %v8001 = vld [vmem:[#allocation3 + $0x22a] sm:$0xff]
  %v8002 = vld [vmem:[#allocation3 + $0x232] sm:$0xff]
  %v8003 = vld [vmem:[#allocation3 + $0x242] sm:$0xff]
  %v8004 = vld [vmem:[#allocation3 + $0x24a] sm:$0xff]
  %v8005 = vld [vmem:[#allocation3 + $0x25a] sm:$0xff]
  %v8006 = vld [vmem:[#allocation3 + $0x262] sm:$0xff]
  %v8007 = vld [vmem:[#allocation3 + $0x272] sm:$0xff]
  %v8008 = vld [vmem:[#allocation3 + $0x27a] sm:$0xff]
  %v8009 = vld [vmem:[#allocation3 + $0x28a] sm:$0xff]
  %v8010 = vld [vmem:[#allocation3 + $0x292] sm:$0xff]
  %v8011 = vld [vmem:[#allocation3 + $0x2a2] sm:$0xff]
  %v8012 = vld [vmem:[#allocation3 + $0x2aa] sm:$0xff]
  %v8013 = vld [vmem:[#allocation3 + $0x2ba] sm:$0xff]
  %v8014 = vld [vmem:[#allocation3 + $0x2c2] sm:$0xff]
  %v8015 = vld [vmem:[#allocation3 + $0x2d2] sm:$0xff]
  %v8016 = vld [vmem:[#allocation3 + $0x2da] sm:$0xff]
  %v8017 = vld [vmem:[#allocation3 + $0x2ea] sm:$0xff]
  %v8018 = vld [vmem:[#allocation3 + $0x2f2] sm:$0xff]
  %v8019 = vld [vmem:[#allocation3 + $0x302] sm:$0xff]
  %v8020 = vld [vmem:[#allocation3 + $0x30a] sm:$0xff]
  %v8021 = vld [vmem:[#allocation3 + $0x31a] sm:$0xff]
  %v8022 = vld [vmem:[#allocation3 + $0x322] sm:$0xff]
  %v8023 = vpack.c.bf16 %v7960, %v7959
  %v8024 = vpack.c.bf16 %v7962, %v7961
  %v8025 = vpack.c.bf16 %v7964, %v7963
  %v8026 = vpack.c.bf16 %v7966, %v7965
  %v8027 = vpack.c.bf16 %v7968, %v7967
  %v8028 = vpack.c.bf16 %v7970, %v7969
  %v8029 = vpack.c.bf16 %v7972, %v7971
  %v8030 = vpack.c.bf16 %v7974, %v7973
  %v8031 = vpack.c.bf16 %v7976, %v7975
  %v8032 = vpack.c.bf16 %v7978, %v7977
  %v8033 = vpack.c.bf16 %v7980, %v7979
  %v8034 = vpack.c.bf16 %v7982, %v7981
  %v8035 = vpack.c.bf16 %v7984, %v7983
  %v8036 = vpack.c.bf16 %v7986, %v7985
  %v8037 = vpack.c.bf16 %v7988, %v7987
  %v8038 = vpack.c.bf16 %v7990, %v7989
  %v8039 = vpack.c.bf16 %v7992, %v7991
  %v8040 = vpack.c.bf16 %v7994, %v7993
  %v8041 = vpack.c.bf16 %v7996, %v7995
  %v8042 = vpack.c.bf16 %v7998, %v7997
  %v8043 = vpack.c.bf16 %v8000, %v7999
  %v8044 = vpack.c.bf16 %v8002, %v8001
  %v8045 = vpack.c.bf16 %v8004, %v8003
  %v8046 = vpack.c.bf16 %v8006, %v8005
  %v8047 = vpack.c.bf16 %v8008, %v8007
  %v8048 = vpack.c.bf16 %v8010, %v8009
  %v8049 = vpack.c.bf16 %v8012, %v8011
  %v8050 = vpack.c.bf16 %v8014, %v8013
  %v8051 = vpack.c.bf16 %v8016, %v8015
  %v8052 = vpack.c.bf16 %v8018, %v8017
  %v8053 = vpack.c.bf16 %v8020, %v8019
  %v8054 = vpack.c.bf16 %v8022, %v8021
  %v8055 = vld [vmem:[%s4 + $0x80] sm:$0xf]
  %v8056 = vld [vmem:[%s4 + $0x84] sm:$0xf]
  %v8057 = vld [vmem:[%s4 + $0x88] sm:$0xf]
  %v8058 = vld [vmem:[%s4 + $0x8c] sm:$0xf]
  %v8059 = vld [vmem:[%s4 + $0x90] sm:$0xf]
  %v8060 = vld [vmem:[%s4 + $0x94] sm:$0xf]
  %v8061 = vld [vmem:[%s4 + $0x98] sm:$0xf]
  %v8062 = vld [vmem:[%s4 + $0x9c] sm:$0xf]
  %v8063 = vld [vmem:[%s4 + $0xa0] sm:$0xf]
  %v8064 = vld [vmem:[%s4 + $0xa4] sm:$0xf]
  %v8065 = vld [vmem:[%s4 + $0xa8] sm:$0xf]
  %v8066 = vld [vmem:[%s4 + $0xac] sm:$0xf]
  %v8067 = vld [vmem:[%s4 + $0xb0] sm:$0xf]
  %v8068 = vld [vmem:[%s4 + $0xb4] sm:$0xf]
  %v8069 = vld [vmem:[%s4 + $0xb8] sm:$0xf]
  %v8070 = vld [vmem:[%s4 + $0xbc] sm:$0xf]
  %v8087 = vunpack.c.l.b16 %v8055
  %v8088 = vunpack.c.l.b16 %v8056
  %v8089 = vunpack.c.l.b16 %v8057
  %v8090 = vunpack.c.l.b16 %v8058
  %v8091 = vunpack.c.l.b16 %v8059
  %v8092 = vunpack.c.l.b16 %v8060
  %v8093 = vunpack.c.l.b16 %v8061
  %v8094 = vunpack.c.l.b16 %v8062
  %v8095 = vunpack.c.l.b16 %v8063
  %v8096 = vunpack.c.l.b16 %v8064
  %v8097 = vunpack.c.l.b16 %v8065
  %v8098 = vunpack.c.l.b16 %v8066
  %v8099 = vunpack.c.l.b16 %v8067
  %v8100 = vunpack.c.l.b16 %v8068
  %v8101 = vunpack.c.l.b16 %v8069
  %v8102 = vunpack.c.l.b16 %v8070
  %v8103 = vpack.c.b16 %v8088, %v8087
  %v8104 = vpack.c.b16 %v8090, %v8089
  %v8105 = vpack.c.b16 %v8092, %v8091
  %v8106 = vpack.c.b16 %v8094, %v8093
  %v8107 = vpack.c.b16 %v8096, %v8095
  %v8108 = vpack.c.b16 %v8098, %v8097
  %v8109 = vpack.c.b16 %v8100, %v8099
  %v8110 = vpack.c.b16 %v8102, %v8101
  %8119 = vmatpush.bf16.msra.mxu0 %v8110
  %8120 = vmatpush.bf16.msra.mxu0 %v8109
  %8121 = vmatpush.bf16.msra.mxu0 %v8108
  %8122 = vmatpush.bf16.msra.mxu0 %v8107
  %8123 = vmatpush.bf16.msra.mxu0 %v8106
  %8124 = vmatpush.bf16.msra.mxu0 %v8105
  %8125 = vmatpush.bf16.msra.mxu0 %v8104
  %8126 = vmatpush.bf16.msra.mxu0 %v8103
  %8127 = vmatmul.bf16.gmra.mxu0 %v8023
  %v8128 = vpop.f32.mrf.mxu0
  %v8129 = vadd.f32 0.0, %v8128
  %v8130 = vpop.f32.mrf.mxu0
  %v8131 = vadd.f32 0.0, %v8130
  %8132 = vmatmul.bf16.gmra.mxu0 %v8024
  %v8133 = vpop.f32.mrf.mxu0
  %v8134 = vadd.f32 0.0, %v8133
  %v8135 = vpop.f32.mrf.mxu0
  %v8136 = vadd.f32 0.0, %v8135
  %8137 = vmatmul.bf16.gmra.mxu0 %v8025
  %v8138 = vpop.f32.mrf.mxu0
  %v8139 = vadd.f32 0.0, %v8138
  %v8140 = vpop.f32.mrf.mxu0
  %v8141 = vadd.f32 0.0, %v8140
  %8142 = vmatmul.bf16.gmra.mxu0 %v8026
  %v8143 = vpop.f32.mrf.mxu0
  %v8144 = vadd.f32 0.0, %v8143
  %v8145 = vpop.f32.mrf.mxu0
  %v8146 = vadd.f32 0.0, %v8145
  %8147 = vmatmul.bf16.gmra.mxu0 %v8027
  %v8148 = vpop.f32.mrf.mxu0
  %v8149 = vadd.f32 0.0, %v8148
  %v8150 = vpop.f32.mrf.mxu0
  %v8151 = vadd.f32 0.0, %v8150
  %8152 = vmatmul.bf16.gmra.mxu0 %v8028
  %v8153 = vpop.f32.mrf.mxu0
  %v8154 = vadd.f32 0.0, %v8153
  %v8155 = vpop.f32.mrf.mxu0
  %v8156 = vadd.f32 0.0, %v8155
  %8157 = vmatmul.bf16.gmra.mxu0 %v8029
  %v8158 = vpop.f32.mrf.mxu0
  %v8159 = vadd.f32 0.0, %v8158
  %v8160 = vpop.f32.mrf.mxu0
  %v8161 = vadd.f32 0.0, %v8160
  %8162 = vmatmul.bf16.gmra.mxu0 %v8030
  %v8163 = vpop.f32.mrf.mxu0
  %v8164 = vadd.f32 0.0, %v8163
  %v8165 = vpop.f32.mrf.mxu0
  %v8166 = vadd.f32 0.0, %v8165
  %8167 = vmatmul.bf16.gmra.mxu0 %v8031
  %v8168 = vpop.f32.mrf.mxu0
  %v8169 = vadd.f32 0.0, %v8168
  %v8170 = vpop.f32.mrf.mxu0
  %v8171 = vadd.f32 0.0, %v8170
  %8172 = vmatmul.bf16.gmra.mxu0 %v8032
  %v8173 = vpop.f32.mrf.mxu0
  %v8174 = vadd.f32 0.0, %v8173
  %v8175 = vpop.f32.mrf.mxu0
  %v8176 = vadd.f32 0.0, %v8175
  %8177 = vmatmul.bf16.gmra.mxu0 %v8033
  %v8178 = vpop.f32.mrf.mxu0
  %v8179 = vadd.f32 0.0, %v8178
  %v8180 = vpop.f32.mrf.mxu0
  %v8181 = vadd.f32 0.0, %v8180
  %8182 = vmatmul.bf16.gmra.mxu0 %v8034
  %v8183 = vpop.f32.mrf.mxu0
  %v8184 = vadd.f32 0.0, %v8183
  %v8185 = vpop.f32.mrf.mxu0
  %v8186 = vadd.f32 0.0, %v8185
  %8187 = vmatmul.bf16.gmra.mxu0 %v8035
  %v8188 = vpop.f32.mrf.mxu0
  %v8189 = vadd.f32 0.0, %v8188
  %v8190 = vpop.f32.mrf.mxu0
  %v8191 = vadd.f32 0.0, %v8190
  %8192 = vmatmul.bf16.gmra.mxu0 %v8036
  %v8193 = vpop.f32.mrf.mxu0
  %v8194 = vadd.f32 0.0, %v8193
  %v8195 = vpop.f32.mrf.mxu0
  %v8196 = vadd.f32 0.0, %v8195
  %8197 = vmatmul.bf16.gmra.mxu0 %v8037
  %v8198 = vpop.f32.mrf.mxu0
  %v8199 = vadd.f32 0.0, %v8198
  %v8200 = vpop.f32.mrf.mxu0
  %v8201 = vadd.f32 0.0, %v8200
  %8202 = vmatmul.bf16.gmra.mxu0 %v8038
  %v8203 = vpop.f32.mrf.mxu0
  %v8204 = vadd.f32 0.0, %v8203
  %v8205 = vpop.f32.mrf.mxu0
  %v8206 = vadd.f32 0.0, %v8205
  %8207 = vmatmul.bf16.gmra.mxu0 %v8039
  %v8208 = vpop.f32.mrf.mxu0
  %v8209 = vadd.f32 0.0, %v8208
  %v8210 = vpop.f32.mrf.mxu0
  %v8211 = vadd.f32 0.0, %v8210
  %8212 = vmatmul.bf16.gmra.mxu0 %v8040
  %v8213 = vpop.f32.mrf.mxu0
  %v8214 = vadd.f32 0.0, %v8213
  %v8215 = vpop.f32.mrf.mxu0
  %v8216 = vadd.f32 0.0, %v8215
  %8217 = vmatmul.bf16.gmra.mxu0 %v8041
  %v8218 = vpop.f32.mrf.mxu0
  %v8219 = vadd.f32 0.0, %v8218
  %v8220 = vpop.f32.mrf.mxu0
  %v8221 = vadd.f32 0.0, %v8220
  %8222 = vmatmul.bf16.gmra.mxu0 %v8042
  %v8223 = vpop.f32.mrf.mxu0
  %v8224 = vadd.f32 0.0, %v8223
  %v8225 = vpop.f32.mrf.mxu0
  %v8226 = vadd.f32 0.0, %v8225
  %8227 = vmatmul.bf16.gmra.mxu0 %v8043
  %v8228 = vpop.f32.mrf.mxu0
  %v8229 = vadd.f32 0.0, %v8228
  %v8230 = vpop.f32.mrf.mxu0
  %v8231 = vadd.f32 0.0, %v8230
  %8232 = vmatmul.bf16.gmra.mxu0 %v8044
  %v8233 = vpop.f32.mrf.mxu0
  %v8234 = vadd.f32 0.0, %v8233
  %v8235 = vpop.f32.mrf.mxu0
  %v8236 = vadd.f32 0.0, %v8235
  %8237 = vmatmul.bf16.gmra.mxu0 %v8045
  %v8238 = vpop.f32.mrf.mxu0
  %v8239 = vadd.f32 0.0, %v8238
  %v8240 = vpop.f32.mrf.mxu0
  %v8241 = vadd.f32 0.0, %v8240
  %8242 = vmatmul.bf16.gmra.mxu0 %v8046
  %v8243 = vpop.f32.mrf.mxu0
  %v8244 = vadd.f32 0.0, %v8243
  %v8245 = vpop.f32.mrf.mxu0
  %v8246 = vadd.f32 0.0, %v8245
  %8247 = vmatmul.bf16.gmra.mxu0 %v8047
  %v8248 = vpop.f32.mrf.mxu0
  %v8249 = vadd.f32 0.0, %v8248
  %v8250 = vpop.f32.mrf.mxu0
  %v8251 = vadd.f32 0.0, %v8250
  %8252 = vmatmul.bf16.gmra.mxu0 %v8048
  %v8253 = vpop.f32.mrf.mxu0
  %v8254 = vadd.f32 0.0, %v8253
  %v8255 = vpop.f32.mrf.mxu0
  %v8256 = vadd.f32 0.0, %v8255
  %8257 = vmatmul.bf16.gmra.mxu0 %v8049
  %v8258 = vpop.f32.mrf.mxu0
  %v8259 = vadd.f32 0.0, %v8258
  %v8260 = vpop.f32.mrf.mxu0
  %v8261 = vadd.f32 0.0, %v8260
  %8262 = vmatmul.bf16.gmra.mxu0 %v8050
  %v8263 = vpop.f32.mrf.mxu0
  %v8264 = vadd.f32 0.0, %v8263
  %v8265 = vpop.f32.mrf.mxu0
  %v8266 = vadd.f32 0.0, %v8265
  %8267 = vmatmul.bf16.gmra.mxu0 %v8051
  %v8268 = vpop.f32.mrf.mxu0
  %v8269 = vadd.f32 0.0, %v8268
  %v8270 = vpop.f32.mrf.mxu0
  %v8271 = vadd.f32 0.0, %v8270
  %8272 = vmatmul.bf16.gmra.mxu0 %v8052
  %v8273 = vpop.f32.mrf.mxu0
  %v8274 = vadd.f32 0.0, %v8273
  %v8275 = vpop.f32.mrf.mxu0
  %v8276 = vadd.f32 0.0, %v8275
  %8277 = vmatmul.bf16.gmra.mxu0 %v8053
  %v8278 = vpop.f32.mrf.mxu0
  %v8279 = vadd.f32 0.0, %v8278
  %v8280 = vpop.f32.mrf.mxu0
  %v8281 = vadd.f32 0.0, %v8280
  %8282 = vmatmul.bf16.gmra.mxu0 %v8054
  %v8283 = vpop.f32.mrf.mxu0
  %v8284 = vadd.f32 0.0, %v8283
  %v8285 = vpop.f32.mrf.mxu0
  %v8286 = vadd.f32 0.0, %v8285
  %8287 = vdwg.mxu0
  %v8288 = vadd.f32 %v7800, %v8129
  %v8289 = vadd.f32 %v7802, %v8131
  %v8290 = vadd.f32 %v7805, %v8134
  %v8291 = vadd.f32 %v7807, %v8136
  %v8292 = vadd.f32 %v7810, %v8139
  %v8293 = vadd.f32 %v7812, %v8141
  %v8294 = vadd.f32 %v7815, %v8144
  %v8295 = vadd.f32 %v7817, %v8146
  %v8296 = vadd.f32 %v7820, %v8149
  %v8297 = vadd.f32 %v7822, %v8151
  %v8298 = vadd.f32 %v7825, %v8154
  %v8299 = vadd.f32 %v7827, %v8156
  %v8300 = vadd.f32 %v7830, %v8159
  %v8301 = vadd.f32 %v7832, %v8161
  %v8302 = vadd.f32 %v7835, %v8164
  %v8303 = vadd.f32 %v7837, %v8166
  %v8304 = vadd.f32 %v7840, %v8169
  %v8305 = vadd.f32 %v7842, %v8171
  %v8306 = vadd.f32 %v7845, %v8174
  %v8307 = vadd.f32 %v7847, %v8176
  %v8308 = vadd.f32 %v7850, %v8179
  %v8309 = vadd.f32 %v7852, %v8181
  %v8310 = vadd.f32 %v7855, %v8184
  %v8311 = vadd.f32 %v7857, %v8186
  %v8312 = vadd.f32 %v7860, %v8189
  %v8313 = vadd.f32 %v7862, %v8191
  %v8314 = vadd.f32 %v7865, %v8194
  %v8315 = vadd.f32 %v7867, %v8196
  %v8316 = vadd.f32 %v7870, %v8199
  %v8317 = vadd.f32 %v7872, %v8201
  %v8318 = vadd.f32 %v7875, %v8204
  %v8319 = vadd.f32 %v7877, %v8206
  %v8320 = vadd.f32 %v7880, %v8209
  %v8321 = vadd.f32 %v7882, %v8211
  %v8322 = vadd.f32 %v7885, %v8214
  %v8323 = vadd.f32 %v7887, %v8216
  %v8324 = vadd.f32 %v7890, %v8219
  %v8325 = vadd.f32 %v7892, %v8221
  %v8326 = vadd.f32 %v7895, %v8224
  %v8327 = vadd.f32 %v7897, %v8226
  %v8328 = vadd.f32 %v7900, %v8229
  %v8329 = vadd.f32 %v7902, %v8231
  %v8330 = vadd.f32 %v7905, %v8234
  %v8331 = vadd.f32 %v7907, %v8236
  %v8332 = vadd.f32 %v7910, %v8239
  %v8333 = vadd.f32 %v7912, %v8241
  %v8334 = vadd.f32 %v7915, %v8244
  %v8335 = vadd.f32 %v7917, %v8246
  %v8336 = vadd.f32 %v7920, %v8249
  %v8337 = vadd.f32 %v7922, %v8251
  %v8338 = vadd.f32 %v7925, %v8254
  %v8339 = vadd.f32 %v7927, %v8256
  %v8340 = vadd.f32 %v7930, %v8259
  %v8341 = vadd.f32 %v7932, %v8261
  %v8342 = vadd.f32 %v7935, %v8264
  %v8343 = vadd.f32 %v7937, %v8266
  %v8344 = vadd.f32 %v7940, %v8269
  %v8345 = vadd.f32 %v7942, %v8271
  %v8346 = vadd.f32 %v7945, %v8274
  %v8347 = vadd.f32 %v7947, %v8276
  %v8348 = vadd.f32 %v7950, %v8279
  %v8349 = vadd.f32 %v7952, %v8281
  %v8350 = vadd.f32 %v7955, %v8284
  %v8351 = vadd.f32 %v7957, %v8286
  %v8352 = vld [vmem:[%s2832] sm:$0xff]
  %v8353 = vld [vmem:[%s2832 + $0x8] sm:$0xff]
  %v8354 = vld [vmem:[%s2832 + $0x18] sm:$0xff]
  %v8355 = vld [vmem:[%s2832 + $0x20] sm:$0xff]
  %v8356 = vld [vmem:[%s2832 + $0x30] sm:$0xff]
  %v8357 = vld [vmem:[%s2832 + $0x38] sm:$0xff]
  %v8358 = vld [vmem:[%s2832 + $0x48] sm:$0xff]
  %v8359 = vld [vmem:[%s2832 + $0x50] sm:$0xff]
  %v8360 = vld [vmem:[%s2832 + $0x60] sm:$0xff]
  %v8361 = vld [vmem:[%s2832 + $0x68] sm:$0xff]
  %v8362 = vld [vmem:[%s2832 + $0x78] sm:$0xff]
  %v8363 = vld [vmem:[%s2832 + $0x80] sm:$0xff]
  %v8364 = vld [vmem:[%s2832 + $0x90] sm:$0xff]
  %v8365 = vld [vmem:[%s2832 + $0x98] sm:$0xff]
  %v8366 = vld [vmem:[%s2832 + $0xa8] sm:$0xff]
  %v8367 = vld [vmem:[%s2832 + $0xb0] sm:$0xff]
  %v8368 = vld [vmem:[%s2832 + $0xc0] sm:$0xff]
  %v8369 = vld [vmem:[%s2832 + $0xc8] sm:$0xff]
  %v8370 = vld [vmem:[%s2832 + $0xd8] sm:$0xff]
  %v8371 = vld [vmem:[%s2832 + $0xe0] sm:$0xff]
  %v8372 = vld [vmem:[%s2832 + $0xf0] sm:$0xff]
  %v8373 = vld [vmem:[%s2832 + $0xf8] sm:$0xff]
  %v8374 = vld [vmem:[%s2832 + $0x108] sm:$0xff]
  %v8375 = vld [vmem:[%s2832 + $0x110] sm:$0xff]
  %v8376 = vld [vmem:[%s2832 + $0x120] sm:$0xff]
  %v8377 = vld [vmem:[%s2832 + $0x128] sm:$0xff]
  %v8378 = vld [vmem:[%s2832 + $0x138] sm:$0xff]
  %v8379 = vld [vmem:[%s2832 + $0x140] sm:$0xff]
  %v8380 = vld [vmem:[%s2832 + $0x150] sm:$0xff]
  %v8381 = vld [vmem:[%s2832 + $0x158] sm:$0xff]
  %v8382 = vld [vmem:[%s2832 + $0x168] sm:$0xff]
  %v8383 = vld [vmem:[%s2832 + $0x170] sm:$0xff]
  %v8384 = vld [vmem:[%s2832 + $0x1b0] sm:$0xff]
  %v8385 = vld [vmem:[%s2832 + $0x1b8] sm:$0xff]
  %v8386 = vld [vmem:[%s2832 + $0x1c8] sm:$0xff]
  %v8387 = vld [vmem:[%s2832 + $0x1d0] sm:$0xff]
  %v8388 = vld [vmem:[%s2832 + $0x1e0] sm:$0xff]
  %v8389 = vld [vmem:[%s2832 + $0x1e8] sm:$0xff]
  %v8390 = vld [vmem:[%s2832 + $0x1f8] sm:$0xff]
  %v8391 = vld [vmem:[%s2832 + $0x200] sm:$0xff]
  %v8392 = vld [vmem:[%s2832 + $0x210] sm:$0xff]
  %v8393 = vld [vmem:[%s2832 + $0x218] sm:$0xff]
  %v8394 = vld [vmem:[%s2832 + $0x228] sm:$0xff]
  %v8395 = vld [vmem:[%s2832 + $0x230] sm:$0xff]
  %v8396 = vld [vmem:[%s2832 + $0x240] sm:$0xff]
  %v8397 = vld [vmem:[%s2832 + $0x248] sm:$0xff]
  %v8398 = vld [vmem:[%s2832 + $0x258] sm:$0xff]
  %v8399 = vld [vmem:[%s2832 + $0x260] sm:$0xff]
  %v8400 = vld [vmem:[%s2832 + $0x270] sm:$0xff]
  %v8401 = vld [vmem:[%s2832 + $0x278] sm:$0xff]
  %v8402 = vld [vmem:[%s2832 + $0x288] sm:$0xff]
  %v8403 = vld [vmem:[%s2832 + $0x290] sm:$0xff]
  %v8404 = vld [vmem:[%s2832 + $0x2a0] sm:$0xff]
  %v8405 = vld [vmem:[%s2832 + $0x2a8] sm:$0xff]
  %v8406 = vld [vmem:[%s2832 + $0x2b8] sm:$0xff]
  %v8407 = vld [vmem:[%s2832 + $0x2c0] sm:$0xff]
  %v8408 = vld [vmem:[%s2832 + $0x2d0] sm:$0xff]
  %v8409 = vld [vmem:[%s2832 + $0x2d8] sm:$0xff]
  %v8410 = vld [vmem:[%s2832 + $0x2e8] sm:$0xff]
  %v8411 = vld [vmem:[%s2832 + $0x2f0] sm:$0xff]
  %v8412 = vld [vmem:[%s2832 + $0x300] sm:$0xff]
  %v8413 = vld [vmem:[%s2832 + $0x308] sm:$0xff]
  %v8414 = vld [vmem:[%s2832 + $0x318] sm:$0xff]
  %v8415 = vld [vmem:[%s2832 + $0x320] sm:$0xff]
  %v8416 = vpack.c.bf16 %v8353, %v8352
  %v8417 = vpack.c.bf16 %v8355, %v8354
  %v8418 = vpack.c.bf16 %v8357, %v8356
  %v8419 = vpack.c.bf16 %v8359, %v8358
  %v8420 = vpack.c.bf16 %v8361, %v8360
  %v8421 = vpack.c.bf16 %v8363, %v8362
  %v8422 = vpack.c.bf16 %v8365, %v8364
  %v8423 = vpack.c.bf16 %v8367, %v8366
  %v8424 = vpack.c.bf16 %v8369, %v8368
  %v8425 = vpack.c.bf16 %v8371, %v8370
  %v8426 = vpack.c.bf16 %v8373, %v8372
  %v8427 = vpack.c.bf16 %v8375, %v8374
  %v8428 = vpack.c.bf16 %v8377, %v8376
  %v8429 = vpack.c.bf16 %v8379, %v8378
  %v8430 = vpack.c.bf16 %v8381, %v8380
  %v8431 = vpack.c.bf16 %v8383, %v8382
  %v8432 = vpack.c.bf16 %v8385, %v8384
  %v8433 = vpack.c.bf16 %v8387, %v8386
  %v8434 = vpack.c.bf16 %v8389, %v8388
  %v8435 = vpack.c.bf16 %v8391, %v8390
  %v8436 = vpack.c.bf16 %v8393, %v8392
  %v8437 = vpack.c.bf16 %v8395, %v8394
  %v8438 = vpack.c.bf16 %v8397, %v8396
  %v8439 = vpack.c.bf16 %v8399, %v8398
  %v8440 = vpack.c.bf16 %v8401, %v8400
  %v8441 = vpack.c.bf16 %v8403, %v8402
  %v8442 = vpack.c.bf16 %v8405, %v8404
  %v8443 = vpack.c.bf16 %v8407, %v8406
  %v8444 = vpack.c.bf16 %v8409, %v8408
  %v8445 = vpack.c.bf16 %v8411, %v8410
  %v8446 = vpack.c.bf16 %v8413, %v8412
  %v8447 = vpack.c.bf16 %v8415, %v8414
  %v8448 = vld [vmem:[%s4 + $0xc0] sm:$0xf]
  %v8449 = vld [vmem:[%s4 + $0xc4] sm:$0xf]
  %v8450 = vld [vmem:[%s4 + $0xc8] sm:$0xf]
  %v8451 = vld [vmem:[%s4 + $0xcc] sm:$0xf]
  %v8452 = vld [vmem:[%s4 + $0xd0] sm:$0xf]
  %v8453 = vld [vmem:[%s4 + $0xd4] sm:$0xf]
  %v8454 = vld [vmem:[%s4 + $0xd8] sm:$0xf]
  %v8455 = vld [vmem:[%s4 + $0xdc] sm:$0xf]
  %v8456 = vld [vmem:[%s4 + $0xe0] sm:$0xf]
  %v8457 = vld [vmem:[%s4 + $0xe4] sm:$0xf]
  %v8458 = vld [vmem:[%s4 + $0xe8] sm:$0xf]
  %v8459 = vld [vmem:[%s4 + $0xec] sm:$0xf]
  %v8460 = vld [vmem:[%s4 + $0xf0] sm:$0xf]
  %v8461 = vld [vmem:[%s4 + $0xf4] sm:$0xf]
  %v8462 = vld [vmem:[%s4 + $0xf8] sm:$0xf]
  %v8463 = vld [vmem:[%s4 + $0xfc] sm:$0xf]
  %v8480 = vunpack.c.l.b16 %v8448
  %v8481 = vunpack.c.l.b16 %v8449
  %v8482 = vunpack.c.l.b16 %v8450
  %v8483 = vunpack.c.l.b16 %v8451
  %v8484 = vunpack.c.l.b16 %v8452
  %v8485 = vunpack.c.l.b16 %v8453
  %v8486 = vunpack.c.l.b16 %v8454
  %v8487 = vunpack.c.l.b16 %v8455
  %v8488 = vunpack.c.l.b16 %v8456
  %v8489 = vunpack.c.l.b16 %v8457
  %v8490 = vunpack.c.l.b16 %v8458
  %v8491 = vunpack.c.l.b16 %v8459
  %v8492 = vunpack.c.l.b16 %v8460
  %v8493 = vunpack.c.l.b16 %v8461
  %v8494 = vunpack.c.l.b16 %v8462
  %v8495 = vunpack.c.l.b16 %v8463
  %v8496 = vpack.c.b16 %v8481, %v8480
  %v8497 = vpack.c.b16 %v8483, %v8482
  %v8498 = vpack.c.b16 %v8485, %v8484
  %v8499 = vpack.c.b16 %v8487, %v8486
  %v8500 = vpack.c.b16 %v8489, %v8488
  %v8501 = vpack.c.b16 %v8491, %v8490
  %v8502 = vpack.c.b16 %v8493, %v8492
  %v8503 = vpack.c.b16 %v8495, %v8494
  %8512 = vmatpush.bf16.msra.mxu0 %v8503
  %8513 = vmatpush.bf16.msra.mxu0 %v8502
  %8514 = vmatpush.bf16.msra.mxu0 %v8501
  %8515 = vmatpush.bf16.msra.mxu0 %v8500
  %8516 = vmatpush.bf16.msra.mxu0 %v8499
  %8517 = vmatpush.bf16.msra.mxu0 %v8498
  %8518 = vmatpush.bf16.msra.mxu0 %v8497
  %8519 = vmatpush.bf16.msra.mxu0 %v8496
  %8520 = vmatmul.bf16.gmra.mxu0 %v8416
  %v8521 = vpop.f32.mrf.mxu0
  %v8522 = vadd.f32 0.0, %v8521
  %v8523 = vpop.f32.mrf.mxu0
  %v8524 = vadd.f32 0.0, %v8523
  %8525 = vmatmul.bf16.gmra.mxu0 %v8417
  %v8526 = vpop.f32.mrf.mxu0
  %v8527 = vadd.f32 0.0, %v8526
  %v8528 = vpop.f32.mrf.mxu0
  %v8529 = vadd.f32 0.0, %v8528
  %8530 = vmatmul.bf16.gmra.mxu0 %v8418
  %v8531 = vpop.f32.mrf.mxu0
  %v8532 = vadd.f32 0.0, %v8531
  %v8533 = vpop.f32.mrf.mxu0
  %v8534 = vadd.f32 0.0, %v8533
  %8535 = vmatmul.bf16.gmra.mxu0 %v8419
  %v8536 = vpop.f32.mrf.mxu0
  %v8537 = vadd.f32 0.0, %v8536
  %v8538 = vpop.f32.mrf.mxu0
  %v8539 = vadd.f32 0.0, %v8538
  %8540 = vmatmul.bf16.gmra.mxu0 %v8420
  %v8541 = vpop.f32.mrf.mxu0
  %v8542 = vadd.f32 0.0, %v8541
  %v8543 = vpop.f32.mrf.mxu0
  %v8544 = vadd.f32 0.0, %v8543
  %8545 = vmatmul.bf16.gmra.mxu0 %v8421
  %v8546 = vpop.f32.mrf.mxu0
  %v8547 = vadd.f32 0.0, %v8546
  %v8548 = vpop.f32.mrf.mxu0
  %v8549 = vadd.f32 0.0, %v8548
  %8550 = vmatmul.bf16.gmra.mxu0 %v8422
  %v8551 = vpop.f32.mrf.mxu0
  %v8552 = vadd.f32 0.0, %v8551
  %v8553 = vpop.f32.mrf.mxu0
  %v8554 = vadd.f32 0.0, %v8553
  %8555 = vmatmul.bf16.gmra.mxu0 %v8423
  %v8556 = vpop.f32.mrf.mxu0
  %v8557 = vadd.f32 0.0, %v8556
  %v8558 = vpop.f32.mrf.mxu0
  %v8559 = vadd.f32 0.0, %v8558
  %8560 = vmatmul.bf16.gmra.mxu0 %v8424
  %v8561 = vpop.f32.mrf.mxu0
  %v8562 = vadd.f32 0.0, %v8561
  %v8563 = vpop.f32.mrf.mxu0
  %v8564 = vadd.f32 0.0, %v8563
  %8565 = vmatmul.bf16.gmra.mxu0 %v8425
  %v8566 = vpop.f32.mrf.mxu0
  %v8567 = vadd.f32 0.0, %v8566
  %v8568 = vpop.f32.mrf.mxu0
  %v8569 = vadd.f32 0.0, %v8568
  %8570 = vmatmul.bf16.gmra.mxu0 %v8426
  %v8571 = vpop.f32.mrf.mxu0
  %v8572 = vadd.f32 0.0, %v8571
  %v8573 = vpop.f32.mrf.mxu0
  %v8574 = vadd.f32 0.0, %v8573
  %8575 = vmatmul.bf16.gmra.mxu0 %v8427
  %v8576 = vpop.f32.mrf.mxu0
  %v8577 = vadd.f32 0.0, %v8576
  %v8578 = vpop.f32.mrf.mxu0
  %v8579 = vadd.f32 0.0, %v8578
  %8580 = vmatmul.bf16.gmra.mxu0 %v8428
  %v8581 = vpop.f32.mrf.mxu0
  %v8582 = vadd.f32 0.0, %v8581
  %v8583 = vpop.f32.mrf.mxu0
  %v8584 = vadd.f32 0.0, %v8583
  %8585 = vmatmul.bf16.gmra.mxu0 %v8429
  %v8586 = vpop.f32.mrf.mxu0
  %v8587 = vadd.f32 0.0, %v8586
  %v8588 = vpop.f32.mrf.mxu0
  %v8589 = vadd.f32 0.0, %v8588
  %8590 = vmatmul.bf16.gmra.mxu0 %v8430
  %v8591 = vpop.f32.mrf.mxu0
  %v8592 = vadd.f32 0.0, %v8591
  %v8593 = vpop.f32.mrf.mxu0
  %v8594 = vadd.f32 0.0, %v8593
  %8595 = vmatmul.bf16.gmra.mxu0 %v8431
  %v8596 = vpop.f32.mrf.mxu0
  %v8597 = vadd.f32 0.0, %v8596
  %v8598 = vpop.f32.mrf.mxu0
  %v8599 = vadd.f32 0.0, %v8598
  %8600 = vmatmul.bf16.gmra.mxu0 %v8432
  %v8601 = vpop.f32.mrf.mxu0
  %v8602 = vadd.f32 0.0, %v8601
  %v8603 = vpop.f32.mrf.mxu0
  %v8604 = vadd.f32 0.0, %v8603
  %8605 = vmatmul.bf16.gmra.mxu0 %v8433
  %v8606 = vpop.f32.mrf.mxu0
  %v8607 = vadd.f32 0.0, %v8606
  %v8608 = vpop.f32.mrf.mxu0
  %v8609 = vadd.f32 0.0, %v8608
  %8610 = vmatmul.bf16.gmra.mxu0 %v8434
  %v8611 = vpop.f32.mrf.mxu0
  %v8612 = vadd.f32 0.0, %v8611
  %v8613 = vpop.f32.mrf.mxu0
  %v8614 = vadd.f32 0.0, %v8613
  %8615 = vmatmul.bf16.gmra.mxu0 %v8435
  %v8616 = vpop.f32.mrf.mxu0
  %v8617 = vadd.f32 0.0, %v8616
  %v8618 = vpop.f32.mrf.mxu0
  %v8619 = vadd.f32 0.0, %v8618
  %8620 = vmatmul.bf16.gmra.mxu0 %v8436
  %v8621 = vpop.f32.mrf.mxu0
  %v8622 = vadd.f32 0.0, %v8621
  %v8623 = vpop.f32.mrf.mxu0
  %v8624 = vadd.f32 0.0, %v8623
  %8625 = vmatmul.bf16.gmra.mxu0 %v8437
  %v8626 = vpop.f32.mrf.mxu0
  %v8627 = vadd.f32 0.0, %v8626
  %v8628 = vpop.f32.mrf.mxu0
  %v8629 = vadd.f32 0.0, %v8628
  %8630 = vmatmul.bf16.gmra.mxu0 %v8438
  %v8631 = vpop.f32.mrf.mxu0
  %v8632 = vadd.f32 0.0, %v8631
  %v8633 = vpop.f32.mrf.mxu0
  %v8634 = vadd.f32 0.0, %v8633
  %8635 = vmatmul.bf16.gmra.mxu0 %v8439
  %v8636 = vpop.f32.mrf.mxu0
  %v8637 = vadd.f32 0.0, %v8636
  %v8638 = vpop.f32.mrf.mxu0
  %v8639 = vadd.f32 0.0, %v8638
  %8640 = vmatmul.bf16.gmra.mxu0 %v8440
  %v8641 = vpop.f32.mrf.mxu0
  %v8642 = vadd.f32 0.0, %v8641
  %v8643 = vpop.f32.mrf.mxu0
  %v8644 = vadd.f32 0.0, %v8643
  %8645 = vmatmul.bf16.gmra.mxu0 %v8441
  %v8646 = vpop.f32.mrf.mxu0
  %v8647 = vadd.f32 0.0, %v8646
  %v8648 = vpop.f32.mrf.mxu0
  %v8649 = vadd.f32 0.0, %v8648
  %8650 = vmatmul.bf16.gmra.mxu0 %v8442
  %v8651 = vpop.f32.mrf.mxu0
  %v8652 = vadd.f32 0.0, %v8651
  %v8653 = vpop.f32.mrf.mxu0
  %v8654 = vadd.f32 0.0, %v8653
  %8655 = vmatmul.bf16.gmra.mxu0 %v8443
  %v8656 = vpop.f32.mrf.mxu0
  %v8657 = vadd.f32 0.0, %v8656
  %v8658 = vpop.f32.mrf.mxu0
  %v8659 = vadd.f32 0.0, %v8658
  %8660 = vmatmul.bf16.gmra.mxu0 %v8444
  %v8661 = vpop.f32.mrf.mxu0
  %v8662 = vadd.f32 0.0, %v8661
  %v8663 = vpop.f32.mrf.mxu0
  %v8664 = vadd.f32 0.0, %v8663
  %8665 = vmatmul.bf16.gmra.mxu0 %v8445
  %v8666 = vpop.f32.mrf.mxu0
  %v8667 = vadd.f32 0.0, %v8666
  %v8668 = vpop.f32.mrf.mxu0
  %v8669 = vadd.f32 0.0, %v8668
  %8670 = vmatmul.bf16.gmra.mxu0 %v8446
  %v8671 = vpop.f32.mrf.mxu0
  %v8672 = vadd.f32 0.0, %v8671
  %v8673 = vpop.f32.mrf.mxu0
  %v8674 = vadd.f32 0.0, %v8673
  %8675 = vmatmul.bf16.gmra.mxu0 %v8447
  %v8676 = vpop.f32.mrf.mxu0
  %v8677 = vadd.f32 0.0, %v8676
  %v8678 = vpop.f32.mrf.mxu0
  %v8679 = vadd.f32 0.0, %v8678
  %8680 = vdwg.mxu0
  %v8681 = vadd.f32 %v8288, %v8522
  %v8682 = vadd.f32 %v8289, %v8524
  %v8683 = vadd.f32 %v8290, %v8527
  %v8684 = vadd.f32 %v8291, %v8529
  %v8685 = vadd.f32 %v8292, %v8532
  %v8686 = vadd.f32 %v8293, %v8534
  %v8687 = vadd.f32 %v8294, %v8537
  %v8688 = vadd.f32 %v8295, %v8539
  %v8689 = vadd.f32 %v8296, %v8542
  %v8690 = vadd.f32 %v8297, %v8544
  %v8691 = vadd.f32 %v8298, %v8547
  %v8692 = vadd.f32 %v8299, %v8549
  %v8693 = vadd.f32 %v8300, %v8552
  %v8694 = vadd.f32 %v8301, %v8554
  %v8695 = vadd.f32 %v8302, %v8557
  %v8696 = vadd.f32 %v8303, %v8559
  %v8697 = vadd.f32 %v8304, %v8562
  %v8698 = vadd.f32 %v8305, %v8564
  %v8699 = vadd.f32 %v8306, %v8567
  %v8700 = vadd.f32 %v8307, %v8569
  %v8701 = vadd.f32 %v8308, %v8572
  %v8702 = vadd.f32 %v8309, %v8574
  %v8703 = vadd.f32 %v8310, %v8577
  %v8704 = vadd.f32 %v8311, %v8579
  %v8705 = vadd.f32 %v8312, %v8582
  %v8706 = vadd.f32 %v8313, %v8584
  %v8707 = vadd.f32 %v8314, %v8587
  %v8708 = vadd.f32 %v8315, %v8589
  %v8709 = vadd.f32 %v8316, %v8592
  %v8710 = vadd.f32 %v8317, %v8594
  %v8711 = vadd.f32 %v8318, %v8597
  %v8712 = vadd.f32 %v8319, %v8599
  %v8713 = vadd.f32 %v8320, %v8602
  %v8714 = vadd.f32 %v8321, %v8604
  %v8715 = vadd.f32 %v8322, %v8607
  %v8716 = vadd.f32 %v8323, %v8609
  %v8717 = vadd.f32 %v8324, %v8612
  %v8718 = vadd.f32 %v8325, %v8614
  %v8719 = vadd.f32 %v8326, %v8617
  %v8720 = vadd.f32 %v8327, %v8619
  %v8721 = vadd.f32 %v8328, %v8622
  %v8722 = vadd.f32 %v8329, %v8624
  %v8723 = vadd.f32 %v8330, %v8627
  %v8724 = vadd.f32 %v8331, %v8629
  %v8725 = vadd.f32 %v8332, %v8632
  %v8726 = vadd.f32 %v8333, %v8634
  %v8727 = vadd.f32 %v8334, %v8637
  %v8728 = vadd.f32 %v8335, %v8639
  %v8729 = vadd.f32 %v8336, %v8642
  %v8730 = vadd.f32 %v8337, %v8644
  %v8731 = vadd.f32 %v8338, %v8647
  %v8732 = vadd.f32 %v8339, %v8649
  %v8733 = vadd.f32 %v8340, %v8652
  %v8734 = vadd.f32 %v8341, %v8654
  %v8735 = vadd.f32 %v8342, %v8657
  %v8736 = vadd.f32 %v8343, %v8659
  %v8737 = vadd.f32 %v8344, %v8662
  %v8738 = vadd.f32 %v8345, %v8664
  %v8739 = vadd.f32 %v8346, %v8667
  %v8740 = vadd.f32 %v8347, %v8669
  %v8741 = vadd.f32 %v8348, %v8672
  %v8742 = vadd.f32 %v8349, %v8674
  %v8743 = vadd.f32 %v8350, %v8677
  %v8744 = vadd.f32 %v8351, %v8679
  %v8745 = vld [vmem:[%s2832 + $0x1] sm:$0xff]
  %v8746 = vld [vmem:[%s2832 + $0x9] sm:$0xff]
  %v8747 = vld [vmem:[%s2832 + $0x19] sm:$0xff]
  %v8748 = vld [vmem:[%s2832 + $0x21] sm:$0xff]
  %v8749 = vld [vmem:[%s2832 + $0x31] sm:$0xff]
  %v8750 = vld [vmem:[%s2832 + $0x39] sm:$0xff]
  %v8751 = vld [vmem:[%s2832 + $0x49] sm:$0xff]
  %v8752 = vld [vmem:[%s2832 + $0x51] sm:$0xff]
  %v8753 = vld [vmem:[%s2832 + $0x61] sm:$0xff]
  %v8754 = vld [vmem:[%s2832 + $0x69] sm:$0xff]
  %v8755 = vld [vmem:[%s2832 + $0x79] sm:$0xff]
  %v8756 = vld [vmem:[%s2832 + $0x81] sm:$0xff]
  %v8757 = vld [vmem:[%s2832 + $0x91] sm:$0xff]
  %v8758 = vld [vmem:[%s2832 + $0x99] sm:$0xff]
  %v8759 = vld [vmem:[%s2832 + $0xa9] sm:$0xff]
  %v8760 = vld [vmem:[%s2832 + $0xb1] sm:$0xff]
  %v8761 = vld [vmem:[%s2832 + $0xc1] sm:$0xff]
  %v8762 = vld [vmem:[%s2832 + $0xc9] sm:$0xff]
  %v8763 = vld [vmem:[%s2832 + $0xd9] sm:$0xff]
  %v8764 = vld [vmem:[%s2832 + $0xe1] sm:$0xff]
  %v8765 = vld [vmem:[%s2832 + $0xf1] sm:$0xff]
  %v8766 = vld [vmem:[%s2832 + $0xf9] sm:$0xff]
  %v8767 = vld [vmem:[%s2832 + $0x109] sm:$0xff]
  %v8768 = vld [vmem:[%s2832 + $0x111] sm:$0xff]
  %v8769 = vld [vmem:[%s2832 + $0x121] sm:$0xff]
  %v8770 = vld [vmem:[%s2832 + $0x129] sm:$0xff]
  %v8771 = vld [vmem:[%s2832 + $0x139] sm:$0xff]
  %v8772 = vld [vmem:[%s2832 + $0x141] sm:$0xff]
  %v8773 = vld [vmem:[%s2832 + $0x151] sm:$0xff]
  %v8774 = vld [vmem:[%s2832 + $0x159] sm:$0xff]
  %v8775 = vld [vmem:[%s2832 + $0x169] sm:$0xff]
  %v8776 = vld [vmem:[%s2832 + $0x171] sm:$0xff]
  %v8777 = vld [vmem:[%s2832 + $0x1b1] sm:$0xff]
  %v8778 = vld [vmem:[%s2832 + $0x1b9] sm:$0xff]
  %v8779 = vld [vmem:[%s2832 + $0x1c9] sm:$0xff]
  %v8780 = vld [vmem:[%s2832 + $0x1d1] sm:$0xff]
  %v8781 = vld [vmem:[%s2832 + $0x1e1] sm:$0xff]
  %v8782 = vld [vmem:[%s2832 + $0x1e9] sm:$0xff]
  %v8783 = vld [vmem:[%s2832 + $0x1f9] sm:$0xff]
  %v8784 = vld [vmem:[%s2832 + $0x201] sm:$0xff]
  %v8785 = vld [vmem:[%s2832 + $0x211] sm:$0xff]
  %v8786 = vld [vmem:[%s2832 + $0x219] sm:$0xff]
  %v8787 = vld [vmem:[%s2832 + $0x229] sm:$0xff]
  %v8788 = vld [vmem:[%s2832 + $0x231] sm:$0xff]
  %v8789 = vld [vmem:[%s2832 + $0x241] sm:$0xff]
  %v8790 = vld [vmem:[%s2832 + $0x249] sm:$0xff]
  %v8791 = vld [vmem:[%s2832 + $0x259] sm:$0xff]
  %v8792 = vld [vmem:[%s2832 + $0x261] sm:$0xff]
  %v8793 = vld [vmem:[%s2832 + $0x271] sm:$0xff]
  %v8794 = vld [vmem:[%s2832 + $0x279] sm:$0xff]
  %v8795 = vld [vmem:[%s2832 + $0x289] sm:$0xff]
  %v8796 = vld [vmem:[%s2832 + $0x291] sm:$0xff]
  %v8797 = vld [vmem:[%s2832 + $0x2a1] sm:$0xff]
  %v8798 = vld [vmem:[%s2832 + $0x2a9] sm:$0xff]
  %v8799 = vld [vmem:[%s2832 + $0x2b9] sm:$0xff]
  %v8800 = vld [vmem:[%s2832 + $0x2c1] sm:$0xff]
  %v8801 = vld [vmem:[%s2832 + $0x2d1] sm:$0xff]
  %v8802 = vld [vmem:[%s2832 + $0x2d9] sm:$0xff]
  %v8803 = vld [vmem:[%s2832 + $0x2e9] sm:$0xff]
  %v8804 = vld [vmem:[%s2832 + $0x2f1] sm:$0xff]
  %v8805 = vld [vmem:[%s2832 + $0x301] sm:$0xff]
  %v8806 = vld [vmem:[%s2832 + $0x309] sm:$0xff]
  %v8807 = vld [vmem:[%s2832 + $0x319] sm:$0xff]
  %v8808 = vld [vmem:[%s2832 + $0x321] sm:$0xff]
  %v8809 = vpack.c.bf16 %v8746, %v8745
  %v8810 = vpack.c.bf16 %v8748, %v8747
  %v8811 = vpack.c.bf16 %v8750, %v8749
  %v8812 = vpack.c.bf16 %v8752, %v8751
  %v8813 = vpack.c.bf16 %v8754, %v8753
  %v8814 = vpack.c.bf16 %v8756, %v8755
  %v8815 = vpack.c.bf16 %v8758, %v8757
  %v8816 = vpack.c.bf16 %v8760, %v8759
  %v8817 = vpack.c.bf16 %v8762, %v8761
  %v8818 = vpack.c.bf16 %v8764, %v8763
  %v8819 = vpack.c.bf16 %v8766, %v8765
  %v8820 = vpack.c.bf16 %v8768, %v8767
  %v8821 = vpack.c.bf16 %v8770, %v8769
  %v8822 = vpack.c.bf16 %v8772, %v8771
  %v8823 = vpack.c.bf16 %v8774, %v8773
  %v8824 = vpack.c.bf16 %v8776, %v8775
  %v8825 = vpack.c.bf16 %v8778, %v8777
  %v8826 = vpack.c.bf16 %v8780, %v8779
  %v8827 = vpack.c.bf16 %v8782, %v8781
  %v8828 = vpack.c.bf16 %v8784, %v8783
  %v8829 = vpack.c.bf16 %v8786, %v8785
  %v8830 = vpack.c.bf16 %v8788, %v8787
  %v8831 = vpack.c.bf16 %v8790, %v8789
  %v8832 = vpack.c.bf16 %v8792, %v8791
  %v8833 = vpack.c.bf16 %v8794, %v8793
  %v8834 = vpack.c.bf16 %v8796, %v8795
  %v8835 = vpack.c.bf16 %v8798, %v8797
  %v8836 = vpack.c.bf16 %v8800, %v8799
  %v8837 = vpack.c.bf16 %v8802, %v8801
  %v8838 = vpack.c.bf16 %v8804, %v8803
  %v8839 = vpack.c.bf16 %v8806, %v8805
  %v8840 = vpack.c.bf16 %v8808, %v8807
  %v8841 = vld [vmem:[%s4 + $0x100] sm:$0xf]
  %v8842 = vld [vmem:[%s4 + $0x104] sm:$0xf]
  %v8843 = vld [vmem:[%s4 + $0x108] sm:$0xf]
  %v8844 = vld [vmem:[%s4 + $0x10c] sm:$0xf]
  %v8845 = vld [vmem:[%s4 + $0x110] sm:$0xf]
  %v8846 = vld [vmem:[%s4 + $0x114] sm:$0xf]
  %v8847 = vld [vmem:[%s4 + $0x118] sm:$0xf]
  %v8848 = vld [vmem:[%s4 + $0x11c] sm:$0xf]
  %v8849 = vld [vmem:[%s4 + $0x120] sm:$0xf]
  %v8850 = vld [vmem:[%s4 + $0x124] sm:$0xf]
  %v8851 = vld [vmem:[%s4 + $0x128] sm:$0xf]
  %v8852 = vld [vmem:[%s4 + $0x12c] sm:$0xf]
  %v8853 = vld [vmem:[%s4 + $0x130] sm:$0xf]
  %v8854 = vld [vmem:[%s4 + $0x134] sm:$0xf]
  %v8855 = vld [vmem:[%s4 + $0x138] sm:$0xf]
  %v8856 = vld [vmem:[%s4 + $0x13c] sm:$0xf]
  %v8873 = vunpack.c.l.b16 %v8841
  %v8874 = vunpack.c.l.b16 %v8842
  %v8875 = vunpack.c.l.b16 %v8843
  %v8876 = vunpack.c.l.b16 %v8844
  %v8877 = vunpack.c.l.b16 %v8845
  %v8878 = vunpack.c.l.b16 %v8846
  %v8879 = vunpack.c.l.b16 %v8847
  %v8880 = vunpack.c.l.b16 %v8848
  %v8881 = vunpack.c.l.b16 %v8849
  %v8882 = vunpack.c.l.b16 %v8850
  %v8883 = vunpack.c.l.b16 %v8851
  %v8884 = vunpack.c.l.b16 %v8852
  %v8885 = vunpack.c.l.b16 %v8853
  %v8886 = vunpack.c.l.b16 %v8854
  %v8887 = vunpack.c.l.b16 %v8855
  %v8888 = vunpack.c.l.b16 %v8856
  %v8889 = vpack.c.b16 %v8874, %v8873
  %v8890 = vpack.c.b16 %v8876, %v8875
  %v8891 = vpack.c.b16 %v8878, %v8877
  %v8892 = vpack.c.b16 %v8880, %v8879
  %v8893 = vpack.c.b16 %v8882, %v8881
  %v8894 = vpack.c.b16 %v8884, %v8883
  %v8895 = vpack.c.b16 %v8886, %v8885
  %v8896 = vpack.c.b16 %v8888, %v8887
  %8905 = vmatpush.bf16.msra.mxu0 %v8896
  %8906 = vmatpush.bf16.msra.mxu0 %v8895
  %8907 = vmatpush.bf16.msra.mxu0 %v8894
  %8908 = vmatpush.bf16.msra.mxu0 %v8893
  %8909 = vmatpush.bf16.msra.mxu0 %v8892
  %8910 = vmatpush.bf16.msra.mxu0 %v8891
  %8911 = vmatpush.bf16.msra.mxu0 %v8890
  %8912 = vmatpush.bf16.msra.mxu0 %v8889
  %8913 = vmatmul.bf16.gmra.mxu0 %v8809
  %v8914 = vpop.f32.mrf.mxu0
  %v8915 = vadd.f32 0.0, %v8914
  %v8916 = vpop.f32.mrf.mxu0
  %v8917 = vadd.f32 0.0, %v8916
  %8918 = vmatmul.bf16.gmra.mxu0 %v8810
  %v8919 = vpop.f32.mrf.mxu0
  %v8920 = vadd.f32 0.0, %v8919
  %v8921 = vpop.f32.mrf.mxu0
  %v8922 = vadd.f32 0.0, %v8921
  %8923 = vmatmul.bf16.gmra.mxu0 %v8811
  %v8924 = vpop.f32.mrf.mxu0
  %v8925 = vadd.f32 0.0, %v8924
  %v8926 = vpop.f32.mrf.mxu0
  %v8927 = vadd.f32 0.0, %v8926
  %8928 = vmatmul.bf16.gmra.mxu0 %v8812
  %v8929 = vpop.f32.mrf.mxu0
  %v8930 = vadd.f32 0.0, %v8929
  %v8931 = vpop.f32.mrf.mxu0
  %v8932 = vadd.f32 0.0, %v8931
  %8933 = vmatmul.bf16.gmra.mxu0 %v8813
  %v8934 = vpop.f32.mrf.mxu0
  %v8935 = vadd.f32 0.0, %v8934
  %v8936 = vpop.f32.mrf.mxu0
  %v8937 = vadd.f32 0.0, %v8936
  %8938 = vmatmul.bf16.gmra.mxu0 %v8814
  %v8939 = vpop.f32.mrf.mxu0
  %v8940 = vadd.f32 0.0, %v8939
  %v8941 = vpop.f32.mrf.mxu0
  %v8942 = vadd.f32 0.0, %v8941
  %8943 = vmatmul.bf16.gmra.mxu0 %v8815
  %v8944 = vpop.f32.mrf.mxu0
  %v8945 = vadd.f32 0.0, %v8944
  %v8946 = vpop.f32.mrf.mxu0
  %v8947 = vadd.f32 0.0, %v8946
  %8948 = vmatmul.bf16.gmra.mxu0 %v8816
  %v8949 = vpop.f32.mrf.mxu0
  %v8950 = vadd.f32 0.0, %v8949
  %v8951 = vpop.f32.mrf.mxu0
  %v8952 = vadd.f32 0.0, %v8951
  %8953 = vmatmul.bf16.gmra.mxu0 %v8817
  %v8954 = vpop.f32.mrf.mxu0
  %v8955 = vadd.f32 0.0, %v8954
  %v8956 = vpop.f32.mrf.mxu0
  %v8957 = vadd.f32 0.0, %v8956
  %8958 = vmatmul.bf16.gmra.mxu0 %v8818
  %v8959 = vpop.f32.mrf.mxu0
  %v8960 = vadd.f32 0.0, %v8959
  %v8961 = vpop.f32.mrf.mxu0
  %v8962 = vadd.f32 0.0, %v8961
  %8963 = vmatmul.bf16.gmra.mxu0 %v8819
  %v8964 = vpop.f32.mrf.mxu0
  %v8965 = vadd.f32 0.0, %v8964
  %v8966 = vpop.f32.mrf.mxu0
  %v8967 = vadd.f32 0.0, %v8966
  %8968 = vmatmul.bf16.gmra.mxu0 %v8820
  %v8969 = vpop.f32.mrf.mxu0
  %v8970 = vadd.f32 0.0, %v8969
  %v8971 = vpop.f32.mrf.mxu0
  %v8972 = vadd.f32 0.0, %v8971
  %8973 = vmatmul.bf16.gmra.mxu0 %v8821
  %v8974 = vpop.f32.mrf.mxu0
  %v8975 = vadd.f32 0.0, %v8974
  %v8976 = vpop.f32.mrf.mxu0
  %v8977 = vadd.f32 0.0, %v8976
  %8978 = vmatmul.bf16.gmra.mxu0 %v8822
  %v8979 = vpop.f32.mrf.mxu0
  %v8980 = vadd.f32 0.0, %v8979
  %v8981 = vpop.f32.mrf.mxu0
  %v8982 = vadd.f32 0.0, %v8981
  %8983 = vmatmul.bf16.gmra.mxu0 %v8823
  %v8984 = vpop.f32.mrf.mxu0
  %v8985 = vadd.f32 0.0, %v8984
  %v8986 = vpop.f32.mrf.mxu0
  %v8987 = vadd.f32 0.0, %v8986
  %8988 = vmatmul.bf16.gmra.mxu0 %v8824
  %v8989 = vpop.f32.mrf.mxu0
  %v8990 = vadd.f32 0.0, %v8989
  %v8991 = vpop.f32.mrf.mxu0
  %v8992 = vadd.f32 0.0, %v8991
  %8993 = vmatmul.bf16.gmra.mxu0 %v8825
  %v8994 = vpop.f32.mrf.mxu0
  %v8995 = vadd.f32 0.0, %v8994
  %v8996 = vpop.f32.mrf.mxu0
  %v8997 = vadd.f32 0.0, %v8996
  %8998 = vmatmul.bf16.gmra.mxu0 %v8826
  %v8999 = vpop.f32.mrf.mxu0
  %v9000 = vadd.f32 0.0, %v8999
  %v9001 = vpop.f32.mrf.mxu0
  %v9002 = vadd.f32 0.0, %v9001
  %9003 = vmatmul.bf16.gmra.mxu0 %v8827
  %v9004 = vpop.f32.mrf.mxu0
  %v9005 = vadd.f32 0.0, %v9004
  %v9006 = vpop.f32.mrf.mxu0
  %v9007 = vadd.f32 0.0, %v9006
  %9008 = vmatmul.bf16.gmra.mxu0 %v8828
  %v9009 = vpop.f32.mrf.mxu0
  %v9010 = vadd.f32 0.0, %v9009
  %v9011 = vpop.f32.mrf.mxu0
  %v9012 = vadd.f32 0.0, %v9011
  %9013 = vmatmul.bf16.gmra.mxu0 %v8829
  %v9014 = vpop.f32.mrf.mxu0
  %v9015 = vadd.f32 0.0, %v9014
  %v9016 = vpop.f32.mrf.mxu0
  %v9017 = vadd.f32 0.0, %v9016
  %9018 = vmatmul.bf16.gmra.mxu0 %v8830
  %v9019 = vpop.f32.mrf.mxu0
  %v9020 = vadd.f32 0.0, %v9019
  %v9021 = vpop.f32.mrf.mxu0
  %v9022 = vadd.f32 0.0, %v9021
  %9023 = vmatmul.bf16.gmra.mxu0 %v8831
  %v9024 = vpop.f32.mrf.mxu0
  %v9025 = vadd.f32 0.0, %v9024
  %v9026 = vpop.f32.mrf.mxu0
  %v9027 = vadd.f32 0.0, %v9026
  %9028 = vmatmul.bf16.gmra.mxu0 %v8832
  %v9029 = vpop.f32.mrf.mxu0
  %v9030 = vadd.f32 0.0, %v9029
  %v9031 = vpop.f32.mrf.mxu0
  %v9032 = vadd.f32 0.0, %v9031
  %9033 = vmatmul.bf16.gmra.mxu0 %v8833
  %v9034 = vpop.f32.mrf.mxu0
  %v9035 = vadd.f32 0.0, %v9034
  %v9036 = vpop.f32.mrf.mxu0
  %v9037 = vadd.f32 0.0, %v9036
  %9038 = vmatmul.bf16.gmra.mxu0 %v8834
  %v9039 = vpop.f32.mrf.mxu0
  %v9040 = vadd.f32 0.0, %v9039
  %v9041 = vpop.f32.mrf.mxu0
  %v9042 = vadd.f32 0.0, %v9041
  %9043 = vmatmul.bf16.gmra.mxu0 %v8835
  %v9044 = vpop.f32.mrf.mxu0
  %v9045 = vadd.f32 0.0, %v9044
  %v9046 = vpop.f32.mrf.mxu0
  %v9047 = vadd.f32 0.0, %v9046
  %9048 = vmatmul.bf16.gmra.mxu0 %v8836
  %v9049 = vpop.f32.mrf.mxu0
  %v9050 = vadd.f32 0.0, %v9049
  %v9051 = vpop.f32.mrf.mxu0
  %v9052 = vadd.f32 0.0, %v9051
  %9053 = vmatmul.bf16.gmra.mxu0 %v8837
  %v9054 = vpop.f32.mrf.mxu0
  %v9055 = vadd.f32 0.0, %v9054
  %v9056 = vpop.f32.mrf.mxu0
  %v9057 = vadd.f32 0.0, %v9056
  %9058 = vmatmul.bf16.gmra.mxu0 %v8838
  %v9059 = vpop.f32.mrf.mxu0
  %v9060 = vadd.f32 0.0, %v9059
  %v9061 = vpop.f32.mrf.mxu0
  %v9062 = vadd.f32 0.0, %v9061
  %9063 = vmatmul.bf16.gmra.mxu0 %v8839
  %v9064 = vpop.f32.mrf.mxu0
  %v9065 = vadd.f32 0.0, %v9064
  %v9066 = vpop.f32.mrf.mxu0
  %v9067 = vadd.f32 0.0, %v9066
  %9068 = vmatmul.bf16.gmra.mxu0 %v8840
  %v9069 = vpop.f32.mrf.mxu0
  %v9070 = vadd.f32 0.0, %v9069
  %v9071 = vpop.f32.mrf.mxu0
  %v9072 = vadd.f32 0.0, %v9071
  %9073 = vdwg.mxu0
  %v9074 = vadd.f32 %v8681, %v8915
  %v9075 = vadd.f32 %v8682, %v8917
  %v9076 = vadd.f32 %v8683, %v8920
  %v9077 = vadd.f32 %v8684, %v8922
  %v9078 = vadd.f32 %v8685, %v8925
  %v9079 = vadd.f32 %v8686, %v8927
  %v9080 = vadd.f32 %v8687, %v8930
  %v9081 = vadd.f32 %v8688, %v8932
  %v9082 = vadd.f32 %v8689, %v8935
  %v9083 = vadd.f32 %v8690, %v8937
  %v9084 = vadd.f32 %v8691, %v8940
  %v9085 = vadd.f32 %v8692, %v8942
  %v9086 = vadd.f32 %v8693, %v8945
  %v9087 = vadd.f32 %v8694, %v8947
  %v9088 = vadd.f32 %v8695, %v8950
  %v9089 = vadd.f32 %v8696, %v8952
  %v9090 = vadd.f32 %v8697, %v8955
  %v9091 = vadd.f32 %v8698, %v8957
  %v9092 = vadd.f32 %v8699, %v8960
  %v9093 = vadd.f32 %v8700, %v8962
  %v9094 = vadd.f32 %v8701, %v8965
  %v9095 = vadd.f32 %v8702, %v8967
  %v9096 = vadd.f32 %v8703, %v8970
  %v9097 = vadd.f32 %v8704, %v8972
  %v9098 = vadd.f32 %v8705, %v8975
  %v9099 = vadd.f32 %v8706, %v8977
  %v9100 = vadd.f32 %v8707, %v8980
  %v9101 = vadd.f32 %v8708, %v8982
  %v9102 = vadd.f32 %v8709, %v8985
  %v9103 = vadd.f32 %v8710, %v8987
  %v9104 = vadd.f32 %v8711, %v8990
  %v9105 = vadd.f32 %v8712, %v8992
  %v9106 = vadd.f32 %v8713, %v8995
  %v9107 = vadd.f32 %v8714, %v8997
  %v9108 = vadd.f32 %v8715, %v9000
  %v9109 = vadd.f32 %v8716, %v9002
  %v9110 = vadd.f32 %v8717, %v9005
  %v9111 = vadd.f32 %v8718, %v9007
  %v9112 = vadd.f32 %v8719, %v9010
  %v9113 = vadd.f32 %v8720, %v9012
  %v9114 = vadd.f32 %v8721, %v9015
  %v9115 = vadd.f32 %v8722, %v9017
  %v9116 = vadd.f32 %v8723, %v9020
  %v9117 = vadd.f32 %v8724, %v9022
  %v9118 = vadd.f32 %v8725, %v9025
  %v9119 = vadd.f32 %v8726, %v9027
  %v9120 = vadd.f32 %v8727, %v9030
  %v9121 = vadd.f32 %v8728, %v9032
  %v9122 = vadd.f32 %v8729, %v9035
  %v9123 = vadd.f32 %v8730, %v9037
  %v9124 = vadd.f32 %v8731, %v9040
  %v9125 = vadd.f32 %v8732, %v9042
  %v9126 = vadd.f32 %v8733, %v9045
  %v9127 = vadd.f32 %v8734, %v9047
  %v9128 = vadd.f32 %v8735, %v9050
  %v9129 = vadd.f32 %v8736, %v9052
  %v9130 = vadd.f32 %v8737, %v9055
  %v9131 = vadd.f32 %v8738, %v9057
  %v9132 = vadd.f32 %v8739, %v9060
  %v9133 = vadd.f32 %v8740, %v9062
  %v9134 = vadd.f32 %v8741, %v9065
  %v9135 = vadd.f32 %v8742, %v9067
  %v9136 = vadd.f32 %v8743, %v9070
  %v9137 = vadd.f32 %v8744, %v9072
  %v9138 = vld [vmem:[%s2832 + $0x2] sm:$0xff]
  %v9139 = vld [vmem:[%s2832 + $0xa] sm:$0xff]
  %v9140 = vld [vmem:[%s2832 + $0x1a] sm:$0xff]
  %v9141 = vld [vmem:[%s2832 + $0x22] sm:$0xff]
  %v9142 = vld [vmem:[%s2832 + $0x32] sm:$0xff]
  %v9143 = vld [vmem:[%s2832 + $0x3a] sm:$0xff]
  %v9144 = vld [vmem:[%s2832 + $0x4a] sm:$0xff]
  %v9145 = vld [vmem:[%s2832 + $0x52] sm:$0xff]
  %v9146 = vld [vmem:[%s2832 + $0x62] sm:$0xff]
  %v9147 = vld [vmem:[%s2832 + $0x6a] sm:$0xff]
  %v9148 = vld [vmem:[%s2832 + $0x7a] sm:$0xff]
  %v9149 = vld [vmem:[%s2832 + $0x82] sm:$0xff]
  %v9150 = vld [vmem:[%s2832 + $0x92] sm:$0xff]
  %v9151 = vld [vmem:[%s2832 + $0x9a] sm:$0xff]
  %v9152 = vld [vmem:[%s2832 + $0xaa] sm:$0xff]
  %v9153 = vld [vmem:[%s2832 + $0xb2] sm:$0xff]
  %v9154 = vld [vmem:[%s2832 + $0xc2] sm:$0xff]
  %v9155 = vld [vmem:[%s2832 + $0xca] sm:$0xff]
  %v9156 = vld [vmem:[%s2832 + $0xda] sm:$0xff]
  %v9157 = vld [vmem:[%s2832 + $0xe2] sm:$0xff]
  %v9158 = vld [vmem:[%s2832 + $0xf2] sm:$0xff]
  %v9159 = vld [vmem:[%s2832 + $0xfa] sm:$0xff]
  %v9160 = vld [vmem:[%s2832 + $0x10a] sm:$0xff]
  %v9161 = vld [vmem:[%s2832 + $0x112] sm:$0xff]
  %v9162 = vld [vmem:[%s2832 + $0x122] sm:$0xff]
  %v9163 = vld [vmem:[%s2832 + $0x12a] sm:$0xff]
  %v9164 = vld [vmem:[%s2832 + $0x13a] sm:$0xff]
  %v9165 = vld [vmem:[%s2832 + $0x142] sm:$0xff]
  %v9166 = vld [vmem:[%s2832 + $0x152] sm:$0xff]
  %v9167 = vld [vmem:[%s2832 + $0x15a] sm:$0xff]
  %v9168 = vld [vmem:[%s2832 + $0x16a] sm:$0xff]
  %v9169 = vld [vmem:[%s2832 + $0x172] sm:$0xff]
  %v9170 = vld [vmem:[%s2832 + $0x1b2] sm:$0xff]
  %v9171 = vld [vmem:[%s2832 + $0x1ba] sm:$0xff]
  %v9172 = vld [vmem:[%s2832 + $0x1ca] sm:$0xff]
  %v9173 = vld [vmem:[%s2832 + $0x1d2] sm:$0xff]
  %v9174 = vld [vmem:[%s2832 + $0x1e2] sm:$0xff]
  %v9175 = vld [vmem:[%s2832 + $0x1ea] sm:$0xff]
  %v9176 = vld [vmem:[%s2832 + $0x1fa] sm:$0xff]
  %v9177 = vld [vmem:[%s2832 + $0x202] sm:$0xff]
  %v9178 = vld [vmem:[%s2832 + $0x212] sm:$0xff]
  %v9179 = vld [vmem:[%s2832 + $0x21a] sm:$0xff]
  %v9180 = vld [vmem:[%s2832 + $0x22a] sm:$0xff]
  %v9181 = vld [vmem:[%s2832 + $0x232] sm:$0xff]
  %v9182 = vld [vmem:[%s2832 + $0x242] sm:$0xff]
  %v9183 = vld [vmem:[%s2832 + $0x24a] sm:$0xff]
  %v9184 = vld [vmem:[%s2832 + $0x25a] sm:$0xff]
  %v9185 = vld [vmem:[%s2832 + $0x262] sm:$0xff]
  %v9186 = vld [vmem:[%s2832 + $0x272] sm:$0xff]
  %v9187 = vld [vmem:[%s2832 + $0x27a] sm:$0xff]
  %v9188 = vld [vmem:[%s2832 + $0x28a] sm:$0xff]
  %v9189 = vld [vmem:[%s2832 + $0x292] sm:$0xff]
  %v9190 = vld [vmem:[%s2832 + $0x2a2] sm:$0xff]
  %v9191 = vld [vmem:[%s2832 + $0x2aa] sm:$0xff]
  %v9192 = vld [vmem:[%s2832 + $0x2ba] sm:$0xff]
  %v9193 = vld [vmem:[%s2832 + $0x2c2] sm:$0xff]
  %v9194 = vld [vmem:[%s2832 + $0x2d2] sm:$0xff]
  %v9195 = vld [vmem:[%s2832 + $0x2da] sm:$0xff]
  %v9196 = vld [vmem:[%s2832 + $0x2ea] sm:$0xff]
  %v9197 = vld [vmem:[%s2832 + $0x2f2] sm:$0xff]
  %v9198 = vld [vmem:[%s2832 + $0x302] sm:$0xff]
  %v9199 = vld [vmem:[%s2832 + $0x30a] sm:$0xff]
  %v9200 = vld [vmem:[%s2832 + $0x31a] sm:$0xff]
  %v9201 = vld [vmem:[%s2832 + $0x322] sm:$0xff]
  %v9202 = vpack.c.bf16 %v9139, %v9138
  %v9203 = vpack.c.bf16 %v9141, %v9140
  %v9204 = vpack.c.bf16 %v9143, %v9142
  %v9205 = vpack.c.bf16 %v9145, %v9144
  %v9206 = vpack.c.bf16 %v9147, %v9146
  %v9207 = vpack.c.bf16 %v9149, %v9148
  %v9208 = vpack.c.bf16 %v9151, %v9150
  %v9209 = vpack.c.bf16 %v9153, %v9152
  %v9210 = vpack.c.bf16 %v9155, %v9154
  %v9211 = vpack.c.bf16 %v9157, %v9156
  %v9212 = vpack.c.bf16 %v9159, %v9158
  %v9213 = vpack.c.bf16 %v9161, %v9160
  %v9214 = vpack.c.bf16 %v9163, %v9162
  %v9215 = vpack.c.bf16 %v9165, %v9164
  %v9216 = vpack.c.bf16 %v9167, %v9166
  %v9217 = vpack.c.bf16 %v9169, %v9168
  %v9218 = vpack.c.bf16 %v9171, %v9170
  %v9219 = vpack.c.bf16 %v9173, %v9172
  %v9220 = vpack.c.bf16 %v9175, %v9174
  %v9221 = vpack.c.bf16 %v9177, %v9176
  %v9222 = vpack.c.bf16 %v9179, %v9178
  %v9223 = vpack.c.bf16 %v9181, %v9180
  %v9224 = vpack.c.bf16 %v9183, %v9182
  %v9225 = vpack.c.bf16 %v9185, %v9184
  %v9226 = vpack.c.bf16 %v9187, %v9186
  %v9227 = vpack.c.bf16 %v9189, %v9188
  %v9228 = vpack.c.bf16 %v9191, %v9190
  %v9229 = vpack.c.bf16 %v9193, %v9192
  %v9230 = vpack.c.bf16 %v9195, %v9194
  %v9231 = vpack.c.bf16 %v9197, %v9196
  %v9232 = vpack.c.bf16 %v9199, %v9198
  %v9233 = vpack.c.bf16 %v9201, %v9200
  %v9234 = vld [vmem:[%s4 + $0x140] sm:$0xf]
  %v9235 = vld [vmem:[%s4 + $0x144] sm:$0xf]
  %v9236 = vld [vmem:[%s4 + $0x148] sm:$0xf]
  %v9237 = vld [vmem:[%s4 + $0x14c] sm:$0xf]
  %v9238 = vld [vmem:[%s4 + $0x150] sm:$0xf]
  %v9239 = vld [vmem:[%s4 + $0x154] sm:$0xf]
  %v9240 = vld [vmem:[%s4 + $0x158] sm:$0xf]
  %v9241 = vld [vmem:[%s4 + $0x15c] sm:$0xf]
  %v9242 = vld [vmem:[%s4 + $0x160] sm:$0xf]
  %v9243 = vld [vmem:[%s4 + $0x164] sm:$0xf]
  %v9244 = vld [vmem:[%s4 + $0x168] sm:$0xf]
  %v9245 = vld [vmem:[%s4 + $0x16c] sm:$0xf]
  %v9246 = vld [vmem:[%s4 + $0x170] sm:$0xf]
  %v9247 = vld [vmem:[%s4 + $0x174] sm:$0xf]
  %v9248 = vld [vmem:[%s4 + $0x178] sm:$0xf]
  %v9249 = vld [vmem:[%s4 + $0x17c] sm:$0xf]
  %v9266 = vunpack.c.l.b16 %v9234
  %v9267 = vunpack.c.l.b16 %v9235
  %v9268 = vunpack.c.l.b16 %v9236
  %v9269 = vunpack.c.l.b16 %v9237
  %v9270 = vunpack.c.l.b16 %v9238
  %v9271 = vunpack.c.l.b16 %v9239
  %v9272 = vunpack.c.l.b16 %v9240
  %v9273 = vunpack.c.l.b16 %v9241
  %v9274 = vunpack.c.l.b16 %v9242
  %v9275 = vunpack.c.l.b16 %v9243
  %v9276 = vunpack.c.l.b16 %v9244
  %v9277 = vunpack.c.l.b16 %v9245
  %v9278 = vunpack.c.l.b16 %v9246
  %v9279 = vunpack.c.l.b16 %v9247
  %v9280 = vunpack.c.l.b16 %v9248
  %v9281 = vunpack.c.l.b16 %v9249
  %v9282 = vpack.c.b16 %v9267, %v9266
  %v9283 = vpack.c.b16 %v9269, %v9268
  %v9284 = vpack.c.b16 %v9271, %v9270
  %v9285 = vpack.c.b16 %v9273, %v9272
  %v9286 = vpack.c.b16 %v9275, %v9274
  %v9287 = vpack.c.b16 %v9277, %v9276
  %v9288 = vpack.c.b16 %v9279, %v9278
  %v9289 = vpack.c.b16 %v9281, %v9280
  %9298 = vmatpush.bf16.msra.mxu0 %v9289
  %9299 = vmatpush.bf16.msra.mxu0 %v9288
  %9300 = vmatpush.bf16.msra.mxu0 %v9287
  %9301 = vmatpush.bf16.msra.mxu0 %v9286
  %9302 = vmatpush.bf16.msra.mxu0 %v9285
  %9303 = vmatpush.bf16.msra.mxu0 %v9284
  %9304 = vmatpush.bf16.msra.mxu0 %v9283
  %9305 = vmatpush.bf16.msra.mxu0 %v9282
  %9306 = vmatmul.bf16.gmra.mxu0 %v9202
  %v9307 = vpop.f32.mrf.mxu0
  %v9308 = vadd.f32 0.0, %v9307
  %v9309 = vpop.f32.mrf.mxu0
  %v9310 = vadd.f32 0.0, %v9309
  %9311 = vmatmul.bf16.gmra.mxu0 %v9203
  %v9312 = vpop.f32.mrf.mxu0
  %v9313 = vadd.f32 0.0, %v9312
  %v9314 = vpop.f32.mrf.mxu0
  %v9315 = vadd.f32 0.0, %v9314
  %9316 = vmatmul.bf16.gmra.mxu0 %v9204
  %v9317 = vpop.f32.mrf.mxu0
  %v9318 = vadd.f32 0.0, %v9317
  %v9319 = vpop.f32.mrf.mxu0
  %v9320 = vadd.f32 0.0, %v9319
  %9321 = vmatmul.bf16.gmra.mxu0 %v9205
  %v9322 = vpop.f32.mrf.mxu0
  %v9323 = vadd.f32 0.0, %v9322
  %v9324 = vpop.f32.mrf.mxu0
  %v9325 = vadd.f32 0.0, %v9324
  %9326 = vmatmul.bf16.gmra.mxu0 %v9206
  %v9327 = vpop.f32.mrf.mxu0
  %v9328 = vadd.f32 0.0, %v9327
  %v9329 = vpop.f32.mrf.mxu0
  %v9330 = vadd.f32 0.0, %v9329
  %9331 = vmatmul.bf16.gmra.mxu0 %v9207
  %v9332 = vpop.f32.mrf.mxu0
  %v9333 = vadd.f32 0.0, %v9332
  %v9334 = vpop.f32.mrf.mxu0
  %v9335 = vadd.f32 0.0, %v9334
  %9336 = vmatmul.bf16.gmra.mxu0 %v9208
  %v9337 = vpop.f32.mrf.mxu0
  %v9338 = vadd.f32 0.0, %v9337
  %v9339 = vpop.f32.mrf.mxu0
  %v9340 = vadd.f32 0.0, %v9339
  %9341 = vmatmul.bf16.gmra.mxu0 %v9209
  %v9342 = vpop.f32.mrf.mxu0
  %v9343 = vadd.f32 0.0, %v9342
  %v9344 = vpop.f32.mrf.mxu0
  %v9345 = vadd.f32 0.0, %v9344
  %9346 = vmatmul.bf16.gmra.mxu0 %v9210
  %v9347 = vpop.f32.mrf.mxu0
  %v9348 = vadd.f32 0.0, %v9347
  %v9349 = vpop.f32.mrf.mxu0
  %v9350 = vadd.f32 0.0, %v9349
  %9351 = vmatmul.bf16.gmra.mxu0 %v9211
  %v9352 = vpop.f32.mrf.mxu0
  %v9353 = vadd.f32 0.0, %v9352
  %v9354 = vpop.f32.mrf.mxu0
  %v9355 = vadd.f32 0.0, %v9354
  %9356 = vmatmul.bf16.gmra.mxu0 %v9212
  %v9357 = vpop.f32.mrf.mxu0
  %v9358 = vadd.f32 0.0, %v9357
  %v9359 = vpop.f32.mrf.mxu0
  %v9360 = vadd.f32 0.0, %v9359
  %9361 = vmatmul.bf16.gmra.mxu0 %v9213
  %v9362 = vpop.f32.mrf.mxu0
  %v9363 = vadd.f32 0.0, %v9362
  %v9364 = vpop.f32.mrf.mxu0
  %v9365 = vadd.f32 0.0, %v9364
  %9366 = vmatmul.bf16.gmra.mxu0 %v9214
  %v9367 = vpop.f32.mrf.mxu0
  %v9368 = vadd.f32 0.0, %v9367
  %v9369 = vpop.f32.mrf.mxu0
  %v9370 = vadd.f32 0.0, %v9369
  %9371 = vmatmul.bf16.gmra.mxu0 %v9215
  %v9372 = vpop.f32.mrf.mxu0
  %v9373 = vadd.f32 0.0, %v9372
  %v9374 = vpop.f32.mrf.mxu0
  %v9375 = vadd.f32 0.0, %v9374
  %9376 = vmatmul.bf16.gmra.mxu0 %v9216
  %v9377 = vpop.f32.mrf.mxu0
  %v9378 = vadd.f32 0.0, %v9377
  %v9379 = vpop.f32.mrf.mxu0
  %v9380 = vadd.f32 0.0, %v9379
  %9381 = vmatmul.bf16.gmra.mxu0 %v9217
  %v9382 = vpop.f32.mrf.mxu0
  %v9383 = vadd.f32 0.0, %v9382
  %v9384 = vpop.f32.mrf.mxu0
  %v9385 = vadd.f32 0.0, %v9384
  %9386 = vmatmul.bf16.gmra.mxu0 %v9218
  %v9387 = vpop.f32.mrf.mxu0
  %v9388 = vadd.f32 0.0, %v9387
  %v9389 = vpop.f32.mrf.mxu0
  %v9390 = vadd.f32 0.0, %v9389
  %9391 = vmatmul.bf16.gmra.mxu0 %v9219
  %v9392 = vpop.f32.mrf.mxu0
  %v9393 = vadd.f32 0.0, %v9392
  %v9394 = vpop.f32.mrf.mxu0
  %v9395 = vadd.f32 0.0, %v9394
  %9396 = vmatmul.bf16.gmra.mxu0 %v9220
  %v9397 = vpop.f32.mrf.mxu0
  %v9398 = vadd.f32 0.0, %v9397
  %v9399 = vpop.f32.mrf.mxu0
  %v9400 = vadd.f32 0.0, %v9399
  %9401 = vmatmul.bf16.gmra.mxu0 %v9221
  %v9402 = vpop.f32.mrf.mxu0
  %v9403 = vadd.f32 0.0, %v9402
  %v9404 = vpop.f32.mrf.mxu0
  %v9405 = vadd.f32 0.0, %v9404
  %9406 = vmatmul.bf16.gmra.mxu0 %v9222
  %v9407 = vpop.f32.mrf.mxu0
  %v9408 = vadd.f32 0.0, %v9407
  %v9409 = vpop.f32.mrf.mxu0
  %v9410 = vadd.f32 0.0, %v9409
  %9411 = vmatmul.bf16.gmra.mxu0 %v9223
  %v9412 = vpop.f32.mrf.mxu0
  %v9413 = vadd.f32 0.0, %v9412
  %v9414 = vpop.f32.mrf.mxu0
  %v9415 = vadd.f32 0.0, %v9414
  %9416 = vmatmul.bf16.gmra.mxu0 %v9224
  %v9417 = vpop.f32.mrf.mxu0
  %v9418 = vadd.f32 0.0, %v9417
  %v9419 = vpop.f32.mrf.mxu0
  %v9420 = vadd.f32 0.0, %v9419
  %9421 = vmatmul.bf16.gmra.mxu0 %v9225
  %v9422 = vpop.f32.mrf.mxu0
  %v9423 = vadd.f32 0.0, %v9422
  %v9424 = vpop.f32.mrf.mxu0
  %v9425 = vadd.f32 0.0, %v9424
  %9426 = vmatmul.bf16.gmra.mxu0 %v9226
  %v9427 = vpop.f32.mrf.mxu0
  %v9428 = vadd.f32 0.0, %v9427
  %v9429 = vpop.f32.mrf.mxu0
  %v9430 = vadd.f32 0.0, %v9429
  %9431 = vmatmul.bf16.gmra.mxu0 %v9227
  %v9432 = vpop.f32.mrf.mxu0
  %v9433 = vadd.f32 0.0, %v9432
  %v9434 = vpop.f32.mrf.mxu0
  %v9435 = vadd.f32 0.0, %v9434
  %9436 = vmatmul.bf16.gmra.mxu0 %v9228
  %v9437 = vpop.f32.mrf.mxu0
  %v9438 = vadd.f32 0.0, %v9437
  %v9439 = vpop.f32.mrf.mxu0
  %v9440 = vadd.f32 0.0, %v9439
  %9441 = vmatmul.bf16.gmra.mxu0 %v9229
  %v9442 = vpop.f32.mrf.mxu0
  %v9443 = vadd.f32 0.0, %v9442
  %v9444 = vpop.f32.mrf.mxu0
  %v9445 = vadd.f32 0.0, %v9444
  %9446 = vmatmul.bf16.gmra.mxu0 %v9230
  %v9447 = vpop.f32.mrf.mxu0
  %v9448 = vadd.f32 0.0, %v9447
  %v9449 = vpop.f32.mrf.mxu0
  %v9450 = vadd.f32 0.0, %v9449
  %9451 = vmatmul.bf16.gmra.mxu0 %v9231
  %v9452 = vpop.f32.mrf.mxu0
  %v9453 = vadd.f32 0.0, %v9452
  %v9454 = vpop.f32.mrf.mxu0
  %v9455 = vadd.f32 0.0, %v9454
  %9456 = vmatmul.bf16.gmra.mxu0 %v9232
  %v9457 = vpop.f32.mrf.mxu0
  %v9458 = vadd.f32 0.0, %v9457
  %v9459 = vpop.f32.mrf.mxu0
  %v9460 = vadd.f32 0.0, %v9459
  %9461 = vmatmul.bf16.gmra.mxu0 %v9233
  %v9462 = vpop.f32.mrf.mxu0
  %v9463 = vadd.f32 0.0, %v9462
  %v9464 = vpop.f32.mrf.mxu0
  %v9465 = vadd.f32 0.0, %v9464
  %9466 = vdwg.mxu0
  %v9467 = vadd.f32 %v9074, %v9308
  %v9468 = vadd.f32 %v9075, %v9310
  %v9469 = vadd.f32 %v9076, %v9313
  %v9470 = vadd.f32 %v9077, %v9315
  %v9471 = vadd.f32 %v9078, %v9318
  %v9472 = vadd.f32 %v9079, %v9320
  %v9473 = vadd.f32 %v9080, %v9323
  %v9474 = vadd.f32 %v9081, %v9325
  %v9475 = vadd.f32 %v9082, %v9328
  %v9476 = vadd.f32 %v9083, %v9330
  %v9477 = vadd.f32 %v9084, %v9333
  %v9478 = vadd.f32 %v9085, %v9335
  %v9479 = vadd.f32 %v9086, %v9338
  %v9480 = vadd.f32 %v9087, %v9340
  %v9481 = vadd.f32 %v9088, %v9343
  %v9482 = vadd.f32 %v9089, %v9345
  %v9483 = vadd.f32 %v9090, %v9348
  %v9484 = vadd.f32 %v9091, %v9350
  %v9485 = vadd.f32 %v9092, %v9353
  %v9486 = vadd.f32 %v9093, %v9355
  %v9487 = vadd.f32 %v9094, %v9358
  %v9488 = vadd.f32 %v9095, %v9360
  %v9489 = vadd.f32 %v9096, %v9363
  %v9490 = vadd.f32 %v9097, %v9365
  %v9491 = vadd.f32 %v9098, %v9368
  %v9492 = vadd.f32 %v9099, %v9370
  %v9493 = vadd.f32 %v9100, %v9373
  %v9494 = vadd.f32 %v9101, %v9375
  %v9495 = vadd.f32 %v9102, %v9378
  %v9496 = vadd.f32 %v9103, %v9380
  %v9497 = vadd.f32 %v9104, %v9383
  %v9498 = vadd.f32 %v9105, %v9385
  %v9499 = vadd.f32 %v9106, %v9388
  %v9500 = vadd.f32 %v9107, %v9390
  %v9501 = vadd.f32 %v9108, %v9393
  %v9502 = vadd.f32 %v9109, %v9395
  %v9503 = vadd.f32 %v9110, %v9398
  %v9504 = vadd.f32 %v9111, %v9400
  %v9505 = vadd.f32 %v9112, %v9403
  %v9506 = vadd.f32 %v9113, %v9405
  %v9507 = vadd.f32 %v9114, %v9408
  %v9508 = vadd.f32 %v9115, %v9410
  %v9509 = vadd.f32 %v9116, %v9413
  %v9510 = vadd.f32 %v9117, %v9415
  %v9511 = vadd.f32 %v9118, %v9418
  %v9512 = vadd.f32 %v9119, %v9420
  %v9513 = vadd.f32 %v9120, %v9423
  %v9514 = vadd.f32 %v9121, %v9425
  %v9515 = vadd.f32 %v9122, %v9428
  %v9516 = vadd.f32 %v9123, %v9430
  %v9517 = vadd.f32 %v9124, %v9433
  %v9518 = vadd.f32 %v9125, %v9435
  %v9519 = vadd.f32 %v9126, %v9438
  %v9520 = vadd.f32 %v9127, %v9440
  %v9521 = vadd.f32 %v9128, %v9443
  %v9522 = vadd.f32 %v9129, %v9445
  %v9523 = vadd.f32 %v9130, %v9448
  %v9524 = vadd.f32 %v9131, %v9450
  %v9525 = vadd.f32 %v9132, %v9453
  %v9526 = vadd.f32 %v9133, %v9455
  %v9527 = vadd.f32 %v9134, %v9458
  %v9528 = vadd.f32 %v9135, %v9460
  %v9529 = vadd.f32 %v9136, %v9463
  %v9530 = vadd.f32 %v9137, %v9465
  %v9531 = vld [vmem:[%s5576] sm:$0xff]
  %v9532 = vld [vmem:[%s5576 + $0x8] sm:$0xff]
  %v9533 = vld [vmem:[%s5576 + $0x18] sm:$0xff]
  %v9534 = vld [vmem:[%s5576 + $0x20] sm:$0xff]
  %v9535 = vld [vmem:[%s5576 + $0x30] sm:$0xff]
  %v9536 = vld [vmem:[%s5576 + $0x38] sm:$0xff]
  %v9537 = vld [vmem:[%s5576 + $0x48] sm:$0xff]
  %v9538 = vld [vmem:[%s5576 + $0x50] sm:$0xff]
  %v9539 = vld [vmem:[%s5576 + $0x60] sm:$0xff]
  %v9540 = vld [vmem:[%s5576 + $0x68] sm:$0xff]
  %v9541 = vld [vmem:[%s5576 + $0x78] sm:$0xff]
  %v9542 = vld [vmem:[%s5576 + $0x80] sm:$0xff]
  %v9543 = vld [vmem:[%s5576 + $0x90] sm:$0xff]
  %v9544 = vld [vmem:[%s5576 + $0x98] sm:$0xff]
  %v9545 = vld [vmem:[%s5576 + $0xa8] sm:$0xff]
  %v9546 = vld [vmem:[%s5576 + $0xb0] sm:$0xff]
  %v9547 = vld [vmem:[%s5576 + $0xc0] sm:$0xff]
  %v9548 = vld [vmem:[%s5576 + $0xc8] sm:$0xff]
  %v9549 = vld [vmem:[%s5576 + $0xd8] sm:$0xff]
  %v9550 = vld [vmem:[%s5576 + $0xe0] sm:$0xff]
  %v9551 = vld [vmem:[%s5576 + $0xf0] sm:$0xff]
  %v9552 = vld [vmem:[%s5576 + $0xf8] sm:$0xff]
  %v9553 = vld [vmem:[%s5576 + $0x108] sm:$0xff]
  %v9554 = vld [vmem:[%s5576 + $0x110] sm:$0xff]
  %v9555 = vld [vmem:[%s5576 + $0x120] sm:$0xff]
  %v9556 = vld [vmem:[%s5576 + $0x128] sm:$0xff]
  %v9557 = vld [vmem:[%s5576 + $0x138] sm:$0xff]
  %v9558 = vld [vmem:[%s5576 + $0x140] sm:$0xff]
  %v9559 = vld [vmem:[%s5576 + $0x150] sm:$0xff]
  %v9560 = vld [vmem:[%s5576 + $0x158] sm:$0xff]
  %v9561 = vld [vmem:[%s5576 + $0x168] sm:$0xff]
  %v9562 = vld [vmem:[%s5576 + $0x170] sm:$0xff]
  %v9563 = vld [vmem:[%s5576 + $0x1b0] sm:$0xff]
  %v9564 = vld [vmem:[%s5576 + $0x1b8] sm:$0xff]
  %v9565 = vld [vmem:[%s5576 + $0x1c8] sm:$0xff]
  %v9566 = vld [vmem:[%s5576 + $0x1d0] sm:$0xff]
  %v9567 = vld [vmem:[%s5576 + $0x1e0] sm:$0xff]
  %v9568 = vld [vmem:[%s5576 + $0x1e8] sm:$0xff]
  %v9569 = vld [vmem:[%s5576 + $0x1f8] sm:$0xff]
  %v9570 = vld [vmem:[%s5576 + $0x200] sm:$0xff]
  %v9571 = vld [vmem:[%s5576 + $0x210] sm:$0xff]
  %v9572 = vld [vmem:[%s5576 + $0x218] sm:$0xff]
  %v9573 = vld [vmem:[%s5576 + $0x228] sm:$0xff]
  %v9574 = vld [vmem:[%s5576 + $0x230] sm:$0xff]
  %v9575 = vld [vmem:[%s5576 + $0x240] sm:$0xff]
  %v9576 = vld [vmem:[%s5576 + $0x248] sm:$0xff]
  %v9577 = vld [vmem:[%s5576 + $0x258] sm:$0xff]
  %v9578 = vld [vmem:[%s5576 + $0x260] sm:$0xff]
  %v9579 = vld [vmem:[%s5576 + $0x270] sm:$0xff]
  %v9580 = vld [vmem:[%s5576 + $0x278] sm:$0xff]
  %v9581 = vld [vmem:[%s5576 + $0x288] sm:$0xff]
  %v9582 = vld [vmem:[%s5576 + $0x290] sm:$0xff]
  %v9583 = vld [vmem:[%s5576 + $0x2a0] sm:$0xff]
  %v9584 = vld [vmem:[%s5576 + $0x2a8] sm:$0xff]
  %v9585 = vld [vmem:[%s5576 + $0x2b8] sm:$0xff]
  %v9586 = vld [vmem:[%s5576 + $0x2c0] sm:$0xff]
  %v9587 = vld [vmem:[%s5576 + $0x2d0] sm:$0xff]
  %v9588 = vld [vmem:[%s5576 + $0x2d8] sm:$0xff]
  %v9589 = vld [vmem:[%s5576 + $0x2e8] sm:$0xff]
  %v9590 = vld [vmem:[%s5576 + $0x2f0] sm:$0xff]
  %v9591 = vld [vmem:[%s5576 + $0x300] sm:$0xff]
  %v9592 = vld [vmem:[%s5576 + $0x308] sm:$0xff]
  %v9593 = vld [vmem:[%s5576 + $0x318] sm:$0xff]
  %v9594 = vld [vmem:[%s5576 + $0x320] sm:$0xff]
  %v9595 = vpack.c.bf16 %v9532, %v9531
  %v9596 = vpack.c.bf16 %v9534, %v9533
  %v9597 = vpack.c.bf16 %v9536, %v9535
  %v9598 = vpack.c.bf16 %v9538, %v9537
  %v9599 = vpack.c.bf16 %v9540, %v9539
  %v9600 = vpack.c.bf16 %v9542, %v9541
  %v9601 = vpack.c.bf16 %v9544, %v9543
  %v9602 = vpack.c.bf16 %v9546, %v9545
  %v9603 = vpack.c.bf16 %v9548, %v9547
  %v9604 = vpack.c.bf16 %v9550, %v9549
  %v9605 = vpack.c.bf16 %v9552, %v9551
  %v9606 = vpack.c.bf16 %v9554, %v9553
  %v9607 = vpack.c.bf16 %v9556, %v9555
  %v9608 = vpack.c.bf16 %v9558, %v9557
  %v9609 = vpack.c.bf16 %v9560, %v9559
  %v9610 = vpack.c.bf16 %v9562, %v9561
  %v9611 = vpack.c.bf16 %v9564, %v9563
  %v9612 = vpack.c.bf16 %v9566, %v9565
  %v9613 = vpack.c.bf16 %v9568, %v9567
  %v9614 = vpack.c.bf16 %v9570, %v9569
  %v9615 = vpack.c.bf16 %v9572, %v9571
  %v9616 = vpack.c.bf16 %v9574, %v9573
  %v9617 = vpack.c.bf16 %v9576, %v9575
  %v9618 = vpack.c.bf16 %v9578, %v9577
  %v9619 = vpack.c.bf16 %v9580, %v9579
  %v9620 = vpack.c.bf16 %v9582, %v9581
  %v9621 = vpack.c.bf16 %v9584, %v9583
  %v9622 = vpack.c.bf16 %v9586, %v9585
  %v9623 = vpack.c.bf16 %v9588, %v9587
  %v9624 = vpack.c.bf16 %v9590, %v9589
  %v9625 = vpack.c.bf16 %v9592, %v9591
  %v9626 = vpack.c.bf16 %v9594, %v9593
  %v9627 = vld [vmem:[%s4 + $0x180] sm:$0xf]
  %v9628 = vld [vmem:[%s4 + $0x184] sm:$0xf]
  %v9629 = vld [vmem:[%s4 + $0x188] sm:$0xf]
  %v9630 = vld [vmem:[%s4 + $0x18c] sm:$0xf]
  %v9631 = vld [vmem:[%s4 + $0x190] sm:$0xf]
  %v9632 = vld [vmem:[%s4 + $0x194] sm:$0xf]
  %v9633 = vld [vmem:[%s4 + $0x198] sm:$0xf]
  %v9634 = vld [vmem:[%s4 + $0x19c] sm:$0xf]
  %v9635 = vld [vmem:[%s4 + $0x1a0] sm:$0xf]
  %v9636 = vld [vmem:[%s4 + $0x1a4] sm:$0xf]
  %v9637 = vld [vmem:[%s4 + $0x1a8] sm:$0xf]
  %v9638 = vld [vmem:[%s4 + $0x1ac] sm:$0xf]
  %v9639 = vld [vmem:[%s4 + $0x1b0] sm:$0xf]
  %v9640 = vld [vmem:[%s4 + $0x1b4] sm:$0xf]
  %v9641 = vld [vmem:[%s4 + $0x1b8] sm:$0xf]
  %v9642 = vld [vmem:[%s4 + $0x1bc] sm:$0xf]
  %v9659 = vunpack.c.l.b16 %v9627
  %v9660 = vunpack.c.l.b16 %v9628
  %v9661 = vunpack.c.l.b16 %v9629
  %v9662 = vunpack.c.l.b16 %v9630
  %v9663 = vunpack.c.l.b16 %v9631
  %v9664 = vunpack.c.l.b16 %v9632
  %v9665 = vunpack.c.l.b16 %v9633
  %v9666 = vunpack.c.l.b16 %v9634
  %v9667 = vunpack.c.l.b16 %v9635
  %v9668 = vunpack.c.l.b16 %v9636
  %v9669 = vunpack.c.l.b16 %v9637
  %v9670 = vunpack.c.l.b16 %v9638
  %v9671 = vunpack.c.l.b16 %v9639
  %v9672 = vunpack.c.l.b16 %v9640
  %v9673 = vunpack.c.l.b16 %v9641
  %v9674 = vunpack.c.l.b16 %v9642
  %v9675 = vpack.c.b16 %v9660, %v9659
  %v9676 = vpack.c.b16 %v9662, %v9661
  %v9677 = vpack.c.b16 %v9664, %v9663
  %v9678 = vpack.c.b16 %v9666, %v9665
  %v9679 = vpack.c.b16 %v9668, %v9667
  %v9680 = vpack.c.b16 %v9670, %v9669
  %v9681 = vpack.c.b16 %v9672, %v9671
  %v9682 = vpack.c.b16 %v9674, %v9673
  %9691 = vmatpush.bf16.msra.mxu0 %v9682
  %9692 = vmatpush.bf16.msra.mxu0 %v9681
  %9693 = vmatpush.bf16.msra.mxu0 %v9680
  %9694 = vmatpush.bf16.msra.mxu0 %v9679
  %9695 = vmatpush.bf16.msra.mxu0 %v9678
  %9696 = vmatpush.bf16.msra.mxu0 %v9677
  %9697 = vmatpush.bf16.msra.mxu0 %v9676
  %9698 = vmatpush.bf16.msra.mxu0 %v9675
  %9699 = vmatmul.bf16.gmra.mxu0 %v9595
  %v9700 = vpop.f32.mrf.mxu0
  %v9701 = vadd.f32 0.0, %v9700
  %v9702 = vpop.f32.mrf.mxu0
  %v9703 = vadd.f32 0.0, %v9702
  %9704 = vmatmul.bf16.gmra.mxu0 %v9596
  %v9705 = vpop.f32.mrf.mxu0
  %v9706 = vadd.f32 0.0, %v9705
  %v9707 = vpop.f32.mrf.mxu0
  %v9708 = vadd.f32 0.0, %v9707
  %9709 = vmatmul.bf16.gmra.mxu0 %v9597
  %v9710 = vpop.f32.mrf.mxu0
  %v9711 = vadd.f32 0.0, %v9710
  %v9712 = vpop.f32.mrf.mxu0
  %v9713 = vadd.f32 0.0, %v9712
  %9714 = vmatmul.bf16.gmra.mxu0 %v9598
  %v9715 = vpop.f32.mrf.mxu0
  %v9716 = vadd.f32 0.0, %v9715
  %v9717 = vpop.f32.mrf.mxu0
  %v9718 = vadd.f32 0.0, %v9717
  %9719 = vmatmul.bf16.gmra.mxu0 %v9599
  %v9720 = vpop.f32.mrf.mxu0
  %v9721 = vadd.f32 0.0, %v9720
  %v9722 = vpop.f32.mrf.mxu0
  %v9723 = vadd.f32 0.0, %v9722
  %9724 = vmatmul.bf16.gmra.mxu0 %v9600
  %v9725 = vpop.f32.mrf.mxu0
  %v9726 = vadd.f32 0.0, %v9725
  %v9727 = vpop.f32.mrf.mxu0
  %v9728 = vadd.f32 0.0, %v9727
  %9729 = vmatmul.bf16.gmra.mxu0 %v9601
  %v9730 = vpop.f32.mrf.mxu0
  %v9731 = vadd.f32 0.0, %v9730
  %v9732 = vpop.f32.mrf.mxu0
  %v9733 = vadd.f32 0.0, %v9732
  %9734 = vmatmul.bf16.gmra.mxu0 %v9602
  %v9735 = vpop.f32.mrf.mxu0
  %v9736 = vadd.f32 0.0, %v9735
  %v9737 = vpop.f32.mrf.mxu0
  %v9738 = vadd.f32 0.0, %v9737
  %9739 = vmatmul.bf16.gmra.mxu0 %v9603
  %v9740 = vpop.f32.mrf.mxu0
  %v9741 = vadd.f32 0.0, %v9740
  %v9742 = vpop.f32.mrf.mxu0
  %v9743 = vadd.f32 0.0, %v9742
  %9744 = vmatmul.bf16.gmra.mxu0 %v9604
  %v9745 = vpop.f32.mrf.mxu0
  %v9746 = vadd.f32 0.0, %v9745
  %v9747 = vpop.f32.mrf.mxu0
  %v9748 = vadd.f32 0.0, %v9747
  %9749 = vmatmul.bf16.gmra.mxu0 %v9605
  %v9750 = vpop.f32.mrf.mxu0
  %v9751 = vadd.f32 0.0, %v9750
  %v9752 = vpop.f32.mrf.mxu0
  %v9753 = vadd.f32 0.0, %v9752
  %9754 = vmatmul.bf16.gmra.mxu0 %v9606
  %v9755 = vpop.f32.mrf.mxu0
  %v9756 = vadd.f32 0.0, %v9755
  %v9757 = vpop.f32.mrf.mxu0
  %v9758 = vadd.f32 0.0, %v9757
  %9759 = vmatmul.bf16.gmra.mxu0 %v9607
  %v9760 = vpop.f32.mrf.mxu0
  %v9761 = vadd.f32 0.0, %v9760
  %v9762 = vpop.f32.mrf.mxu0
  %v9763 = vadd.f32 0.0, %v9762
  %9764 = vmatmul.bf16.gmra.mxu0 %v9608
  %v9765 = vpop.f32.mrf.mxu0
  %v9766 = vadd.f32 0.0, %v9765
  %v9767 = vpop.f32.mrf.mxu0
  %v9768 = vadd.f32 0.0, %v9767
  %9769 = vmatmul.bf16.gmra.mxu0 %v9609
  %v9770 = vpop.f32.mrf.mxu0
  %v9771 = vadd.f32 0.0, %v9770
  %v9772 = vpop.f32.mrf.mxu0
  %v9773 = vadd.f32 0.0, %v9772
  %9774 = vmatmul.bf16.gmra.mxu0 %v9610
  %v9775 = vpop.f32.mrf.mxu0
  %v9776 = vadd.f32 0.0, %v9775
  %v9777 = vpop.f32.mrf.mxu0
  %v9778 = vadd.f32 0.0, %v9777
  %9779 = vmatmul.bf16.gmra.mxu0 %v9611
  %v9780 = vpop.f32.mrf.mxu0
  %v9781 = vadd.f32 0.0, %v9780
  %v9782 = vpop.f32.mrf.mxu0
  %v9783 = vadd.f32 0.0, %v9782
  %9784 = vmatmul.bf16.gmra.mxu0 %v9612
  %v9785 = vpop.f32.mrf.mxu0
  %v9786 = vadd.f32 0.0, %v9785
  %v9787 = vpop.f32.mrf.mxu0
  %v9788 = vadd.f32 0.0, %v9787
  %9789 = vmatmul.bf16.gmra.mxu0 %v9613
  %v9790 = vpop.f32.mrf.mxu0
  %v9791 = vadd.f32 0.0, %v9790
  %v9792 = vpop.f32.mrf.mxu0
  %v9793 = vadd.f32 0.0, %v9792
  %9794 = vmatmul.bf16.gmra.mxu0 %v9614
  %v9795 = vpop.f32.mrf.mxu0
  %v9796 = vadd.f32 0.0, %v9795
  %v9797 = vpop.f32.mrf.mxu0
  %v9798 = vadd.f32 0.0, %v9797
  %9799 = vmatmul.bf16.gmra.mxu0 %v9615
  %v9800 = vpop.f32.mrf.mxu0
  %v9801 = vadd.f32 0.0, %v9800
  %v9802 = vpop.f32.mrf.mxu0
  %v9803 = vadd.f32 0.0, %v9802
  %9804 = vmatmul.bf16.gmra.mxu0 %v9616
  %v9805 = vpop.f32.mrf.mxu0
  %v9806 = vadd.f32 0.0, %v9805
  %v9807 = vpop.f32.mrf.mxu0
  %v9808 = vadd.f32 0.0, %v9807
  %9809 = vmatmul.bf16.gmra.mxu0 %v9617
  %v9810 = vpop.f32.mrf.mxu0
  %v9811 = vadd.f32 0.0, %v9810
  %v9812 = vpop.f32.mrf.mxu0
  %v9813 = vadd.f32 0.0, %v9812
  %9814 = vmatmul.bf16.gmra.mxu0 %v9618
  %v9815 = vpop.f32.mrf.mxu0
  %v9816 = vadd.f32 0.0, %v9815
  %v9817 = vpop.f32.mrf.mxu0
  %v9818 = vadd.f32 0.0, %v9817
  %9819 = vmatmul.bf16.gmra.mxu0 %v9619
  %v9820 = vpop.f32.mrf.mxu0
  %v9821 = vadd.f32 0.0, %v9820
  %v9822 = vpop.f32.mrf.mxu0
  %v9823 = vadd.f32 0.0, %v9822
  %9824 = vmatmul.bf16.gmra.mxu0 %v9620
  %v9825 = vpop.f32.mrf.mxu0
  %v9826 = vadd.f32 0.0, %v9825
  %v9827 = vpop.f32.mrf.mxu0
  %v9828 = vadd.f32 0.0, %v9827
  %9829 = vmatmul.bf16.gmra.mxu0 %v9621
  %v9830 = vpop.f32.mrf.mxu0
  %v9831 = vadd.f32 0.0, %v9830
  %v9832 = vpop.f32.mrf.mxu0
  %v9833 = vadd.f32 0.0, %v9832
  %9834 = vmatmul.bf16.gmra.mxu0 %v9622
  %v9835 = vpop.f32.mrf.mxu0
  %v9836 = vadd.f32 0.0, %v9835
  %v9837 = vpop.f32.mrf.mxu0
  %v9838 = vadd.f32 0.0, %v9837
  %9839 = vmatmul.bf16.gmra.mxu0 %v9623
  %v9840 = vpop.f32.mrf.mxu0
  %v9841 = vadd.f32 0.0, %v9840
  %v9842 = vpop.f32.mrf.mxu0
  %v9843 = vadd.f32 0.0, %v9842
  %9844 = vmatmul.bf16.gmra.mxu0 %v9624
  %v9845 = vpop.f32.mrf.mxu0
  %v9846 = vadd.f32 0.0, %v9845
  %v9847 = vpop.f32.mrf.mxu0
  %v9848 = vadd.f32 0.0, %v9847
  %9849 = vmatmul.bf16.gmra.mxu0 %v9625
  %v9850 = vpop.f32.mrf.mxu0
  %v9851 = vadd.f32 0.0, %v9850
  %v9852 = vpop.f32.mrf.mxu0
  %v9853 = vadd.f32 0.0, %v9852
  %9854 = vmatmul.bf16.gmra.mxu0 %v9626
  %v9855 = vpop.f32.mrf.mxu0
  %v9856 = vadd.f32 0.0, %v9855
  %v9857 = vpop.f32.mrf.mxu0
  %v9858 = vadd.f32 0.0, %v9857
  %9859 = vdwg.mxu0
  %v9860 = vadd.f32 %v9467, %v9701
  %v9861 = vadd.f32 %v9468, %v9703
  %v9862 = vadd.f32 %v9469, %v9706
  %v9863 = vadd.f32 %v9470, %v9708
  %v9864 = vadd.f32 %v9471, %v9711
  %v9865 = vadd.f32 %v9472, %v9713
  %v9866 = vadd.f32 %v9473, %v9716
  %v9867 = vadd.f32 %v9474, %v9718
  %v9868 = vadd.f32 %v9475, %v9721
  %v9869 = vadd.f32 %v9476, %v9723
  %v9870 = vadd.f32 %v9477, %v9726
  %v9871 = vadd.f32 %v9478, %v9728
  %v9872 = vadd.f32 %v9479, %v9731
  %v9873 = vadd.f32 %v9480, %v9733
  %v9874 = vadd.f32 %v9481, %v9736
  %v9875 = vadd.f32 %v9482, %v9738
  %v9876 = vadd.f32 %v9483, %v9741
  %v9877 = vadd.f32 %v9484, %v9743
  %v9878 = vadd.f32 %v9485, %v9746
  %v9879 = vadd.f32 %v9486, %v9748
  %v9880 = vadd.f32 %v9487, %v9751
  %v9881 = vadd.f32 %v9488, %v9753
  %v9882 = vadd.f32 %v9489, %v9756
  %v9883 = vadd.f32 %v9490, %v9758
  %v9884 = vadd.f32 %v9491, %v9761
  %v9885 = vadd.f32 %v9492, %v9763
  %v9886 = vadd.f32 %v9493, %v9766
  %v9887 = vadd.f32 %v9494, %v9768
  %v9888 = vadd.f32 %v9495, %v9771
  %v9889 = vadd.f32 %v9496, %v9773
  %v9890 = vadd.f32 %v9497, %v9776
  %v9891 = vadd.f32 %v9498, %v9778
  %v9892 = vadd.f32 %v9499, %v9781
  %v9893 = vadd.f32 %v9500, %v9783
  %v9894 = vadd.f32 %v9501, %v9786
  %v9895 = vadd.f32 %v9502, %v9788
  %v9896 = vadd.f32 %v9503, %v9791
  %v9897 = vadd.f32 %v9504, %v9793
  %v9898 = vadd.f32 %v9505, %v9796
  %v9899 = vadd.f32 %v9506, %v9798
  %v9900 = vadd.f32 %v9507, %v9801
  %v9901 = vadd.f32 %v9508, %v9803
  %v9902 = vadd.f32 %v9509, %v9806
  %v9903 = vadd.f32 %v9510, %v9808
  %v9904 = vadd.f32 %v9511, %v9811
  %v9905 = vadd.f32 %v9512, %v9813
  %v9906 = vadd.f32 %v9513, %v9816
  %v9907 = vadd.f32 %v9514, %v9818
  %v9908 = vadd.f32 %v9515, %v9821
  %v9909 = vadd.f32 %v9516, %v9823
  %v9910 = vadd.f32 %v9517, %v9826
  %v9911 = vadd.f32 %v9518, %v9828
  %v9912 = vadd.f32 %v9519, %v9831
  %v9913 = vadd.f32 %v9520, %v9833
  %v9914 = vadd.f32 %v9521, %v9836
  %v9915 = vadd.f32 %v9522, %v9838
  %v9916 = vadd.f32 %v9523, %v9841
  %v9917 = vadd.f32 %v9524, %v9843
  %v9918 = vadd.f32 %v9525, %v9846
  %v9919 = vadd.f32 %v9526, %v9848
  %v9920 = vadd.f32 %v9527, %v9851
  %v9921 = vadd.f32 %v9528, %v9853
  %v9922 = vadd.f32 %v9529, %v9856
  %v9923 = vadd.f32 %v9530, %v9858
  %v9924 = vld [vmem:[%s5576 + $0x1] sm:$0xff]
  %v9925 = vld [vmem:[%s5576 + $0x9] sm:$0xff]
  %v9926 = vld [vmem:[%s5576 + $0x19] sm:$0xff]
  %v9927 = vld [vmem:[%s5576 + $0x21] sm:$0xff]
  %v9928 = vld [vmem:[%s5576 + $0x31] sm:$0xff]
  %v9929 = vld [vmem:[%s5576 + $0x39] sm:$0xff]
  %v9930 = vld [vmem:[%s5576 + $0x49] sm:$0xff]
  %v9931 = vld [vmem:[%s5576 + $0x51] sm:$0xff]
  %v9932 = vld [vmem:[%s5576 + $0x61] sm:$0xff]
  %v9933 = vld [vmem:[%s5576 + $0x69] sm:$0xff]
  %v9934 = vld [vmem:[%s5576 + $0x79] sm:$0xff]
  %v9935 = vld [vmem:[%s5576 + $0x81] sm:$0xff]
  %v9936 = vld [vmem:[%s5576 + $0x91] sm:$0xff]
  %v9937 = vld [vmem:[%s5576 + $0x99] sm:$0xff]
  %v9938 = vld [vmem:[%s5576 + $0xa9] sm:$0xff]
  %v9939 = vld [vmem:[%s5576 + $0xb1] sm:$0xff]
  %v9940 = vld [vmem:[%s5576 + $0xc1] sm:$0xff]
  %v9941 = vld [vmem:[%s5576 + $0xc9] sm:$0xff]
  %v9942 = vld [vmem:[%s5576 + $0xd9] sm:$0xff]
  %v9943 = vld [vmem:[%s5576 + $0xe1] sm:$0xff]
  %v9944 = vld [vmem:[%s5576 + $0xf1] sm:$0xff]
  %v9945 = vld [vmem:[%s5576 + $0xf9] sm:$0xff]
  %v9946 = vld [vmem:[%s5576 + $0x109] sm:$0xff]
  %v9947 = vld [vmem:[%s5576 + $0x111] sm:$0xff]
  %v9948 = vld [vmem:[%s5576 + $0x121] sm:$0xff]
  %v9949 = vld [vmem:[%s5576 + $0x129] sm:$0xff]
  %v9950 = vld [vmem:[%s5576 + $0x139] sm:$0xff]
  %v9951 = vld [vmem:[%s5576 + $0x141] sm:$0xff]
  %v9952 = vld [vmem:[%s5576 + $0x151] sm:$0xff]
  %v9953 = vld [vmem:[%s5576 + $0x159] sm:$0xff]
  %v9954 = vld [vmem:[%s5576 + $0x169] sm:$0xff]
  %v9955 = vld [vmem:[%s5576 + $0x171] sm:$0xff]
  %v9956 = vld [vmem:[%s5576 + $0x1b1] sm:$0xff]
  %v9957 = vld [vmem:[%s5576 + $0x1b9] sm:$0xff]
  %v9958 = vld [vmem:[%s5576 + $0x1c9] sm:$0xff]
  %v9959 = vld [vmem:[%s5576 + $0x1d1] sm:$0xff]
  %v9960 = vld [vmem:[%s5576 + $0x1e1] sm:$0xff]
  %v9961 = vld [vmem:[%s5576 + $0x1e9] sm:$0xff]
  %v9962 = vld [vmem:[%s5576 + $0x1f9] sm:$0xff]
  %v9963 = vld [vmem:[%s5576 + $0x201] sm:$0xff]
  %v9964 = vld [vmem:[%s5576 + $0x211] sm:$0xff]
  %v9965 = vld [vmem:[%s5576 + $0x219] sm:$0xff]
  %v9966 = vld [vmem:[%s5576 + $0x229] sm:$0xff]
  %v9967 = vld [vmem:[%s5576 + $0x231] sm:$0xff]
  %v9968 = vld [vmem:[%s5576 + $0x241] sm:$0xff]
  %v9969 = vld [vmem:[%s5576 + $0x249] sm:$0xff]
  %v9970 = vld [vmem:[%s5576 + $0x259] sm:$0xff]
  %v9971 = vld [vmem:[%s5576 + $0x261] sm:$0xff]
  %v9972 = vld [vmem:[%s5576 + $0x271] sm:$0xff]
  %v9973 = vld [vmem:[%s5576 + $0x279] sm:$0xff]
  %v9974 = vld [vmem:[%s5576 + $0x289] sm:$0xff]
  %v9975 = vld [vmem:[%s5576 + $0x291] sm:$0xff]
  %v9976 = vld [vmem:[%s5576 + $0x2a1] sm:$0xff]
  %v9977 = vld [vmem:[%s5576 + $0x2a9] sm:$0xff]
  %v9978 = vld [vmem:[%s5576 + $0x2b9] sm:$0xff]
  %v9979 = vld [vmem:[%s5576 + $0x2c1] sm:$0xff]
  %v9980 = vld [vmem:[%s5576 + $0x2d1] sm:$0xff]
  %v9981 = vld [vmem:[%s5576 + $0x2d9] sm:$0xff]
  %v9982 = vld [vmem:[%s5576 + $0x2e9] sm:$0xff]
  %v9983 = vld [vmem:[%s5576 + $0x2f1] sm:$0xff]
  %v9984 = vld [vmem:[%s5576 + $0x301] sm:$0xff]
  %v9985 = vld [vmem:[%s5576 + $0x309] sm:$0xff]
  %v9986 = vld [vmem:[%s5576 + $0x319] sm:$0xff]
  %v9987 = vld [vmem:[%s5576 + $0x321] sm:$0xff]
  %v9988 = vpack.c.bf16 %v9925, %v9924
  %v9989 = vpack.c.bf16 %v9927, %v9926
  %v9990 = vpack.c.bf16 %v9929, %v9928
  %v9991 = vpack.c.bf16 %v9931, %v9930
  %v9992 = vpack.c.bf16 %v9933, %v9932
  %v9993 = vpack.c.bf16 %v9935, %v9934
  %v9994 = vpack.c.bf16 %v9937, %v9936
  %v9995 = vpack.c.bf16 %v9939, %v9938
  %v9996 = vpack.c.bf16 %v9941, %v9940
  %v9997 = vpack.c.bf16 %v9943, %v9942
  %v9998 = vpack.c.bf16 %v9945, %v9944
  %v9999 = vpack.c.bf16 %v9947, %v9946
  %v10000 = vpack.c.bf16 %v9949, %v9948
  %v10001 = vpack.c.bf16 %v9951, %v9950
  %v10002 = vpack.c.bf16 %v9953, %v9952
  %v10003 = vpack.c.bf16 %v9955, %v9954
  %v10004 = vpack.c.bf16 %v9957, %v9956
  %v10005 = vpack.c.bf16 %v9959, %v9958
  %v10006 = vpack.c.bf16 %v9961, %v9960
  %v10007 = vpack.c.bf16 %v9963, %v9962
  %v10008 = vpack.c.bf16 %v9965, %v9964
  %v10009 = vpack.c.bf16 %v9967, %v9966
  %v10010 = vpack.c.bf16 %v9969, %v9968
  %v10011 = vpack.c.bf16 %v9971, %v9970
  %v10012 = vpack.c.bf16 %v9973, %v9972
  %v10013 = vpack.c.bf16 %v9975, %v9974
  %v10014 = vpack.c.bf16 %v9977, %v9976
  %v10015 = vpack.c.bf16 %v9979, %v9978
  %v10016 = vpack.c.bf16 %v9981, %v9980
  %v10017 = vpack.c.bf16 %v9983, %v9982
  %v10018 = vpack.c.bf16 %v9985, %v9984
  %v10019 = vpack.c.bf16 %v9987, %v9986
  %v10020 = vld [vmem:[%s4 + $0x1c0] sm:$0xf]
  %v10021 = vld [vmem:[%s4 + $0x1c4] sm:$0xf]
  %v10022 = vld [vmem:[%s4 + $0x1c8] sm:$0xf]
  %v10023 = vld [vmem:[%s4 + $0x1cc] sm:$0xf]
  %v10024 = vld [vmem:[%s4 + $0x1d0] sm:$0xf]
  %v10025 = vld [vmem:[%s4 + $0x1d4] sm:$0xf]
  %v10026 = vld [vmem:[%s4 + $0x1d8] sm:$0xf]
  %v10027 = vld [vmem:[%s4 + $0x1dc] sm:$0xf]
  %v10028 = vld [vmem:[%s4 + $0x1e0] sm:$0xf]
  %v10029 = vld [vmem:[%s4 + $0x1e4] sm:$0xf]
  %v10030 = vld [vmem:[%s4 + $0x1e8] sm:$0xf]
  %v10031 = vld [vmem:[%s4 + $0x1ec] sm:$0xf]
  %v10032 = vld [vmem:[%s4 + $0x1f0] sm:$0xf]
  %v10033 = vld [vmem:[%s4 + $0x1f4] sm:$0xf]
  %v10034 = vld [vmem:[%s4 + $0x1f8] sm:$0xf]
  %v10035 = vld [vmem:[%s4 + $0x1fc] sm:$0xf]
  %v10052 = vunpack.c.l.b16 %v10020
  %v10053 = vunpack.c.l.b16 %v10021
  %v10054 = vunpack.c.l.b16 %v10022
  %v10055 = vunpack.c.l.b16 %v10023
  %v10056 = vunpack.c.l.b16 %v10024
  %v10057 = vunpack.c.l.b16 %v10025
  %v10058 = vunpack.c.l.b16 %v10026
  %v10059 = vunpack.c.l.b16 %v10027
  %v10060 = vunpack.c.l.b16 %v10028
  %v10061 = vunpack.c.l.b16 %v10029
  %v10062 = vunpack.c.l.b16 %v10030
  %v10063 = vunpack.c.l.b16 %v10031
  %v10064 = vunpack.c.l.b16 %v10032
  %v10065 = vunpack.c.l.b16 %v10033
  %v10066 = vunpack.c.l.b16 %v10034
  %v10067 = vunpack.c.l.b16 %v10035
  %v10068 = vpack.c.b16 %v10053, %v10052
  %v10069 = vpack.c.b16 %v10055, %v10054
  %v10070 = vpack.c.b16 %v10057, %v10056
  %v10071 = vpack.c.b16 %v10059, %v10058
  %v10072 = vpack.c.b16 %v10061, %v10060
  %v10073 = vpack.c.b16 %v10063, %v10062
  %v10074 = vpack.c.b16 %v10065, %v10064
  %v10075 = vpack.c.b16 %v10067, %v10066
  %10084 = vmatpush.bf16.msra.mxu0 %v10075
  %10085 = vmatpush.bf16.msra.mxu0 %v10074
  %10086 = vmatpush.bf16.msra.mxu0 %v10073
  %10087 = vmatpush.bf16.msra.mxu0 %v10072
  %10088 = vmatpush.bf16.msra.mxu0 %v10071
  %10089 = vmatpush.bf16.msra.mxu0 %v10070
  %10090 = vmatpush.bf16.msra.mxu0 %v10069
  %10091 = vmatpush.bf16.msra.mxu0 %v10068
  %10092 = vmatmul.bf16.gmra.mxu0 %v9988
  %v10093 = vpop.f32.mrf.mxu0
  %v10094 = vadd.f32 0.0, %v10093
  %v10095 = vpop.f32.mrf.mxu0
  %v10096 = vadd.f32 0.0, %v10095
  %10097 = vmatmul.bf16.gmra.mxu0 %v9989
  %v10098 = vpop.f32.mrf.mxu0
  %v10099 = vadd.f32 0.0, %v10098
  %v10100 = vpop.f32.mrf.mxu0
  %v10101 = vadd.f32 0.0, %v10100
  %10102 = vmatmul.bf16.gmra.mxu0 %v9990
  %v10103 = vpop.f32.mrf.mxu0
  %v10104 = vadd.f32 0.0, %v10103
  %v10105 = vpop.f32.mrf.mxu0
  %v10106 = vadd.f32 0.0, %v10105
  %10107 = vmatmul.bf16.gmra.mxu0 %v9991
  %v10108 = vpop.f32.mrf.mxu0
  %v10109 = vadd.f32 0.0, %v10108
  %v10110 = vpop.f32.mrf.mxu0
  %v10111 = vadd.f32 0.0, %v10110
  %10112 = vmatmul.bf16.gmra.mxu0 %v9992
  %v10113 = vpop.f32.mrf.mxu0
  %v10114 = vadd.f32 0.0, %v10113
  %v10115 = vpop.f32.mrf.mxu0
  %v10116 = vadd.f32 0.0, %v10115
  %10117 = vmatmul.bf16.gmra.mxu0 %v9993
  %v10118 = vpop.f32.mrf.mxu0
  %v10119 = vadd.f32 0.0, %v10118
  %v10120 = vpop.f32.mrf.mxu0
  %v10121 = vadd.f32 0.0, %v10120
  %10122 = vmatmul.bf16.gmra.mxu0 %v9994
  %v10123 = vpop.f32.mrf.mxu0
  %v10124 = vadd.f32 0.0, %v10123
  %v10125 = vpop.f32.mrf.mxu0
  %v10126 = vadd.f32 0.0, %v10125
  %10127 = vmatmul.bf16.gmra.mxu0 %v9995
  %v10128 = vpop.f32.mrf.mxu0
  %v10129 = vadd.f32 0.0, %v10128
  %v10130 = vpop.f32.mrf.mxu0
  %v10131 = vadd.f32 0.0, %v10130
  %10132 = vmatmul.bf16.gmra.mxu0 %v9996
  %v10133 = vpop.f32.mrf.mxu0
  %v10134 = vadd.f32 0.0, %v10133
  %v10135 = vpop.f32.mrf.mxu0
  %v10136 = vadd.f32 0.0, %v10135
  %10137 = vmatmul.bf16.gmra.mxu0 %v9997
  %v10138 = vpop.f32.mrf.mxu0
  %v10139 = vadd.f32 0.0, %v10138
  %v10140 = vpop.f32.mrf.mxu0
  %v10141 = vadd.f32 0.0, %v10140
  %10142 = vmatmul.bf16.gmra.mxu0 %v9998
  %v10143 = vpop.f32.mrf.mxu0
  %v10144 = vadd.f32 0.0, %v10143
  %v10145 = vpop.f32.mrf.mxu0
  %v10146 = vadd.f32 0.0, %v10145
  %10147 = vmatmul.bf16.gmra.mxu0 %v9999
  %v10148 = vpop.f32.mrf.mxu0
  %v10149 = vadd.f32 0.0, %v10148
  %v10150 = vpop.f32.mrf.mxu0
  %v10151 = vadd.f32 0.0, %v10150
  %10152 = vmatmul.bf16.gmra.mxu0 %v10000
  %v10153 = vpop.f32.mrf.mxu0
  %v10154 = vadd.f32 0.0, %v10153
  %v10155 = vpop.f32.mrf.mxu0
  %v10156 = vadd.f32 0.0, %v10155
  %10157 = vmatmul.bf16.gmra.mxu0 %v10001
  %v10158 = vpop.f32.mrf.mxu0
  %v10159 = vadd.f32 0.0, %v10158
  %v10160 = vpop.f32.mrf.mxu0
  %v10161 = vadd.f32 0.0, %v10160
  %10162 = vmatmul.bf16.gmra.mxu0 %v10002
  %v10163 = vpop.f32.mrf.mxu0
  %v10164 = vadd.f32 0.0, %v10163
  %v10165 = vpop.f32.mrf.mxu0
  %v10166 = vadd.f32 0.0, %v10165
  %10167 = vmatmul.bf16.gmra.mxu0 %v10003
  %v10168 = vpop.f32.mrf.mxu0
  %v10169 = vadd.f32 0.0, %v10168
  %v10170 = vpop.f32.mrf.mxu0
  %v10171 = vadd.f32 0.0, %v10170
  %10172 = vmatmul.bf16.gmra.mxu0 %v10004
  %v10173 = vpop.f32.mrf.mxu0
  %v10174 = vadd.f32 0.0, %v10173
  %v10175 = vpop.f32.mrf.mxu0
  %v10176 = vadd.f32 0.0, %v10175
  %10177 = vmatmul.bf16.gmra.mxu0 %v10005
  %v10178 = vpop.f32.mrf.mxu0
  %v10179 = vadd.f32 0.0, %v10178
  %v10180 = vpop.f32.mrf.mxu0
  %v10181 = vadd.f32 0.0, %v10180
  %10182 = vmatmul.bf16.gmra.mxu0 %v10006
  %v10183 = vpop.f32.mrf.mxu0
  %v10184 = vadd.f32 0.0, %v10183
  %v10185 = vpop.f32.mrf.mxu0
  %v10186 = vadd.f32 0.0, %v10185
  %10187 = vmatmul.bf16.gmra.mxu0 %v10007
  %v10188 = vpop.f32.mrf.mxu0
  %v10189 = vadd.f32 0.0, %v10188
  %v10190 = vpop.f32.mrf.mxu0
  %v10191 = vadd.f32 0.0, %v10190
  %10192 = vmatmul.bf16.gmra.mxu0 %v10008
  %v10193 = vpop.f32.mrf.mxu0
  %v10194 = vadd.f32 0.0, %v10193
  %v10195 = vpop.f32.mrf.mxu0
  %v10196 = vadd.f32 0.0, %v10195
  %10197 = vmatmul.bf16.gmra.mxu0 %v10009
  %v10198 = vpop.f32.mrf.mxu0
  %v10199 = vadd.f32 0.0, %v10198
  %v10200 = vpop.f32.mrf.mxu0
  %v10201 = vadd.f32 0.0, %v10200
  %10202 = vmatmul.bf16.gmra.mxu0 %v10010
  %v10203 = vpop.f32.mrf.mxu0
  %v10204 = vadd.f32 0.0, %v10203
  %v10205 = vpop.f32.mrf.mxu0
  %v10206 = vadd.f32 0.0, %v10205
  %10207 = vmatmul.bf16.gmra.mxu0 %v10011
  %v10208 = vpop.f32.mrf.mxu0
  %v10209 = vadd.f32 0.0, %v10208
  %v10210 = vpop.f32.mrf.mxu0
  %v10211 = vadd.f32 0.0, %v10210
  %10212 = vmatmul.bf16.gmra.mxu0 %v10012
  %v10213 = vpop.f32.mrf.mxu0
  %v10214 = vadd.f32 0.0, %v10213
  %v10215 = vpop.f32.mrf.mxu0
  %v10216 = vadd.f32 0.0, %v10215
  %10217 = vmatmul.bf16.gmra.mxu0 %v10013
  %v10218 = vpop.f32.mrf.mxu0
  %v10219 = vadd.f32 0.0, %v10218
  %v10220 = vpop.f32.mrf.mxu0
  %v10221 = vadd.f32 0.0, %v10220
  %10222 = vmatmul.bf16.gmra.mxu0 %v10014
  %v10223 = vpop.f32.mrf.mxu0
  %v10224 = vadd.f32 0.0, %v10223
  %v10225 = vpop.f32.mrf.mxu0
  %v10226 = vadd.f32 0.0, %v10225
  %10227 = vmatmul.bf16.gmra.mxu0 %v10015
  %v10228 = vpop.f32.mrf.mxu0
  %v10229 = vadd.f32 0.0, %v10228
  %v10230 = vpop.f32.mrf.mxu0
  %v10231 = vadd.f32 0.0, %v10230
  %10232 = vmatmul.bf16.gmra.mxu0 %v10016
  %v10233 = vpop.f32.mrf.mxu0
  %v10234 = vadd.f32 0.0, %v10233
  %v10235 = vpop.f32.mrf.mxu0
  %v10236 = vadd.f32 0.0, %v10235
  %10237 = vmatmul.bf16.gmra.mxu0 %v10017
  %v10238 = vpop.f32.mrf.mxu0
  %v10239 = vadd.f32 0.0, %v10238
  %v10240 = vpop.f32.mrf.mxu0
  %v10241 = vadd.f32 0.0, %v10240
  %10242 = vmatmul.bf16.gmra.mxu0 %v10018
  %v10243 = vpop.f32.mrf.mxu0
  %v10244 = vadd.f32 0.0, %v10243
  %v10245 = vpop.f32.mrf.mxu0
  %v10246 = vadd.f32 0.0, %v10245
  %10247 = vmatmul.bf16.gmra.mxu0 %v10019
  %v10248 = vpop.f32.mrf.mxu0
  %v10249 = vadd.f32 0.0, %v10248
  %v10250 = vpop.f32.mrf.mxu0
  %v10251 = vadd.f32 0.0, %v10250
  %10252 = vdwg.mxu0
  %v10253 = vadd.f32 %v9860, %v10094
  %v10254 = vadd.f32 %v9861, %v10096
  %v10255 = vadd.f32 %v9862, %v10099
  %v10256 = vadd.f32 %v9863, %v10101
  %v10257 = vadd.f32 %v9864, %v10104
  %v10258 = vadd.f32 %v9865, %v10106
  %v10259 = vadd.f32 %v9866, %v10109
  %v10260 = vadd.f32 %v9867, %v10111
  %v10261 = vadd.f32 %v9868, %v10114
  %v10262 = vadd.f32 %v9869, %v10116
  %v10263 = vadd.f32 %v9870, %v10119
  %v10264 = vadd.f32 %v9871, %v10121
  %v10265 = vadd.f32 %v9872, %v10124
  %v10266 = vadd.f32 %v9873, %v10126
  %v10267 = vadd.f32 %v9874, %v10129
  %v10268 = vadd.f32 %v9875, %v10131
  %v10269 = vadd.f32 %v9876, %v10134
  %v10270 = vadd.f32 %v9877, %v10136
  %v10271 = vadd.f32 %v9878, %v10139
  %v10272 = vadd.f32 %v9879, %v10141
  %v10273 = vadd.f32 %v9880, %v10144
  %v10274 = vadd.f32 %v9881, %v10146
  %v10275 = vadd.f32 %v9882, %v10149
  %v10276 = vadd.f32 %v9883, %v10151
  %v10277 = vadd.f32 %v9884, %v10154
  %v10278 = vadd.f32 %v9885, %v10156
  %v10279 = vadd.f32 %v9886, %v10159
  %v10280 = vadd.f32 %v9887, %v10161
  %v10281 = vadd.f32 %v9888, %v10164
  %v10282 = vadd.f32 %v9889, %v10166
  %v10283 = vadd.f32 %v9890, %v10169
  %v10284 = vadd.f32 %v9891, %v10171
  %v10285 = vadd.f32 %v9892, %v10174
  %v10286 = vadd.f32 %v9893, %v10176
  %v10287 = vadd.f32 %v9894, %v10179
  %v10288 = vadd.f32 %v9895, %v10181
  %v10289 = vadd.f32 %v9896, %v10184
  %v10290 = vadd.f32 %v9897, %v10186
  %v10291 = vadd.f32 %v9898, %v10189
  %v10292 = vadd.f32 %v9899, %v10191
  %v10293 = vadd.f32 %v9900, %v10194
  %v10294 = vadd.f32 %v9901, %v10196
  %v10295 = vadd.f32 %v9902, %v10199
  %v10296 = vadd.f32 %v9903, %v10201
  %v10297 = vadd.f32 %v9904, %v10204
  %v10298 = vadd.f32 %v9905, %v10206
  %v10299 = vadd.f32 %v9906, %v10209
  %v10300 = vadd.f32 %v9907, %v10211
  %v10301 = vadd.f32 %v9908, %v10214
  %v10302 = vadd.f32 %v9909, %v10216
  %v10303 = vadd.f32 %v9910, %v10219
  %v10304 = vadd.f32 %v9911, %v10221
  %v10305 = vadd.f32 %v9912, %v10224
  %v10306 = vadd.f32 %v9913, %v10226
  %v10307 = vadd.f32 %v9914, %v10229
  %v10308 = vadd.f32 %v9915, %v10231
  %v10309 = vadd.f32 %v9916, %v10234
  %v10310 = vadd.f32 %v9917, %v10236
  %v10311 = vadd.f32 %v9918, %v10239
  %v10312 = vadd.f32 %v9919, %v10241
  %v10313 = vadd.f32 %v9920, %v10244
  %v10314 = vadd.f32 %v9921, %v10246
  %v10315 = vadd.f32 %v9922, %v10249
  %v10316 = vadd.f32 %v9923, %v10251
  %v10317 = vld [vmem:[%s5576 + $0x2] sm:$0xff]
  %v10318 = vld [vmem:[%s5576 + $0xa] sm:$0xff]
  %v10319 = vld [vmem:[%s5576 + $0x1a] sm:$0xff]
  %v10320 = vld [vmem:[%s5576 + $0x22] sm:$0xff]
  %v10321 = vld [vmem:[%s5576 + $0x32] sm:$0xff]
  %v10322 = vld [vmem:[%s5576 + $0x3a] sm:$0xff]
  %v10323 = vld [vmem:[%s5576 + $0x4a] sm:$0xff]
  %v10324 = vld [vmem:[%s5576 + $0x52] sm:$0xff]
  %v10325 = vld [vmem:[%s5576 + $0x62] sm:$0xff]
  %v10326 = vld [vmem:[%s5576 + $0x6a] sm:$0xff]
  %v10327 = vld [vmem:[%s5576 + $0x7a] sm:$0xff]
  %v10328 = vld [vmem:[%s5576 + $0x82] sm:$0xff]
  %v10329 = vld [vmem:[%s5576 + $0x92] sm:$0xff]
  %v10330 = vld [vmem:[%s5576 + $0x9a] sm:$0xff]
  %v10331 = vld [vmem:[%s5576 + $0xaa] sm:$0xff]
  %v10332 = vld [vmem:[%s5576 + $0xb2] sm:$0xff]
  %v10333 = vld [vmem:[%s5576 + $0xc2] sm:$0xff]
  %v10334 = vld [vmem:[%s5576 + $0xca] sm:$0xff]
  %v10335 = vld [vmem:[%s5576 + $0xda] sm:$0xff]
  %v10336 = vld [vmem:[%s5576 + $0xe2] sm:$0xff]
  %v10337 = vld [vmem:[%s5576 + $0xf2] sm:$0xff]
  %v10338 = vld [vmem:[%s5576 + $0xfa] sm:$0xff]
  %v10339 = vld [vmem:[%s5576 + $0x10a] sm:$0xff]
  %v10340 = vld [vmem:[%s5576 + $0x112] sm:$0xff]
  %v10341 = vld [vmem:[%s5576 + $0x122] sm:$0xff]
  %v10342 = vld [vmem:[%s5576 + $0x12a] sm:$0xff]
  %v10343 = vld [vmem:[%s5576 + $0x13a] sm:$0xff]
  %v10344 = vld [vmem:[%s5576 + $0x142] sm:$0xff]
  %v10345 = vld [vmem:[%s5576 + $0x152] sm:$0xff]
  %v10346 = vld [vmem:[%s5576 + $0x15a] sm:$0xff]
  %v10347 = vld [vmem:[%s5576 + $0x16a] sm:$0xff]
  %v10348 = vld [vmem:[%s5576 + $0x172] sm:$0xff]
  %v10349 = vld [vmem:[%s5576 + $0x1b2] sm:$0xff]
  %v10350 = vld [vmem:[%s5576 + $0x1ba] sm:$0xff]
  %v10351 = vld [vmem:[%s5576 + $0x1ca] sm:$0xff]
  %v10352 = vld [vmem:[%s5576 + $0x1d2] sm:$0xff]
  %v10353 = vld [vmem:[%s5576 + $0x1e2] sm:$0xff]
  %v10354 = vld [vmem:[%s5576 + $0x1ea] sm:$0xff]
  %v10355 = vld [vmem:[%s5576 + $0x1fa] sm:$0xff]
  %v10356 = vld [vmem:[%s5576 + $0x202] sm:$0xff]
  %v10357 = vld [vmem:[%s5576 + $0x212] sm:$0xff]
  %v10358 = vld [vmem:[%s5576 + $0x21a] sm:$0xff]
  %v10359 = vld [vmem:[%s5576 + $0x22a] sm:$0xff]
  %v10360 = vld [vmem:[%s5576 + $0x232] sm:$0xff]
  %v10361 = vld [vmem:[%s5576 + $0x242] sm:$0xff]
  %v10362 = vld [vmem:[%s5576 + $0x24a] sm:$0xff]
  %v10363 = vld [vmem:[%s5576 + $0x25a] sm:$0xff]
  %v10364 = vld [vmem:[%s5576 + $0x262] sm:$0xff]
  %v10365 = vld [vmem:[%s5576 + $0x272] sm:$0xff]
  %v10366 = vld [vmem:[%s5576 + $0x27a] sm:$0xff]
  %v10367 = vld [vmem:[%s5576 + $0x28a] sm:$0xff]
  %v10368 = vld [vmem:[%s5576 + $0x292] sm:$0xff]
  %v10369 = vld [vmem:[%s5576 + $0x2a2] sm:$0xff]
  %v10370 = vld [vmem:[%s5576 + $0x2aa] sm:$0xff]
  %v10371 = vld [vmem:[%s5576 + $0x2ba] sm:$0xff]
  %v10372 = vld [vmem:[%s5576 + $0x2c2] sm:$0xff]
  %v10373 = vld [vmem:[%s5576 + $0x2d2] sm:$0xff]
  %v10374 = vld [vmem:[%s5576 + $0x2da] sm:$0xff]
  %v10375 = vld [vmem:[%s5576 + $0x2ea] sm:$0xff]
  %v10376 = vld [vmem:[%s5576 + $0x2f2] sm:$0xff]
  %v10377 = vld [vmem:[%s5576 + $0x302] sm:$0xff]
  %v10378 = vld [vmem:[%s5576 + $0x30a] sm:$0xff]
  %v10379 = vld [vmem:[%s5576 + $0x31a] sm:$0xff]
  %v10380 = vld [vmem:[%s5576 + $0x322] sm:$0xff]
  %v10381 = vpack.c.bf16 %v10318, %v10317
  %v10382 = vpack.c.bf16 %v10320, %v10319
  %v10383 = vpack.c.bf16 %v10322, %v10321
  %v10384 = vpack.c.bf16 %v10324, %v10323
  %v10385 = vpack.c.bf16 %v10326, %v10325
  %v10386 = vpack.c.bf16 %v10328, %v10327
  %v10387 = vpack.c.bf16 %v10330, %v10329
  %v10388 = vpack.c.bf16 %v10332, %v10331
  %v10389 = vpack.c.bf16 %v10334, %v10333
  %v10390 = vpack.c.bf16 %v10336, %v10335
  %v10391 = vpack.c.bf16 %v10338, %v10337
  %v10392 = vpack.c.bf16 %v10340, %v10339
  %v10393 = vpack.c.bf16 %v10342, %v10341
  %v10394 = vpack.c.bf16 %v10344, %v10343
  %v10395 = vpack.c.bf16 %v10346, %v10345
  %v10396 = vpack.c.bf16 %v10348, %v10347
  %v10397 = vpack.c.bf16 %v10350, %v10349
  %v10398 = vpack.c.bf16 %v10352, %v10351
  %v10399 = vpack.c.bf16 %v10354, %v10353
  %v10400 = vpack.c.bf16 %v10356, %v10355
  %v10401 = vpack.c.bf16 %v10358, %v10357
  %v10402 = vpack.c.bf16 %v10360, %v10359
  %v10403 = vpack.c.bf16 %v10362, %v10361
  %v10404 = vpack.c.bf16 %v10364, %v10363
  %v10405 = vpack.c.bf16 %v10366, %v10365
  %v10406 = vpack.c.bf16 %v10368, %v10367
  %v10407 = vpack.c.bf16 %v10370, %v10369
  %v10408 = vpack.c.bf16 %v10372, %v10371
  %v10409 = vpack.c.bf16 %v10374, %v10373
  %v10410 = vpack.c.bf16 %v10376, %v10375
  %v10411 = vpack.c.bf16 %v10378, %v10377
  %v10412 = vpack.c.bf16 %v10380, %v10379
  %v10413 = vld [vmem:[%s4 + $0x200] sm:$0xf]
  %v10414 = vld [vmem:[%s4 + $0x204] sm:$0xf]
  %v10415 = vld [vmem:[%s4 + $0x208] sm:$0xf]
  %v10416 = vld [vmem:[%s4 + $0x20c] sm:$0xf]
  %v10417 = vld [vmem:[%s4 + $0x210] sm:$0xf]
  %v10418 = vld [vmem:[%s4 + $0x214] sm:$0xf]
  %v10419 = vld [vmem:[%s4 + $0x218] sm:$0xf]
  %v10420 = vld [vmem:[%s4 + $0x21c] sm:$0xf]
  %v10421 = vld [vmem:[%s4 + $0x220] sm:$0xf]
  %v10422 = vld [vmem:[%s4 + $0x224] sm:$0xf]
  %v10423 = vld [vmem:[%s4 + $0x228] sm:$0xf]
  %v10424 = vld [vmem:[%s4 + $0x22c] sm:$0xf]
  %v10425 = vld [vmem:[%s4 + $0x230] sm:$0xf]
  %v10426 = vld [vmem:[%s4 + $0x234] sm:$0xf]
  %v10427 = vld [vmem:[%s4 + $0x238] sm:$0xf]
  %v10428 = vld [vmem:[%s4 + $0x23c] sm:$0xf]
  %v10445 = vunpack.c.l.b16 %v10413
  %v10446 = vunpack.c.l.b16 %v10414
  %v10447 = vunpack.c.l.b16 %v10415
  %v10448 = vunpack.c.l.b16 %v10416
  %v10449 = vunpack.c.l.b16 %v10417
  %v10450 = vunpack.c.l.b16 %v10418
  %v10451 = vunpack.c.l.b16 %v10419
  %v10452 = vunpack.c.l.b16 %v10420
  %v10453 = vunpack.c.l.b16 %v10421
  %v10454 = vunpack.c.l.b16 %v10422
  %v10455 = vunpack.c.l.b16 %v10423
  %v10456 = vunpack.c.l.b16 %v10424
  %v10457 = vunpack.c.l.b16 %v10425
  %v10458 = vunpack.c.l.b16 %v10426
  %v10459 = vunpack.c.l.b16 %v10427
  %v10460 = vunpack.c.l.b16 %v10428
  %v10461 = vpack.c.b16 %v10446, %v10445
  %v10462 = vpack.c.b16 %v10448, %v10447
  %v10463 = vpack.c.b16 %v10450, %v10449
  %v10464 = vpack.c.b16 %v10452, %v10451
  %v10465 = vpack.c.b16 %v10454, %v10453
  %v10466 = vpack.c.b16 %v10456, %v10455
  %v10467 = vpack.c.b16 %v10458, %v10457
  %v10468 = vpack.c.b16 %v10460, %v10459
  %10477 = vmatpush.bf16.msra.mxu0 %v10468
  %10478 = vmatpush.bf16.msra.mxu0 %v10467
  %10479 = vmatpush.bf16.msra.mxu0 %v10466
  %10480 = vmatpush.bf16.msra.mxu0 %v10465
  %10481 = vmatpush.bf16.msra.mxu0 %v10464
  %10482 = vmatpush.bf16.msra.mxu0 %v10463
  %10483 = vmatpush.bf16.msra.mxu0 %v10462
  %10484 = vmatpush.bf16.msra.mxu0 %v10461
  %10485 = vmatmul.bf16.gmra.mxu0 %v10381
  %v10486 = vpop.f32.mrf.mxu0
  %v10487 = vadd.f32 0.0, %v10486
  %v10488 = vpop.f32.mrf.mxu0
  %v10489 = vadd.f32 0.0, %v10488
  %10490 = vmatmul.bf16.gmra.mxu0 %v10382
  %v10491 = vpop.f32.mrf.mxu0
  %v10492 = vadd.f32 0.0, %v10491
  %v10493 = vpop.f32.mrf.mxu0
  %v10494 = vadd.f32 0.0, %v10493
  %10495 = vmatmul.bf16.gmra.mxu0 %v10383
  %v10496 = vpop.f32.mrf.mxu0
  %v10497 = vadd.f32 0.0, %v10496
  %v10498 = vpop.f32.mrf.mxu0
  %v10499 = vadd.f32 0.0, %v10498
  %10500 = vmatmul.bf16.gmra.mxu0 %v10384
  %v10501 = vpop.f32.mrf.mxu0
  %v10502 = vadd.f32 0.0, %v10501
  %v10503 = vpop.f32.mrf.mxu0
  %v10504 = vadd.f32 0.0, %v10503
  %10505 = vmatmul.bf16.gmra.mxu0 %v10385
  %v10506 = vpop.f32.mrf.mxu0
  %v10507 = vadd.f32 0.0, %v10506
  %v10508 = vpop.f32.mrf.mxu0
  %v10509 = vadd.f32 0.0, %v10508
  %10510 = vmatmul.bf16.gmra.mxu0 %v10386
  %v10511 = vpop.f32.mrf.mxu0
  %v10512 = vadd.f32 0.0, %v10511
  %v10513 = vpop.f32.mrf.mxu0
  %v10514 = vadd.f32 0.0, %v10513
  %10515 = vmatmul.bf16.gmra.mxu0 %v10387
  %v10516 = vpop.f32.mrf.mxu0
  %v10517 = vadd.f32 0.0, %v10516
  %v10518 = vpop.f32.mrf.mxu0
  %v10519 = vadd.f32 0.0, %v10518
  %10520 = vmatmul.bf16.gmra.mxu0 %v10388
  %v10521 = vpop.f32.mrf.mxu0
  %v10522 = vadd.f32 0.0, %v10521
  %v10523 = vpop.f32.mrf.mxu0
  %v10524 = vadd.f32 0.0, %v10523
  %10525 = vmatmul.bf16.gmra.mxu0 %v10389
  %v10526 = vpop.f32.mrf.mxu0
  %v10527 = vadd.f32 0.0, %v10526
  %v10528 = vpop.f32.mrf.mxu0
  %v10529 = vadd.f32 0.0, %v10528
  %10530 = vmatmul.bf16.gmra.mxu0 %v10390
  %v10531 = vpop.f32.mrf.mxu0
  %v10532 = vadd.f32 0.0, %v10531
  %v10533 = vpop.f32.mrf.mxu0
  %v10534 = vadd.f32 0.0, %v10533
  %10535 = vmatmul.bf16.gmra.mxu0 %v10391
  %v10536 = vpop.f32.mrf.mxu0
  %v10537 = vadd.f32 0.0, %v10536
  %v10538 = vpop.f32.mrf.mxu0
  %v10539 = vadd.f32 0.0, %v10538
  %10540 = vmatmul.bf16.gmra.mxu0 %v10392
  %v10541 = vpop.f32.mrf.mxu0
  %v10542 = vadd.f32 0.0, %v10541
  %v10543 = vpop.f32.mrf.mxu0
  %v10544 = vadd.f32 0.0, %v10543
  %10545 = vmatmul.bf16.gmra.mxu0 %v10393
  %v10546 = vpop.f32.mrf.mxu0
  %v10547 = vadd.f32 0.0, %v10546
  %v10548 = vpop.f32.mrf.mxu0
  %v10549 = vadd.f32 0.0, %v10548
  %10550 = vmatmul.bf16.gmra.mxu0 %v10394
  %v10551 = vpop.f32.mrf.mxu0
  %v10552 = vadd.f32 0.0, %v10551
  %v10553 = vpop.f32.mrf.mxu0
  %v10554 = vadd.f32 0.0, %v10553
  %10555 = vmatmul.bf16.gmra.mxu0 %v10395
  %v10556 = vpop.f32.mrf.mxu0
  %v10557 = vadd.f32 0.0, %v10556
  %v10558 = vpop.f32.mrf.mxu0
  %v10559 = vadd.f32 0.0, %v10558
  %10560 = vmatmul.bf16.gmra.mxu0 %v10396
  %v10561 = vpop.f32.mrf.mxu0
  %v10562 = vadd.f32 0.0, %v10561
  %v10563 = vpop.f32.mrf.mxu0
  %v10564 = vadd.f32 0.0, %v10563
  %10565 = vmatmul.bf16.gmra.mxu0 %v10397
  %v10566 = vpop.f32.mrf.mxu0
  %v10567 = vadd.f32 0.0, %v10566
  %v10568 = vpop.f32.mrf.mxu0
  %v10569 = vadd.f32 0.0, %v10568
  %10570 = vmatmul.bf16.gmra.mxu0 %v10398
  %v10571 = vpop.f32.mrf.mxu0
  %v10572 = vadd.f32 0.0, %v10571
  %v10573 = vpop.f32.mrf.mxu0
  %v10574 = vadd.f32 0.0, %v10573
  %10575 = vmatmul.bf16.gmra.mxu0 %v10399
  %v10576 = vpop.f32.mrf.mxu0
  %v10577 = vadd.f32 0.0, %v10576
  %v10578 = vpop.f32.mrf.mxu0
  %v10579 = vadd.f32 0.0, %v10578
  %10580 = vmatmul.bf16.gmra.mxu0 %v10400
  %v10581 = vpop.f32.mrf.mxu0
  %v10582 = vadd.f32 0.0, %v10581
  %v10583 = vpop.f32.mrf.mxu0
  %v10584 = vadd.f32 0.0, %v10583
  %10585 = vmatmul.bf16.gmra.mxu0 %v10401
  %v10586 = vpop.f32.mrf.mxu0
  %v10587 = vadd.f32 0.0, %v10586
  %v10588 = vpop.f32.mrf.mxu0
  %v10589 = vadd.f32 0.0, %v10588
  %10590 = vmatmul.bf16.gmra.mxu0 %v10402
  %v10591 = vpop.f32.mrf.mxu0
  %v10592 = vadd.f32 0.0, %v10591
  %v10593 = vpop.f32.mrf.mxu0
  %v10594 = vadd.f32 0.0, %v10593
  %10595 = vmatmul.bf16.gmra.mxu0 %v10403
  %v10596 = vpop.f32.mrf.mxu0
  %v10597 = vadd.f32 0.0, %v10596
  %v10598 = vpop.f32.mrf.mxu0
  %v10599 = vadd.f32 0.0, %v10598
  %10600 = vmatmul.bf16.gmra.mxu0 %v10404
  %v10601 = vpop.f32.mrf.mxu0
  %v10602 = vadd.f32 0.0, %v10601
  %v10603 = vpop.f32.mrf.mxu0
  %v10604 = vadd.f32 0.0, %v10603
  %10605 = vmatmul.bf16.gmra.mxu0 %v10405
  %v10606 = vpop.f32.mrf.mxu0
  %v10607 = vadd.f32 0.0, %v10606
  %v10608 = vpop.f32.mrf.mxu0
  %v10609 = vadd.f32 0.0, %v10608
  %10610 = vmatmul.bf16.gmra.mxu0 %v10406
  %v10611 = vpop.f32.mrf.mxu0
  %v10612 = vadd.f32 0.0, %v10611
  %v10613 = vpop.f32.mrf.mxu0
  %v10614 = vadd.f32 0.0, %v10613
  %10615 = vmatmul.bf16.gmra.mxu0 %v10407
  %v10616 = vpop.f32.mrf.mxu0
  %v10617 = vadd.f32 0.0, %v10616
  %v10618 = vpop.f32.mrf.mxu0
  %v10619 = vadd.f32 0.0, %v10618
  %10620 = vmatmul.bf16.gmra.mxu0 %v10408
  %v10621 = vpop.f32.mrf.mxu0
  %v10622 = vadd.f32 0.0, %v10621
  %v10623 = vpop.f32.mrf.mxu0
  %v10624 = vadd.f32 0.0, %v10623
  %10625 = vmatmul.bf16.gmra.mxu0 %v10409
  %v10626 = vpop.f32.mrf.mxu0
  %v10627 = vadd.f32 0.0, %v10626
  %v10628 = vpop.f32.mrf.mxu0
  %v10629 = vadd.f32 0.0, %v10628
  %10630 = vmatmul.bf16.gmra.mxu0 %v10410
  %v10631 = vpop.f32.mrf.mxu0
  %v10632 = vadd.f32 0.0, %v10631
  %v10633 = vpop.f32.mrf.mxu0
  %v10634 = vadd.f32 0.0, %v10633
  %10635 = vmatmul.bf16.gmra.mxu0 %v10411
  %v10636 = vpop.f32.mrf.mxu0
  %v10637 = vadd.f32 0.0, %v10636
  %v10638 = vpop.f32.mrf.mxu0
  %v10639 = vadd.f32 0.0, %v10638
  %10640 = vmatmul.bf16.gmra.mxu0 %v10412
  %v10641 = vpop.f32.mrf.mxu0
  %v10642 = vadd.f32 0.0, %v10641
  %v10643 = vpop.f32.mrf.mxu0
  %v10644 = vadd.f32 0.0, %v10643
  %10645 = vdwg.mxu0
  %v10646 = vadd.f32 %v10253, %v10487
  %v10647 = vadd.f32 %v10254, %v10489
  %v10648 = vadd.f32 %v10255, %v10492
  %v10649 = vadd.f32 %v10256, %v10494
  %v10650 = vadd.f32 %v10257, %v10497
  %v10651 = vadd.f32 %v10258, %v10499
  %v10652 = vadd.f32 %v10259, %v10502
  %v10653 = vadd.f32 %v10260, %v10504
  %v10654 = vadd.f32 %v10261, %v10507
  %v10655 = vadd.f32 %v10262, %v10509
  %v10656 = vadd.f32 %v10263, %v10512
  %v10657 = vadd.f32 %v10264, %v10514
  %v10658 = vadd.f32 %v10265, %v10517
  %v10659 = vadd.f32 %v10266, %v10519
  %v10660 = vadd.f32 %v10267, %v10522
  %v10661 = vadd.f32 %v10268, %v10524
  %v10662 = vadd.f32 %v10269, %v10527
  %v10663 = vadd.f32 %v10270, %v10529
  %v10664 = vadd.f32 %v10271, %v10532
  %v10665 = vadd.f32 %v10272, %v10534
  %v10666 = vadd.f32 %v10273, %v10537
  %v10667 = vadd.f32 %v10274, %v10539
  %v10668 = vadd.f32 %v10275, %v10542
  %v10669 = vadd.f32 %v10276, %v10544
  %v10670 = vadd.f32 %v10277, %v10547
  %v10671 = vadd.f32 %v10278, %v10549
  %v10672 = vadd.f32 %v10279, %v10552
  %v10673 = vadd.f32 %v10280, %v10554
  %v10674 = vadd.f32 %v10281, %v10557
  %v10675 = vadd.f32 %v10282, %v10559
  %v10676 = vadd.f32 %v10283, %v10562
  %v10677 = vadd.f32 %v10284, %v10564
  %v10678 = vadd.f32 %v10285, %v10567
  %v10679 = vadd.f32 %v10286, %v10569
  %v10680 = vadd.f32 %v10287, %v10572
  %v10681 = vadd.f32 %v10288, %v10574
  %v10682 = vadd.f32 %v10289, %v10577
  %v10683 = vadd.f32 %v10290, %v10579
  %v10684 = vadd.f32 %v10291, %v10582
  %v10685 = vadd.f32 %v10292, %v10584
  %v10686 = vadd.f32 %v10293, %v10587
  %v10687 = vadd.f32 %v10294, %v10589
  %v10688 = vadd.f32 %v10295, %v10592
  %v10689 = vadd.f32 %v10296, %v10594
  %v10690 = vadd.f32 %v10297, %v10597
  %v10691 = vadd.f32 %v10298, %v10599
  %v10692 = vadd.f32 %v10299, %v10602
  %v10693 = vadd.f32 %v10300, %v10604
  %v10694 = vadd.f32 %v10301, %v10607
  %v10695 = vadd.f32 %v10302, %v10609
  %v10696 = vadd.f32 %v10303, %v10612
  %v10697 = vadd.f32 %v10304, %v10614
  %v10698 = vadd.f32 %v10305, %v10617
  %v10699 = vadd.f32 %v10306, %v10619
  %v10700 = vadd.f32 %v10307, %v10622
  %v10701 = vadd.f32 %v10308, %v10624
  %v10702 = vadd.f32 %v10309, %v10627
  %v10703 = vadd.f32 %v10310, %v10629
  %v10704 = vadd.f32 %v10311, %v10632
  %v10705 = vadd.f32 %v10312, %v10634
  %v10706 = vadd.f32 %v10313, %v10637
  %v10707 = vadd.f32 %v10314, %v10639
  %v10708 = vadd.f32 %v10315, %v10642
  %v10709 = vadd.f32 %v10316, %v10644
  %v10710 = vadd.f32 %v10646, %v10647
  %v10711 = vadd.f32 %v10710, %v10648
  %v10712 = vadd.f32 %v10711, %v10649
  %v10713 = vadd.f32 %v10712, %v10650
  %v10714 = vadd.f32 %v10713, %v10651
  %v10715 = vadd.f32 %v10714, %v10652
  %v10716 = vadd.f32 %v10715, %v10653
  %v10717 = vadd.f32 %v10716, %v10654
  %v10718 = vadd.f32 %v10717, %v10655
  %v10719 = vadd.f32 %v10718, %v10656
  %v10720 = vadd.f32 %v10719, %v10657
  %v10721 = vadd.f32 %v10720, %v10658
  %v10722 = vadd.f32 %v10721, %v10659
  %v10723 = vadd.f32 %v10722, %v10660
  %v10724 = vadd.f32 %v10723, %v10661
  %v10725 = vadd.f32 %v10724, %v10662
  %v10726 = vadd.f32 %v10725, %v10663
  %v10727 = vadd.f32 %v10726, %v10664
  %v10728 = vadd.f32 %v10727, %v10665
  %v10729 = vadd.f32 %v10728, %v10666
  %v10730 = vadd.f32 %v10729, %v10667
  %v10731 = vadd.f32 %v10730, %v10668
  %v10732 = vadd.f32 %v10731, %v10669
  %v10733 = vadd.f32 %v10732, %v10670
  %v10734 = vadd.f32 %v10733, %v10671
  %v10735 = vadd.f32 %v10734, %v10672
  %v10736 = vadd.f32 %v10735, %v10673
  %v10737 = vadd.f32 %v10736, %v10674
  %v10738 = vadd.f32 %v10737, %v10675
  %v10739 = vadd.f32 %v10738, %v10676
  %v10740 = vadd.f32 %v10739, %v10677
  %v10741 = vadd.f32 %v10740, %v10678
  %v10742 = vadd.f32 %v10741, %v10679
  %v10743 = vadd.f32 %v10742, %v10680
  %v10744 = vadd.f32 %v10743, %v10681
  %v10745 = vadd.f32 %v10744, %v10682
  %v10746 = vadd.f32 %v10745, %v10683
  %v10747 = vadd.f32 %v10746, %v10684
  %v10748 = vadd.f32 %v10747, %v10685
  %v10749 = vadd.f32 %v10748, %v10686
  %v10750 = vadd.f32 %v10749, %v10687
  %v10751 = vadd.f32 %v10750, %v10688
  %v10752 = vadd.f32 %v10751, %v10689
  %v10753 = vadd.f32 %v10752, %v10690
  %v10754 = vadd.f32 %v10753, %v10691
  %v10755 = vadd.f32 %v10754, %v10692
  %v10756 = vadd.f32 %v10755, %v10693
  %v10757 = vadd.f32 %v10756, %v10694
  %v10758 = vadd.f32 %v10757, %v10695
  %v10759 = vadd.f32 %v10758, %v10696
  %v10760 = vadd.f32 %v10759, %v10697
  %v10761 = vadd.f32 %v10760, %v10698
  %v10762 = vadd.f32 %v10761, %v10699
  %v10763 = vadd.f32 %v10762, %v10700
  %v10764 = vadd.f32 %v10763, %v10701
  %v10765 = vadd.f32 %v10764, %v10702
  %v10766 = vadd.f32 %v10765, %v10703
  %v10767 = vadd.f32 %v10766, %v10704
  %v10768 = vadd.f32 %v10767, %v10705
  %v10769 = vadd.f32 %v10768, %v10706
  %v10770 = vadd.f32 %v10769, %v10707
  %v10771 = vadd.f32 %v10770, %v10708
  %v10772 = vadd.f32 %v10771, %v10709
  %v10773 = vrot.slane %v10772, 4
  %v10774 = vadd.f32 %v10772, %v10773
  %v10775 = vrot.slane %v10774, 2
  %v10776 = vadd.f32 %v10774, %v10775
  %v10777 = vrot.slane %v10776, 1
  %v10778 = vadd.f32 %v10776, %v10777
  %v10779 = vmul.f32 %v10778, %v6831
  %v10780 = vsub.f32 %v10646, %v10779
  %v10781 = vsub.f32 %v10647, %v10779
  %v10782 = vsub.f32 %v10648, %v10779
  %v10783 = vsub.f32 %v10649, %v10779
  %v10784 = vsub.f32 %v10650, %v10779
  %v10785 = vsub.f32 %v10651, %v10779
  %v10786 = vsub.f32 %v10652, %v10779
  %v10787 = vsub.f32 %v10653, %v10779
  %v10788 = vsub.f32 %v10654, %v10779
  %v10789 = vsub.f32 %v10655, %v10779
  %v10790 = vsub.f32 %v10656, %v10779
  %v10791 = vsub.f32 %v10657, %v10779
  %v10792 = vsub.f32 %v10658, %v10779
  %v10793 = vsub.f32 %v10659, %v10779
  %v10794 = vsub.f32 %v10660, %v10779
  %v10795 = vsub.f32 %v10661, %v10779
  %v10796 = vsub.f32 %v10662, %v10779
  %v10797 = vsub.f32 %v10663, %v10779
  %v10798 = vsub.f32 %v10664, %v10779
  %v10799 = vsub.f32 %v10665, %v10779
  %v10800 = vsub.f32 %v10666, %v10779
  %v10801 = vsub.f32 %v10667, %v10779
  %v10802 = vsub.f32 %v10668, %v10779
  %v10803 = vsub.f32 %v10669, %v10779
  %v10804 = vsub.f32 %v10670, %v10779
  %v10805 = vsub.f32 %v10671, %v10779
  %v10806 = vsub.f32 %v10672, %v10779
  %v10807 = vsub.f32 %v10673, %v10779
  %v10808 = vsub.f32 %v10674, %v10779
  %v10809 = vsub.f32 %v10675, %v10779
  %v10810 = vsub.f32 %v10676, %v10779
  %v10811 = vsub.f32 %v10677, %v10779
  %v10812 = vsub.f32 %v10678, %v10779
  %v10813 = vsub.f32 %v10679, %v10779
  %v10814 = vsub.f32 %v10680, %v10779
  %v10815 = vsub.f32 %v10681, %v10779
  %v10816 = vsub.f32 %v10682, %v10779
  %v10817 = vsub.f32 %v10683, %v10779
  %v10818 = vsub.f32 %v10684, %v10779
  %v10819 = vsub.f32 %v10685, %v10779
  %v10820 = vsub.f32 %v10686, %v10779
  %v10821 = vsub.f32 %v10687, %v10779
  %v10822 = vsub.f32 %v10688, %v10779
  %v10823 = vsub.f32 %v10689, %v10779
  %v10824 = vsub.f32 %v10690, %v10779
  %v10825 = vsub.f32 %v10691, %v10779
  %v10826 = vsub.f32 %v10692, %v10779
  %v10827 = vsub.f32 %v10693, %v10779
  %v10828 = vsub.f32 %v10694, %v10779
  %v10829 = vsub.f32 %v10695, %v10779
  %v10830 = vsub.f32 %v10696, %v10779
  %v10831 = vsub.f32 %v10697, %v10779
  %v10832 = vsub.f32 %v10698, %v10779
  %v10833 = vsub.f32 %v10699, %v10779
  %v10834 = vsub.f32 %v10700, %v10779
  %v10835 = vsub.f32 %v10701, %v10779
  %v10836 = vsub.f32 %v10702, %v10779
  %v10837 = vsub.f32 %v10703, %v10779
  %v10838 = vsub.f32 %v10704, %v10779
  %v10839 = vsub.f32 %v10705, %v10779
  %v10840 = vsub.f32 %v10706, %v10779
  %v10841 = vsub.f32 %v10707, %v10779
  %v10842 = vsub.f32 %v10708, %v10779
  %v10843 = vsub.f32 %v10709, %v10779
  %v10844 = vmul.f32 %v10780, %v10780
  %v10845 = vmul.f32 %v10781, %v10781
  %v10846 = vmul.f32 %v10782, %v10782
  %v10847 = vmul.f32 %v10783, %v10783
  %v10848 = vmul.f32 %v10784, %v10784
  %v10849 = vmul.f32 %v10785, %v10785
  %v10850 = vmul.f32 %v10786, %v10786
  %v10851 = vmul.f32 %v10787, %v10787
  %v10852 = vmul.f32 %v10788, %v10788
  %v10853 = vmul.f32 %v10789, %v10789
  %v10854 = vmul.f32 %v10790, %v10790
  %v10855 = vmul.f32 %v10791, %v10791
  %v10856 = vmul.f32 %v10792, %v10792
  %v10857 = vmul.f32 %v10793, %v10793
  %v10858 = vmul.f32 %v10794, %v10794
  %v10859 = vmul.f32 %v10795, %v10795
  %v10860 = vmul.f32 %v10796, %v10796
  %v10861 = vmul.f32 %v10797, %v10797
  %v10862 = vmul.f32 %v10798, %v10798
  %v10863 = vmul.f32 %v10799, %v10799
  %v10864 = vmul.f32 %v10800, %v10800
  %v10865 = vmul.f32 %v10801, %v10801
  %v10866 = vmul.f32 %v10802, %v10802
  %v10867 = vmul.f32 %v10803, %v10803
  %v10868 = vmul.f32 %v10804, %v10804
  %v10869 = vmul.f32 %v10805, %v10805
  %v10870 = vmul.f32 %v10806, %v10806
  %v10871 = vmul.f32 %v10807, %v10807
  %v10872 = vmul.f32 %v10808, %v10808
  %v10873 = vmul.f32 %v10809, %v10809
  %v10874 = vmul.f32 %v10810, %v10810
  %v10875 = vmul.f32 %v10811, %v10811
  %v10876 = vmul.f32 %v10812, %v10812
  %v10877 = vmul.f32 %v10813, %v10813
  %v10878 = vmul.f32 %v10814, %v10814
  %v10879 = vmul.f32 %v10815, %v10815
  %v10880 = vmul.f32 %v10816, %v10816
  %v10881 = vmul.f32 %v10817, %v10817
  %v10882 = vmul.f32 %v10818, %v10818
  %v10883 = vmul.f32 %v10819, %v10819
  %v10884 = vmul.f32 %v10820, %v10820
  %v10885 = vmul.f32 %v10821, %v10821
  %v10886 = vmul.f32 %v10822, %v10822
  %v10887 = vmul.f32 %v10823, %v10823
  %v10888 = vmul.f32 %v10824, %v10824
  %v10889 = vmul.f32 %v10825, %v10825
  %v10890 = vmul.f32 %v10826, %v10826
  %v10891 = vmul.f32 %v10827, %v10827
  %v10892 = vmul.f32 %v10828, %v10828
  %v10893 = vmul.f32 %v10829, %v10829
  %v10894 = vmul.f32 %v10830, %v10830
  %v10895 = vmul.f32 %v10831, %v10831
  %v10896 = vmul.f32 %v10832, %v10832
  %v10897 = vmul.f32 %v10833, %v10833
  %v10898 = vmul.f32 %v10834, %v10834
  %v10899 = vmul.f32 %v10835, %v10835
  %v10900 = vmul.f32 %v10836, %v10836
  %v10901 = vmul.f32 %v10837, %v10837
  %v10902 = vmul.f32 %v10838, %v10838
  %v10903 = vmul.f32 %v10839, %v10839
  %v10904 = vmul.f32 %v10840, %v10840
  %v10905 = vmul.f32 %v10841, %v10841
  %v10906 = vmul.f32 %v10842, %v10842
  %v10907 = vmul.f32 %v10843, %v10843
  %v10908 = vadd.f32 %v10844, %v10845
  %v10909 = vadd.f32 %v10908, %v10846
  %v10910 = vadd.f32 %v10909, %v10847
  %v10911 = vadd.f32 %v10910, %v10848
  %v10912 = vadd.f32 %v10911, %v10849
  %v10913 = vadd.f32 %v10912, %v10850
  %v10914 = vadd.f32 %v10913, %v10851
  %v10915 = vadd.f32 %v10914, %v10852
  %v10916 = vadd.f32 %v10915, %v10853
  %v10917 = vadd.f32 %v10916, %v10854
  %v10918 = vadd.f32 %v10917, %v10855
  %v10919 = vadd.f32 %v10918, %v10856
  %v10920 = vadd.f32 %v10919, %v10857
  %v10921 = vadd.f32 %v10920, %v10858
  %v10922 = vadd.f32 %v10921, %v10859
  %v10923 = vadd.f32 %v10922, %v10860
  %v10924 = vadd.f32 %v10923, %v10861
  %v10925 = vadd.f32 %v10924, %v10862
  %v10926 = vadd.f32 %v10925, %v10863
  %v10927 = vadd.f32 %v10926, %v10864
  %v10928 = vadd.f32 %v10927, %v10865
  %v10929 = vadd.f32 %v10928, %v10866
  %v10930 = vadd.f32 %v10929, %v10867
  %v10931 = vadd.f32 %v10930, %v10868
  %v10932 = vadd.f32 %v10931, %v10869
  %v10933 = vadd.f32 %v10932, %v10870
  %v10934 = vadd.f32 %v10933, %v10871
  %v10935 = vadd.f32 %v10934, %v10872
  %v10936 = vadd.f32 %v10935, %v10873
  %v10937 = vadd.f32 %v10936, %v10874
  %v10938 = vadd.f32 %v10937, %v10875
  %v10939 = vadd.f32 %v10938, %v10876
  %v10940 = vadd.f32 %v10939, %v10877
  %v10941 = vadd.f32 %v10940, %v10878
  %v10942 = vadd.f32 %v10941, %v10879
  %v10943 = vadd.f32 %v10942, %v10880
  %v10944 = vadd.f32 %v10943, %v10881
  %v10945 = vadd.f32 %v10944, %v10882
  %v10946 = vadd.f32 %v10945, %v10883
  %v10947 = vadd.f32 %v10946, %v10884
  %v10948 = vadd.f32 %v10947, %v10885
  %v10949 = vadd.f32 %v10948, %v10886
  %v10950 = vadd.f32 %v10949, %v10887
  %v10951 = vadd.f32 %v10950, %v10888
  %v10952 = vadd.f32 %v10951, %v10889
  %v10953 = vadd.f32 %v10952, %v10890
  %v10954 = vadd.f32 %v10953, %v10891
  %v10955 = vadd.f32 %v10954, %v10892
  %v10956 = vadd.f32 %v10955, %v10893
  %v10957 = vadd.f32 %v10956, %v10894
  %v10958 = vadd.f32 %v10957, %v10895
  %v10959 = vadd.f32 %v10958, %v10896
  %v10960 = vadd.f32 %v10959, %v10897
  %v10961 = vadd.f32 %v10960, %v10898
  %v10962 = vadd.f32 %v10961, %v10899
  %v10963 = vadd.f32 %v10962, %v10900
  %v10964 = vadd.f32 %v10963, %v10901
  %v10965 = vadd.f32 %v10964, %v10902
  %v10966 = vadd.f32 %v10965, %v10903
  %v10967 = vadd.f32 %v10966, %v10904
  %v10968 = vadd.f32 %v10967, %v10905
  %v10969 = vadd.f32 %v10968, %v10906
  %v10970 = vadd.f32 %v10969, %v10907
  %v10971 = vrot.slane %v10970, 4
  %v10972 = vadd.f32 %v10970, %v10971
  %v10973 = vrot.slane %v10972, 2
  %v10974 = vadd.f32 %v10972, %v10973
  %v10975 = vrot.slane %v10974, 1
  %v10976 = vadd.f32 %v10974, %v10975
  %v10977 = vmul.f32 %v10976, %v6831
  %v10978 = vadd.f32 %v10977, 1e-05
  %v10979 = vrsqrt.pop %v10978
  %v10980 = vmul.f32 %v10979, %v10978
  %v10981 = vmul.f32 %v10980, %v10979
  %v10982 = vmul.f32 0.5, %v10981
  %v10983 = vsub.f32 1.5, %v10982
  %v10984 = vmul.f32 %v10979, %v10983
  %vm10985 = vweird.f32 %v10978
  %vm10986 = vweird.f32 %v10979
  %vm10987 = vmor %vm10985, %vm10986
  %v10988 = vsel %vm10987, %v10979, %v10984
  %v10989 = vmul.f32 %v27, %v10988
  %v10990 = vperm.slane %v10989, 0
  %v10991 = vmul.f32 %v10780, %v10990
  %v10992 = vmul.f32 %v10781, %v10990
  %v10993 = vmul.f32 %v10782, %v10990
  %v10994 = vmul.f32 %v10783, %v10990
  %v10995 = vmul.f32 %v10784, %v10990
  %v10996 = vmul.f32 %v10785, %v10990
  %v10997 = vmul.f32 %v10786, %v10990
  %v10998 = vmul.f32 %v10787, %v10990
  %v10999 = vmul.f32 %v10788, %v10990
  %v11000 = vmul.f32 %v10789, %v10990
  %v11001 = vmul.f32 %v10790, %v10990
  %v11002 = vmul.f32 %v10791, %v10990
  %v11003 = vmul.f32 %v10792, %v10990
  %v11004 = vmul.f32 %v10793, %v10990
  %v11005 = vmul.f32 %v10794, %v10990
  %v11006 = vmul.f32 %v10795, %v10990
  %v11007 = vmul.f32 %v10796, %v10990
  %v11008 = vmul.f32 %v10797, %v10990
  %v11009 = vmul.f32 %v10798, %v10990
  %v11010 = vmul.f32 %v10799, %v10990
  %v11011 = vmul.f32 %v10800, %v10990
  %v11012 = vmul.f32 %v10801, %v10990
  %v11013 = vmul.f32 %v10802, %v10990
  %v11014 = vmul.f32 %v10803, %v10990
  %v11015 = vmul.f32 %v10804, %v10990
  %v11016 = vmul.f32 %v10805, %v10990
  %v11017 = vmul.f32 %v10806, %v10990
  %v11018 = vmul.f32 %v10807, %v10990
  %v11019 = vmul.f32 %v10808, %v10990
  %v11020 = vmul.f32 %v10809, %v10990
  %v11021 = vmul.f32 %v10810, %v10990
  %v11022 = vmul.f32 %v10811, %v10990
  %v11023 = vmul.f32 %v10812, %v10990
  %v11024 = vmul.f32 %v10813, %v10990
  %v11025 = vmul.f32 %v10814, %v10990
  %v11026 = vmul.f32 %v10815, %v10990
  %v11027 = vmul.f32 %v10816, %v10990
  %v11028 = vmul.f32 %v10817, %v10990
  %v11029 = vmul.f32 %v10818, %v10990
  %v11030 = vmul.f32 %v10819, %v10990
  %v11031 = vmul.f32 %v10820, %v10990
  %v11032 = vmul.f32 %v10821, %v10990
  %v11033 = vmul.f32 %v10822, %v10990
  %v11034 = vmul.f32 %v10823, %v10990
  %v11035 = vmul.f32 %v10824, %v10990
  %v11036 = vmul.f32 %v10825, %v10990
  %v11037 = vmul.f32 %v10826, %v10990
  %v11038 = vmul.f32 %v10827, %v10990
  %v11039 = vmul.f32 %v10828, %v10990
  %v11040 = vmul.f32 %v10829, %v10990
  %v11041 = vmul.f32 %v10830, %v10990
  %v11042 = vmul.f32 %v10831, %v10990
  %v11043 = vmul.f32 %v10832, %v10990
  %v11044 = vmul.f32 %v10833, %v10990
  %v11045 = vmul.f32 %v10834, %v10990
  %v11046 = vmul.f32 %v10835, %v10990
  %v11047 = vmul.f32 %v10836, %v10990
  %v11048 = vmul.f32 %v10837, %v10990
  %v11049 = vmul.f32 %v10838, %v10990
  %v11050 = vmul.f32 %v10839, %v10990
  %v11051 = vmul.f32 %v10840, %v10990
  %v11052 = vmul.f32 %v10841, %v10990
  %v11053 = vmul.f32 %v10842, %v10990
  %v11054 = vmul.f32 %v10843, %v10990
  %v11055 = vperm.slane %v28, 0
  %v11056 = vadd.f32 %v10991, %v11055
  %v11057 = vadd.f32 %v10992, %v11055
  %v11058 = vadd.f32 %v10993, %v11055
  %v11059 = vadd.f32 %v10994, %v11055
  %v11060 = vadd.f32 %v10995, %v11055
  %v11061 = vadd.f32 %v10996, %v11055
  %v11062 = vadd.f32 %v10997, %v11055
  %v11063 = vadd.f32 %v10998, %v11055
  %v11064 = vadd.f32 %v10999, %v11055
  %v11065 = vadd.f32 %v11000, %v11055
  %v11066 = vadd.f32 %v11001, %v11055
  %v11067 = vadd.f32 %v11002, %v11055
  %v11068 = vadd.f32 %v11003, %v11055
  %v11069 = vadd.f32 %v11004, %v11055
  %v11070 = vadd.f32 %v11005, %v11055
  %v11071 = vadd.f32 %v11006, %v11055
  %v11072 = vadd.f32 %v11007, %v11055
  %v11073 = vadd.f32 %v11008, %v11055
  %v11074 = vadd.f32 %v11009, %v11055
  %v11075 = vadd.f32 %v11010, %v11055
  %v11076 = vadd.f32 %v11011, %v11055
  %v11077 = vadd.f32 %v11012, %v11055
  %v11078 = vadd.f32 %v11013, %v11055
  %v11079 = vadd.f32 %v11014, %v11055
  %v11080 = vadd.f32 %v11015, %v11055
  %v11081 = vadd.f32 %v11016, %v11055
  %v11082 = vadd.f32 %v11017, %v11055
  %v11083 = vadd.f32 %v11018, %v11055
  %v11084 = vadd.f32 %v11019, %v11055
  %v11085 = vadd.f32 %v11020, %v11055
  %v11086 = vadd.f32 %v11021, %v11055
  %v11087 = vadd.f32 %v11022, %v11055
  %v11088 = vadd.f32 %v11023, %v11055
  %v11089 = vadd.f32 %v11024, %v11055
  %v11090 = vadd.f32 %v11025, %v11055
  %v11091 = vadd.f32 %v11026, %v11055
  %v11092 = vadd.f32 %v11027, %v11055
  %v11093 = vadd.f32 %v11028, %v11055
  %v11094 = vadd.f32 %v11029, %v11055
  %v11095 = vadd.f32 %v11030, %v11055
  %v11096 = vadd.f32 %v11031, %v11055
  %v11097 = vadd.f32 %v11032, %v11055
  %v11098 = vadd.f32 %v11033, %v11055
  %v11099 = vadd.f32 %v11034, %v11055
  %v11100 = vadd.f32 %v11035, %v11055
  %v11101 = vadd.f32 %v11036, %v11055
  %v11102 = vadd.f32 %v11037, %v11055
  %v11103 = vadd.f32 %v11038, %v11055
  %v11104 = vadd.f32 %v11039, %v11055
  %v11105 = vadd.f32 %v11040, %v11055
  %v11106 = vadd.f32 %v11041, %v11055
  %v11107 = vadd.f32 %v11042, %v11055
  %v11108 = vadd.f32 %v11043, %v11055
  %v11109 = vadd.f32 %v11044, %v11055
  %v11110 = vadd.f32 %v11045, %v11055
  %v11111 = vadd.f32 %v11046, %v11055
  %v11112 = vadd.f32 %v11047, %v11055
  %v11113 = vadd.f32 %v11048, %v11055
  %v11114 = vadd.f32 %v11049, %v11055
  %v11115 = vadd.f32 %v11050, %v11055
  %v11116 = vadd.f32 %v11051, %v11055
  %v11117 = vadd.f32 %v11052, %v11055
  %v11118 = vadd.f32 %v11053, %v11055
  %v11119 = vadd.f32 %v11054, %v11055
  %v11120 = vmax.f32 %v11056, 0.0
  %v11121 = vmax.f32 %v11057, 0.0
  %v11122 = vmax.f32 %v11058, 0.0
  %v11123 = vmax.f32 %v11059, 0.0
  %v11124 = vmax.f32 %v11060, 0.0
  %v11125 = vmax.f32 %v11061, 0.0
  %v11126 = vmax.f32 %v11062, 0.0
  %v11127 = vmax.f32 %v11063, 0.0
  %v11128 = vmax.f32 %v11064, 0.0
  %v11129 = vmax.f32 %v11065, 0.0
  %v11130 = vmax.f32 %v11066, 0.0
  %v11131 = vmax.f32 %v11067, 0.0
  %v11132 = vmax.f32 %v11068, 0.0
  %v11133 = vmax.f32 %v11069, 0.0
  %v11134 = vmax.f32 %v11070, 0.0
  %v11135 = vmax.f32 %v11071, 0.0
  %v11136 = vmax.f32 %v11072, 0.0
  %v11137 = vmax.f32 %v11073, 0.0
  %v11138 = vmax.f32 %v11074, 0.0
  %v11139 = vmax.f32 %v11075, 0.0
  %v11140 = vmax.f32 %v11076, 0.0
  %v11141 = vmax.f32 %v11077, 0.0
  %v11142 = vmax.f32 %v11078, 0.0
  %v11143 = vmax.f32 %v11079, 0.0
  %v11144 = vmax.f32 %v11080, 0.0
  %v11145 = vmax.f32 %v11081, 0.0
  %v11146 = vmax.f32 %v11082, 0.0
  %v11147 = vmax.f32 %v11083, 0.0
  %v11148 = vmax.f32 %v11084, 0.0
  %v11149 = vmax.f32 %v11085, 0.0
  %v11150 = vmax.f32 %v11086, 0.0
  %v11151 = vmax.f32 %v11087, 0.0
  %v11152 = vmax.f32 %v11088, 0.0
  %v11153 = vmax.f32 %v11089, 0.0
  %v11154 = vmax.f32 %v11090, 0.0
  %v11155 = vmax.f32 %v11091, 0.0
  %v11156 = vmax.f32 %v11092, 0.0
  %v11157 = vmax.f32 %v11093, 0.0
  %v11158 = vmax.f32 %v11094, 0.0
  %v11159 = vmax.f32 %v11095, 0.0
  %v11160 = vmax.f32 %v11096, 0.0
  %v11161 = vmax.f32 %v11097, 0.0
  %v11162 = vmax.f32 %v11098, 0.0
  %v11163 = vmax.f32 %v11099, 0.0
  %v11164 = vmax.f32 %v11100, 0.0
  %v11165 = vmax.f32 %v11101, 0.0
  %v11166 = vmax.f32 %v11102, 0.0
  %v11167 = vmax.f32 %v11103, 0.0
  %v11168 = vmax.f32 %v11104, 0.0
  %v11169 = vmax.f32 %v11105, 0.0
  %v11170 = vmax.f32 %v11106, 0.0
  %v11171 = vmax.f32 %v11107, 0.0
  %v11172 = vmax.f32 %v11108, 0.0
  %v11173 = vmax.f32 %v11109, 0.0
  %v11174 = vmax.f32 %v11110, 0.0
  %v11175 = vmax.f32 %v11111, 0.0
  %v11176 = vmax.f32 %v11112, 0.0
  %v11177 = vmax.f32 %v11113, 0.0
  %v11178 = vmax.f32 %v11114, 0.0
  %v11179 = vmax.f32 %v11115, 0.0
  %v11180 = vmax.f32 %v11116, 0.0
  %v11181 = vmax.f32 %v11117, 0.0
  %v11182 = vmax.f32 %v11118, 0.0
  %v11183 = vmax.f32 %v11119, 0.0
  %vm11184 = vcmask 31744
  %11185 = vst.msk [vmem:[%s6] sm:$0xff] %vm11184, %v11120
  %11186 = vst.msk [vmem:[%s6 + $0x8] sm:$0xff] %vm11184, %v11121
  %11187 = vst.msk [vmem:[%s6 + $0x10] sm:$0xff] %vm11184, %v11122
  %11188 = vst.msk [vmem:[%s6 + $0x18] sm:$0xff] %vm11184, %v11123
  %11189 = vst.msk [vmem:[%s6 + $0x20] sm:$0xff] %vm11184, %v11124
  %11190 = vst.msk [vmem:[%s6 + $0x28] sm:$0xff] %vm11184, %v11125
  %11191 = vst.msk [vmem:[%s6 + $0x30] sm:$0xff] %vm11184, %v11126
  %11192 = vst.msk [vmem:[%s6 + $0x38] sm:$0xff] %vm11184, %v11127
  %11193 = vst.msk [vmem:[%s6 + $0x40] sm:$0xff] %vm11184, %v11128
  %11194 = vst.msk [vmem:[%s6 + $0x48] sm:$0xff] %vm11184, %v11129
  %11195 = vst.msk [vmem:[%s6 + $0x50] sm:$0xff] %vm11184, %v11130
  %11196 = vst.msk [vmem:[%s6 + $0x58] sm:$0xff] %vm11184, %v11131
  %11197 = vst.msk [vmem:[%s6 + $0x60] sm:$0xff] %vm11184, %v11132
  %11198 = vst.msk [vmem:[%s6 + $0x68] sm:$0xff] %vm11184, %v11133
  %11199 = vst.msk [vmem:[%s6 + $0x70] sm:$0xff] %vm11184, %v11134
  %11200 = vst.msk [vmem:[%s6 + $0x78] sm:$0xff] %vm11184, %v11135
  %11201 = vst.msk [vmem:[%s6 + $0x80] sm:$0xff] %vm11184, %v11136
  %11202 = vst.msk [vmem:[%s6 + $0x88] sm:$0xff] %vm11184, %v11137
  %11203 = vst.msk [vmem:[%s6 + $0x90] sm:$0xff] %vm11184, %v11138
  %11204 = vst.msk [vmem:[%s6 + $0x98] sm:$0xff] %vm11184, %v11139
  %11205 = vst.msk [vmem:[%s6 + $0xa0] sm:$0xff] %vm11184, %v11140
  %11206 = vst.msk [vmem:[%s6 + $0xa8] sm:$0xff] %vm11184, %v11141
  %11207 = vst.msk [vmem:[%s6 + $0xb0] sm:$0xff] %vm11184, %v11142
  %11208 = vst.msk [vmem:[%s6 + $0xb8] sm:$0xff] %vm11184, %v11143
  %11209 = vst.msk [vmem:[%s6 + $0xc0] sm:$0xff] %vm11184, %v11144
  %11210 = vst.msk [vmem:[%s6 + $0xc8] sm:$0xff] %vm11184, %v11145
  %11211 = vst.msk [vmem:[%s6 + $0xd0] sm:$0xff] %vm11184, %v11146
  %11212 = vst.msk [vmem:[%s6 + $0xd8] sm:$0xff] %vm11184, %v11147
  %11213 = vst.msk [vmem:[%s6 + $0xe0] sm:$0xff] %vm11184, %v11148
  %11214 = vst.msk [vmem:[%s6 + $0xe8] sm:$0xff] %vm11184, %v11149
  %11215 = vst.msk [vmem:[%s6 + $0xf0] sm:$0xff] %vm11184, %v11150
  %11216 = vst.msk [vmem:[%s6 + $0xf8] sm:$0xff] %vm11184, %v11151
  %11217 = vst.msk [vmem:[%s6 + $0x100] sm:$0xff] %vm11184, %v11152
  %11218 = vst.msk [vmem:[%s6 + $0x108] sm:$0xff] %vm11184, %v11153
  %11219 = vst.msk [vmem:[%s6 + $0x110] sm:$0xff] %vm11184, %v11154
  %11220 = vst.msk [vmem:[%s6 + $0x118] sm:$0xff] %vm11184, %v11155
  %11221 = vst.msk [vmem:[%s6 + $0x120] sm:$0xff] %vm11184, %v11156
  %11222 = vst.msk [vmem:[%s6 + $0x128] sm:$0xff] %vm11184, %v11157
  %11223 = vst.msk [vmem:[%s6 + $0x130] sm:$0xff] %vm11184, %v11158
  %11224 = vst.msk [vmem:[%s6 + $0x138] sm:$0xff] %vm11184, %v11159
  %11225 = vst.msk [vmem:[%s6 + $0x140] sm:$0xff] %vm11184, %v11160
  %11226 = vst.msk [vmem:[%s6 + $0x148] sm:$0xff] %vm11184, %v11161
  %11227 = vst.msk [vmem:[%s6 + $0x150] sm:$0xff] %vm11184, %v11162
  %11228 = vst.msk [vmem:[%s6 + $0x158] sm:$0xff] %vm11184, %v11163
  %11229 = vst.msk [vmem:[%s6 + $0x160] sm:$0xff] %vm11184, %v11164
  %11230 = vst.msk [vmem:[%s6 + $0x168] sm:$0xff] %vm11184, %v11165
  %11231 = vst.msk [vmem:[%s6 + $0x170] sm:$0xff] %vm11184, %v11166
  %11232 = vst.msk [vmem:[%s6 + $0x178] sm:$0xff] %vm11184, %v11167
  %11233 = vst.msk [vmem:[%s6 + $0x180] sm:$0xff] %vm11184, %v11168
  %11234 = vst.msk [vmem:[%s6 + $0x188] sm:$0xff] %vm11184, %v11169
  %11235 = vst.msk [vmem:[%s6 + $0x190] sm:$0xff] %vm11184, %v11170
  %11236 = vst.msk [vmem:[%s6 + $0x198] sm:$0xff] %vm11184, %v11171
  %11237 = vst.msk [vmem:[%s6 + $0x1a0] sm:$0xff] %vm11184, %v11172
  %11238 = vst.msk [vmem:[%s6 + $0x1a8] sm:$0xff] %vm11184, %v11173
  %11239 = vst.msk [vmem:[%s6 + $0x1b0] sm:$0xff] %vm11184, %v11174
  %11240 = vst.msk [vmem:[%s6 + $0x1b8] sm:$0xff] %vm11184, %v11175
  %11241 = vst.msk [vmem:[%s6 + $0x1c0] sm:$0xff] %vm11184, %v11176
  %11242 = vst.msk [vmem:[%s6 + $0x1c8] sm:$0xff] %vm11184, %v11177
  %11243 = vst.msk [vmem:[%s6 + $0x1d0] sm:$0xff] %vm11184, %v11178
  %11244 = vst.msk [vmem:[%s6 + $0x1d8] sm:$0xff] %vm11184, %v11179
  %11245 = vst.msk [vmem:[%s6 + $0x1e0] sm:$0xff] %vm11184, %v11180
  %11246 = vst.msk [vmem:[%s6 + $0x1e8] sm:$0xff] %vm11184, %v11181
  %11247 = vst.msk [vmem:[%s6 + $0x1f0] sm:$0xff] %vm11184, %v11182
  %11248 = vst.msk [vmem:[%s6 + $0x1f8] sm:$0xff] %vm11184, %v11183
  // Predicated region
  $region26: #{upsample_forward.1} parent=0 // pred_check
    _
  $region27: #{upsample_forward.1} parent=0 // pred_check_branch
    %11250 = sbr.rel (0) target = $region29
  $region28: #{upsample_forward.1} parent=0 // pred_region
    _
  $region29: #{upsample_forward.1} parent=0 // pred_fallthru
    _
  // Predicated region
  $region30: #{upsample_forward.1} parent=0 // pred_check
    _
  $region31: #{upsample_forward.1} parent=0 // pred_check_branch
    %11252 = sbr.rel (0) target = $region33
  $region32: #{upsample_forward.1} parent=0 // pred_region
    _
  $region33: #{upsample_forward.1} parent=0 // pred_fallthru
    _

</llo_original>
